<compile_context>
chip_gen: v7x
topology: tpu7x:2x2x1
jax: 0.10.0
libtpu: 0.0.40
codegen_flags: <defaults>
</compile_context>

<pallas_src>
import functools

import jax
import jax.numpy as jnp
from jax import lax
from jax.experimental import pallas as pl
from jax.experimental.pallas import tpu as pltpu

EPS = 1e-5
MXU_DTYPE = jnp.bfloat16   # matmul operand dtype (accumulation is always f32)


# ----------------------------------------------------------------------------
# Fused ASPP kernel for one (tile_h x W) spatial tile of one batch element.
#   branch 0    : 1x1 conv (+ folded BN bias) + ReLU        -> concat slab
#   branch 1..R : 3x3 dilated conv (9 taps from padded img) -> concat slab
#   projection  : ONE matmul over the (R+1)*Cout concat slab
#                 + pooled-branch contribution (pcpb, carries proj BN bias)
#                 + ReLU.  Dropout(0.5) is identity in eval mode.
# ----------------------------------------------------------------------------
def _fused_aspp_kernel(xpad_ref, w0_ref, b0_ref, wr_ref, br_ref, pw_ref,
                       pcpb_ref, o_ref, cat_ref, *, rates):
    _, tile_h, w, cout = o_ref.shape
    _, _hp, wp, cin = xpad_ref.shape
    rmax = (wp - w) // 2
    m = tile_h * w
    row_base = pl.program_id(1) * tile_h + rmax     # padded row of 1st out row

    def tap(dy, dx):
        # (tile_h, W, Cin) rectangle of the padded image, uniformly shifted by
        # (dy, dx): the whole spatial tile at once (M = tile_h * W).
        return xpad_ref[0, pl.ds(row_base + dy, tile_h), pl.ds(rmax + dx, w), :]

    # --- branch 0: 1x1 conv + folded-BN bias + ReLU --------------------------
    y0 = jnp.dot(tap(0, 0).reshape(m, cin), w0_ref[...],
                 preferred_element_type=jnp.float32) + b0_ref[...]
    cat_ref[:, pl.ds(0, cout)] = jnp.maximum(y0, 0.0).astype(cat_ref.dtype)

    # --- dilated 3x3 branches ------------------------------------------------
    for r, d in enumerate(rates):
        if cin >= 128:
            # Per-tap K=Cin already fills the MXU depth: 9 accumulated matmuls.
            acc = jnp.zeros((m, cout), jnp.float32)
            for k in range(9):
                dy, dx = (k // 3 - 1) * d, (k % 3 - 1) * d
                acc = acc + jnp.dot(tap(dy, dx).reshape(m, cin),
                                    wr_ref[r, pl.ds(k * cin, cin), :],
                                    preferred_element_type=jnp.float32)
            yb = acc + br_ref[r]
        else:
            # Small Cin: K-concat the 9 taps -> single (M, 9*Cin) x (9*Cin, C).
            taps = jnp.concatenate(
                [tap((k // 3 - 1) * d, (k % 3 - 1) * d) for k in range(9)],
                axis=-1)
            yb = jnp.dot(taps.reshape(m, 9 * cin), wr_ref[r],
                         preferred_element_type=jnp.float32) + br_ref[r]
        cat_ref[:, pl.ds((1 + r) * cout, cout)] = (
            jnp.maximum(yb, 0.0).astype(cat_ref.dtype))

    # --- projection: one matmul over the whole concat slab -------------------
    pre = jnp.dot(cat_ref[...], pw_ref[...],
                  preferred_element_type=jnp.float32) + pcpb_ref[0]
    out = jnp.maximum(pre, 0.0).astype(o_ref.dtype)       # dropout = identity
    o_ref[...] = out.reshape(1, tile_h, w, cout)


# ----------------------------------------------------------------------------
# Forward wrapper (NCHW in / NCHW out, PyTorch convention)
# ----------------------------------------------------------------------------
def aspp_forward(x_nchw, prep, rates, *, tile_h=16, out_dtype=MXU_DTYPE):
    rates = tuple(rates)
    num_rates = len(rates)
    rmax = max(rates)

    x = jnp.transpose(x_nchw, (0, 2, 3, 1)).astype(MXU_DTYPE)    # NCHW -> NHWC
    n, h, w, cin = x.shape
    cout = prep["b0"].shape[-1]
    assert h % tile_h == 0, (h, tile_h)
    assert w % 8 == 0, w                      # free (tile_h, W) -> M reshapes
    nt = h // tile_h
    hp, wp = h + 2 * rmax, w + 2 * rmax

    # Pooled branch in plain XLA: global mean + two tiny matmuls per batch
    # element; result already includes the projection BN bias so the fused
    # kernel only adds one (1, Cout) vector per tile.
    mean = jnp.mean(x.astype(jnp.float32), axis=(1, 2))          # (N, Cin)
    t = jnp.maximum(
        jnp.dot(mean.astype(MXU_DTYPE), prep["pool_w"],
                preferred_element_type=jnp.float32) + prep["pool_b"], 0.0)
    pcpb = (jnp.dot(t.astype(MXU_DTYPE), prep["pw_pool"],
                    preferred_element_type=jnp.float32)
            + prep["proj_b"]).reshape(n, 1, cout)                # (N, 1, Cout)

    # One padded copy of the input, reused by ALL dilation rates.
    xpad = jnp.pad(x, ((0, 0), (rmax, rmax), (rmax, rmax), (0, 0)))

    out_itemsize = jnp.finfo(out_dtype).bits // 8
    flops = (2 * n * h * w * cin * cout * (1 + 9 * num_rates)
             + 2 * n * h * w * (num_rates + 1) * cout * cout)
    bytes_accessed = (n * hp * wp * cin * 2
                      + (prep["w0"].size + prep["wr"].size
                         + prep["pw_br"].size) * 2
                      + n * h * w * cout * out_itemsize
                      + n * cout * 4)

    out_nhwc = pl.pallas_call(
        functools.partial(_fused_aspp_kernel, rates=rates),
        grid=(n, nt),
        in_specs=[
            # Padded image: grid-invariant along the tile axis -> DMA'd once
            # per batch element, double-buffered across batch elements.
            pl.BlockSpec((1, hp, wp, cin), lambda b, j: (b, 0, 0, 0)),
            pl.BlockSpec((cin, cout), lambda b, j: (0, 0)),
            pl.BlockSpec((1, cout), lambda b, j: (0, 0)),
            pl.BlockSpec((num_rates, 9 * cin, cout), lambda b, j: (0, 0, 0)),
            pl.BlockSpec((num_rates, 1, cout), lambda b, j: (0, 0, 0)),
            pl.BlockSpec(((num_rates + 1) * cout, cout), lambda b, j: (0, 0)),
            pl.BlockSpec((1, 1, cout), lambda b, j: (b, 0, 0)),
        ],
        out_specs=pl.BlockSpec((1, tile_h, w, cout), lambda b, j: (b, j, 0, 0)),
        out_shape=jax.ShapeDtypeStruct((n, h, w, cout), out_dtype),
        scratch_shapes=[
            # branch-concat slab: (M, (R+1)*Cout) bf16, lives in VMEM so the
            # ReLU'd activations never occupy vregs across branches.
            pltpu.VMEM((tile_h * w, (num_rates + 1) * cout), MXU_DTYPE)],
        cost_estimate=pl.CostEstimate(flops=flops, transcendentals=0,
                                      bytes_accessed=bytes_accessed),
        compiler_params=pltpu.CompilerParams(
            # batch "parallel" / tile "arbitrary": megacore shards on batch so
            # the grid-invariant padded block is never re-DMA'd per core.
            dimension_semantics=("parallel", "arbitrary"),
            vmem_limit_bytes=48 * 1024 * 1024),
    )(xpad, prep["w0"], prep["b0"], prep["wr"], prep["br"], prep["pw_br"], pcpb)

    return jnp.transpose(out_nhwc, (0, 3, 1, 2))                 # NHWC -> NCHW


# ----------------------------------------------------------------------------
# Pure-JAX reference (same folded/bf16 params, same precision policy)
# ----------------------------------------------------------------------------
def aspp_reference(x_nchw, prep, rates):
    rates = tuple(rates)
    xb = jnp.transpose(x_nchw, (0, 2, 3, 1)).astype(MXU_DTYPE)
    _n, _h, _w, cin = xb.shape
    cout = prep["b0"].shape[-1]

    def mm(a, b):                                # bf16 x bf16, f32 accumulation
        return jnp.einsum("nhwc,co->nhwo", a, b,
                          preferred_element_type=jnp.float32)

    ys = [jnp.maximum(mm(xb, prep["w0"]) + prep["b0"].reshape(1, 1, 1, cout),
                      0.0)]
    for r, d in enumerate(rates):
        wk = prep["wr"][r].reshape(3, 3, cin, cout)              # HWIO, bf16
        y = lax.conv_general_dilated(
            xb, wk, window_strides=(1, 1), padding=((d, d), (d, d)),
            rhs_dilation=(d, d), dimension_numbers=("NHWC", "HWIO", "NHWC"),
            preferred_element_type=jnp.float32)
        ys.append(jnp.maximum(y + prep["br"][r].reshape(1, 1, 1, cout), 0.0))

    # pooled branch: global mean (f32) -> 1x1 conv -> BN -> ReLU
    mean = jnp.mean(xb.astype(jnp.float32), axis=(1, 2))         # (N, Cin)
    t = jnp.maximum(
        jnp.dot(mean.astype(MXU_DTYPE), prep["pool_w"],
                preferred_element_type=jnp.float32) + prep["pool_b"], 0.0)

    # projection: concat == sum of per-branch partial matmuls
    pre = prep["proj_b"].reshape(1, 1, 1, cout).astype(jnp.float32)
    for i, y in enumerate(ys):
        pw_i = prep["pw_br"][i * cout:(i + 1) * cout]
        pre = pre + mm(y.astype(MXU_DTYPE), pw_i)
    pool_pre = jnp.dot(t.astype(MXU_DTYPE), prep["pw_pool"],
                       preferred_element_type=jnp.float32)       # (N, Cout)
    pre = pre + pool_pre[:, None, None, :]
    out = jnp.maximum(pre, 0.0)                                  # dropout = id
    return jnp.transpose(out, (0, 3, 1, 2))


# ----------------------------------------------------------------------------
# Deterministic synthetic parameters (raw) + eval-mode BN folding (prepared)
# ----------------------------------------------------------------------------
def make_params(key, cin, cout, rates):
    num_rates = len(rates)
    keys = iter(jax.random.split(key, 64))

    def conv(shape):
        return 0.1 * jax.random.normal(next(keys), shape, jnp.float32)

    def bn(c):
        gamma = 1.0 + 0.1 * jax.random.normal(next(keys), (c,), jnp.float32)
        beta = 0.1 * jax.random.normal(next(keys), (c,), jnp.float32)
        mean = 0.1 * jax.random.normal(next(keys), (c,), jnp.float32)
        var = 1.0 + 0.1 * jnp.abs(jax.random.normal(next(keys), (c,), jnp.float32))
        return gamma, beta, mean, var

    return {
        "w0": conv((cin, cout)), "bn0": bn(cout),
        "wr": jnp.stack([conv((9, cin, cout)) for _ in range(num_rates)]),
        "bnr": [bn(cout) for _ in range(num_rates)],
        "pool_w": conv((cin, cout)), "bn_pool": bn(cout),
        "proj_w": conv(((num_rates + 2) * cout, cout)), "bn_proj": bn(cout),
    }


def prepare_params(raw, cout, rates):
    """Fold eval-mode BN: scale -> conv weights (bf16), bias -> f32 vector."""
    num_rates = len(rates)

    def fold(bn_params):
        gamma, beta, mean, var = bn_params
        scale = gamma * lax.rsqrt(var + EPS)
        return scale, beta - mean * scale

    prep = {}
    s, b = fold(raw["bn0"])
    prep["w0"] = (raw["w0"] * s[None, :]).astype(MXU_DTYPE)
    prep["b0"] = b.reshape(1, cout)
    wr, br = [], []
    for r in range(num_rates):
        s, b = fold(raw["bnr"][r])
        cin = raw["wr"].shape[2]
        wr.append((raw["wr"][r] * s[None, None, :])
                  .astype(MXU_DTYPE).reshape(9 * cin, cout))
        br.append(b.reshape(1, cout))
    prep["wr"] = jnp.stack(wr)                       # [R, 9*Cin, Cout] bf16
    prep["br"] = jnp.stack(br)                       # [R, 1, Cout]     f32
    s, b = fold(raw["bn_pool"])
    prep["pool_w"] = (raw["pool_w"] * s[None, :]).astype(MXU_DTYPE)
    prep["pool_b"] = b.reshape(1, cout)
    s, b = fold(raw["bn_proj"])
    pw = (raw["proj_w"] * s[None, :]).astype(MXU_DTYPE)   # [(R+2)*Cout, Cout]
    prep["pw_br"] = pw[:(num_rates + 1) * cout]           # [(R+1)*Cout, Cout]
    prep["pw_pool"] = pw[(num_rates + 1) * cout:]         # [Cout, Cout]
    prep["proj_b"] = b.reshape(1, cout)
    return prep


if __name__ == "__main__":
    N, CIN, H, W = 2, 16, 16, 16
    COUT = 128                 # multiple of 128 -> lane-dense output stores
    RATES = (2, 4, 6)
    TILE_H = 16                # tile_h * W = 256 rows per matmul (fills MXU)

    key = jax.random.PRNGKey(0)
    kx_, kp_ = jax.random.split(key)
    x = jax.random.normal(kx_, (N, CIN, H, W), jnp.float32)
    raw = make_params(kp_, CIN, COUT, RATES)
    prep = prepare_params(raw, COUT, RATES)

    out = aspp_forward(x, prep, RATES, tile_h=TILE_H)
    out = jax.block_until_ready(out)
    assert out.shape == (N, COUT, H, W), out.shape

    ref = aspp_reference(x, prep, RATES)
    out_f32 = out.astype(jnp.float32)
    max_err = float(jnp.max(jnp.abs(out_f32 - ref)))
    # bf16 operands / f32 accumulation in both paths; residual differences come
    # from accumulation order, bf16 re-rounding of branch activations and the
    # bf16 output cast.
    assert jnp.allclose(out_f32, ref, rtol=2e-2, atol=2e-2), f"max|err|={max_err}"

    print("KERNEL_OK")
</pallas_src>

<mosaic_0001>
module attributes {stable_mosaic.version = 11 : i64} {
  func.func @_fused_aspp_kernel(%arg0: i32, %arg1: i32, %arg2: memref<1x28x28x16xbf16, #tpu.memory_space<vmem>>, %arg3: memref<16x128xbf16, #tpu.memory_space<vmem>>, %arg4: memref<1x128xf32, #tpu.memory_space<vmem>>, %arg5: memref<3x144x128xbf16, #tpu.memory_space<vmem>>, %arg6: memref<3x1x128xf32, #tpu.memory_space<vmem>>, %arg7: memref<512x128xbf16, #tpu.memory_space<vmem>>, %arg8: memref<1x1x128xf32, #tpu.memory_space<vmem>>, %arg9: memref<1x16x16x128xbf16, #tpu.memory_space<vmem>>, %arg10: memref<256x512xbf16, #tpu.memory_space<vmem>>) attributes {dimension_semantics = [#tpu.dimension_semantics<parallel>, #tpu.dimension_semantics<arbitrary>], iteration_bounds = array<i64: 2, 1>, scalar_prefetch = 0 : i64, scratch_operands = 1 : i64, tpu.core_type = #tpu.core_type<tc>, window_params = [{transform_indices = @transform_0, window_bounds = array<i64: 1, 28, 28, 16>}, {pipeline_mode = #tpu.pipeline_mode<synchronous>, transform_indices = @transform_1, window_bounds = array<i64: 16, 128>}, {pipeline_mode = #tpu.pipeline_mode<synchronous>, transform_indices = @transform_2, window_bounds = array<i64: 1, 128>}, {pipeline_mode = #tpu.pipeline_mode<synchronous>, transform_indices = @transform_3, window_bounds = array<i64: 3, 144, 128>}, {pipeline_mode = #tpu.pipeline_mode<synchronous>, transform_indices = @transform_4, window_bounds = array<i64: 3, 1, 128>}, {pipeline_mode = #tpu.pipeline_mode<synchronous>, transform_indices = @transform_5, window_bounds = array<i64: 512, 128>}, {transform_indices = @transform_6, window_bounds = array<i64: 1, 1, 128>}, {transform_indices = @transform_7, window_bounds = array<i64: 1, 16, 16, 128>}]} {
    %c16_i32 = arith.constant 16 : i32
    %0 = arith.muli %arg1, %c16_i32 : i32
    %c6_i32 = arith.constant 6 : i32
    %1 = arith.addi %0, %c6_i32 : i32
    %c0_i32 = arith.constant 0 : i32
    %2 = arith.addi %1, %c0_i32 : i32
    %c0 = arith.constant 0 : index
    %3 = arith.index_cast %2 : i32 to index
    %c6 = arith.constant 6 : index
    %c0_0 = arith.constant 0 : index
    %4 = vector.load %arg2[%c0, %3, %c6, %c0_0] : memref<1x28x28x16xbf16, #tpu.memory_space<vmem>>, vector<1x16x16x16xbf16>
    %5 = vector.shape_cast %4 : vector<1x16x16x16xbf16> to vector<16x16x16xbf16>
    %6 = vector.shape_cast %5 : vector<16x16x16xbf16> to vector<256x16xbf16>
    %c0_1 = arith.constant 0 : index
    %c0_2 = arith.constant 0 : index
    %7 = vector.load %arg3[%c0_1, %c0_2] : memref<16x128xbf16, #tpu.memory_space<vmem>>, vector<16x128xbf16>
    %cst = arith.constant dense<0.000000e+00> : vector<256x128xf32>
    %8 = tpu.matmul %6, %7, %cst {dimension_numbers = #tpu.dot_dimension_numbers<[1], [0], [0], [1], [0, 0, 1, 1], [], []>} : vector<256x16xbf16>, vector<16x128xbf16>, vector<256x128xf32> -> vector<256x128xf32>
    %c0_3 = arith.constant 0 : index
    %c0_4 = arith.constant 0 : index
    %9 = vector.load %arg4[%c0_3, %c0_4] : memref<1x128xf32, #tpu.memory_space<vmem>>, vector<1x128xf32>
    %10 = vector.broadcast %9 : vector<1x128xf32> to vector<256x128xf32>
    %11 = arith.addf %8, %10 : vector<256x128xf32>
    %cst_5 = arith.constant 0.000000e+00 : f32
    %12 = vector.broadcast %cst_5 : f32 to vector<256x128xf32>
    %13 = arith.maximumf %11, %12 : vector<256x128xf32>
    %14 = arith.truncf %13 : vector<256x128xf32> to vector<256x128xbf16>
    %c0_6 = arith.constant 0 : index
    %c0_7 = arith.constant 0 : index
    %15 = vector.load %arg10[%c0_6, %c0_7] : memref<256x512xbf16, #tpu.memory_space<vmem>>, vector<256x128xbf16>
    tpu.vector_store %arg10[%c0_6, %c0_7], %14 {strides = array<i32>} : memref<256x512xbf16, #tpu.memory_space<vmem>>, vector<256x128xbf16>,
    %c-2_i32 = arith.constant -2 : i32
    %16 = arith.addi %1, %c-2_i32 : i32
    %c0_8 = arith.constant 0 : index
    %17 = arith.index_cast %16 : i32 to index
    %c4 = arith.constant 4 : index
    %c0_9 = arith.constant 0 : index
    %18 = vector.load %arg2[%c0_8, %17, %c4, %c0_9] : memref<1x28x28x16xbf16, #tpu.memory_space<vmem>>, vector<1x16x16x16xbf16>
    %19 = vector.shape_cast %18 : vector<1x16x16x16xbf16> to vector<16x16x16xbf16>
    %c-2_i32_10 = arith.constant -2 : i32
    %20 = arith.addi %1, %c-2_i32_10 : i32
    %c0_11 = arith.constant 0 : index
    %21 = arith.index_cast %20 : i32 to index
    %c6_12 = arith.constant 6 : index
    %c0_13 = arith.constant 0 : index
    %22 = vector.load %arg2[%c0_11, %21, %c6_12, %c0_13] : memref<1x28x28x16xbf16, #tpu.memory_space<vmem>>, vector<1x16x16x16xbf16>
    %23 = vector.shape_cast %22 : vector<1x16x16x16xbf16> to vector<16x16x16xbf16>
    %c-2_i32_14 = arith.constant -2 : i32
    %24 = arith.addi %1, %c-2_i32_14 : i32
    %c0_15 = arith.constant 0 : index
    %25 = arith.index_cast %24 : i32 to index
    %c8 = arith.constant 8 : index
    %c0_16 = arith.constant 0 : index
    %26 = vector.load %arg2[%c0_15, %25, %c8, %c0_16] : memref<1x28x28x16xbf16, #tpu.memory_space<vmem>>, vector<1x16x16x16xbf16>
    %27 = vector.shape_cast %26 : vector<1x16x16x16xbf16> to vector<16x16x16xbf16>
    %c0_i32_17 = arith.constant 0 : i32
    %28 = arith.addi %1, %c0_i32_17 : i32
    %c0_18 = arith.constant 0 : index
    %29 = arith.index_cast %28 : i32 to index
    %c4_19 = arith.constant 4 : index
    %c0_20 = arith.constant 0 : index
    %30 = vector.load %arg2[%c0_18, %29, %c4_19, %c0_20] : memref<1x28x28x16xbf16, #tpu.memory_space<vmem>>, vector<1x16x16x16xbf16>
    %31 = vector.shape_cast %30 : vector<1x16x16x16xbf16> to vector<16x16x16xbf16>
    %c0_i32_21 = arith.constant 0 : i32
    %32 = arith.addi %1, %c0_i32_21 : i32
    %c0_22 = arith.constant 0 : index
    %33 = arith.index_cast %32 : i32 to index
    %c6_23 = arith.constant 6 : index
    %c0_24 = arith.constant 0 : index
    %34 = vector.load %arg2[%c0_22, %33, %c6_23, %c0_24] : memref<1x28x28x16xbf16, #tpu.memory_space<vmem>>, vector<1x16x16x16xbf16>
    %35 = vector.shape_cast %34 : vector<1x16x16x16xbf16> to vector<16x16x16xbf16>
    %c0_i32_25 = arith.constant 0 : i32
    %36 = arith.addi %1, %c0_i32_25 : i32
    %c0_26 = arith.constant 0 : index
    %37 = arith.index_cast %36 : i32 to index
    %c8_27 = arith.constant 8 : index
    %c0_28 = arith.constant 0 : index
    %38 = vector.load %arg2[%c0_26, %37, %c8_27, %c0_28] : memref<1x28x28x16xbf16, #tpu.memory_space<vmem>>, vector<1x16x16x16xbf16>
    %39 = vector.shape_cast %38 : vector<1x16x16x16xbf16> to vector<16x16x16xbf16>
    %c2_i32 = arith.constant 2 : i32
    %40 = arith.addi %1, %c2_i32 : i32
    %c0_29 = arith.constant 0 : index
    %41 = arith.index_cast %40 : i32 to index
    %c4_30 = arith.constant 4 : index
    %c0_31 = arith.constant 0 : index
    %42 = vector.load %arg2[%c0_29, %41, %c4_30, %c0_31] : memref<1x28x28x16xbf16, #tpu.memory_space<vmem>>, vector<1x16x16x16xbf16>
    %43 = vector.shape_cast %42 : vector<1x16x16x16xbf16> to vector<16x16x16xbf16>
    %c2_i32_32 = arith.constant 2 : i32
    %44 = arith.addi %1, %c2_i32_32 : i32
    %c0_33 = arith.constant 0 : index
    %45 = arith.index_cast %44 : i32 to index
    %c6_34 = arith.constant 6 : index
    %c0_35 = arith.constant 0 : index
    %46 = vector.load %arg2[%c0_33, %45, %c6_34, %c0_35] : memref<1x28x28x16xbf16, #tpu.memory_space<vmem>>, vector<1x16x16x16xbf16>
    %47 = vector.shape_cast %46 : vector<1x16x16x16xbf16> to vector<16x16x16xbf16>
    %c2_i32_36 = arith.constant 2 : i32
    %48 = arith.addi %1, %c2_i32_36 : i32
    %c0_37 = arith.constant 0 : index
    %49 = arith.index_cast %48 : i32 to index
    %c8_38 = arith.constant 8 : index
    %c0_39 = arith.constant 0 : index
    %50 = vector.load %arg2[%c0_37, %49, %c8_38, %c0_39] : memref<1x28x28x16xbf16, #tpu.memory_space<vmem>>, vector<1x16x16x16xbf16>
    %51 = vector.shape_cast %50 : vector<1x16x16x16xbf16> to vector<16x16x16xbf16>
    %52 = tpu.concatenate %19, %23, %27, %31, %35, %39, %43, %47, %51 in 2 : vector<16x16x16xbf16>, vector<16x16x16xbf16>, vector<16x16x16xbf16>, vector<16x16x16xbf16>, vector<16x16x16xbf16>, vector<16x16x16xbf16>, vector<16x16x16xbf16>, vector<16x16x16xbf16>, vector<16x16x16xbf16> -> vector<16x16x144xbf16>
    %53 = vector.shape_cast %52 : vector<16x16x144xbf16> to vector<256x144xbf16>
    %c0_40 = arith.constant 0 : index
    %c0_41 = arith.constant 0 : index
    %c0_42 = arith.constant 0 : index
    %54 = vector.load %arg5[%c0_40, %c0_41, %c0_42] : memref<3x144x128xbf16, #tpu.memory_space<vmem>>, vector<1x144x128xbf16>
    %55 = vector.shape_cast %54 : vector<1x144x128xbf16> to vector<144x128xbf16>
    %cst_43 = arith.constant dense<0.000000e+00> : vector<256x128xf32>
    %56 = tpu.matmul %53, %55, %cst_43 {dimension_numbers = #tpu.dot_dimension_numbers<[1], [0], [0], [1], [0, 0, 1, 1], [], []>} : vector<256x144xbf16>, vector<144x128xbf16>, vector<256x128xf32> -> vector<256x128xf32>
    %c0_44 = arith.constant 0 : index
    %c0_45 = arith.constant 0 : index
    %c0_46 = arith.constant 0 : index
    %57 = vector.load %arg6[%c0_44, %c0_45, %c0_46] : memref<3x1x128xf32, #tpu.memory_space<vmem>>, vector<1x1x128xf32>
    %58 = vector.shape_cast %57 : vector<1x1x128xf32> to vector<1x128xf32>
    %59 = vector.broadcast %58 : vector<1x128xf32> to vector<256x128xf32>
    %60 = arith.addf %56, %59 : vector<256x128xf32>
    %cst_47 = arith.constant 0.000000e+00 : f32
    %61 = vector.broadcast %cst_47 : f32 to vector<256x128xf32>
    %62 = arith.maximumf %60, %61 : vector<256x128xf32>
    %63 = arith.truncf %62 : vector<256x128xf32> to vector<256x128xbf16>
    %c0_48 = arith.constant 0 : index
    %c128 = arith.constant 128 : index
    %64 = vector.load %arg10[%c0_48, %c128] : memref<256x512xbf16, #tpu.memory_space<vmem>>, vector<256x128xbf16>
    tpu.vector_store %arg10[%c0_48, %c128], %63 {strides = array<i32>} : memref<256x512xbf16, #tpu.memory_space<vmem>>, vector<256x128xbf16>,
    %c-4_i32 = arith.constant -4 : i32
    %65 = arith.addi %1, %c-4_i32 : i32
    %c0_49 = arith.constant 0 : index
    %66 = arith.index_cast %65 : i32 to index
    %c2 = arith.constant 2 : index
    %c0_50 = arith.constant 0 : index
    %67 = vector.load %arg2[%c0_49, %66, %c2, %c0_50] : memref<1x28x28x16xbf16, #tpu.memory_space<vmem>>, vector<1x16x16x16xbf16>
    %68 = vector.shape_cast %67 : vector<1x16x16x16xbf16> to vector<16x16x16xbf16>
    %c-4_i32_51 = arith.constant -4 : i32
    %69 = arith.addi %1, %c-4_i32_51 : i32
    %c0_52 = arith.constant 0 : index
    %70 = arith.index_cast %69 : i32 to index
    %c6_53 = arith.constant 6 : index
    %c0_54 = arith.constant 0 : index
    %71 = vector.load %arg2[%c0_52, %70, %c6_53, %c0_54] : memref<1x28x28x16xbf16, #tpu.memory_space<vmem>>, vector<1x16x16x16xbf16>
    %72 = vector.shape_cast %71 : vector<1x16x16x16xbf16> to vector<16x16x16xbf16>
    %c-4_i32_55 = arith.constant -4 : i32
    %73 = arith.addi %1, %c-4_i32_55 : i32
    %c0_56 = arith.constant 0 : index
    %74 = arith.index_cast %73 : i32 to index
    %c10 = arith.constant 10 : index
    %c0_57 = arith.constant 0 : index
    %75 = vector.load %arg2[%c0_56, %74, %c10, %c0_57] : memref<1x28x28x16xbf16, #tpu.memory_space<vmem>>, vector<1x16x16x16xbf16>
    %76 = vector.shape_cast %75 : vector<1x16x16x16xbf16> to vector<16x16x16xbf16>
    %c0_i32_58 = arith.constant 0 : i32
    %77 = arith.addi %1, %c0_i32_58 : i32
    %c0_59 = arith.constant 0 : index
    %78 = arith.index_cast %77 : i32 to index
    %c2_60 = arith.constant 2 : index
    %c0_61 = arith.constant 0 : index
    %79 = vector.load %arg2[%c0_59, %78, %c2_60, %c0_61] : memref<1x28x28x16xbf16, #tpu.memory_space<vmem>>, vector<1x16x16x16xbf16>
    %80 = vector.shape_cast %79 : vector<1x16x16x16xbf16> to vector<16x16x16xbf16>
    %c0_i32_62 = arith.constant 0 : i32
    %81 = arith.addi %1, %c0_i32_62 : i32
    %c0_63 = arith.constant 0 : index
    %82 = arith.index_cast %81 : i32 to index
    %c6_64 = arith.constant 6 : index
    %c0_65 = arith.constant 0 : index
    %83 = vector.load %arg2[%c0_63, %82, %c6_64, %c0_65] : memref<1x28x28x16xbf16, #tpu.memory_space<vmem>>, vector<1x16x16x16xbf16>
    %84 = vector.shape_cast %83 : vector<1x16x16x16xbf16> to vector<16x16x16xbf16>
    %c0_i32_66 = arith.constant 0 : i32
    %85 = arith.addi %1, %c0_i32_66 : i32
    %c0_67 = arith.constant 0 : index
    %86 = arith.index_cast %85 : i32 to index
    %c10_68 = arith.constant 10 : index
    %c0_69 = arith.constant 0 : index
    %87 = vector.load %arg2[%c0_67, %86, %c10_68, %c0_69] : memref<1x28x28x16xbf16, #tpu.memory_space<vmem>>, vector<1x16x16x16xbf16>
    %88 = vector.shape_cast %87 : vector<1x16x16x16xbf16> to vector<16x16x16xbf16>
    %c4_i32 = arith.constant 4 : i32
    %89 = arith.addi %1, %c4_i32 : i32
    %c0_70 = arith.constant 0 : index
    %90 = arith.index_cast %89 : i32 to index
    %c2_71 = arith.constant 2 : index
    %c0_72 = arith.constant 0 : index
    %91 = vector.load %arg2[%c0_70, %90, %c2_71, %c0_72] : memref<1x28x28x16xbf16, #tpu.memory_space<vmem>>, vector<1x16x16x16xbf16>
    %92 = vector.shape_cast %91 : vector<1x16x16x16xbf16> to vector<16x16x16xbf16>
    %c4_i32_73 = arith.constant 4 : i32
    %93 = arith.addi %1, %c4_i32_73 : i32
    %c0_74 = arith.constant 0 : index
    %94 = arith.index_cast %93 : i32 to index
    %c6_75 = arith.constant 6 : index
    %c0_76 = arith.constant 0 : index
    %95 = vector.load %arg2[%c0_74, %94, %c6_75, %c0_76] : memref<1x28x28x16xbf16, #tpu.memory_space<vmem>>, vector<1x16x16x16xbf16>
    %96 = vector.shape_cast %95 : vector<1x16x16x16xbf16> to vector<16x16x16xbf16>
    %c4_i32_77 = arith.constant 4 : i32
    %97 = arith.addi %1, %c4_i32_77 : i32
    %c0_78 = arith.constant 0 : index
    %98 = arith.index_cast %97 : i32 to index
    %c10_79 = arith.constant 10 : index
    %c0_80 = arith.constant 0 : index
    %99 = vector.load %arg2[%c0_78, %98, %c10_79, %c0_80] : memref<1x28x28x16xbf16, #tpu.memory_space<vmem>>, vector<1x16x16x16xbf16>
    %100 = vector.shape_cast %99 : vector<1x16x16x16xbf16> to vector<16x16x16xbf16>
    %101 = tpu.concatenate %68, %72, %76, %80, %84, %88, %92, %96, %100 in 2 : vector<16x16x16xbf16>, vector<16x16x16xbf16>, vector<16x16x16xbf16>, vector<16x16x16xbf16>, vector<16x16x16xbf16>, vector<16x16x16xbf16>, vector<16x16x16xbf16>, vector<16x16x16xbf16>, vector<16x16x16xbf16> -> vector<16x16x144xbf16>
    %102 = vector.shape_cast %101 : vector<16x16x144xbf16> to vector<256x144xbf16>
    %c1 = arith.constant 1 : index
    %c0_81 = arith.constant 0 : index
    %c0_82 = arith.constant 0 : index
    %103 = vector.load %arg5[%c1, %c0_81, %c0_82] : memref<3x144x128xbf16, #tpu.memory_space<vmem>>, vector<1x144x128xbf16>
    %104 = vector.shape_cast %103 : vector<1x144x128xbf16> to vector<144x128xbf16>
    %cst_83 = arith.constant dense<0.000000e+00> : vector<256x128xf32>
    %105 = tpu.matmul %102, %104, %cst_83 {dimension_numbers = #tpu.dot_dimension_numbers<[1], [0], [0], [1], [0, 0, 1, 1], [], []>} : vector<256x144xbf16>, vector<144x128xbf16>, vector<256x128xf32> -> vector<256x128xf32>
    %c1_84 = arith.constant 1 : index
    %c0_85 = arith.constant 0 : index
    %c0_86 = arith.constant 0 : index
    %106 = vector.load %arg6[%c1_84, %c0_85, %c0_86] : memref<3x1x128xf32, #tpu.memory_space<vmem>>, vector<1x1x128xf32>
    %107 = vector.shape_cast %106 : vector<1x1x128xf32> to vector<1x128xf32>
    %108 = vector.broadcast %107 : vector<1x128xf32> to vector<256x128xf32>
    %109 = arith.addf %105, %108 : vector<256x128xf32>
    %cst_87 = arith.constant 0.000000e+00 : f32
    %110 = vector.broadcast %cst_87 : f32 to vector<256x128xf32>
    %111 = arith.maximumf %109, %110 : vector<256x128xf32>
    %112 = arith.truncf %111 : vector<256x128xf32> to vector<256x128xbf16>
    %c0_88 = arith.constant 0 : index
    %c256 = arith.constant 256 : index
    %113 = vector.load %arg10[%c0_88, %c256] : memref<256x512xbf16, #tpu.memory_space<vmem>>, vector<256x128xbf16>
    tpu.vector_store %arg10[%c0_88, %c256], %112 {strides = array<i32>} : memref<256x512xbf16, #tpu.memory_space<vmem>>, vector<256x128xbf16>,
    %c-6_i32 = arith.constant -6 : i32
    %114 = arith.addi %1, %c-6_i32 : i32
    %c0_89 = arith.constant 0 : index
    %115 = arith.index_cast %114 : i32 to index
    %c0_90 = arith.constant 0 : index
    %c0_91 = arith.constant 0 : index
    %116 = vector.load %arg2[%c0_89, %115, %c0_90, %c0_91] : memref<1x28x28x16xbf16, #tpu.memory_space<vmem>>, vector<1x16x16x16xbf16>
    %117 = vector.shape_cast %116 : vector<1x16x16x16xbf16> to vector<16x16x16xbf16>
    %c-6_i32_92 = arith.constant -6 : i32
    %118 = arith.addi %1, %c-6_i32_92 : i32
    %c0_93 = arith.constant 0 : index
    %119 = arith.index_cast %118 : i32 to index
    %c6_94 = arith.constant 6 : index
    %c0_95 = arith.constant 0 : index
    %120 = vector.load %arg2[%c0_93, %119, %c6_94, %c0_95] : memref<1x28x28x16xbf16, #tpu.memory_space<vmem>>, vector<1x16x16x16xbf16>
    %121 = vector.shape_cast %120 : vector<1x16x16x16xbf16> to vector<16x16x16xbf16>
    %c-6_i32_96 = arith.constant -6 : i32
    %122 = arith.addi %1, %c-6_i32_96 : i32
    %c0_97 = arith.constant 0 : index
    %123 = arith.index_cast %122 : i32 to index
    %c12 = arith.constant 12 : index
    %c0_98 = arith.constant 0 : index
    %124 = vector.load %arg2[%c0_97, %123, %c12, %c0_98] : memref<1x28x28x16xbf16, #tpu.memory_space<vmem>>, vector<1x16x16x16xbf16>
    %125 = vector.shape_cast %124 : vector<1x16x16x16xbf16> to vector<16x16x16xbf16>
    %c0_i32_99 = arith.constant 0 : i32
    %126 = arith.addi %1, %c0_i32_99 : i32
    %c0_100 = arith.constant 0 : index
    %127 = arith.index_cast %126 : i32 to index
    %c0_101 = arith.constant 0 : index
    %c0_102 = arith.constant 0 : index
    %128 = vector.load %arg2[%c0_100, %127, %c0_101, %c0_102] : memref<1x28x28x16xbf16, #tpu.memory_space<vmem>>, vector<1x16x16x16xbf16>
    %129 = vector.shape_cast %128 : vector<1x16x16x16xbf16> to vector<16x16x16xbf16>
    %c0_i32_103 = arith.constant 0 : i32
    %130 = arith.addi %1, %c0_i32_103 : i32
    %c0_104 = arith.constant 0 : index
    %131 = arith.index_cast %130 : i32 to index
    %c6_105 = arith.constant 6 : index
    %c0_106 = arith.constant 0 : index
    %132 = vector.load %arg2[%c0_104, %131, %c6_105, %c0_106] : memref<1x28x28x16xbf16, #tpu.memory_space<vmem>>, vector<1x16x16x16xbf16>
    %133 = vector.shape_cast %132 : vector<1x16x16x16xbf16> to vector<16x16x16xbf16>
    %c0_i32_107 = arith.constant 0 : i32
    %134 = arith.addi %1, %c0_i32_107 : i32
    %c0_108 = arith.constant 0 : index
    %135 = arith.index_cast %134 : i32 to index
    %c12_109 = arith.constant 12 : index
    %c0_110 = arith.constant 0 : index
    %136 = vector.load %arg2[%c0_108, %135, %c12_109, %c0_110] : memref<1x28x28x16xbf16, #tpu.memory_space<vmem>>, vector<1x16x16x16xbf16>
    %137 = vector.shape_cast %136 : vector<1x16x16x16xbf16> to vector<16x16x16xbf16>
    %c6_i32_111 = arith.constant 6 : i32
    %138 = arith.addi %1, %c6_i32_111 : i32
    %c0_112 = arith.constant 0 : index
    %139 = arith.index_cast %138 : i32 to index
    %c0_113 = arith.constant 0 : index
    %c0_114 = arith.constant 0 : index
    %140 = vector.load %arg2[%c0_112, %139, %c0_113, %c0_114] : memref<1x28x28x16xbf16, #tpu.memory_space<vmem>>, vector<1x16x16x16xbf16>
    %141 = vector.shape_cast %140 : vector<1x16x16x16xbf16> to vector<16x16x16xbf16>
    %c6_i32_115 = arith.constant 6 : i32
    %142 = arith.addi %1, %c6_i32_115 : i32
    %c0_116 = arith.constant 0 : index
    %143 = arith.index_cast %142 : i32 to index
    %c6_117 = arith.constant 6 : index
    %c0_118 = arith.constant 0 : index
    %144 = vector.load %arg2[%c0_116, %143, %c6_117, %c0_118] : memref<1x28x28x16xbf16, #tpu.memory_space<vmem>>, vector<1x16x16x16xbf16>
    %145 = vector.shape_cast %144 : vector<1x16x16x16xbf16> to vector<16x16x16xbf16>
    %c6_i32_119 = arith.constant 6 : i32
    %146 = arith.addi %1, %c6_i32_119 : i32
    %c0_120 = arith.constant 0 : index
    %147 = arith.index_cast %146 : i32 to index
    %c12_121 = arith.constant 12 : index
    %c0_122 = arith.constant 0 : index
    %148 = vector.load %arg2[%c0_120, %147, %c12_121, %c0_122] : memref<1x28x28x16xbf16, #tpu.memory_space<vmem>>, vector<1x16x16x16xbf16>
    %149 = vector.shape_cast %148 : vector<1x16x16x16xbf16> to vector<16x16x16xbf16>
    %150 = tpu.concatenate %117, %121, %125, %129, %133, %137, %141, %145, %149 in 2 : vector<16x16x16xbf16>, vector<16x16x16xbf16>, vector<16x16x16xbf16>, vector<16x16x16xbf16>, vector<16x16x16xbf16>, vector<16x16x16xbf16>, vector<16x16x16xbf16>, vector<16x16x16xbf16>, vector<16x16x16xbf16> -> vector<16x16x144xbf16>
    %151 = vector.shape_cast %150 : vector<16x16x144xbf16> to vector<256x144xbf16>
    %c2_123 = arith.constant 2 : index
    %c0_124 = arith.constant 0 : index
    %c0_125 = arith.constant 0 : index
    %152 = vector.load %arg5[%c2_123, %c0_124, %c0_125] : memref<3x144x128xbf16, #tpu.memory_space<vmem>>, vector<1x144x128xbf16>
    %153 = vector.shape_cast %152 : vector<1x144x128xbf16> to vector<144x128xbf16>
    %cst_126 = arith.constant dense<0.000000e+00> : vector<256x128xf32>
    %154 = tpu.matmul %151, %153, %cst_126 {dimension_numbers = #tpu.dot_dimension_numbers<[1], [0], [0], [1], [0, 0, 1, 1], [], []>} : vector<256x144xbf16>, vector<144x128xbf16>, vector<256x128xf32> -> vector<256x128xf32>
    %c2_127 = arith.constant 2 : index
    %c0_128 = arith.constant 0 : index
    %c0_129 = arith.constant 0 : index
    %155 = vector.load %arg6[%c2_127, %c0_128, %c0_129] : memref<3x1x128xf32, #tpu.memory_space<vmem>>, vector<1x1x128xf32>
    %156 = vector.shape_cast %155 : vector<1x1x128xf32> to vector<1x128xf32>
    %157 = vector.broadcast %156 : vector<1x128xf32> to vector<256x128xf32>
    %158 = arith.addf %154, %157 : vector<256x128xf32>
    %cst_130 = arith.constant 0.000000e+00 : f32
    %159 = vector.broadcast %cst_130 : f32 to vector<256x128xf32>
    %160 = arith.maximumf %158, %159 : vector<256x128xf32>
    %161 = arith.truncf %160 : vector<256x128xf32> to vector<256x128xbf16>
    %c0_131 = arith.constant 0 : index
    %c384 = arith.constant 384 : index
    %162 = vector.load %arg10[%c0_131, %c384] : memref<256x512xbf16, #tpu.memory_space<vmem>>, vector<256x128xbf16>
    tpu.vector_store %arg10[%c0_131, %c384], %161 {strides = array<i32>} : memref<256x512xbf16, #tpu.memory_space<vmem>>, vector<256x128xbf16>,
    %c0_132 = arith.constant 0 : index
    %c0_133 = arith.constant 0 : index
    %163 = vector.load %arg10[%c0_132, %c0_133] : memref<256x512xbf16, #tpu.memory_space<vmem>>, vector<256x512xbf16>
    %c0_134 = arith.constant 0 : index
    %c0_135 = arith.constant 0 : index
    %164 = vector.load %arg7[%c0_134, %c0_135] : memref<512x128xbf16, #tpu.memory_space<vmem>>, vector<512x128xbf16>
    %cst_136 = arith.constant dense<0.000000e+00> : vector<256x128xf32>
    %165 = tpu.matmul %163, %164, %cst_136 {dimension_numbers = #tpu.dot_dimension_numbers<[1], [0], [0], [1], [0, 0, 1, 1], [], []>} : vector<256x512xbf16>, vector<512x128xbf16>, vector<256x128xf32> -> vector<256x128xf32>
    %c0_137 = arith.constant 0 : index
    %c0_138 = arith.constant 0 : index
    %c0_139 = arith.constant 0 : index
    %166 = vector.load %arg8[%c0_137, %c0_138, %c0_139] : memref<1x1x128xf32, #tpu.memory_space<vmem>>, vector<1x1x128xf32>
    %167 = vector.shape_cast %166 : vector<1x1x128xf32> to vector<1x128xf32>
    %168 = vector.broadcast %167 : vector<1x128xf32> to vector<256x128xf32>
    %169 = arith.addf %165, %168 : vector<256x128xf32>
    %cst_140 = arith.constant 0.000000e+00 : f32
    %170 = vector.broadcast %cst_140 : f32 to vector<256x128xf32>
    %171 = arith.maximumf %169, %170 : vector<256x128xf32>
    %172 = arith.truncf %171 : vector<256x128xf32> to vector<256x128xbf16>
    %173 = vector.shape_cast %172 : vector<256x128xbf16> to vector<1x16x16x128xbf16>
    %c0_141 = arith.constant 0 : index
    %c0_142 = arith.constant 0 : index
    %c0_143 = arith.constant 0 : index
    %c0_144 = arith.constant 0 : index
    %174 = vector.load %arg9[%c0_141, %c0_142, %c0_143, %c0_144] : memref<1x16x16x128xbf16, #tpu.memory_space<vmem>>, vector<1x16x16x128xbf16>
    tpu.vector_store %arg9[%c0_141, %c0_142, %c0_143, %c0_144], %173 {strides = array<i32>} : memref<1x16x16x128xbf16, #tpu.memory_space<vmem>>, vector<1x16x16x128xbf16>,
    return
  }
  func.func @transform_0(%arg0: i32, %arg1: i32) -> (i32, i32, i32, i32) {
    %c0_i32 = arith.constant 0 : i32
    %c0_i32_0 = arith.constant 0 : i32
    %c0_i32_1 = arith.constant 0 : i32
    %c0_i32_2 = arith.constant 0 : i32
    return %arg0, %c0_i32, %c0_i32_0, %c0_i32_1 : i32, i32, i32, i32
  }
  func.func @transform_1(%arg0: i32, %arg1: i32) -> (i32, i32) {
    %c0_i32 = arith.constant 0 : i32
    %c0_i32_0 = arith.constant 0 : i32
    %c0_i32_1 = arith.constant 0 : i32
    return %c0_i32, %c0_i32_0 : i32, i32
  }
  func.func @transform_2(%arg0: i32, %arg1: i32) -> (i32, i32) {
    %c0_i32 = arith.constant 0 : i32
    %c0_i32_0 = arith.constant 0 : i32
    %c0_i32_1 = arith.constant 0 : i32
    return %c0_i32, %c0_i32_0 : i32, i32
  }
  func.func @transform_3(%arg0: i32, %arg1: i32) -> (i32, i32, i32) {
    %c0_i32 = arith.constant 0 : i32
    %c0_i32_0 = arith.constant 0 : i32
    %c0_i32_1 = arith.constant 0 : i32
    %c0_i32_2 = arith.constant 0 : i32
    return %c0_i32, %c0_i32_0, %c0_i32_1 : i32, i32, i32
  }
  func.func @transform_4(%arg0: i32, %arg1: i32) -> (i32, i32, i32) {
    %c0_i32 = arith.constant 0 : i32
    %c0_i32_0 = arith.constant 0 : i32
    %c0_i32_1 = arith.constant 0 : i32
    %c0_i32_2 = arith.constant 0 : i32
    return %c0_i32, %c0_i32_0, %c0_i32_1 : i32, i32, i32
  }
  func.func @transform_5(%arg0: i32, %arg1: i32) -> (i32, i32) {
    %c0_i32 = arith.constant 0 : i32
    %c0_i32_0 = arith.constant 0 : i32
    %c0_i32_1 = arith.constant 0 : i32
    return %c0_i32, %c0_i32_0 : i32, i32
  }
  func.func @transform_6(%arg0: i32, %arg1: i32) -> (i32, i32, i32) {
    %c0_i32 = arith.constant 0 : i32
    %c0_i32_0 = arith.constant 0 : i32
    %c0_i32_1 = arith.constant 0 : i32
    return %arg0, %c0_i32, %c0_i32_0 : i32, i32, i32
  }
  func.func @transform_7(%arg0: i32, %arg1: i32) -> (i32, i32, i32, i32) {
    %c0_i32 = arith.constant 0 : i32
    %c0_i32_0 = arith.constant 0 : i32
    %c0_i32_1 = arith.constant 0 : i32
    return %arg0, %arg1, %c0_i32, %c0_i32_0 : i32, i32, i32, i32
  }
}

</mosaic_0001>

<llo_original>
// kernel: tpu_custom_call.1
$region0: #{tpu_custom_call.1}
  #allocation0 [shape = 'u32[]', space=smem, size = 0x4, offset = 0x4, fixed_abs, tag = 'smem constant byte address 0x4 - core index']
  #allocation1 [shape = 'u32[144,128]{1,0:T(1,128)}', space=vmem, size = 0x12000, scoped, tag = 'internal scratch']
  #allocation2 [shape = 'bf16[256,512]{1,0:T(16,128)(2,1)}', space=vmem, size = 0x40000, scoped, tag = 'scratch operand']
  %s0 = inlined_call_operand.vmem [shape: bf16[2,28,28,16], index: 0, kind: input, shape index: {}]
  %s1 = inlined_call_operand.vmem [shape: bf16[16,128], index: 1, kind: input, shape index: {}]
  %s2 = inlined_call_operand.vmem [shape: f32[1,128], index: 2, kind: input, shape index: {}]
  %s3 = inlined_call_operand.vmem [shape: bf16[3,144,128], index: 3, kind: input, shape index: {}]
  %s4 = inlined_call_operand.vmem [shape: f32[3,1,128], index: 4, kind: input, shape index: {}]
  %s5 = inlined_call_operand.vmem [shape: bf16[512,128], index: 5, kind: input, shape index: {}]
  %s6 = inlined_call_operand.vmem [shape: f32[2,1,128], index: 6, kind: input, shape index: {}]
  %s7 = inlined_call_operand.hbm [shape: bf16[2,16,16,128], index: 7, kind: output, shape index: {}]
  %s8 = sld [smem:[#allocation0]]
  $region61: #{tpu_custom_call.1} parent=0
    _
  %s10 = ssub.s32 1, %s8
  %s11 = scalar_select 0, %s10, %s8
  $region1: #{tpu_custom_call.1} parent=0
    #allocation3 [shape = 'u8[131072]{0}', space=vmem, size = 0x20000, scoped, tag = 'output window, operand 0']
    #allocation4 [shape = 's32[2]{0}', space=sflag, size = 0x8, scoped, tag = 'scoped memory for tpu_custom_call.1']
    %12 = vsyncpa [#allocation4], 0
    %s13 = scalar_lea.sflag [#allocation4], 1
    %14 = vsyncpa %s13, 0
    loop: start=0, step=1, limit=4
    $region2: #{tpu_custom_call.1} parent=1 // loop_pre_header
      _
    $region3: #{tpu_custom_call.1} parent=1 // loop_header
      %s16 = sphi 0, %s20
      %p17 = scmp.ge.s32.totalorder %s16, 4
      %s23 = sphi 0, %s35
      %s24 = sphi 0, %s31
      %s25 = sphi 0, %s23
      %s26 = sphi 0, %s24
      %s27 = sphi 0, %s25
      %s28 = sphi 0, %s26
      %s38 = sphi 0, %s40
      %s41 = sphi 0, %s38
      %s42 = sphi 0, %s41
      %s58 = sphi 0, %s42
      %s62 = sphi 0, %s62
      %s64 = sphi 0, %s62
      %s65 = sphi 0, %s64
      %s79 = sphi 0, %s65
      %s83 = sphi 0, %s83
      %s85 = sphi 0, %s83
      %s86 = sphi 0, %s85
      %s100 = sphi 0, %s86
      %s104 = sphi 0, %s104
      %s106 = sphi 0, %s104
      %s107 = sphi 0, %s106
      %s121 = sphi 0, %s107
      %s125 = sphi 0, %s125
      %s127 = sphi 0, %s125
      %s128 = sphi 0, %s127
      %s142 = sphi 0, %s128
      %s146 = sphi 0, %s146
      %s148 = sphi 0, %s146
      %s149 = sphi 0, %s148
      %s163 = sphi 0, %s149
      %s169 = sphi 0, %s171
      %s172 = sphi 0, %s169
      %s173 = sphi 0, %s172
      %s189 = sphi 0, %s173
      %s197 = sphi 0, %s199
      %s200 = sphi 0, %s197
      %s201 = sphi 0, %s200
      %s217 = sphi 0, %s201
    $region4: #{tpu_custom_call.1} parent=1 // loop_header_branch
      %19 = sbr.rel (%p17) target = $region8
    $region5: #{tpu_custom_call.1} parent=1 // loop_body
      %s21 = ssub.s32 %s16, 1
      %s22 = ssub.s32 %s16, 2
      %s29 = sadd.s32 1, %s24
      %p30 = scmp.ge.s32.totalorder %s29, 1
      %s31 = scalar_select %p30, 0, %s29
      %s32 = sadd.s32 1, %s23
      %s33 = scalar_select %p30, %s32, %s23
      %p34 = scmp.ge.s32.totalorder %s33, 2
      %s35 = scalar_select %p34, 0, %s33
      %s36 = ssub.s32 %s23, %s35
      %p37 = scmp.eq.s32.totalorder %s36, 0
      %s39 = sadd.s32 %s38, 1
      %s40 = scalar_select %p37, %s38, %s39
      %p43 = pneg %p37
      %p44 = scmp.eq.s32.totalorder %s16, 1
      %p45 = por %p43, %p44
      %p46 = scmp.ne.s32.totalorder %s38, %s41
      %p47 = scmp.eq.s32.totalorder %s16, 0
      %p48 = por %p46, %p47
      %p49 = scmp.ne.s32.totalorder %s38, %s41
      %p50 = scmp.eq.s32.totalorder %s21, 1
      %p51 = por %p49, %p50
      %p52 = scmp.ne.s32.totalorder %s41, %s42
      %p53 = scmp.eq.s32.totalorder %s21, 0
      %p54 = por %p52, %p53
      %p55 = scmp.ne.s32.totalorder %s41, %s42
      %p56 = scmp.eq.s32.totalorder %s22, 1
      %p57 = por %p55, %p56
      %p59 = scmp.ne.s32.totalorder %s42, %s58
      %p60 = scmp.eq.s32.totalorder %s22, 0
      %p61 = por %p59, %p60
      %s63 = sadd.s32 %s62, 1
      %p66 = scmp.eq.s32.totalorder %s16, 1
      %p67 = scmp.ne.s32.totalorder %s62, %s64
      %p68 = scmp.eq.s32.totalorder %s16, 0
      %p69 = por %p67, %p68
      %p70 = scmp.ne.s32.totalorder %s62, %s64
      %p71 = scmp.eq.s32.totalorder %s21, 1
      %p72 = por %p70, %p71
      %p73 = scmp.ne.s32.totalorder %s64, %s65
      %p74 = scmp.eq.s32.totalorder %s21, 0
      %p75 = por %p73, %p74
      %p76 = scmp.ne.s32.totalorder %s64, %s65
      %p77 = scmp.eq.s32.totalorder %s22, 1
      %p78 = por %p76, %p77
      %p80 = scmp.ne.s32.totalorder %s65, %s79
      %p81 = scmp.eq.s32.totalorder %s22, 0
      %p82 = por %p80, %p81
      %s84 = sadd.s32 %s83, 1
      %p87 = scmp.eq.s32.totalorder %s16, 1
      %p88 = scmp.ne.s32.totalorder %s83, %s85
      %p89 = scmp.eq.s32.totalorder %s16, 0
      %p90 = por %p88, %p89
      %p91 = scmp.ne.s32.totalorder %s83, %s85
      %p92 = scmp.eq.s32.totalorder %s21, 1
      %p93 = por %p91, %p92
      %p94 = scmp.ne.s32.totalorder %s85, %s86
      %p95 = scmp.eq.s32.totalorder %s21, 0
      %p96 = por %p94, %p95
      %p97 = scmp.ne.s32.totalorder %s85, %s86
      %p98 = scmp.eq.s32.totalorder %s22, 1
      %p99 = por %p97, %p98
      %p101 = scmp.ne.s32.totalorder %s86, %s100
      %p102 = scmp.eq.s32.totalorder %s22, 0
      %p103 = por %p101, %p102
      %s105 = sadd.s32 %s104, 1
      %p108 = scmp.eq.s32.totalorder %s16, 1
      %p109 = scmp.ne.s32.totalorder %s104, %s106
      %p110 = scmp.eq.s32.totalorder %s16, 0
      %p111 = por %p109, %p110
      %p112 = scmp.ne.s32.totalorder %s104, %s106
      %p113 = scmp.eq.s32.totalorder %s21, 1
      %p114 = por %p112, %p113
      %p115 = scmp.ne.s32.totalorder %s106, %s107
      %p116 = scmp.eq.s32.totalorder %s21, 0
      %p117 = por %p115, %p116
      %p118 = scmp.ne.s32.totalorder %s106, %s107
      %p119 = scmp.eq.s32.totalorder %s22, 1
      %p120 = por %p118, %p119
      %p122 = scmp.ne.s32.totalorder %s107, %s121
      %p123 = scmp.eq.s32.totalorder %s22, 0
      %p124 = por %p122, %p123
      %s126 = sadd.s32 %s125, 1
      %p129 = scmp.eq.s32.totalorder %s16, 1
      %p130 = scmp.ne.s32.totalorder %s125, %s127
      %p131 = scmp.eq.s32.totalorder %s16, 0
      %p132 = por %p130, %p131
      %p133 = scmp.ne.s32.totalorder %s125, %s127
      %p134 = scmp.eq.s32.totalorder %s21, 1
      %p135 = por %p133, %p134
      %p136 = scmp.ne.s32.totalorder %s127, %s128
      %p137 = scmp.eq.s32.totalorder %s21, 0
      %p138 = por %p136, %p137
      %p139 = scmp.ne.s32.totalorder %s127, %s128
      %p140 = scmp.eq.s32.totalorder %s22, 1
      %p141 = por %p139, %p140
      %p143 = scmp.ne.s32.totalorder %s128, %s142
      %p144 = scmp.eq.s32.totalorder %s22, 0
      %p145 = por %p143, %p144
      %s147 = sadd.s32 %s146, 1
      %p150 = scmp.eq.s32.totalorder %s16, 1
      %p151 = scmp.ne.s32.totalorder %s146, %s148
      %p152 = scmp.eq.s32.totalorder %s16, 0
      %p153 = por %p151, %p152
      %p154 = scmp.ne.s32.totalorder %s146, %s148
      %p155 = scmp.eq.s32.totalorder %s21, 1
      %p156 = por %p154, %p155
      %p157 = scmp.ne.s32.totalorder %s148, %s149
      %p158 = scmp.eq.s32.totalorder %s21, 0
      %p159 = por %p157, %p158
      %p160 = scmp.ne.s32.totalorder %s148, %s149
      %p161 = scmp.eq.s32.totalorder %s22, 1
      %p162 = por %p160, %p161
      %p164 = scmp.ne.s32.totalorder %s149, %s163
      %p165 = scmp.eq.s32.totalorder %s22, 0
      %p166 = por %p164, %p165
      %s167 = ssub.s32 %s23, %s35
      %p168 = scmp.eq.s32.totalorder %s167, 0
      %s170 = sadd.s32 %s169, 1
      %s171 = scalar_select %p168, %s169, %s170
      %p174 = pneg %p168
      %p175 = scmp.eq.s32.totalorder %s16, 1
      %p176 = por %p174, %p175
      %p177 = scmp.ne.s32.totalorder %s169, %s172
      %p178 = scmp.eq.s32.totalorder %s16, 0
      %p179 = por %p177, %p178
      %p180 = scmp.ne.s32.totalorder %s169, %s172
      %p181 = scmp.eq.s32.totalorder %s21, 1
      %p182 = por %p180, %p181
      %p183 = scmp.ne.s32.totalorder %s172, %s173
      %p184 = scmp.eq.s32.totalorder %s21, 0
      %p185 = por %p183, %p184
      %p186 = scmp.ne.s32.totalorder %s172, %s173
      %p187 = scmp.eq.s32.totalorder %s22, 1
      %p188 = por %p186, %p187
      %p190 = scmp.ne.s32.totalorder %s173, %s189
      %p191 = scmp.eq.s32.totalorder %s22, 0
      %p192 = por %p190, %p191
      %s193 = ssub.s32 %s23, %s35
      %s194 = ssub.s32 %s24, %s31
      %s195 = sor.u32 %s193, %s194
      %p196 = scmp.eq.s32.totalorder %s195, 0
      %s198 = sadd.s32 %s197, 1
      %s199 = scalar_select %p196, %s197, %s198
      %p202 = pneg %p196
      %p203 = scmp.eq.s32.totalorder %s16, 1
      %p204 = por %p202, %p203
      %p205 = scmp.ne.s32.totalorder %s197, %s200
      %p206 = scmp.eq.s32.totalorder %s16, 0
      %p207 = por %p205, %p206
      %p208 = scmp.ne.s32.totalorder %s197, %s200
      %p209 = scmp.eq.s32.totalorder %s21, 1
      %p210 = por %p208, %p209
      %p211 = scmp.ne.s32.totalorder %s200, %s201
      %p212 = scmp.eq.s32.totalorder %s21, 0
      %p213 = por %p211, %p212
      %p214 = scmp.ne.s32.totalorder %s200, %s201
      %p215 = scmp.eq.s32.totalorder %s22, 1
      %p216 = por %p214, %p215
      %p218 = scmp.ne.s32.totalorder %s201, %s217
      %p219 = scmp.eq.s32.totalorder %s22, 0
      %p220 = por %p218, %p219
      %p221 = scmp.le.s32.totalorder 1, %s16
      %p222 = scmp.lt.s32.totalorder %s16, 3
      %p223 = pnand %p221, %p222
      %p224 = pneg %p223
      // Predicated region
      $region9: #{tpu_custom_call.1} parent=5 // pred_check
        _
      $region10: #{tpu_custom_call.1} parent=5 // pred_check_branch
        %226 = sbr.rel (%p223) target = $region12
      $region11: #{tpu_custom_call.1} parent=5 // pred_region
        %s227 = ssub.s32 %s16, 1
        // Predicated region
        $region13: #{tpu_custom_call.1} parent=11 // pred_check
          %p228 = pneg %p75
        $region14: #{tpu_custom_call.1} parent=11 // pred_check_branch
          %230 = sbr.rel (%p228) target = $region16
        $region15: #{tpu_custom_call.1} parent=11 // pred_region
          _
        $region16: #{tpu_custom_call.1} parent=11 // pred_fallthru
          _
        // Predicated region
        $region17: #{tpu_custom_call.1} parent=11 // pred_check
          %p231 = pneg %p96
        $region18: #{tpu_custom_call.1} parent=11 // pred_check_branch
          %233 = sbr.rel (%p231) target = $region20
        $region19: #{tpu_custom_call.1} parent=11 // pred_region
          _
        $region20: #{tpu_custom_call.1} parent=11 // pred_fallthru
          _
        // Predicated region
        $region21: #{tpu_custom_call.1} parent=11 // pred_check
          %p234 = pneg %p117
        $region22: #{tpu_custom_call.1} parent=11 // pred_check_branch
          %236 = sbr.rel (%p234) target = $region24
        $region23: #{tpu_custom_call.1} parent=11 // pred_region
          _
        $region24: #{tpu_custom_call.1} parent=11 // pred_fallthru
          _
        // Predicated region
        $region25: #{tpu_custom_call.1} parent=11 // pred_check
          %p237 = pneg %p138
        $region26: #{tpu_custom_call.1} parent=11 // pred_check_branch
          %239 = sbr.rel (%p237) target = $region28
        $region27: #{tpu_custom_call.1} parent=11 // pred_region
          _
        $region28: #{tpu_custom_call.1} parent=11 // pred_fallthru
          _
        // Predicated region
        $region29: #{tpu_custom_call.1} parent=11 // pred_check
          %p240 = pneg %p159
        $region30: #{tpu_custom_call.1} parent=11 // pred_check_branch
          %242 = sbr.rel (%p240) target = $region32
        $region31: #{tpu_custom_call.1} parent=11 // pred_region
          _
        $region32: #{tpu_custom_call.1} parent=11 // pred_fallthru
          _
      $region12: #{tpu_custom_call.1} parent=5 // pred_fallthru
        _
      %p243 = scmp.lt.s32.totalorder %s16, 2
      // Predicated region
      $region33: #{tpu_custom_call.1} parent=5 // pred_check
        %p244 = pneg %p243
      $region34: #{tpu_custom_call.1} parent=5 // pred_check_branch
        %246 = sbr.rel (%p244) target = $region36
      $region35: #{tpu_custom_call.1} parent=5 // pred_region
        // Predicated region
        $region37: #{tpu_custom_call.1} parent=35 // pred_check
          %p247 = pneg %p48
        $region38: #{tpu_custom_call.1} parent=35 // pred_check_branch
          %249 = sbr.rel (%p247) target = $region40
        $region39: #{tpu_custom_call.1} parent=35 // pred_region
          %p250 = scmp.lt.s32.totalorder %s23, 1
          %s251 = scalar_select %p250, %s23, 1
          %s252 = smul.addr %s251, 112
          %s253 = smul.addr %s252, 4
          %s254 = scalar_lea.vmem %s0, %s253
        $region40: #{tpu_custom_call.1} parent=35 // pred_fallthru
          _
        // Predicated region
        $region41: #{tpu_custom_call.1} parent=35 // pred_check
          %p255 = pneg %p179
        $region42: #{tpu_custom_call.1} parent=35 // pred_check_branch
          %257 = sbr.rel (%p255) target = $region44
        $region43: #{tpu_custom_call.1} parent=35 // pred_region
          %p258 = scmp.lt.s32.totalorder %s23, 1
          %s259 = scalar_select %p258, %s23, 1
          %s260 = scalar_lea.vmem %s6, %s259
        $region44: #{tpu_custom_call.1} parent=35 // pred_fallthru
          _
      $region36: #{tpu_custom_call.1} parent=5 // pred_fallthru
        _
      %p261 = scmp.le.s32.totalorder 1, %s16
      %p262 = scmp.lt.s32.totalorder %s16, 3
      %p263 = pnand %p261, %p262
      %p264 = pneg %p263
      // Predicated region
      $region45: #{tpu_custom_call.1} parent=5 // pred_check
        _
      $region46: #{tpu_custom_call.1} parent=5 // pred_check_branch
        %266 = sbr.rel (%p263) target = $region48
      $region47: #{tpu_custom_call.1} parent=5 // pred_region
        %s267 = ssub.s32 %s16, 1
        %p268 = scmp.lt.s32.totalorder %s25, 1
        %s269 = scalar_select %p268, %s25, 1
        %s270 = smul.addr %s269, 112
        %s271 = smul.addr %s270, 4
        %s272 = scalar_lea.vmem %s0, %s271
        %p273 = pneg %p54
        %p274 = pneg %p51
        %p275 = pneg %p75
        %p276 = pneg %p72
        %p277 = pneg %p96
        %p278 = pneg %p93
        %p279 = pneg %p117
        %p280 = pneg %p114
        %p281 = pneg %p138
        %p282 = pneg %p135
        %p283 = pneg %p159
        %p284 = pneg %p156
        %p285 = scmp.lt.s32.totalorder %s25, 1
        %s286 = scalar_select %p285, %s25, 1
        %s287 = scalar_lea.vmem %s6, %s286
        %p288 = pneg %p185
        %p289 = pneg %p182
        %p290 = pneg %p213
        %p291 = pneg %p210
        %s292 = sand.u32 %s200, 1
        %s293 = scalar_lea.sflag [#allocation4], %s292
        %s294 = sand.u32 %s200, 1
        %s295 = smul.addr %s294, 128
        %s296 = scalar_lea.vmem [#allocation3], %s295
        %p297 = scmp.lt.s32.totalorder %s25, 1
        %s298 = scalar_select %p297, %s25, 1
        %s299 = smul.addr %s298, 112
        %s300 = smul.addr %s299, 4
        %s301 = scalar_lea.vmem %s0, %s300
        %p302 = scmp.lt.s32.totalorder %s25, 1
        %s303 = scalar_select %p302, %s25, 1
        %s304 = scalar_lea.vmem %s6, %s303
        %s305 = smul.u32 16, %s26
        %s307 = smul.u32 %s26, 16
        %s308 = sadd.s32 %s307, 6
        %s309 = smul.u32 %s308, 4
        %s310 = smul.addr %s309, 4
        %s311 = scalar_lea.vmem %s301, %s310
        %v312 = vld [vmem:[%s311] sm:$0x8]
        %v313 = vld [vmem:[%s311 + $0x4] sm:$0xf]
        %v314 = vld [vmem:[%s311 + $0x8] sm:$0x7]
        %v315 = vld [vmem:[%s311 + $0x10] sm:$0x8]
        %v316 = vld [vmem:[%s311 + $0x14] sm:$0xf]
        %v317 = vld [vmem:[%s311 + $0x18] sm:$0x7]
        %v318 = vld [vmem:[%s311 + $0x20] sm:$0x8]
        %v319 = vld [vmem:[%s311 + $0x24] sm:$0xf]
        %v320 = vld [vmem:[%s311 + $0x28] sm:$0x7]
        %v321 = vld [vmem:[%s311 + $0x30] sm:$0x8]
        %v322 = vld [vmem:[%s311 + $0x34] sm:$0xf]
        %v323 = vld [vmem:[%s311 + $0x38] sm:$0x7]
        %v324 = vld [vmem:[%s311 + $0x40] sm:$0x8]
        %v325 = vld [vmem:[%s311 + $0x44] sm:$0xf]
        %v326 = vld [vmem:[%s311 + $0x48] sm:$0x7]
        %v327 = vld [vmem:[%s311 + $0x50] sm:$0x8]
        %v328 = vld [vmem:[%s311 + $0x54] sm:$0xf]
        %v329 = vld [vmem:[%s311 + $0x58] sm:$0x7]
        %v330 = vld [vmem:[%s311 + $0x60] sm:$0x8]
        %v331 = vld [vmem:[%s311 + $0x64] sm:$0xf]
        %v332 = vld [vmem:[%s311 + $0x68] sm:$0x7]
        %v333 = vld [vmem:[%s311 + $0x70] sm:$0x8]
        %v334 = vld [vmem:[%s311 + $0x74] sm:$0xf]
        %v335 = vld [vmem:[%s311 + $0x78] sm:$0x7]
        %v336 = vld [vmem:[%s311 + $0x80] sm:$0x8]
        %v337 = vld [vmem:[%s311 + $0x84] sm:$0xf]
        %v338 = vld [vmem:[%s311 + $0x88] sm:$0x7]
        %v339 = vld [vmem:[%s311 + $0x90] sm:$0x8]
        %v340 = vld [vmem:[%s311 + $0x94] sm:$0xf]
        %v341 = vld [vmem:[%s311 + $0x98] sm:$0x7]
        %v342 = vld [vmem:[%s311 + $0xa0] sm:$0x8]
        %v343 = vld [vmem:[%s311 + $0xa4] sm:$0xf]
        %v344 = vld [vmem:[%s311 + $0xa8] sm:$0x7]
        %v345 = vld [vmem:[%s311 + $0xb0] sm:$0x8]
        %v346 = vld [vmem:[%s311 + $0xb4] sm:$0xf]
        %v347 = vld [vmem:[%s311 + $0xb8] sm:$0x7]
        %v348 = vld [vmem:[%s311 + $0xc0] sm:$0x8]
        %v349 = vld [vmem:[%s311 + $0xc4] sm:$0xf]
        %v350 = vld [vmem:[%s311 + $0xc8] sm:$0x7]
        %v351 = vld [vmem:[%s311 + $0xd0] sm:$0x8]
        %v352 = vld [vmem:[%s311 + $0xd4] sm:$0xf]
        %v353 = vld [vmem:[%s311 + $0xd8] sm:$0x7]
        %v354 = vld [vmem:[%s311 + $0xe0] sm:$0x8]
        %v355 = vld [vmem:[%s311 + $0xe4] sm:$0xf]
        %v356 = vld [vmem:[%s311 + $0xe8] sm:$0x7]
        %v357 = vld [vmem:[%s311 + $0xf0] sm:$0x8]
        %v358 = vld [vmem:[%s311 + $0xf4] sm:$0xf]
        %v359 = vld [vmem:[%s311 + $0xf8] sm:$0x7]
        %vm408 = vcmask 1040384
        %vm409 = vcmask 1044484
        %vm410 = vmor %vm408, %vm409
        %v411 = vrot.slane %v312, 7
        %v412 = vrot.slane %v411, 4
        %v413 = vrot.slane %v313, 7
        %v414 = vsel %vm410, %v412, %v413
        %v415 = vrot.slane %v413, 4
        %v416 = vrot.slane %v314, 7
        %v417 = vsel %vm410, %v415, %v416
        %v418 = vrot.slane %v315, 7
        %v419 = vrot.slane %v418, 4
        %v420 = vrot.slane %v316, 7
        %v421 = vsel %vm410, %v419, %v420
        %v422 = vrot.slane %v420, 4
        %v423 = vrot.slane %v317, 7
        %v424 = vsel %vm410, %v422, %v423
        %v425 = vrot.slane %v318, 7
        %v426 = vrot.slane %v425, 4
        %v427 = vrot.slane %v319, 7
        %v428 = vsel %vm410, %v426, %v427
        %v429 = vrot.slane %v427, 4
        %v430 = vrot.slane %v320, 7
        %v431 = vsel %vm410, %v429, %v430
        %v432 = vrot.slane %v321, 7
        %v433 = vrot.slane %v432, 4
        %v434 = vrot.slane %v322, 7
        %v435 = vsel %vm410, %v433, %v434
        %v436 = vrot.slane %v434, 4
        %v437 = vrot.slane %v323, 7
        %v438 = vsel %vm410, %v436, %v437
        %v439 = vrot.slane %v324, 7
        %v440 = vrot.slane %v439, 4
        %v441 = vrot.slane %v325, 7
        %v442 = vsel %vm410, %v440, %v441
        %v443 = vrot.slane %v441, 4
        %v444 = vrot.slane %v326, 7
        %v445 = vsel %vm410, %v443, %v444
        %v446 = vrot.slane %v327, 7
        %v447 = vrot.slane %v446, 4
        %v448 = vrot.slane %v328, 7
        %v449 = vsel %vm410, %v447, %v448
        %v450 = vrot.slane %v448, 4
        %v451 = vrot.slane %v329, 7
        %v452 = vsel %vm410, %v450, %v451
        %v453 = vrot.slane %v330, 7
        %v454 = vrot.slane %v453, 4
        %v455 = vrot.slane %v331, 7
        %v456 = vsel %vm410, %v454, %v455
        %v457 = vrot.slane %v455, 4
        %v458 = vrot.slane %v332, 7
        %v459 = vsel %vm410, %v457, %v458
        %v460 = vrot.slane %v333, 7
        %v461 = vrot.slane %v460, 4
        %v462 = vrot.slane %v334, 7
        %v463 = vsel %vm410, %v461, %v462
        %v464 = vrot.slane %v462, 4
        %v465 = vrot.slane %v335, 7
        %v466 = vsel %vm410, %v464, %v465
        %v467 = vrot.slane %v336, 7
        %v468 = vrot.slane %v467, 4
        %v469 = vrot.slane %v337, 7
        %v470 = vsel %vm410, %v468, %v469
        %v471 = vrot.slane %v469, 4
        %v472 = vrot.slane %v338, 7
        %v473 = vsel %vm410, %v471, %v472
        %v474 = vrot.slane %v339, 7
        %v475 = vrot.slane %v474, 4
        %v476 = vrot.slane %v340, 7
        %v477 = vsel %vm410, %v475, %v476
        %v478 = vrot.slane %v476, 4
        %v479 = vrot.slane %v341, 7
        %v480 = vsel %vm410, %v478, %v479
        %v481 = vrot.slane %v342, 7
        %v482 = vrot.slane %v481, 4
        %v483 = vrot.slane %v343, 7
        %v484 = vsel %vm410, %v482, %v483
        %v485 = vrot.slane %v483, 4
        %v486 = vrot.slane %v344, 7
        %v487 = vsel %vm410, %v485, %v486
        %v488 = vrot.slane %v345, 7
        %v489 = vrot.slane %v488, 4
        %v490 = vrot.slane %v346, 7
        %v491 = vsel %vm410, %v489, %v490
        %v492 = vrot.slane %v490, 4
        %v493 = vrot.slane %v347, 7
        %v494 = vsel %vm410, %v492, %v493
        %v495 = vrot.slane %v348, 7
        %v496 = vrot.slane %v495, 4
        %v497 = vrot.slane %v349, 7
        %v498 = vsel %vm410, %v496, %v497
        %v499 = vrot.slane %v497, 4
        %v500 = vrot.slane %v350, 7
        %v501 = vsel %vm410, %v499, %v500
        %v502 = vrot.slane %v351, 7
        %v503 = vrot.slane %v502, 4
        %v504 = vrot.slane %v352, 7
        %v505 = vsel %vm410, %v503, %v504
        %v506 = vrot.slane %v504, 4
        %v507 = vrot.slane %v353, 7
        %v508 = vsel %vm410, %v506, %v507
        %v509 = vrot.slane %v354, 7
        %v510 = vrot.slane %v509, 4
        %v511 = vrot.slane %v355, 7
        %v512 = vsel %vm410, %v510, %v511
        %v513 = vrot.slane %v511, 4
        %v514 = vrot.slane %v356, 7
        %v515 = vsel %vm410, %v513, %v514
        %v516 = vrot.slane %v357, 7
        %v517 = vrot.slane %v516, 4
        %v518 = vrot.slane %v358, 7
        %v519 = vsel %vm410, %v517, %v518
        %v520 = vrot.slane %v518, 4
        %v521 = vrot.slane %v359, 7
        %v522 = vsel %vm410, %v520, %v521
        %v523 = vld [vmem:[%s1] sm:$0xf]
        %v524 = vld [vmem:[%s1 + $0x4] sm:$0xf]
        %v525 = vld [vmem:[%s2] sm:$0x1]
        %v527 = vlaneseq
        %v528 = vshrl.u32 %v527, 7
        %v529 = vsub.s32 0, %v528
        %v530 = vrot.slane %v525, %v529
        %v532 = vunpack.c.l.b16 %v414
        %v533 = vunpack.c.l.b16 %v417
        %v534 = vunpack.c.l.b16 %v421
        %v535 = vunpack.c.l.b16 %v424
        %v536 = vunpack.c.l.b16 %v428
        %v537 = vunpack.c.l.b16 %v431
        %v538 = vunpack.c.l.b16 %v435
        %v539 = vunpack.c.l.b16 %v438
        %v540 = vunpack.c.l.b16 %v442
        %v541 = vunpack.c.l.b16 %v445
        %v542 = vunpack.c.l.b16 %v449
        %v543 = vunpack.c.l.b16 %v452
        %v544 = vunpack.c.l.b16 %v456
        %v545 = vunpack.c.l.b16 %v459
        %v546 = vunpack.c.l.b16 %v463
        %v547 = vunpack.c.l.b16 %v466
        %v548 = vunpack.c.l.b16 %v470
        %v549 = vunpack.c.l.b16 %v473
        %v550 = vunpack.c.l.b16 %v477
        %v551 = vunpack.c.l.b16 %v480
        %v552 = vunpack.c.l.b16 %v484
        %v553 = vunpack.c.l.b16 %v487
        %v554 = vunpack.c.l.b16 %v491
        %v555 = vunpack.c.l.b16 %v494
        %v556 = vunpack.c.l.b16 %v498
        %v557 = vunpack.c.l.b16 %v501
        %v558 = vunpack.c.l.b16 %v505
        %v559 = vunpack.c.l.b16 %v508
        %v560 = vunpack.c.l.b16 %v512
        %v561 = vunpack.c.l.b16 %v515
        %v562 = vunpack.c.l.b16 %v519
        %v563 = vunpack.c.l.b16 %v522
        %v564 = vpack.c.b16 %v533, %v532
        %v565 = vpack.c.b16 %v535, %v534
        %v566 = vpack.c.b16 %v537, %v536
        %v567 = vpack.c.b16 %v539, %v538
        %v568 = vpack.c.b16 %v541, %v540
        %v569 = vpack.c.b16 %v543, %v542
        %v570 = vpack.c.b16 %v545, %v544
        %v571 = vpack.c.b16 %v547, %v546
        %v572 = vpack.c.b16 %v549, %v548
        %v573 = vpack.c.b16 %v551, %v550
        %v574 = vpack.c.b16 %v553, %v552
        %v575 = vpack.c.b16 %v555, %v554
        %v576 = vpack.c.b16 %v557, %v556
        %v577 = vpack.c.b16 %v559, %v558
        %v578 = vpack.c.b16 %v561, %v560
        %v579 = vpack.c.b16 %v563, %v562
        %v582 = vunpack.c.l.b16 %v523
        %v583 = vunpack.c.l.b16 %v524
        %v584 = vpack.c.b16 %v583, %v582
        %vm586 = vcmask 130048
        %v588 = vsel %vm586, %v564, 0
        %v591 = vsel %vm586, %v565, 0
        %v594 = vsel %vm586, %v566, 0
        %v597 = vsel %vm586, %v567, 0
        %v600 = vsel %vm586, %v568, 0
        %v603 = vsel %vm586, %v569, 0
        %v606 = vsel %vm586, %v570, 0
        %v609 = vsel %vm586, %v571, 0
        %v612 = vsel %vm586, %v572, 0
        %v615 = vsel %vm586, %v573, 0
        %v618 = vsel %vm586, %v574, 0
        %v621 = vsel %vm586, %v575, 0
        %v624 = vsel %vm586, %v576, 0
        %v627 = vsel %vm586, %v577, 0
        %v630 = vsel %vm586, %v578, 0
        %v633 = vsel %vm586, %v579, 0
        %635 = vmatprep.subr.bf16.mxu0 0
        %636 = vmatpush1.bf16.msra.mxu0 %v584
        %637 = vmatprep.subr.bf16.mxu0 0
        %638 = vmatpush1.bf16.msra.mxu0 0
        %639 = vmatprep.subr.bf16.mxu0 0
        %640 = vmatpush1.bf16.msra.mxu0 0
        %641 = vmatprep.subr.bf16.mxu0 0
        %642 = vmatpush1.bf16.msra.mxu0 0
        %643 = vmatprep.subr.bf16.mxu0 0
        %644 = vmatpush1.bf16.msra.mxu0 0
        %645 = vmatprep.subr.bf16.mxu0 0
        %646 = vmatpush1.bf16.msra.mxu0 0
        %647 = vmatprep.subr.bf16.mxu0 0
        %648 = vmatpush1.bf16.msra.mxu0 0
        %649 = vmatprep.subr.bf16.mxu0 0
        %650 = vmatpush1.bf16.msra.mxu0 0
        %651 = vmatprep.subr.bf16.mxu0 0
        %652 = vmatpush1.bf16.msra.mxu0 0
        %653 = vmatprep.subr.bf16.mxu0 0
        %654 = vmatpush1.bf16.msra.mxu0 0
        %655 = vmatprep.subr.bf16.mxu0 0
        %656 = vmatpush1.bf16.msra.mxu0 0
        %657 = vmatprep.subr.bf16.mxu0 0
        %658 = vmatpush1.bf16.msra.mxu0 0
        %659 = vmatprep.subr.bf16.mxu0 0
        %660 = vmatpush1.bf16.msra.mxu0 0
        %661 = vmatprep.subr.bf16.mxu0 0
        %662 = vmatpush1.bf16.msra.mxu0 0
        %663 = vmatprep.subr.bf16.mxu0 0
        %664 = vmatpush1.bf16.msra.mxu0 0
        %665 = vmatprep.subr.bf16.mxu0 0
        %666 = vmatpush1.bf16.msra.mxu0 0
        %667 = vmatprep.mubr.bf16.mxu0 0
        %668 = vmatmul.mubr.bf16.gmra.mrb[0].mxu0 %v588
        %v669 = vpop.f32.mrb[0].mxu0
        %v670 = vadd.f32 %v530, %v669
        %v671 = vpop.f32.mrb[0].mxu0
        %v672 = vpop.f32.mrb[0].mxu0
        %v673 = vadd.f32 %v530, %v672
        %v674 = vpop.f32.mrb[0].mxu0
        %675 = vmatprep.mubr.bf16.mxu0 0
        %676 = vmatmul.mubr.bf16.gmra.mrb[0].mxu0 %v591
        %v677 = vpop.f32.mrb[0].mxu0
        %v678 = vadd.f32 %v530, %v677
        %v679 = vpop.f32.mrb[0].mxu0
        %v680 = vpop.f32.mrb[0].mxu0
        %v681 = vadd.f32 %v530, %v680
        %v682 = vpop.f32.mrb[0].mxu0
        %683 = vmatprep.mubr.bf16.mxu0 0
        %684 = vmatmul.mubr.bf16.gmra.mrb[0].mxu0 %v594
        %v685 = vpop.f32.mrb[0].mxu0
        %v686 = vadd.f32 %v530, %v685
        %v687 = vpop.f32.mrb[0].mxu0
        %v688 = vpop.f32.mrb[0].mxu0
        %v689 = vadd.f32 %v530, %v688
        %v690 = vpop.f32.mrb[0].mxu0
        %691 = vmatprep.mubr.bf16.mxu0 0
        %692 = vmatmul.mubr.bf16.gmra.mrb[0].mxu0 %v597
        %v693 = vpop.f32.mrb[0].mxu0
        %v694 = vadd.f32 %v530, %v693
        %v695 = vpop.f32.mrb[0].mxu0
        %v696 = vpop.f32.mrb[0].mxu0
        %v697 = vadd.f32 %v530, %v696
        %v698 = vpop.f32.mrb[0].mxu0
        %699 = vmatprep.mubr.bf16.mxu0 0
        %700 = vmatmul.mubr.bf16.gmra.mrb[0].mxu0 %v600
        %v701 = vpop.f32.mrb[0].mxu0
        %v702 = vadd.f32 %v530, %v701
        %v703 = vpop.f32.mrb[0].mxu0
        %v704 = vpop.f32.mrb[0].mxu0
        %v705 = vadd.f32 %v530, %v704
        %v706 = vpop.f32.mrb[0].mxu0
        %707 = vmatprep.mubr.bf16.mxu0 0
        %708 = vmatmul.mubr.bf16.gmra.mrb[0].mxu0 %v603
        %v709 = vpop.f32.mrb[0].mxu0
        %v710 = vadd.f32 %v530, %v709
        %v711 = vpop.f32.mrb[0].mxu0
        %v712 = vpop.f32.mrb[0].mxu0
        %v713 = vadd.f32 %v530, %v712
        %v714 = vpop.f32.mrb[0].mxu0
        %715 = vmatprep.mubr.bf16.mxu0 0
        %716 = vmatmul.mubr.bf16.gmra.mrb[0].mxu0 %v606
        %v717 = vpop.f32.mrb[0].mxu0
        %v718 = vadd.f32 %v530, %v717
        %v719 = vpop.f32.mrb[0].mxu0
        %v720 = vpop.f32.mrb[0].mxu0
        %v721 = vadd.f32 %v530, %v720
        %v722 = vpop.f32.mrb[0].mxu0
        %723 = vmatprep.mubr.bf16.mxu0 0
        %724 = vmatmul.mubr.bf16.gmra.mrb[0].mxu0 %v609
        %v725 = vpop.f32.mrb[0].mxu0
        %v726 = vadd.f32 %v530, %v725
        %v727 = vpop.f32.mrb[0].mxu0
        %v728 = vpop.f32.mrb[0].mxu0
        %v729 = vadd.f32 %v530, %v728
        %v730 = vpop.f32.mrb[0].mxu0
        %731 = vmatprep.mubr.bf16.mxu0 0
        %732 = vmatmul.mubr.bf16.gmra.mrb[0].mxu0 %v612
        %v733 = vpop.f32.mrb[0].mxu0
        %v734 = vadd.f32 %v530, %v733
        %v735 = vpop.f32.mrb[0].mxu0
        %v736 = vpop.f32.mrb[0].mxu0
        %v737 = vadd.f32 %v530, %v736
        %v738 = vpop.f32.mrb[0].mxu0
        %739 = vmatprep.mubr.bf16.mxu0 0
        %740 = vmatmul.mubr.bf16.gmra.mrb[0].mxu0 %v615
        %v741 = vpop.f32.mrb[0].mxu0
        %v742 = vadd.f32 %v530, %v741
        %v743 = vpop.f32.mrb[0].mxu0
        %v744 = vpop.f32.mrb[0].mxu0
        %v745 = vadd.f32 %v530, %v744
        %v746 = vpop.f32.mrb[0].mxu0
        %747 = vmatprep.mubr.bf16.mxu0 0
        %748 = vmatmul.mubr.bf16.gmra.mrb[0].mxu0 %v618
        %v749 = vpop.f32.mrb[0].mxu0
        %v750 = vadd.f32 %v530, %v749
        %v751 = vpop.f32.mrb[0].mxu0
        %v752 = vpop.f32.mrb[0].mxu0
        %v753 = vadd.f32 %v530, %v752
        %v754 = vpop.f32.mrb[0].mxu0
        %755 = vmatprep.mubr.bf16.mxu0 0
        %756 = vmatmul.mubr.bf16.gmra.mrb[0].mxu0 %v621
        %v757 = vpop.f32.mrb[0].mxu0
        %v758 = vadd.f32 %v530, %v757
        %v759 = vpop.f32.mrb[0].mxu0
        %v760 = vpop.f32.mrb[0].mxu0
        %v761 = vadd.f32 %v530, %v760
        %v762 = vpop.f32.mrb[0].mxu0
        %763 = vmatprep.mubr.bf16.mxu0 0
        %764 = vmatmul.mubr.bf16.gmra.mrb[0].mxu0 %v624
        %v765 = vpop.f32.mrb[0].mxu0
        %v766 = vadd.f32 %v530, %v765
        %v767 = vpop.f32.mrb[0].mxu0
        %v768 = vpop.f32.mrb[0].mxu0
        %v769 = vadd.f32 %v530, %v768
        %v770 = vpop.f32.mrb[0].mxu0
        %771 = vmatprep.mubr.bf16.mxu0 0
        %772 = vmatmul.mubr.bf16.gmra.mrb[0].mxu0 %v627
        %v773 = vpop.f32.mrb[0].mxu0
        %v774 = vadd.f32 %v530, %v773
        %v775 = vpop.f32.mrb[0].mxu0
        %v776 = vpop.f32.mrb[0].mxu0
        %v777 = vadd.f32 %v530, %v776
        %v778 = vpop.f32.mrb[0].mxu0
        %779 = vmatprep.mubr.bf16.mxu0 0
        %780 = vmatmul.mubr.bf16.gmra.mrb[0].mxu0 %v630
        %v781 = vpop.f32.mrb[0].mxu0
        %v782 = vadd.f32 %v530, %v781
        %v783 = vpop.f32.mrb[0].mxu0
        %v784 = vpop.f32.mrb[0].mxu0
        %v785 = vadd.f32 %v530, %v784
        %v786 = vpop.f32.mrb[0].mxu0
        %787 = vmatprep.mubr.bf16.mxu0 0
        %788 = vmatmul.mubr.bf16.gmra.mrb[0].mxu0 %v633
        %v789 = vpop.f32.mrb[0].mxu0
        %v790 = vadd.f32 %v530, %v789
        %v791 = vpop.f32.mrb[0].mxu0
        %v792 = vpop.f32.mrb[0].mxu0
        %v793 = vadd.f32 %v530, %v792
        %v794 = vpop.f32.mrb[0].mxu0
        %795 = vdwg.mxu0
        %v796 = vmax.f32 %v670, 0.0
        %v797 = vmax.f32 %v673, 0.0
        %v798 = vmax.f32 %v678, 0.0
        %v799 = vmax.f32 %v681, 0.0
        %v800 = vmax.f32 %v686, 0.0
        %v801 = vmax.f32 %v689, 0.0
        %v802 = vmax.f32 %v694, 0.0
        %v803 = vmax.f32 %v697, 0.0
        %v804 = vmax.f32 %v702, 0.0
        %v805 = vmax.f32 %v705, 0.0
        %v806 = vmax.f32 %v710, 0.0
        %v807 = vmax.f32 %v713, 0.0
        %v808 = vmax.f32 %v718, 0.0
        %v809 = vmax.f32 %v721, 0.0
        %v810 = vmax.f32 %v726, 0.0
        %v811 = vmax.f32 %v729, 0.0
        %v812 = vmax.f32 %v734, 0.0
        %v813 = vmax.f32 %v737, 0.0
        %v814 = vmax.f32 %v742, 0.0
        %v815 = vmax.f32 %v745, 0.0
        %v816 = vmax.f32 %v750, 0.0
        %v817 = vmax.f32 %v753, 0.0
        %v818 = vmax.f32 %v758, 0.0
        %v819 = vmax.f32 %v761, 0.0
        %v820 = vmax.f32 %v766, 0.0
        %v821 = vmax.f32 %v769, 0.0
        %v822 = vmax.f32 %v774, 0.0
        %v823 = vmax.f32 %v777, 0.0
        %v824 = vmax.f32 %v782, 0.0
        %v825 = vmax.f32 %v785, 0.0
        %v826 = vmax.f32 %v790, 0.0
        %v827 = vmax.f32 %v793, 0.0
        %v828 = vpack.c.bf16 %v797, %v796
        %v829 = vpack.c.bf16 %v799, %v798
        %v830 = vpack.c.bf16 %v801, %v800
        %v831 = vpack.c.bf16 %v803, %v802
        %v832 = vpack.c.bf16 %v805, %v804
        %v833 = vpack.c.bf16 %v807, %v806
        %v834 = vpack.c.bf16 %v809, %v808
        %v835 = vpack.c.bf16 %v811, %v810
        %v836 = vpack.c.bf16 %v813, %v812
        %v837 = vpack.c.bf16 %v815, %v814
        %v838 = vpack.c.bf16 %v817, %v816
        %v839 = vpack.c.bf16 %v819, %v818
        %v840 = vpack.c.bf16 %v821, %v820
        %v841 = vpack.c.bf16 %v823, %v822
        %v842 = vpack.c.bf16 %v825, %v824
        %v843 = vpack.c.bf16 %v827, %v826
        %844 = vst [vmem:[#allocation2] sm:$0xff] %v828
        %845 = vst [vmem:[#allocation2 + $0x20] sm:$0xff] %v829
        %846 = vst [vmem:[#allocation2 + $0x40] sm:$0xff] %v830
        %847 = vst [vmem:[#allocation2 + $0x60] sm:$0xff] %v831
        %848 = vst [vmem:[#allocation2 + $0x80] sm:$0xff] %v832
        %849 = vst [vmem:[#allocation2 + $0xa0] sm:$0xff] %v833
        %850 = vst [vmem:[#allocation2 + $0xc0] sm:$0xff] %v834
        %851 = vst [vmem:[#allocation2 + $0xe0] sm:$0xff] %v835
        %852 = vst [vmem:[#allocation2 + $0x100] sm:$0xff] %v836
        %853 = vst [vmem:[#allocation2 + $0x120] sm:$0xff] %v837
        %854 = vst [vmem:[#allocation2 + $0x140] sm:$0xff] %v838
        %855 = vst [vmem:[#allocation2 + $0x160] sm:$0xff] %v839
        %856 = vst [vmem:[#allocation2 + $0x180] sm:$0xff] %v840
        %857 = vst [vmem:[#allocation2 + $0x1a0] sm:$0xff] %v841
        %858 = vst [vmem:[#allocation2 + $0x1c0] sm:$0xff] %v842
        %859 = vst [vmem:[#allocation2 + $0x1e0] sm:$0xff] %v843
        %s860 = sadd.s32 %s307, 4
        %s861 = smul.u32 %s860, 4
        %s862 = smul.addr %s861, 4
        %s863 = scalar_lea.vmem %s301, %s862
        %v864 = vld [vmem:[%s863] sm:$0xc]
        %v865 = vld [vmem:[%s863 + $0x4] sm:$0xf]
        %v866 = vld [vmem:[%s863 + $0x8] sm:$0x3]
        %v867 = vld [vmem:[%s863 + $0x10] sm:$0xc]
        %v868 = vld [vmem:[%s863 + $0x14] sm:$0xf]
        %v869 = vld [vmem:[%s863 + $0x18] sm:$0x3]
        %v870 = vld [vmem:[%s863 + $0x20] sm:$0xc]
        %v871 = vld [vmem:[%s863 + $0x24] sm:$0xf]
        %v872 = vld [vmem:[%s863 + $0x28] sm:$0x3]
        %v873 = vld [vmem:[%s863 + $0x30] sm:$0xc]
        %v874 = vld [vmem:[%s863 + $0x34] sm:$0xf]
        %v875 = vld [vmem:[%s863 + $0x38] sm:$0x3]
        %v876 = vld [vmem:[%s863 + $0x40] sm:$0xc]
        %v877 = vld [vmem:[%s863 + $0x44] sm:$0xf]
        %v878 = vld [vmem:[%s863 + $0x48] sm:$0x3]
        %v879 = vld [vmem:[%s863 + $0x50] sm:$0xc]
        %v880 = vld [vmem:[%s863 + $0x54] sm:$0xf]
        %v881 = vld [vmem:[%s863 + $0x58] sm:$0x3]
        %v882 = vld [vmem:[%s863 + $0x60] sm:$0xc]
        %v883 = vld [vmem:[%s863 + $0x64] sm:$0xf]
        %v884 = vld [vmem:[%s863 + $0x68] sm:$0x3]
        %v885 = vld [vmem:[%s863 + $0x70] sm:$0xc]
        %v886 = vld [vmem:[%s863 + $0x74] sm:$0xf]
        %v887 = vld [vmem:[%s863 + $0x78] sm:$0x3]
        %v888 = vld [vmem:[%s863 + $0x80] sm:$0xc]
        %v889 = vld [vmem:[%s863 + $0x84] sm:$0xf]
        %v890 = vld [vmem:[%s863 + $0x88] sm:$0x3]
        %v891 = vld [vmem:[%s863 + $0x90] sm:$0xc]
        %v892 = vld [vmem:[%s863 + $0x94] sm:$0xf]
        %v893 = vld [vmem:[%s863 + $0x98] sm:$0x3]
        %v894 = vld [vmem:[%s863 + $0xa0] sm:$0xc]
        %v895 = vld [vmem:[%s863 + $0xa4] sm:$0xf]
        %v896 = vld [vmem:[%s863 + $0xa8] sm:$0x3]
        %v897 = vld [vmem:[%s863 + $0xb0] sm:$0xc]
        %v898 = vld [vmem:[%s863 + $0xb4] sm:$0xf]
        %v899 = vld [vmem:[%s863 + $0xb8] sm:$0x3]
        %v900 = vld [vmem:[%s863 + $0xc0] sm:$0xc]
        %v901 = vld [vmem:[%s863 + $0xc4] sm:$0xf]
        %v902 = vld [vmem:[%s863 + $0xc8] sm:$0x3]
        %v903 = vld [vmem:[%s863 + $0xd0] sm:$0xc]
        %v904 = vld [vmem:[%s863 + $0xd4] sm:$0xf]
        %v905 = vld [vmem:[%s863 + $0xd8] sm:$0x3]
        %v906 = vld [vmem:[%s863 + $0xe0] sm:$0xc]
        %v907 = vld [vmem:[%s863 + $0xe4] sm:$0xf]
        %v908 = vld [vmem:[%s863 + $0xe8] sm:$0x3]
        %v909 = vld [vmem:[%s863 + $0xf0] sm:$0xc]
        %v910 = vld [vmem:[%s863 + $0xf4] sm:$0xf]
        %v911 = vld [vmem:[%s863 + $0xf8] sm:$0x3]
        %v912 = vld [vmem:[%s863] sm:$0x8]
        %v913 = vld [vmem:[%s863 + $0x8] sm:$0x7]
        %v914 = vld [vmem:[%s863 + $0x10] sm:$0x8]
        %v915 = vld [vmem:[%s863 + $0x18] sm:$0x7]
        %v916 = vld [vmem:[%s863 + $0x20] sm:$0x8]
        %v917 = vld [vmem:[%s863 + $0x28] sm:$0x7]
        %v918 = vld [vmem:[%s863 + $0x30] sm:$0x8]
        %v919 = vld [vmem:[%s863 + $0x38] sm:$0x7]
        %v920 = vld [vmem:[%s863 + $0x40] sm:$0x8]
        %v921 = vld [vmem:[%s863 + $0x48] sm:$0x7]
        %v922 = vld [vmem:[%s863 + $0x50] sm:$0x8]
        %v923 = vld [vmem:[%s863 + $0x58] sm:$0x7]
        %v924 = vld [vmem:[%s863 + $0x60] sm:$0x8]
        %v925 = vld [vmem:[%s863 + $0x68] sm:$0x7]
        %v926 = vld [vmem:[%s863 + $0x70] sm:$0x8]
        %v927 = vld [vmem:[%s863 + $0x78] sm:$0x7]
        %v928 = vld [vmem:[%s863 + $0x80] sm:$0x8]
        %v929 = vld [vmem:[%s863 + $0x88] sm:$0x7]
        %v930 = vld [vmem:[%s863 + $0x90] sm:$0x8]
        %v931 = vld [vmem:[%s863 + $0x98] sm:$0x7]
        %v932 = vld [vmem:[%s863 + $0xa0] sm:$0x8]
        %v933 = vld [vmem:[%s863 + $0xa8] sm:$0x7]
        %v934 = vld [vmem:[%s863 + $0xb0] sm:$0x8]
        %v935 = vld [vmem:[%s863 + $0xb8] sm:$0x7]
        %v936 = vld [vmem:[%s863 + $0xc0] sm:$0x8]
        %v937 = vld [vmem:[%s863 + $0xc8] sm:$0x7]
        %v938 = vld [vmem:[%s863 + $0xd0] sm:$0x8]
        %v939 = vld [vmem:[%s863 + $0xd8] sm:$0x7]
        %v940 = vld [vmem:[%s863 + $0xe0] sm:$0x8]
        %v941 = vld [vmem:[%s863 + $0xe8] sm:$0x7]
        %v942 = vld [vmem:[%s863 + $0xf0] sm:$0x8]
        %v943 = vld [vmem:[%s863 + $0xf8] sm:$0x7]
        %v944 = vld [vmem:[%s863 + $0x8] sm:$0xf]
        %v945 = vld [vmem:[%s863 + $0x18] sm:$0xf]
        %v946 = vld [vmem:[%s863 + $0x28] sm:$0xf]
        %v947 = vld [vmem:[%s863 + $0x38] sm:$0xf]
        %v948 = vld [vmem:[%s863 + $0x48] sm:$0xf]
        %v949 = vld [vmem:[%s863 + $0x58] sm:$0xf]
        %v950 = vld [vmem:[%s863 + $0x68] sm:$0xf]
        %v951 = vld [vmem:[%s863 + $0x78] sm:$0xf]
        %v952 = vld [vmem:[%s863 + $0x88] sm:$0xf]
        %v953 = vld [vmem:[%s863 + $0x98] sm:$0xf]
        %v954 = vld [vmem:[%s863 + $0xa8] sm:$0xf]
        %v955 = vld [vmem:[%s863 + $0xb8] sm:$0xf]
        %v956 = vld [vmem:[%s863 + $0xc8] sm:$0xf]
        %v957 = vld [vmem:[%s863 + $0xd8] sm:$0xf]
        %v958 = vld [vmem:[%s863 + $0xe8] sm:$0xf]
        %v959 = vld [vmem:[%s863 + $0xf8] sm:$0xf]
        %v960 = vld [vmem:[%s311] sm:$0xc]
        %v961 = vld [vmem:[%s311 + $0x4] sm:$0xf]
        %v962 = vld [vmem:[%s311 + $0x8] sm:$0x3]
        %v963 = vld [vmem:[%s311 + $0x10] sm:$0xc]
        %v964 = vld [vmem:[%s311 + $0x14] sm:$0xf]
        %v965 = vld [vmem:[%s311 + $0x18] sm:$0x3]
        %v966 = vld [vmem:[%s311 + $0x20] sm:$0xc]
        %v967 = vld [vmem:[%s311 + $0x24] sm:$0xf]
        %v968 = vld [vmem:[%s311 + $0x28] sm:$0x3]
        %v969 = vld [vmem:[%s311 + $0x30] sm:$0xc]
        %v970 = vld [vmem:[%s311 + $0x34] sm:$0xf]
        %v971 = vld [vmem:[%s311 + $0x38] sm:$0x3]
        %v972 = vld [vmem:[%s311 + $0x40] sm:$0xc]
        %v973 = vld [vmem:[%s311 + $0x44] sm:$0xf]
        %v974 = vld [vmem:[%s311 + $0x48] sm:$0x3]
        %v975 = vld [vmem:[%s311 + $0x50] sm:$0xc]
        %v976 = vld [vmem:[%s311 + $0x54] sm:$0xf]
        %v977 = vld [vmem:[%s311 + $0x58] sm:$0x3]
        %v978 = vld [vmem:[%s311 + $0x60] sm:$0xc]
        %v979 = vld [vmem:[%s311 + $0x64] sm:$0xf]
        %v980 = vld [vmem:[%s311 + $0x68] sm:$0x3]
        %v981 = vld [vmem:[%s311 + $0x70] sm:$0xc]
        %v982 = vld [vmem:[%s311 + $0x74] sm:$0xf]
        %v983 = vld [vmem:[%s311 + $0x78] sm:$0x3]
        %v984 = vld [vmem:[%s311 + $0x80] sm:$0xc]
        %v985 = vld [vmem:[%s311 + $0x84] sm:$0xf]
        %v986 = vld [vmem:[%s311 + $0x88] sm:$0x3]
        %v987 = vld [vmem:[%s311 + $0x90] sm:$0xc]
        %v988 = vld [vmem:[%s311 + $0x94] sm:$0xf]
        %v989 = vld [vmem:[%s311 + $0x98] sm:$0x3]
        %v990 = vld [vmem:[%s311 + $0xa0] sm:$0xc]
        %v991 = vld [vmem:[%s311 + $0xa4] sm:$0xf]
        %v992 = vld [vmem:[%s311 + $0xa8] sm:$0x3]
        %v993 = vld [vmem:[%s311 + $0xb0] sm:$0xc]
        %v994 = vld [vmem:[%s311 + $0xb4] sm:$0xf]
        %v995 = vld [vmem:[%s311 + $0xb8] sm:$0x3]
        %v996 = vld [vmem:[%s311 + $0xc0] sm:$0xc]
        %v997 = vld [vmem:[%s311 + $0xc4] sm:$0xf]
        %v998 = vld [vmem:[%s311 + $0xc8] sm:$0x3]
        %v999 = vld [vmem:[%s311 + $0xd0] sm:$0xc]
        %v1000 = vld [vmem:[%s311 + $0xd4] sm:$0xf]
        %v1001 = vld [vmem:[%s311 + $0xd8] sm:$0x3]
        %v1002 = vld [vmem:[%s311 + $0xe0] sm:$0xc]
        %v1003 = vld [vmem:[%s311 + $0xe4] sm:$0xf]
        %v1004 = vld [vmem:[%s311 + $0xe8] sm:$0x3]
        %v1005 = vld [vmem:[%s311 + $0xf0] sm:$0xc]
        %v1006 = vld [vmem:[%s311 + $0xf4] sm:$0xf]
        %v1007 = vld [vmem:[%s311 + $0xf8] sm:$0x3]
        %v1008 = vld [vmem:[%s311] sm:$0x8]
        %v1009 = vld [vmem:[%s311 + $0x8] sm:$0x7]
        %v1010 = vld [vmem:[%s311 + $0x10] sm:$0x8]
        %v1011 = vld [vmem:[%s311 + $0x18] sm:$0x7]
        %v1012 = vld [vmem:[%s311 + $0x20] sm:$0x8]
        %v1013 = vld [vmem:[%s311 + $0x28] sm:$0x7]
        %v1014 = vld [vmem:[%s311 + $0x30] sm:$0x8]
        %v1015 = vld [vmem:[%s311 + $0x38] sm:$0x7]
        %v1016 = vld [vmem:[%s311 + $0x40] sm:$0x8]
        %v1017 = vld [vmem:[%s311 + $0x48] sm:$0x7]
        %v1018 = vld [vmem:[%s311 + $0x50] sm:$0x8]
        %v1019 = vld [vmem:[%s311 + $0x58] sm:$0x7]
        %v1020 = vld [vmem:[%s311 + $0x60] sm:$0x8]
        %v1021 = vld [vmem:[%s311 + $0x68] sm:$0x7]
        %v1022 = vld [vmem:[%s311 + $0x70] sm:$0x8]
        %v1023 = vld [vmem:[%s311 + $0x78] sm:$0x7]
        %v1024 = vld [vmem:[%s311 + $0x80] sm:$0x8]
        %v1025 = vld [vmem:[%s311 + $0x88] sm:$0x7]
        %v1026 = vld [vmem:[%s311 + $0x90] sm:$0x8]
        %v1027 = vld [vmem:[%s311 + $0x98] sm:$0x7]
        %v1028 = vld [vmem:[%s311 + $0xa0] sm:$0x8]
        %v1029 = vld [vmem:[%s311 + $0xa8] sm:$0x7]
        %v1030 = vld [vmem:[%s311 + $0xb0] sm:$0x8]
        %v1031 = vld [vmem:[%s311 + $0xb8] sm:$0x7]
        %v1032 = vld [vmem:[%s311 + $0xc0] sm:$0x8]
        %v1033 = vld [vmem:[%s311 + $0xc8] sm:$0x7]
        %v1034 = vld [vmem:[%s311 + $0xd0] sm:$0x8]
        %v1035 = vld [vmem:[%s311 + $0xd8] sm:$0x7]
        %v1036 = vld [vmem:[%s311 + $0xe0] sm:$0x8]
        %v1037 = vld [vmem:[%s311 + $0xe8] sm:$0x7]
        %v1038 = vld [vmem:[%s311 + $0xf0] sm:$0x8]
        %v1039 = vld [vmem:[%s311 + $0xf8] sm:$0x7]
        %v1040 = vld [vmem:[%s311 + $0x8] sm:$0xf]
        %v1041 = vld [vmem:[%s311 + $0x18] sm:$0xf]
        %v1042 = vld [vmem:[%s311 + $0x28] sm:$0xf]
        %v1043 = vld [vmem:[%s311 + $0x38] sm:$0xf]
        %v1044 = vld [vmem:[%s311 + $0x48] sm:$0xf]
        %v1045 = vld [vmem:[%s311 + $0x58] sm:$0xf]
        %v1046 = vld [vmem:[%s311 + $0x68] sm:$0xf]
        %v1047 = vld [vmem:[%s311 + $0x78] sm:$0xf]
        %v1048 = vld [vmem:[%s311 + $0x88] sm:$0xf]
        %v1049 = vld [vmem:[%s311 + $0x98] sm:$0xf]
        %v1050 = vld [vmem:[%s311 + $0xa8] sm:$0xf]
        %v1051 = vld [vmem:[%s311 + $0xb8] sm:$0xf]
        %v1052 = vld [vmem:[%s311 + $0xc8] sm:$0xf]
        %v1053 = vld [vmem:[%s311 + $0xd8] sm:$0xf]
        %v1054 = vld [vmem:[%s311 + $0xe8] sm:$0xf]
        %v1055 = vld [vmem:[%s311 + $0xf8] sm:$0xf]
        %s1056 = sadd.s32 %s307, 8
        %s1057 = smul.u32 %s1056, 4
        %s1058 = smul.addr %s1057, 4
        %s1059 = scalar_lea.vmem %s301, %s1058
        %v1060 = vld [vmem:[%s1059] sm:$0xc]
        %v1061 = vld [vmem:[%s1059 + $0x4] sm:$0xf]
        %v1062 = vld [vmem:[%s1059 + $0x8] sm:$0x3]
        %v1063 = vld [vmem:[%s1059 + $0x10] sm:$0xc]
        %v1064 = vld [vmem:[%s1059 + $0x14] sm:$0xf]
        %v1065 = vld [vmem:[%s1059 + $0x18] sm:$0x3]
        %v1066 = vld [vmem:[%s1059 + $0x20] sm:$0xc]
        %v1067 = vld [vmem:[%s1059 + $0x24] sm:$0xf]
        %v1068 = vld [vmem:[%s1059 + $0x28] sm:$0x3]
        %v1069 = vld [vmem:[%s1059 + $0x30] sm:$0xc]
        %v1070 = vld [vmem:[%s1059 + $0x34] sm:$0xf]
        %v1071 = vld [vmem:[%s1059 + $0x38] sm:$0x3]
        %v1072 = vld [vmem:[%s1059 + $0x40] sm:$0xc]
        %v1073 = vld [vmem:[%s1059 + $0x44] sm:$0xf]
        %v1074 = vld [vmem:[%s1059 + $0x48] sm:$0x3]
        %v1075 = vld [vmem:[%s1059 + $0x50] sm:$0xc]
        %v1076 = vld [vmem:[%s1059 + $0x54] sm:$0xf]
        %v1077 = vld [vmem:[%s1059 + $0x58] sm:$0x3]
        %v1078 = vld [vmem:[%s1059 + $0x60] sm:$0xc]
        %v1079 = vld [vmem:[%s1059 + $0x64] sm:$0xf]
        %v1080 = vld [vmem:[%s1059 + $0x68] sm:$0x3]
        %v1081 = vld [vmem:[%s1059 + $0x70] sm:$0xc]
        %v1082 = vld [vmem:[%s1059 + $0x74] sm:$0xf]
        %v1083 = vld [vmem:[%s1059 + $0x78] sm:$0x3]
        %v1084 = vld [vmem:[%s1059 + $0x80] sm:$0xc]
        %v1085 = vld [vmem:[%s1059 + $0x84] sm:$0xf]
        %v1086 = vld [vmem:[%s1059 + $0x88] sm:$0x3]
        %v1087 = vld [vmem:[%s1059 + $0x90] sm:$0xc]
        %v1088 = vld [vmem:[%s1059 + $0x94] sm:$0xf]
        %v1089 = vld [vmem:[%s1059 + $0x98] sm:$0x3]
        %v1090 = vld [vmem:[%s1059 + $0xa0] sm:$0xc]
        %v1091 = vld [vmem:[%s1059 + $0xa4] sm:$0xf]
        %v1092 = vld [vmem:[%s1059 + $0xa8] sm:$0x3]
        %v1093 = vld [vmem:[%s1059 + $0xb0] sm:$0xc]
        %v1094 = vld [vmem:[%s1059 + $0xb4] sm:$0xf]
        %v1095 = vld [vmem:[%s1059 + $0xb8] sm:$0x3]
        %v1096 = vld [vmem:[%s1059 + $0xc0] sm:$0xc]
        %v1097 = vld [vmem:[%s1059 + $0xc4] sm:$0xf]
        %v1098 = vld [vmem:[%s1059 + $0xc8] sm:$0x3]
        %v1099 = vld [vmem:[%s1059 + $0xd0] sm:$0xc]
        %v1100 = vld [vmem:[%s1059 + $0xd4] sm:$0xf]
        %v1101 = vld [vmem:[%s1059 + $0xd8] sm:$0x3]
        %v1102 = vld [vmem:[%s1059 + $0xe0] sm:$0xc]
        %v1103 = vld [vmem:[%s1059 + $0xe4] sm:$0xf]
        %v1104 = vld [vmem:[%s1059 + $0xe8] sm:$0x3]
        %v1105 = vld [vmem:[%s1059 + $0xf0] sm:$0xc]
        %v1106 = vld [vmem:[%s1059 + $0xf4] sm:$0xf]
        %v1107 = vld [vmem:[%s1059 + $0xf8] sm:$0x3]
        %v1108 = vld [vmem:[%s1059] sm:$0x8]
        %v1109 = vld [vmem:[%s1059 + $0x8] sm:$0x7]
        %v1110 = vld [vmem:[%s1059 + $0x10] sm:$0x8]
        %v1111 = vld [vmem:[%s1059 + $0x18] sm:$0x7]
        %v1112 = vld [vmem:[%s1059 + $0x20] sm:$0x8]
        %v1113 = vld [vmem:[%s1059 + $0x28] sm:$0x7]
        %v1114 = vld [vmem:[%s1059 + $0x30] sm:$0x8]
        %v1115 = vld [vmem:[%s1059 + $0x38] sm:$0x7]
        %v1116 = vld [vmem:[%s1059 + $0x40] sm:$0x8]
        %v1117 = vld [vmem:[%s1059 + $0x48] sm:$0x7]
        %v1118 = vld [vmem:[%s1059 + $0x50] sm:$0x8]
        %v1119 = vld [vmem:[%s1059 + $0x58] sm:$0x7]
        %v1120 = vld [vmem:[%s1059 + $0x60] sm:$0x8]
        %v1121 = vld [vmem:[%s1059 + $0x68] sm:$0x7]
        %v1122 = vld [vmem:[%s1059 + $0x70] sm:$0x8]
        %v1123 = vld [vmem:[%s1059 + $0x78] sm:$0x7]
        %v1124 = vld [vmem:[%s1059 + $0x80] sm:$0x8]
        %v1125 = vld [vmem:[%s1059 + $0x88] sm:$0x7]
        %v1126 = vld [vmem:[%s1059 + $0x90] sm:$0x8]
        %v1127 = vld [vmem:[%s1059 + $0x98] sm:$0x7]
        %v1128 = vld [vmem:[%s1059 + $0xa0] sm:$0x8]
        %v1129 = vld [vmem:[%s1059 + $0xa8] sm:$0x7]
        %v1130 = vld [vmem:[%s1059 + $0xb0] sm:$0x8]
        %v1131 = vld [vmem:[%s1059 + $0xb8] sm:$0x7]
        %v1132 = vld [vmem:[%s1059 + $0xc0] sm:$0x8]
        %v1133 = vld [vmem:[%s1059 + $0xc8] sm:$0x7]
        %v1134 = vld [vmem:[%s1059 + $0xd0] sm:$0x8]
        %v1135 = vld [vmem:[%s1059 + $0xd8] sm:$0x7]
        %v1136 = vld [vmem:[%s1059 + $0xe0] sm:$0x8]
        %v1137 = vld [vmem:[%s1059 + $0xe8] sm:$0x7]
        %v1138 = vld [vmem:[%s1059 + $0xf0] sm:$0x8]
        %v1139 = vld [vmem:[%s1059 + $0xf8] sm:$0x7]
        %v1140 = vld [vmem:[%s1059 + $0x8] sm:$0xf]
        %v1141 = vld [vmem:[%s1059 + $0x18] sm:$0xf]
        %v1142 = vld [vmem:[%s1059 + $0x28] sm:$0xf]
        %v1143 = vld [vmem:[%s1059 + $0x38] sm:$0xf]
        %v1144 = vld [vmem:[%s1059 + $0x48] sm:$0xf]
        %v1145 = vld [vmem:[%s1059 + $0x58] sm:$0xf]
        %v1146 = vld [vmem:[%s1059 + $0x68] sm:$0xf]
        %v1147 = vld [vmem:[%s1059 + $0x78] sm:$0xf]
        %v1148 = vld [vmem:[%s1059 + $0x88] sm:$0xf]
        %v1149 = vld [vmem:[%s1059 + $0x98] sm:$0xf]
        %v1150 = vld [vmem:[%s1059 + $0xa8] sm:$0xf]
        %v1151 = vld [vmem:[%s1059 + $0xb8] sm:$0xf]
        %v1152 = vld [vmem:[%s1059 + $0xc8] sm:$0xf]
        %v1153 = vld [vmem:[%s1059 + $0xd8] sm:$0xf]
        %v1154 = vld [vmem:[%s1059 + $0xe8] sm:$0xf]
        %v1155 = vld [vmem:[%s1059 + $0xf8] sm:$0xf]
        %v1204 = vunpack.c.l.b16 %v864
        %v1205 = vunpack.c.l.b16 %v865
        %v1206 = vunpack.c.l.b16 %v866
        %v1207 = vunpack.c.l.b16 %v867
        %v1208 = vunpack.c.l.b16 %v868
        %v1209 = vunpack.c.l.b16 %v869
        %v1210 = vunpack.c.l.b16 %v870
        %v1211 = vunpack.c.l.b16 %v871
        %v1212 = vunpack.c.l.b16 %v872
        %v1213 = vunpack.c.l.b16 %v873
        %v1214 = vunpack.c.l.b16 %v874
        %v1215 = vunpack.c.l.b16 %v875
        %v1216 = vunpack.c.l.b16 %v876
        %v1217 = vunpack.c.l.b16 %v877
        %v1218 = vunpack.c.l.b16 %v878
        %v1219 = vunpack.c.l.b16 %v879
        %v1220 = vunpack.c.l.b16 %v880
        %v1221 = vunpack.c.l.b16 %v881
        %v1222 = vunpack.c.l.b16 %v882
        %v1223 = vunpack.c.l.b16 %v883
        %v1224 = vunpack.c.l.b16 %v884
        %v1225 = vunpack.c.l.b16 %v885
        %v1226 = vunpack.c.l.b16 %v886
        %v1227 = vunpack.c.l.b16 %v887
        %v1228 = vunpack.c.l.b16 %v888
        %v1229 = vunpack.c.l.b16 %v889
        %v1230 = vunpack.c.l.b16 %v890
        %v1231 = vunpack.c.l.b16 %v891
        %v1232 = vunpack.c.l.b16 %v892
        %v1233 = vunpack.c.l.b16 %v893
        %v1234 = vunpack.c.l.b16 %v894
        %v1235 = vunpack.c.l.b16 %v895
        %v1236 = vunpack.c.l.b16 %v896
        %v1237 = vunpack.c.l.b16 %v897
        %v1238 = vunpack.c.l.b16 %v898
        %v1239 = vunpack.c.l.b16 %v899
        %v1240 = vunpack.c.l.b16 %v900
        %v1241 = vunpack.c.l.b16 %v901
        %v1242 = vunpack.c.l.b16 %v902
        %v1243 = vunpack.c.l.b16 %v903
        %v1244 = vunpack.c.l.b16 %v904
        %v1245 = vunpack.c.l.b16 %v905
        %v1246 = vunpack.c.l.b16 %v906
        %v1247 = vunpack.c.l.b16 %v907
        %v1248 = vunpack.c.l.b16 %v908
        %v1249 = vunpack.c.l.b16 %v909
        %v1250 = vunpack.c.l.b16 %v910
        %v1251 = vunpack.c.l.b16 %v911
        %v1252 = vpack.c.b16 %v1205, %v1204
        %v1253 = vpack.c.b16 %v1206, %v1206
        %v1254 = vpack.c.b16 %v1208, %v1207
        %v1255 = vpack.c.b16 %v1209, %v1209
        %v1256 = vpack.c.b16 %v1211, %v1210
        %v1257 = vpack.c.b16 %v1212, %v1212
        %v1258 = vpack.c.b16 %v1214, %v1213
        %v1259 = vpack.c.b16 %v1215, %v1215
        %v1260 = vpack.c.b16 %v1217, %v1216
        %v1261 = vpack.c.b16 %v1218, %v1218
        %v1262 = vpack.c.b16 %v1220, %v1219
        %v1263 = vpack.c.b16 %v1221, %v1221
        %v1264 = vpack.c.b16 %v1223, %v1222
        %v1265 = vpack.c.b16 %v1224, %v1224
        %v1266 = vpack.c.b16 %v1226, %v1225
        %v1267 = vpack.c.b16 %v1227, %v1227
        %v1268 = vpack.c.b16 %v1229, %v1228
        %v1269 = vpack.c.b16 %v1230, %v1230
        %v1270 = vpack.c.b16 %v1232, %v1231
        %v1271 = vpack.c.b16 %v1233, %v1233
        %v1272 = vpack.c.b16 %v1235, %v1234
        %v1273 = vpack.c.b16 %v1236, %v1236
        %v1274 = vpack.c.b16 %v1238, %v1237
        %v1275 = vpack.c.b16 %v1239, %v1239
        %v1276 = vpack.c.b16 %v1241, %v1240
        %v1277 = vpack.c.b16 %v1242, %v1242
        %v1278 = vpack.c.b16 %v1244, %v1243
        %v1279 = vpack.c.b16 %v1245, %v1245
        %v1280 = vpack.c.b16 %v1247, %v1246
        %v1281 = vpack.c.b16 %v1248, %v1248
        %v1282 = vpack.c.b16 %v1250, %v1249
        %v1283 = vpack.c.b16 %v1251, %v1251
        %v1316 = vunpack.c.l.b16 %v912
        %v1317 = vunpack.c.l.b16 %v913
        %v1318 = vunpack.c.l.b16 %v914
        %v1319 = vunpack.c.l.b16 %v915
        %v1320 = vunpack.c.l.b16 %v916
        %v1321 = vunpack.c.l.b16 %v917
        %v1322 = vunpack.c.l.b16 %v918
        %v1323 = vunpack.c.l.b16 %v919
        %v1324 = vunpack.c.l.b16 %v920
        %v1325 = vunpack.c.l.b16 %v921
        %v1326 = vunpack.c.l.b16 %v922
        %v1327 = vunpack.c.l.b16 %v923
        %v1328 = vunpack.c.l.b16 %v924
        %v1329 = vunpack.c.l.b16 %v925
        %v1330 = vunpack.c.l.b16 %v926
        %v1331 = vunpack.c.l.b16 %v927
        %v1332 = vunpack.c.l.b16 %v928
        %v1333 = vunpack.c.l.b16 %v929
        %v1334 = vunpack.c.l.b16 %v930
        %v1335 = vunpack.c.l.b16 %v931
        %v1336 = vunpack.c.l.b16 %v932
        %v1337 = vunpack.c.l.b16 %v933
        %v1338 = vunpack.c.l.b16 %v934
        %v1339 = vunpack.c.l.b16 %v935
        %v1340 = vunpack.c.l.b16 %v936
        %v1341 = vunpack.c.l.b16 %v937
        %v1342 = vunpack.c.l.b16 %v938
        %v1343 = vunpack.c.l.b16 %v939
        %v1344 = vunpack.c.l.b16 %v940
        %v1345 = vunpack.c.l.b16 %v941
        %v1346 = vunpack.c.l.b16 %v942
        %v1347 = vunpack.c.l.b16 %v943
        %v1348 = vpack.c.b16 %v1205, %v1316
        %v1349 = vpack.c.b16 %v1317, %v1317
        %v1350 = vpack.c.b16 %v1208, %v1318
        %v1351 = vpack.c.b16 %v1319, %v1319
        %v1352 = vpack.c.b16 %v1211, %v1320
        %v1353 = vpack.c.b16 %v1321, %v1321
        %v1354 = vpack.c.b16 %v1214, %v1322
        %v1355 = vpack.c.b16 %v1323, %v1323
        %v1356 = vpack.c.b16 %v1217, %v1324
        %v1357 = vpack.c.b16 %v1325, %v1325
        %v1358 = vpack.c.b16 %v1220, %v1326
        %v1359 = vpack.c.b16 %v1327, %v1327
        %v1360 = vpack.c.b16 %v1223, %v1328
        %v1361 = vpack.c.b16 %v1329, %v1329
        %v1362 = vpack.c.b16 %v1226, %v1330
        %v1363 = vpack.c.b16 %v1331, %v1331
        %v1364 = vpack.c.b16 %v1229, %v1332
        %v1365 = vpack.c.b16 %v1333, %v1333
        %v1366 = vpack.c.b16 %v1232, %v1334
        %v1367 = vpack.c.b16 %v1335, %v1335
        %v1368 = vpack.c.b16 %v1235, %v1336
        %v1369 = vpack.c.b16 %v1337, %v1337
        %v1370 = vpack.c.b16 %v1238, %v1338
        %v1371 = vpack.c.b16 %v1339, %v1339
        %v1372 = vpack.c.b16 %v1241, %v1340
        %v1373 = vpack.c.b16 %v1341, %v1341
        %v1374 = vpack.c.b16 %v1244, %v1342
        %v1375 = vpack.c.b16 %v1343, %v1343
        %v1376 = vpack.c.b16 %v1247, %v1344
        %v1377 = vpack.c.b16 %v1345, %v1345
        %v1378 = vpack.c.b16 %v1250, %v1346
        %v1379 = vpack.c.b16 %v1347, %v1347
        %vm1380 = vcmask 1046528
        %v1381 = vrot.slane %v1348, 1
        %v1382 = vrot.slane %v1349, 1
        %v1383 = vsel %vm1380, %v1381, %v1382
        %v1384 = vrot.slane %v1350, 1
        %v1385 = vrot.slane %v1351, 1
        %v1386 = vsel %vm1380, %v1384, %v1385
        %v1387 = vrot.slane %v1352, 1
        %v1388 = vrot.slane %v1353, 1
        %v1389 = vsel %vm1380, %v1387, %v1388
        %v1390 = vrot.slane %v1354, 1
        %v1391 = vrot.slane %v1355, 1
        %v1392 = vsel %vm1380, %v1390, %v1391
        %v1393 = vrot.slane %v1356, 1
        %v1394 = vrot.slane %v1357, 1
        %v1395 = vsel %vm1380, %v1393, %v1394
        %v1396 = vrot.slane %v1358, 1
        %v1397 = vrot.slane %v1359, 1
        %v1398 = vsel %vm1380, %v1396, %v1397
        %v1399 = vrot.slane %v1360, 1
        %v1400 = vrot.slane %v1361, 1
        %v1401 = vsel %vm1380, %v1399, %v1400
        %v1402 = vrot.slane %v1362, 1
        %v1403 = vrot.slane %v1363, 1
        %v1404 = vsel %vm1380, %v1402, %v1403
        %v1405 = vrot.slane %v1364, 1
        %v1406 = vrot.slane %v1365, 1
        %v1407 = vsel %vm1380, %v1405, %v1406
        %v1408 = vrot.slane %v1366, 1
        %v1409 = vrot.slane %v1367, 1
        %v1410 = vsel %vm1380, %v1408, %v1409
        %v1411 = vrot.slane %v1368, 1
        %v1412 = vrot.slane %v1369, 1
        %v1413 = vsel %vm1380, %v1411, %v1412
        %v1414 = vrot.slane %v1370, 1
        %v1415 = vrot.slane %v1371, 1
        %v1416 = vsel %vm1380, %v1414, %v1415
        %v1417 = vrot.slane %v1372, 1
        %v1418 = vrot.slane %v1373, 1
        %v1419 = vsel %vm1380, %v1417, %v1418
        %v1420 = vrot.slane %v1374, 1
        %v1421 = vrot.slane %v1375, 1
        %v1422 = vsel %vm1380, %v1420, %v1421
        %v1423 = vrot.slane %v1376, 1
        %v1424 = vrot.slane %v1377, 1
        %v1425 = vsel %vm1380, %v1423, %v1424
        %v1426 = vrot.slane %v1378, 1
        %v1427 = vrot.slane %v1379, 1
        %v1428 = vsel %vm1380, %v1426, %v1427
        %1429 = vrot.lane.b32.xlu0 %v1383, 16
        %v1430 = vpop.permute.xlu0 %1429
        %1431 = vrot.lane.b32.xlu0 %v1382, 16
        %v1432 = vpop.permute.xlu0 %1431
        %1433 = vrot.lane.b32.xlu0 %v1386, 16
        %v1434 = vpop.permute.xlu0 %1433
        %1435 = vrot.lane.b32.xlu0 %v1385, 16
        %v1436 = vpop.permute.xlu0 %1435
        %1437 = vrot.lane.b32.xlu0 %v1389, 16
        %v1438 = vpop.permute.xlu0 %1437
        %1439 = vrot.lane.b32.xlu0 %v1388, 16
        %v1440 = vpop.permute.xlu0 %1439
        %1441 = vrot.lane.b32.xlu0 %v1392, 16
        %v1442 = vpop.permute.xlu0 %1441
        %1443 = vrot.lane.b32.xlu0 %v1391, 16
        %v1444 = vpop.permute.xlu0 %1443
        %1445 = vrot.lane.b32.xlu0 %v1395, 16
        %v1446 = vpop.permute.xlu0 %1445
        %1447 = vrot.lane.b32.xlu0 %v1394, 16
        %v1448 = vpop.permute.xlu0 %1447
        %1449 = vrot.lane.b32.xlu0 %v1398, 16
        %v1450 = vpop.permute.xlu0 %1449
        %1451 = vrot.lane.b32.xlu0 %v1397, 16
        %v1452 = vpop.permute.xlu0 %1451
        %1453 = vrot.lane.b32.xlu0 %v1401, 16
        %v1454 = vpop.permute.xlu0 %1453
        %1455 = vrot.lane.b32.xlu0 %v1400, 16
        %v1456 = vpop.permute.xlu0 %1455
        %1457 = vrot.lane.b32.xlu0 %v1404, 16
        %v1458 = vpop.permute.xlu0 %1457
        %1459 = vrot.lane.b32.xlu0 %v1403, 16
        %v1460 = vpop.permute.xlu0 %1459
        %1461 = vrot.lane.b32.xlu0 %v1407, 16
        %v1462 = vpop.permute.xlu0 %1461
        %1463 = vrot.lane.b32.xlu0 %v1406, 16
        %v1464 = vpop.permute.xlu0 %1463
        %1465 = vrot.lane.b32.xlu0 %v1410, 16
        %v1466 = vpop.permute.xlu0 %1465
        %1467 = vrot.lane.b32.xlu0 %v1409, 16
        %v1468 = vpop.permute.xlu0 %1467
        %1469 = vrot.lane.b32.xlu0 %v1413, 16
        %v1470 = vpop.permute.xlu0 %1469
        %1471 = vrot.lane.b32.xlu0 %v1412, 16
        %v1472 = vpop.permute.xlu0 %1471
        %1473 = vrot.lane.b32.xlu0 %v1416, 16
        %v1474 = vpop.permute.xlu0 %1473
        %1475 = vrot.lane.b32.xlu0 %v1415, 16
        %v1476 = vpop.permute.xlu0 %1475
        %1477 = vrot.lane.b32.xlu0 %v1419, 16
        %v1478 = vpop.permute.xlu0 %1477
        %1479 = vrot.lane.b32.xlu0 %v1418, 16
        %v1480 = vpop.permute.xlu0 %1479
        %1481 = vrot.lane.b32.xlu0 %v1422, 16
        %v1482 = vpop.permute.xlu0 %1481
        %1483 = vrot.lane.b32.xlu0 %v1421, 16
        %v1484 = vpop.permute.xlu0 %1483
        %1485 = vrot.lane.b32.xlu0 %v1425, 16
        %v1486 = vpop.permute.xlu0 %1485
        %1487 = vrot.lane.b32.xlu0 %v1424, 16
        %v1488 = vpop.permute.xlu0 %1487
        %1489 = vrot.lane.b32.xlu0 %v1428, 16
        %v1490 = vpop.permute.xlu0 %1489
        %1491 = vrot.lane.b32.xlu0 %v1427, 16
        %v1492 = vpop.permute.xlu0 %1491
        %v1509 = vunpack.c.l.b16 %v944
        %v1510 = vunpack.c.l.b16 %v945
        %v1511 = vunpack.c.l.b16 %v946
        %v1512 = vunpack.c.l.b16 %v947
        %v1513 = vunpack.c.l.b16 %v948
        %v1514 = vunpack.c.l.b16 %v949
        %v1515 = vunpack.c.l.b16 %v950
        %v1516 = vunpack.c.l.b16 %v951
        %v1517 = vunpack.c.l.b16 %v952
        %v1518 = vunpack.c.l.b16 %v953
        %v1519 = vunpack.c.l.b16 %v954
        %v1520 = vunpack.c.l.b16 %v955
        %v1521 = vunpack.c.l.b16 %v956
        %v1522 = vunpack.c.l.b16 %v957
        %v1523 = vunpack.c.l.b16 %v958
        %v1524 = vunpack.c.l.b16 %v959
        %v1525 = vpack.c.b16 %v1509, %v1205
        %v1526 = vpack.c.b16 %v1510, %v1208
        %v1527 = vpack.c.b16 %v1511, %v1211
        %v1528 = vpack.c.b16 %v1512, %v1214
        %v1529 = vpack.c.b16 %v1513, %v1217
        %v1530 = vpack.c.b16 %v1514, %v1220
        %v1531 = vpack.c.b16 %v1515, %v1223
        %v1532 = vpack.c.b16 %v1516, %v1226
        %v1533 = vpack.c.b16 %v1517, %v1229
        %v1534 = vpack.c.b16 %v1518, %v1232
        %v1535 = vpack.c.b16 %v1519, %v1235
        %v1536 = vpack.c.b16 %v1520, %v1238
        %v1537 = vpack.c.b16 %v1521, %v1241
        %v1538 = vpack.c.b16 %v1522, %v1244
        %v1539 = vpack.c.b16 %v1523, %v1247
        %v1540 = vpack.c.b16 %v1524, %v1250
        %v1541 = vrot.slane %v1525, 6
        %v1542 = vrot.slane %v1526, 6
        %v1543 = vrot.slane %v1527, 6
        %v1544 = vrot.slane %v1528, 6
        %v1545 = vrot.slane %v1529, 6
        %v1546 = vrot.slane %v1530, 6
        %v1547 = vrot.slane %v1531, 6
        %v1548 = vrot.slane %v1532, 6
        %v1549 = vrot.slane %v1533, 6
        %v1550 = vrot.slane %v1534, 6
        %v1551 = vrot.slane %v1535, 6
        %v1552 = vrot.slane %v1536, 6
        %v1553 = vrot.slane %v1537, 6
        %v1554 = vrot.slane %v1538, 6
        %v1555 = vrot.slane %v1539, 6
        %v1556 = vrot.slane %v1540, 6
        %1557 = vrot.lane.b32.xlu0 %v1541, 32
        %v1558 = vpop.permute.xlu0 %1557
        %1559 = vrot.lane.b32.xlu0 %v1542, 32
        %v1560 = vpop.permute.xlu0 %1559
        %1561 = vrot.lane.b32.xlu0 %v1543, 32
        %v1562 = vpop.permute.xlu0 %1561
        %1563 = vrot.lane.b32.xlu0 %v1544, 32
        %v1564 = vpop.permute.xlu0 %1563
        %1565 = vrot.lane.b32.xlu0 %v1545, 32
        %v1566 = vpop.permute.xlu0 %1565
        %1567 = vrot.lane.b32.xlu0 %v1546, 32
        %v1568 = vpop.permute.xlu0 %1567
        %1569 = vrot.lane.b32.xlu0 %v1547, 32
        %v1570 = vpop.permute.xlu0 %1569
        %1571 = vrot.lane.b32.xlu0 %v1548, 32
        %v1572 = vpop.permute.xlu0 %1571
        %1573 = vrot.lane.b32.xlu0 %v1549, 32
        %v1574 = vpop.permute.xlu0 %1573
        %1575 = vrot.lane.b32.xlu0 %v1550, 32
        %v1576 = vpop.permute.xlu0 %1575
        %1577 = vrot.lane.b32.xlu0 %v1551, 32
        %v1578 = vpop.permute.xlu0 %1577
        %1579 = vrot.lane.b32.xlu0 %v1552, 32
        %v1580 = vpop.permute.xlu0 %1579
        %1581 = vrot.lane.b32.xlu0 %v1553, 32
        %v1582 = vpop.permute.xlu0 %1581
        %1583 = vrot.lane.b32.xlu0 %v1554, 32
        %v1584 = vpop.permute.xlu0 %1583
        %1585 = vrot.lane.b32.xlu0 %v1555, 32
        %v1586 = vpop.permute.xlu0 %1585
        %1587 = vrot.lane.b32.xlu0 %v1556, 32
        %v1588 = vpop.permute.xlu0 %1587
        %v1637 = vunpack.c.l.b16 %v960
        %v1638 = vunpack.c.l.b16 %v961
        %v1639 = vunpack.c.l.b16 %v962
        %v1640 = vunpack.c.l.b16 %v963
        %v1641 = vunpack.c.l.b16 %v964
        %v1642 = vunpack.c.l.b16 %v965
        %v1643 = vunpack.c.l.b16 %v966
        %v1644 = vunpack.c.l.b16 %v967
        %v1645 = vunpack.c.l.b16 %v968
        %v1646 = vunpack.c.l.b16 %v969
        %v1647 = vunpack.c.l.b16 %v970
        %v1648 = vunpack.c.l.b16 %v971
        %v1649 = vunpack.c.l.b16 %v972
        %v1650 = vunpack.c.l.b16 %v973
        %v1651 = vunpack.c.l.b16 %v974
        %v1652 = vunpack.c.l.b16 %v975
        %v1653 = vunpack.c.l.b16 %v976
        %v1654 = vunpack.c.l.b16 %v977
        %v1655 = vunpack.c.l.b16 %v978
        %v1656 = vunpack.c.l.b16 %v979
        %v1657 = vunpack.c.l.b16 %v980
        %v1658 = vunpack.c.l.b16 %v981
        %v1659 = vunpack.c.l.b16 %v982
        %v1660 = vunpack.c.l.b16 %v983
        %v1661 = vunpack.c.l.b16 %v984
        %v1662 = vunpack.c.l.b16 %v985
        %v1663 = vunpack.c.l.b16 %v986
        %v1664 = vunpack.c.l.b16 %v987
        %v1665 = vunpack.c.l.b16 %v988
        %v1666 = vunpack.c.l.b16 %v989
        %v1667 = vunpack.c.l.b16 %v990
        %v1668 = vunpack.c.l.b16 %v991
        %v1669 = vunpack.c.l.b16 %v992
        %v1670 = vunpack.c.l.b16 %v993
        %v1671 = vunpack.c.l.b16 %v994
        %v1672 = vunpack.c.l.b16 %v995
        %v1673 = vunpack.c.l.b16 %v996
        %v1674 = vunpack.c.l.b16 %v997
        %v1675 = vunpack.c.l.b16 %v998
        %v1676 = vunpack.c.l.b16 %v999
        %v1677 = vunpack.c.l.b16 %v1000
        %v1678 = vunpack.c.l.b16 %v1001
        %v1679 = vunpack.c.l.b16 %v1002
        %v1680 = vunpack.c.l.b16 %v1003
        %v1681 = vunpack.c.l.b16 %v1004
        %v1682 = vunpack.c.l.b16 %v1005
        %v1683 = vunpack.c.l.b16 %v1006
        %v1684 = vunpack.c.l.b16 %v1007
        %v1685 = vpack.c.b16 %v1638, %v1637
        %v1686 = vpack.c.b16 %v1639, %v1639
        %v1687 = vpack.c.b16 %v1641, %v1640
        %v1688 = vpack.c.b16 %v1642, %v1642
        %v1689 = vpack.c.b16 %v1644, %v1643
        %v1690 = vpack.c.b16 %v1645, %v1645
        %v1691 = vpack.c.b16 %v1647, %v1646
        %v1692 = vpack.c.b16 %v1648, %v1648
        %v1693 = vpack.c.b16 %v1650, %v1649
        %v1694 = vpack.c.b16 %v1651, %v1651
        %v1695 = vpack.c.b16 %v1653, %v1652
        %v1696 = vpack.c.b16 %v1654, %v1654
        %v1697 = vpack.c.b16 %v1656, %v1655
        %v1698 = vpack.c.b16 %v1657, %v1657
        %v1699 = vpack.c.b16 %v1659, %v1658
        %v1700 = vpack.c.b16 %v1660, %v1660
        %v1701 = vpack.c.b16 %v1662, %v1661
        %v1702 = vpack.c.b16 %v1663, %v1663
        %v1703 = vpack.c.b16 %v1665, %v1664
        %v1704 = vpack.c.b16 %v1666, %v1666
        %v1705 = vpack.c.b16 %v1668, %v1667
        %v1706 = vpack.c.b16 %v1669, %v1669
        %v1707 = vpack.c.b16 %v1671, %v1670
        %v1708 = vpack.c.b16 %v1672, %v1672
        %v1709 = vpack.c.b16 %v1674, %v1673
        %v1710 = vpack.c.b16 %v1675, %v1675
        %v1711 = vpack.c.b16 %v1677, %v1676
        %v1712 = vpack.c.b16 %v1678, %v1678
        %v1713 = vpack.c.b16 %v1680, %v1679
        %v1714 = vpack.c.b16 %v1681, %v1681
        %v1715 = vpack.c.b16 %v1683, %v1682
        %v1716 = vpack.c.b16 %v1684, %v1684
        %1717 = vrot.lane.b32.xlu0 %v1685, 48
        %v1718 = vpop.permute.xlu0 %1717
        %1719 = vrot.lane.b32.xlu0 %v1686, 48
        %v1720 = vpop.permute.xlu0 %1719
        %1721 = vrot.lane.b32.xlu0 %v1687, 48
        %v1722 = vpop.permute.xlu0 %1721
        %1723 = vrot.lane.b32.xlu0 %v1688, 48
        %v1724 = vpop.permute.xlu0 %1723
        %1725 = vrot.lane.b32.xlu0 %v1689, 48
        %v1726 = vpop.permute.xlu0 %1725
        %1727 = vrot.lane.b32.xlu0 %v1690, 48
        %v1728 = vpop.permute.xlu0 %1727
        %1729 = vrot.lane.b32.xlu0 %v1691, 48
        %v1730 = vpop.permute.xlu0 %1729
        %1731 = vrot.lane.b32.xlu0 %v1692, 48
        %v1732 = vpop.permute.xlu0 %1731
        %1733 = vrot.lane.b32.xlu0 %v1693, 48
        %v1734 = vpop.permute.xlu0 %1733
        %1735 = vrot.lane.b32.xlu0 %v1694, 48
        %v1736 = vpop.permute.xlu0 %1735
        %1737 = vrot.lane.b32.xlu0 %v1695, 48
        %v1738 = vpop.permute.xlu0 %1737
        %1739 = vrot.lane.b32.xlu0 %v1696, 48
        %v1740 = vpop.permute.xlu0 %1739
        %1741 = vrot.lane.b32.xlu0 %v1697, 48
        %v1742 = vpop.permute.xlu0 %1741
        %1743 = vrot.lane.b32.xlu0 %v1698, 48
        %v1744 = vpop.permute.xlu0 %1743
        %1745 = vrot.lane.b32.xlu0 %v1699, 48
        %v1746 = vpop.permute.xlu0 %1745
        %1747 = vrot.lane.b32.xlu0 %v1700, 48
        %v1748 = vpop.permute.xlu0 %1747
        %1749 = vrot.lane.b32.xlu0 %v1701, 48
        %v1750 = vpop.permute.xlu0 %1749
        %1751 = vrot.lane.b32.xlu0 %v1702, 48
        %v1752 = vpop.permute.xlu0 %1751
        %1753 = vrot.lane.b32.xlu0 %v1703, 48
        %v1754 = vpop.permute.xlu0 %1753
        %1755 = vrot.lane.b32.xlu0 %v1704, 48
        %v1756 = vpop.permute.xlu0 %1755
        %1757 = vrot.lane.b32.xlu0 %v1705, 48
        %v1758 = vpop.permute.xlu0 %1757
        %1759 = vrot.lane.b32.xlu0 %v1706, 48
        %v1760 = vpop.permute.xlu0 %1759
        %1761 = vrot.lane.b32.xlu0 %v1707, 48
        %v1762 = vpop.permute.xlu0 %1761
        %1763 = vrot.lane.b32.xlu0 %v1708, 48
        %v1764 = vpop.permute.xlu0 %1763
        %1765 = vrot.lane.b32.xlu0 %v1709, 48
        %v1766 = vpop.permute.xlu0 %1765
        %1767 = vrot.lane.b32.xlu0 %v1710, 48
        %v1768 = vpop.permute.xlu0 %1767
        %1769 = vrot.lane.b32.xlu0 %v1711, 48
        %v1770 = vpop.permute.xlu0 %1769
        %1771 = vrot.lane.b32.xlu0 %v1712, 48
        %v1772 = vpop.permute.xlu0 %1771
        %1773 = vrot.lane.b32.xlu0 %v1713, 48
        %v1774 = vpop.permute.xlu0 %1773
        %1775 = vrot.lane.b32.xlu0 %v1714, 48
        %v1776 = vpop.permute.xlu0 %1775
        %1777 = vrot.lane.b32.xlu0 %v1715, 48
        %v1778 = vpop.permute.xlu0 %1777
        %1779 = vrot.lane.b32.xlu0 %v1716, 48
        %v1780 = vpop.permute.xlu0 %1779
        %v1813 = vunpack.c.l.b16 %v1008
        %v1814 = vunpack.c.l.b16 %v1009
        %v1815 = vunpack.c.l.b16 %v1010
        %v1816 = vunpack.c.l.b16 %v1011
        %v1817 = vunpack.c.l.b16 %v1012
        %v1818 = vunpack.c.l.b16 %v1013
        %v1819 = vunpack.c.l.b16 %v1014
        %v1820 = vunpack.c.l.b16 %v1015
        %v1821 = vunpack.c.l.b16 %v1016
        %v1822 = vunpack.c.l.b16 %v1017
        %v1823 = vunpack.c.l.b16 %v1018
        %v1824 = vunpack.c.l.b16 %v1019
        %v1825 = vunpack.c.l.b16 %v1020
        %v1826 = vunpack.c.l.b16 %v1021
        %v1827 = vunpack.c.l.b16 %v1022
        %v1828 = vunpack.c.l.b16 %v1023
        %v1829 = vunpack.c.l.b16 %v1024
        %v1830 = vunpack.c.l.b16 %v1025
        %v1831 = vunpack.c.l.b16 %v1026
        %v1832 = vunpack.c.l.b16 %v1027
        %v1833 = vunpack.c.l.b16 %v1028
        %v1834 = vunpack.c.l.b16 %v1029
        %v1835 = vunpack.c.l.b16 %v1030
        %v1836 = vunpack.c.l.b16 %v1031
        %v1837 = vunpack.c.l.b16 %v1032
        %v1838 = vunpack.c.l.b16 %v1033
        %v1839 = vunpack.c.l.b16 %v1034
        %v1840 = vunpack.c.l.b16 %v1035
        %v1841 = vunpack.c.l.b16 %v1036
        %v1842 = vunpack.c.l.b16 %v1037
        %v1843 = vunpack.c.l.b16 %v1038
        %v1844 = vunpack.c.l.b16 %v1039
        %v1845 = vpack.c.b16 %v1638, %v1813
        %v1846 = vpack.c.b16 %v1814, %v1814
        %v1847 = vpack.c.b16 %v1641, %v1815
        %v1848 = vpack.c.b16 %v1816, %v1816
        %v1849 = vpack.c.b16 %v1644, %v1817
        %v1850 = vpack.c.b16 %v1818, %v1818
        %v1851 = vpack.c.b16 %v1647, %v1819
        %v1852 = vpack.c.b16 %v1820, %v1820
        %v1853 = vpack.c.b16 %v1650, %v1821
        %v1854 = vpack.c.b16 %v1822, %v1822
        %v1855 = vpack.c.b16 %v1653, %v1823
        %v1856 = vpack.c.b16 %v1824, %v1824
        %v1857 = vpack.c.b16 %v1656, %v1825
        %v1858 = vpack.c.b16 %v1826, %v1826
        %v1859 = vpack.c.b16 %v1659, %v1827
        %v1860 = vpack.c.b16 %v1828, %v1828
        %v1861 = vpack.c.b16 %v1662, %v1829
        %v1862 = vpack.c.b16 %v1830, %v1830
        %v1863 = vpack.c.b16 %v1665, %v1831
        %v1864 = vpack.c.b16 %v1832, %v1832
        %v1865 = vpack.c.b16 %v1668, %v1833
        %v1866 = vpack.c.b16 %v1834, %v1834
        %v1867 = vpack.c.b16 %v1671, %v1835
        %v1868 = vpack.c.b16 %v1836, %v1836
        %v1869 = vpack.c.b16 %v1674, %v1837
        %v1870 = vpack.c.b16 %v1838, %v1838
        %v1871 = vpack.c.b16 %v1677, %v1839
        %v1872 = vpack.c.b16 %v1840, %v1840
        %v1873 = vpack.c.b16 %v1680, %v1841
        %v1874 = vpack.c.b16 %v1842, %v1842
        %v1875 = vpack.c.b16 %v1683, %v1843
        %v1876 = vpack.c.b16 %v1844, %v1844
        %v1877 = vrot.slane %v1845, 1
        %v1878 = vrot.slane %v1846, 1
        %v1879 = vsel %vm1380, %v1877, %v1878
        %v1880 = vrot.slane %v1847, 1
        %v1881 = vrot.slane %v1848, 1
        %v1882 = vsel %vm1380, %v1880, %v1881
        %v1883 = vrot.slane %v1849, 1
        %v1884 = vrot.slane %v1850, 1
        %v1885 = vsel %vm1380, %v1883, %v1884
        %v1886 = vrot.slane %v1851, 1
        %v1887 = vrot.slane %v1852, 1
        %v1888 = vsel %vm1380, %v1886, %v1887
        %v1889 = vrot.slane %v1853, 1
        %v1890 = vrot.slane %v1854, 1
        %v1891 = vsel %vm1380, %v1889, %v1890
        %v1892 = vrot.slane %v1855, 1
        %v1893 = vrot.slane %v1856, 1
        %v1894 = vsel %vm1380, %v1892, %v1893
        %v1895 = vrot.slane %v1857, 1
        %v1896 = vrot.slane %v1858, 1
        %v1897 = vsel %vm1380, %v1895, %v1896
        %v1898 = vrot.slane %v1859, 1
        %v1899 = vrot.slane %v1860, 1
        %v1900 = vsel %vm1380, %v1898, %v1899
        %v1901 = vrot.slane %v1861, 1
        %v1902 = vrot.slane %v1862, 1
        %v1903 = vsel %vm1380, %v1901, %v1902
        %v1904 = vrot.slane %v1863, 1
        %v1905 = vrot.slane %v1864, 1
        %v1906 = vsel %vm1380, %v1904, %v1905
        %v1907 = vrot.slane %v1865, 1
        %v1908 = vrot.slane %v1866, 1
        %v1909 = vsel %vm1380, %v1907, %v1908
        %v1910 = vrot.slane %v1867, 1
        %v1911 = vrot.slane %v1868, 1
        %v1912 = vsel %vm1380, %v1910, %v1911
        %v1913 = vrot.slane %v1869, 1
        %v1914 = vrot.slane %v1870, 1
        %v1915 = vsel %vm1380, %v1913, %v1914
        %v1916 = vrot.slane %v1871, 1
        %v1917 = vrot.slane %v1872, 1
        %v1918 = vsel %vm1380, %v1916, %v1917
        %v1919 = vrot.slane %v1873, 1
        %v1920 = vrot.slane %v1874, 1
        %v1921 = vsel %vm1380, %v1919, %v1920
        %v1922 = vrot.slane %v1875, 1
        %v1923 = vrot.slane %v1876, 1
        %v1924 = vsel %vm1380, %v1922, %v1923
        %1925 = vrot.lane.b32.xlu0 %v1879, 64
        %v1926 = vpop.permute.xlu0 %1925
        %1927 = vrot.lane.b32.xlu0 %v1878, 64
        %v1928 = vpop.permute.xlu0 %1927
        %1929 = vrot.lane.b32.xlu0 %v1882, 64
        %v1930 = vpop.permute.xlu0 %1929
        %1931 = vrot.lane.b32.xlu0 %v1881, 64
        %v1932 = vpop.permute.xlu0 %1931
        %1933 = vrot.lane.b32.xlu0 %v1885, 64
        %v1934 = vpop.permute.xlu0 %1933
        %1935 = vrot.lane.b32.xlu0 %v1884, 64
        %v1936 = vpop.permute.xlu0 %1935
        %1937 = vrot.lane.b32.xlu0 %v1888, 64
        %v1938 = vpop.permute.xlu0 %1937
        %1939 = vrot.lane.b32.xlu0 %v1887, 64
        %v1940 = vpop.permute.xlu0 %1939
        %1941 = vrot.lane.b32.xlu0 %v1891, 64
        %v1942 = vpop.permute.xlu0 %1941
        %1943 = vrot.lane.b32.xlu0 %v1890, 64
        %v1944 = vpop.permute.xlu0 %1943
        %1945 = vrot.lane.b32.xlu0 %v1894, 64
        %v1946 = vpop.permute.xlu0 %1945
        %1947 = vrot.lane.b32.xlu0 %v1893, 64
        %v1948 = vpop.permute.xlu0 %1947
        %1949 = vrot.lane.b32.xlu0 %v1897, 64
        %v1950 = vpop.permute.xlu0 %1949
        %1951 = vrot.lane.b32.xlu0 %v1896, 64
        %v1952 = vpop.permute.xlu0 %1951
        %1953 = vrot.lane.b32.xlu0 %v1900, 64
        %v1954 = vpop.permute.xlu0 %1953
        %1955 = vrot.lane.b32.xlu0 %v1899, 64
        %v1956 = vpop.permute.xlu0 %1955
        %1957 = vrot.lane.b32.xlu0 %v1903, 64
        %v1958 = vpop.permute.xlu0 %1957
        %1959 = vrot.lane.b32.xlu0 %v1902, 64
        %v1960 = vpop.permute.xlu0 %1959
        %1961 = vrot.lane.b32.xlu0 %v1906, 64
        %v1962 = vpop.permute.xlu0 %1961
        %1963 = vrot.lane.b32.xlu0 %v1905, 64
        %v1964 = vpop.permute.xlu0 %1963
        %1965 = vrot.lane.b32.xlu0 %v1909, 64
        %v1966 = vpop.permute.xlu0 %1965
        %1967 = vrot.lane.b32.xlu0 %v1908, 64
        %v1968 = vpop.permute.xlu0 %1967
        %1969 = vrot.lane.b32.xlu0 %v1912, 64
        %v1970 = vpop.permute.xlu0 %1969
        %1971 = vrot.lane.b32.xlu0 %v1911, 64
        %v1972 = vpop.permute.xlu0 %1971
        %1973 = vrot.lane.b32.xlu0 %v1915, 64
        %v1974 = vpop.permute.xlu0 %1973
        %1975 = vrot.lane.b32.xlu0 %v1914, 64
        %v1976 = vpop.permute.xlu0 %1975
        %1977 = vrot.lane.b32.xlu0 %v1918, 64
        %v1978 = vpop.permute.xlu0 %1977
        %1979 = vrot.lane.b32.xlu0 %v1917, 64
        %v1980 = vpop.permute.xlu0 %1979
        %1981 = vrot.lane.b32.xlu0 %v1921, 64
        %v1982 = vpop.permute.xlu0 %1981
        %1983 = vrot.lane.b32.xlu0 %v1920, 64
        %v1984 = vpop.permute.xlu0 %1983
        %1985 = vrot.lane.b32.xlu0 %v1924, 64
        %v1986 = vpop.permute.xlu0 %1985
        %1987 = vrot.lane.b32.xlu0 %v1923, 64
        %v1988 = vpop.permute.xlu0 %1987
        %v2005 = vunpack.c.l.b16 %v1040
        %v2006 = vunpack.c.l.b16 %v1041
        %v2007 = vunpack.c.l.b16 %v1042
        %v2008 = vunpack.c.l.b16 %v1043
        %v2009 = vunpack.c.l.b16 %v1044
        %v2010 = vunpack.c.l.b16 %v1045
        %v2011 = vunpack.c.l.b16 %v1046
        %v2012 = vunpack.c.l.b16 %v1047
        %v2013 = vunpack.c.l.b16 %v1048
        %v2014 = vunpack.c.l.b16 %v1049
        %v2015 = vunpack.c.l.b16 %v1050
        %v2016 = vunpack.c.l.b16 %v1051
        %v2017 = vunpack.c.l.b16 %v1052
        %v2018 = vunpack.c.l.b16 %v1053
        %v2019 = vunpack.c.l.b16 %v1054
        %v2020 = vunpack.c.l.b16 %v1055
        %v2021 = vpack.c.b16 %v2005, %v1638
        %v2022 = vpack.c.b16 %v2006, %v1641
        %v2023 = vpack.c.b16 %v2007, %v1644
        %v2024 = vpack.c.b16 %v2008, %v1647
        %v2025 = vpack.c.b16 %v2009, %v1650
        %v2026 = vpack.c.b16 %v2010, %v1653
        %v2027 = vpack.c.b16 %v2011, %v1656
        %v2028 = vpack.c.b16 %v2012, %v1659
        %v2029 = vpack.c.b16 %v2013, %v1662
        %v2030 = vpack.c.b16 %v2014, %v1665
        %v2031 = vpack.c.b16 %v2015, %v1668
        %v2032 = vpack.c.b16 %v2016, %v1671
        %v2033 = vpack.c.b16 %v2017, %v1674
        %v2034 = vpack.c.b16 %v2018, %v1677
        %v2035 = vpack.c.b16 %v2019, %v1680
        %v2036 = vpack.c.b16 %v2020, %v1683
        %v2037 = vrot.slane %v2021, 6
        %v2038 = vrot.slane %v2022, 6
        %v2039 = vrot.slane %v2023, 6
        %v2040 = vrot.slane %v2024, 6
        %v2041 = vrot.slane %v2025, 6
        %v2042 = vrot.slane %v2026, 6
        %v2043 = vrot.slane %v2027, 6
        %v2044 = vrot.slane %v2028, 6
        %v2045 = vrot.slane %v2029, 6
        %v2046 = vrot.slane %v2030, 6
        %v2047 = vrot.slane %v2031, 6
        %v2048 = vrot.slane %v2032, 6
        %v2049 = vrot.slane %v2033, 6
        %v2050 = vrot.slane %v2034, 6
        %v2051 = vrot.slane %v2035, 6
        %v2052 = vrot.slane %v2036, 6
        %2053 = vrot.lane.b32.xlu0 %v2037, 80
        %v2054 = vpop.permute.xlu0 %2053
        %2055 = vrot.lane.b32.xlu0 %v2038, 80
        %v2056 = vpop.permute.xlu0 %2055
        %2057 = vrot.lane.b32.xlu0 %v2039, 80
        %v2058 = vpop.permute.xlu0 %2057
        %2059 = vrot.lane.b32.xlu0 %v2040, 80
        %v2060 = vpop.permute.xlu0 %2059
        %2061 = vrot.lane.b32.xlu0 %v2041, 80
        %v2062 = vpop.permute.xlu0 %2061
        %2063 = vrot.lane.b32.xlu0 %v2042, 80
        %v2064 = vpop.permute.xlu0 %2063
        %2065 = vrot.lane.b32.xlu0 %v2043, 80
        %v2066 = vpop.permute.xlu0 %2065
        %2067 = vrot.lane.b32.xlu0 %v2044, 80
        %v2068 = vpop.permute.xlu0 %2067
        %2069 = vrot.lane.b32.xlu0 %v2045, 80
        %v2070 = vpop.permute.xlu0 %2069
        %2071 = vrot.lane.b32.xlu0 %v2046, 80
        %v2072 = vpop.permute.xlu0 %2071
        %2073 = vrot.lane.b32.xlu0 %v2047, 80
        %v2074 = vpop.permute.xlu0 %2073
        %2075 = vrot.lane.b32.xlu0 %v2048, 80
        %v2076 = vpop.permute.xlu0 %2075
        %2077 = vrot.lane.b32.xlu0 %v2049, 80
        %v2078 = vpop.permute.xlu0 %2077
        %2079 = vrot.lane.b32.xlu0 %v2050, 80
        %v2080 = vpop.permute.xlu0 %2079
        %2081 = vrot.lane.b32.xlu0 %v2051, 80
        %v2082 = vpop.permute.xlu0 %2081
        %2083 = vrot.lane.b32.xlu0 %v2052, 80
        %v2084 = vpop.permute.xlu0 %2083
        %v2133 = vunpack.c.l.b16 %v1060
        %v2134 = vunpack.c.l.b16 %v1061
        %v2135 = vunpack.c.l.b16 %v1062
        %v2136 = vunpack.c.l.b16 %v1063
        %v2137 = vunpack.c.l.b16 %v1064
        %v2138 = vunpack.c.l.b16 %v1065
        %v2139 = vunpack.c.l.b16 %v1066
        %v2140 = vunpack.c.l.b16 %v1067
        %v2141 = vunpack.c.l.b16 %v1068
        %v2142 = vunpack.c.l.b16 %v1069
        %v2143 = vunpack.c.l.b16 %v1070
        %v2144 = vunpack.c.l.b16 %v1071
        %v2145 = vunpack.c.l.b16 %v1072
        %v2146 = vunpack.c.l.b16 %v1073
        %v2147 = vunpack.c.l.b16 %v1074
        %v2148 = vunpack.c.l.b16 %v1075
        %v2149 = vunpack.c.l.b16 %v1076
        %v2150 = vunpack.c.l.b16 %v1077
        %v2151 = vunpack.c.l.b16 %v1078
        %v2152 = vunpack.c.l.b16 %v1079
        %v2153 = vunpack.c.l.b16 %v1080
        %v2154 = vunpack.c.l.b16 %v1081
        %v2155 = vunpack.c.l.b16 %v1082
        %v2156 = vunpack.c.l.b16 %v1083
        %v2157 = vunpack.c.l.b16 %v1084
        %v2158 = vunpack.c.l.b16 %v1085
        %v2159 = vunpack.c.l.b16 %v1086
        %v2160 = vunpack.c.l.b16 %v1087
        %v2161 = vunpack.c.l.b16 %v1088
        %v2162 = vunpack.c.l.b16 %v1089
        %v2163 = vunpack.c.l.b16 %v1090
        %v2164 = vunpack.c.l.b16 %v1091
        %v2165 = vunpack.c.l.b16 %v1092
        %v2166 = vunpack.c.l.b16 %v1093
        %v2167 = vunpack.c.l.b16 %v1094
        %v2168 = vunpack.c.l.b16 %v1095
        %v2169 = vunpack.c.l.b16 %v1096
        %v2170 = vunpack.c.l.b16 %v1097
        %v2171 = vunpack.c.l.b16 %v1098
        %v2172 = vunpack.c.l.b16 %v1099
        %v2173 = vunpack.c.l.b16 %v1100
        %v2174 = vunpack.c.l.b16 %v1101
        %v2175 = vunpack.c.l.b16 %v1102
        %v2176 = vunpack.c.l.b16 %v1103
        %v2177 = vunpack.c.l.b16 %v1104
        %v2178 = vunpack.c.l.b16 %v1105
        %v2179 = vunpack.c.l.b16 %v1106
        %v2180 = vunpack.c.l.b16 %v1107
        %v2181 = vpack.c.b16 %v2134, %v2133
        %v2182 = vpack.c.b16 %v2135, %v2135
        %v2183 = vpack.c.b16 %v2137, %v2136
        %v2184 = vpack.c.b16 %v2138, %v2138
        %v2185 = vpack.c.b16 %v2140, %v2139
        %v2186 = vpack.c.b16 %v2141, %v2141
        %v2187 = vpack.c.b16 %v2143, %v2142
        %v2188 = vpack.c.b16 %v2144, %v2144
        %v2189 = vpack.c.b16 %v2146, %v2145
        %v2190 = vpack.c.b16 %v2147, %v2147
        %v2191 = vpack.c.b16 %v2149, %v2148
        %v2192 = vpack.c.b16 %v2150, %v2150
        %v2193 = vpack.c.b16 %v2152, %v2151
        %v2194 = vpack.c.b16 %v2153, %v2153
        %v2195 = vpack.c.b16 %v2155, %v2154
        %v2196 = vpack.c.b16 %v2156, %v2156
        %v2197 = vpack.c.b16 %v2158, %v2157
        %v2198 = vpack.c.b16 %v2159, %v2159
        %v2199 = vpack.c.b16 %v2161, %v2160
        %v2200 = vpack.c.b16 %v2162, %v2162
        %v2201 = vpack.c.b16 %v2164, %v2163
        %v2202 = vpack.c.b16 %v2165, %v2165
        %v2203 = vpack.c.b16 %v2167, %v2166
        %v2204 = vpack.c.b16 %v2168, %v2168
        %v2205 = vpack.c.b16 %v2170, %v2169
        %v2206 = vpack.c.b16 %v2171, %v2171
        %v2207 = vpack.c.b16 %v2173, %v2172
        %v2208 = vpack.c.b16 %v2174, %v2174
        %v2209 = vpack.c.b16 %v2176, %v2175
        %v2210 = vpack.c.b16 %v2177, %v2177
        %v2211 = vpack.c.b16 %v2179, %v2178
        %v2212 = vpack.c.b16 %v2180, %v2180
        %2213 = vrot.lane.b32.xlu0 %v2181, 96
        %v2214 = vpop.permute.xlu0 %2213
        %2215 = vrot.lane.b32.xlu0 %v2182, 96
        %v2216 = vpop.permute.xlu0 %2215
        %2217 = vrot.lane.b32.xlu0 %v2183, 96
        %v2218 = vpop.permute.xlu0 %2217
        %2219 = vrot.lane.b32.xlu0 %v2184, 96
        %v2220 = vpop.permute.xlu0 %2219
        %2221 = vrot.lane.b32.xlu0 %v2185, 96
        %v2222 = vpop.permute.xlu0 %2221
        %2223 = vrot.lane.b32.xlu0 %v2186, 96
        %v2224 = vpop.permute.xlu0 %2223
        %2225 = vrot.lane.b32.xlu0 %v2187, 96
        %v2226 = vpop.permute.xlu0 %2225
        %2227 = vrot.lane.b32.xlu0 %v2188, 96
        %v2228 = vpop.permute.xlu0 %2227
        %2229 = vrot.lane.b32.xlu0 %v2189, 96
        %v2230 = vpop.permute.xlu0 %2229
        %2231 = vrot.lane.b32.xlu0 %v2190, 96
        %v2232 = vpop.permute.xlu0 %2231
        %2233 = vrot.lane.b32.xlu0 %v2191, 96
        %v2234 = vpop.permute.xlu0 %2233
        %2235 = vrot.lane.b32.xlu0 %v2192, 96
        %v2236 = vpop.permute.xlu0 %2235
        %2237 = vrot.lane.b32.xlu0 %v2193, 96
        %v2238 = vpop.permute.xlu0 %2237
        %2239 = vrot.lane.b32.xlu0 %v2194, 96
        %v2240 = vpop.permute.xlu0 %2239
        %2241 = vrot.lane.b32.xlu0 %v2195, 96
        %v2242 = vpop.permute.xlu0 %2241
        %2243 = vrot.lane.b32.xlu0 %v2196, 96
        %v2244 = vpop.permute.xlu0 %2243
        %2245 = vrot.lane.b32.xlu0 %v2197, 96
        %v2246 = vpop.permute.xlu0 %2245
        %2247 = vrot.lane.b32.xlu0 %v2198, 96
        %v2248 = vpop.permute.xlu0 %2247
        %2249 = vrot.lane.b32.xlu0 %v2199, 96
        %v2250 = vpop.permute.xlu0 %2249
        %2251 = vrot.lane.b32.xlu0 %v2200, 96
        %v2252 = vpop.permute.xlu0 %2251
        %2253 = vrot.lane.b32.xlu0 %v2201, 96
        %v2254 = vpop.permute.xlu0 %2253
        %2255 = vrot.lane.b32.xlu0 %v2202, 96
        %v2256 = vpop.permute.xlu0 %2255
        %2257 = vrot.lane.b32.xlu0 %v2203, 96
        %v2258 = vpop.permute.xlu0 %2257
        %2259 = vrot.lane.b32.xlu0 %v2204, 96
        %v2260 = vpop.permute.xlu0 %2259
        %2261 = vrot.lane.b32.xlu0 %v2205, 96
        %v2262 = vpop.permute.xlu0 %2261
        %2263 = vrot.lane.b32.xlu0 %v2206, 96
        %v2264 = vpop.permute.xlu0 %2263
        %2265 = vrot.lane.b32.xlu0 %v2207, 96
        %v2266 = vpop.permute.xlu0 %2265
        %2267 = vrot.lane.b32.xlu0 %v2208, 96
        %v2268 = vpop.permute.xlu0 %2267
        %2269 = vrot.lane.b32.xlu0 %v2209, 96
        %v2270 = vpop.permute.xlu0 %2269
        %2271 = vrot.lane.b32.xlu0 %v2210, 96
        %v2272 = vpop.permute.xlu0 %2271
        %2273 = vrot.lane.b32.xlu0 %v2211, 96
        %v2274 = vpop.permute.xlu0 %2273
        %2275 = vrot.lane.b32.xlu0 %v2212, 96
        %v2276 = vpop.permute.xlu0 %2275
        %v2309 = vunpack.c.l.b16 %v1108
        %v2310 = vunpack.c.l.b16 %v1109
        %v2311 = vunpack.c.l.b16 %v1110
        %v2312 = vunpack.c.l.b16 %v1111
        %v2313 = vunpack.c.l.b16 %v1112
        %v2314 = vunpack.c.l.b16 %v1113
        %v2315 = vunpack.c.l.b16 %v1114
        %v2316 = vunpack.c.l.b16 %v1115
        %v2317 = vunpack.c.l.b16 %v1116
        %v2318 = vunpack.c.l.b16 %v1117
        %v2319 = vunpack.c.l.b16 %v1118
        %v2320 = vunpack.c.l.b16 %v1119
        %v2321 = vunpack.c.l.b16 %v1120
        %v2322 = vunpack.c.l.b16 %v1121
        %v2323 = vunpack.c.l.b16 %v1122
        %v2324 = vunpack.c.l.b16 %v1123
        %v2325 = vunpack.c.l.b16 %v1124
        %v2326 = vunpack.c.l.b16 %v1125
        %v2327 = vunpack.c.l.b16 %v1126
        %v2328 = vunpack.c.l.b16 %v1127
        %v2329 = vunpack.c.l.b16 %v1128
        %v2330 = vunpack.c.l.b16 %v1129
        %v2331 = vunpack.c.l.b16 %v1130
        %v2332 = vunpack.c.l.b16 %v1131
        %v2333 = vunpack.c.l.b16 %v1132
        %v2334 = vunpack.c.l.b16 %v1133
        %v2335 = vunpack.c.l.b16 %v1134
        %v2336 = vunpack.c.l.b16 %v1135
        %v2337 = vunpack.c.l.b16 %v1136
        %v2338 = vunpack.c.l.b16 %v1137
        %v2339 = vunpack.c.l.b16 %v1138
        %v2340 = vunpack.c.l.b16 %v1139
        %v2341 = vpack.c.b16 %v2134, %v2309
        %v2342 = vpack.c.b16 %v2310, %v2310
        %v2343 = vpack.c.b16 %v2137, %v2311
        %v2344 = vpack.c.b16 %v2312, %v2312
        %v2345 = vpack.c.b16 %v2140, %v2313
        %v2346 = vpack.c.b16 %v2314, %v2314
        %v2347 = vpack.c.b16 %v2143, %v2315
        %v2348 = vpack.c.b16 %v2316, %v2316
        %v2349 = vpack.c.b16 %v2146, %v2317
        %v2350 = vpack.c.b16 %v2318, %v2318
        %v2351 = vpack.c.b16 %v2149, %v2319
        %v2352 = vpack.c.b16 %v2320, %v2320
        %v2353 = vpack.c.b16 %v2152, %v2321
        %v2354 = vpack.c.b16 %v2322, %v2322
        %v2355 = vpack.c.b16 %v2155, %v2323
        %v2356 = vpack.c.b16 %v2324, %v2324
        %v2357 = vpack.c.b16 %v2158, %v2325
        %v2358 = vpack.c.b16 %v2326, %v2326
        %v2359 = vpack.c.b16 %v2161, %v2327
        %v2360 = vpack.c.b16 %v2328, %v2328
        %v2361 = vpack.c.b16 %v2164, %v2329
        %v2362 = vpack.c.b16 %v2330, %v2330
        %v2363 = vpack.c.b16 %v2167, %v2331
        %v2364 = vpack.c.b16 %v2332, %v2332
        %v2365 = vpack.c.b16 %v2170, %v2333
        %v2366 = vpack.c.b16 %v2334, %v2334
        %v2367 = vpack.c.b16 %v2173, %v2335
        %v2368 = vpack.c.b16 %v2336, %v2336
        %v2369 = vpack.c.b16 %v2176, %v2337
        %v2370 = vpack.c.b16 %v2338, %v2338
        %v2371 = vpack.c.b16 %v2179, %v2339
        %v2372 = vpack.c.b16 %v2340, %v2340
        %v2373 = vrot.slane %v2341, 1
        %v2374 = vrot.slane %v2342, 1
        %v2375 = vsel %vm1380, %v2373, %v2374
        %v2376 = vrot.slane %v2343, 1
        %v2377 = vrot.slane %v2344, 1
        %v2378 = vsel %vm1380, %v2376, %v2377
        %v2379 = vrot.slane %v2345, 1
        %v2380 = vrot.slane %v2346, 1
        %v2381 = vsel %vm1380, %v2379, %v2380
        %v2382 = vrot.slane %v2347, 1
        %v2383 = vrot.slane %v2348, 1
        %v2384 = vsel %vm1380, %v2382, %v2383
        %v2385 = vrot.slane %v2349, 1
        %v2386 = vrot.slane %v2350, 1
        %v2387 = vsel %vm1380, %v2385, %v2386
        %v2388 = vrot.slane %v2351, 1
        %v2389 = vrot.slane %v2352, 1
        %v2390 = vsel %vm1380, %v2388, %v2389
        %v2391 = vrot.slane %v2353, 1
        %v2392 = vrot.slane %v2354, 1
        %v2393 = vsel %vm1380, %v2391, %v2392
        %v2394 = vrot.slane %v2355, 1
        %v2395 = vrot.slane %v2356, 1
        %v2396 = vsel %vm1380, %v2394, %v2395
        %v2397 = vrot.slane %v2357, 1
        %v2398 = vrot.slane %v2358, 1
        %v2399 = vsel %vm1380, %v2397, %v2398
        %v2400 = vrot.slane %v2359, 1
        %v2401 = vrot.slane %v2360, 1
        %v2402 = vsel %vm1380, %v2400, %v2401
        %v2403 = vrot.slane %v2361, 1
        %v2404 = vrot.slane %v2362, 1
        %v2405 = vsel %vm1380, %v2403, %v2404
        %v2406 = vrot.slane %v2363, 1
        %v2407 = vrot.slane %v2364, 1
        %v2408 = vsel %vm1380, %v2406, %v2407
        %v2409 = vrot.slane %v2365, 1
        %v2410 = vrot.slane %v2366, 1
        %v2411 = vsel %vm1380, %v2409, %v2410
        %v2412 = vrot.slane %v2367, 1
        %v2413 = vrot.slane %v2368, 1
        %v2414 = vsel %vm1380, %v2412, %v2413
        %v2415 = vrot.slane %v2369, 1
        %v2416 = vrot.slane %v2370, 1
        %v2417 = vsel %vm1380, %v2415, %v2416
        %v2418 = vrot.slane %v2371, 1
        %v2419 = vrot.slane %v2372, 1
        %v2420 = vsel %vm1380, %v2418, %v2419
        %2421 = vrot.lane.b32.xlu0 %v2375, 112
        %v2422 = vpop.permute.xlu0 %2421
        %2423 = vrot.lane.b32.xlu0 %v2374, 112
        %v2424 = vpop.permute.xlu0 %2423
        %2425 = vrot.lane.b32.xlu0 %v2378, 112
        %v2426 = vpop.permute.xlu0 %2425
        %2427 = vrot.lane.b32.xlu0 %v2377, 112
        %v2428 = vpop.permute.xlu0 %2427
        %2429 = vrot.lane.b32.xlu0 %v2381, 112
        %v2430 = vpop.permute.xlu0 %2429
        %2431 = vrot.lane.b32.xlu0 %v2380, 112
        %v2432 = vpop.permute.xlu0 %2431
        %2433 = vrot.lane.b32.xlu0 %v2384, 112
        %v2434 = vpop.permute.xlu0 %2433
        %2435 = vrot.lane.b32.xlu0 %v2383, 112
        %v2436 = vpop.permute.xlu0 %2435
        %2437 = vrot.lane.b32.xlu0 %v2387, 112
        %v2438 = vpop.permute.xlu0 %2437
        %2439 = vrot.lane.b32.xlu0 %v2386, 112
        %v2440 = vpop.permute.xlu0 %2439
        %2441 = vrot.lane.b32.xlu0 %v2390, 112
        %v2442 = vpop.permute.xlu0 %2441
        %2443 = vrot.lane.b32.xlu0 %v2389, 112
        %v2444 = vpop.permute.xlu0 %2443
        %2445 = vrot.lane.b32.xlu0 %v2393, 112
        %v2446 = vpop.permute.xlu0 %2445
        %2447 = vrot.lane.b32.xlu0 %v2392, 112
        %v2448 = vpop.permute.xlu0 %2447
        %2449 = vrot.lane.b32.xlu0 %v2396, 112
        %v2450 = vpop.permute.xlu0 %2449
        %2451 = vrot.lane.b32.xlu0 %v2395, 112
        %v2452 = vpop.permute.xlu0 %2451
        %2453 = vrot.lane.b32.xlu0 %v2399, 112
        %v2454 = vpop.permute.xlu0 %2453
        %2455 = vrot.lane.b32.xlu0 %v2398, 112
        %v2456 = vpop.permute.xlu0 %2455
        %2457 = vrot.lane.b32.xlu0 %v2402, 112
        %v2458 = vpop.permute.xlu0 %2457
        %2459 = vrot.lane.b32.xlu0 %v2401, 112
        %v2460 = vpop.permute.xlu0 %2459
        %2461 = vrot.lane.b32.xlu0 %v2405, 112
        %v2462 = vpop.permute.xlu0 %2461
        %2463 = vrot.lane.b32.xlu0 %v2404, 112
        %v2464 = vpop.permute.xlu0 %2463
        %2465 = vrot.lane.b32.xlu0 %v2408, 112
        %v2466 = vpop.permute.xlu0 %2465
        %2467 = vrot.lane.b32.xlu0 %v2407, 112
        %v2468 = vpop.permute.xlu0 %2467
        %2469 = vrot.lane.b32.xlu0 %v2411, 112
        %v2470 = vpop.permute.xlu0 %2469
        %2471 = vrot.lane.b32.xlu0 %v2410, 112
        %v2472 = vpop.permute.xlu0 %2471
        %2473 = vrot.lane.b32.xlu0 %v2414, 112
        %v2474 = vpop.permute.xlu0 %2473
        %2475 = vrot.lane.b32.xlu0 %v2413, 112
        %v2476 = vpop.permute.xlu0 %2475
        %2477 = vrot.lane.b32.xlu0 %v2417, 112
        %v2478 = vpop.permute.xlu0 %2477
        %2479 = vrot.lane.b32.xlu0 %v2416, 112
        %v2480 = vpop.permute.xlu0 %2479
        %2481 = vrot.lane.b32.xlu0 %v2420, 112
        %v2482 = vpop.permute.xlu0 %2481
        %2483 = vrot.lane.b32.xlu0 %v2419, 112
        %v2484 = vpop.permute.xlu0 %2483
        %v2501 = vunpack.c.l.b16 %v1140
        %v2502 = vunpack.c.l.b16 %v1141
        %v2503 = vunpack.c.l.b16 %v1142
        %v2504 = vunpack.c.l.b16 %v1143
        %v2505 = vunpack.c.l.b16 %v1144
        %v2506 = vunpack.c.l.b16 %v1145
        %v2507 = vunpack.c.l.b16 %v1146
        %v2508 = vunpack.c.l.b16 %v1147
        %v2509 = vunpack.c.l.b16 %v1148
        %v2510 = vunpack.c.l.b16 %v1149
        %v2511 = vunpack.c.l.b16 %v1150
        %v2512 = vunpack.c.l.b16 %v1151
        %v2513 = vunpack.c.l.b16 %v1152
        %v2514 = vunpack.c.l.b16 %v1153
        %v2515 = vunpack.c.l.b16 %v1154
        %v2516 = vunpack.c.l.b16 %v1155
        %v2517 = vpack.c.b16 %v2501, %v2134
        %v2518 = vpack.c.b16 %v2502, %v2137
        %v2519 = vpack.c.b16 %v2503, %v2140
        %v2520 = vpack.c.b16 %v2504, %v2143
        %v2521 = vpack.c.b16 %v2505, %v2146
        %v2522 = vpack.c.b16 %v2506, %v2149
        %v2523 = vpack.c.b16 %v2507, %v2152
        %v2524 = vpack.c.b16 %v2508, %v2155
        %v2525 = vpack.c.b16 %v2509, %v2158
        %v2526 = vpack.c.b16 %v2510, %v2161
        %v2527 = vpack.c.b16 %v2511, %v2164
        %v2528 = vpack.c.b16 %v2512, %v2167
        %v2529 = vpack.c.b16 %v2513, %v2170
        %v2530 = vpack.c.b16 %v2514, %v2173
        %v2531 = vpack.c.b16 %v2515, %v2176
        %v2532 = vpack.c.b16 %v2516, %v2179
        %v2533 = vrot.slane %v2517, 6
        %v2534 = vrot.slane %v2518, 6
        %v2535 = vrot.slane %v2519, 6
        %v2536 = vrot.slane %v2520, 6
        %v2537 = vrot.slane %v2521, 6
        %v2538 = vrot.slane %v2522, 6
        %v2539 = vrot.slane %v2523, 6
        %v2540 = vrot.slane %v2524, 6
        %v2541 = vrot.slane %v2525, 6
        %v2542 = vrot.slane %v2526, 6
        %v2543 = vrot.slane %v2527, 6
        %v2544 = vrot.slane %v2528, 6
        %v2545 = vrot.slane %v2529, 6
        %v2546 = vrot.slane %v2530, 6
        %v2547 = vrot.slane %v2531, 6
        %v2548 = vrot.slane %v2532, 6
        %v2551 = vsel %vm586, %v1252, %v1430
        %v2554 = vsel %vm586, %v1253, %v1432
        %v2557 = vsel %vm586, %v1254, %v1434
        %v2560 = vsel %vm586, %v1255, %v1436
        %v2563 = vsel %vm586, %v1256, %v1438
        %v2566 = vsel %vm586, %v1257, %v1440
        %v2569 = vsel %vm586, %v1258, %v1442
        %v2572 = vsel %vm586, %v1259, %v1444
        %v2575 = vsel %vm586, %v1260, %v1446
        %v2578 = vsel %vm586, %v1261, %v1448
        %v2581 = vsel %vm586, %v1262, %v1450
        %v2584 = vsel %vm586, %v1263, %v1452
        %v2587 = vsel %vm586, %v1264, %v1454
        %v2590 = vsel %vm586, %v1265, %v1456
        %v2593 = vsel %vm586, %v1266, %v1458
        %v2596 = vsel %vm586, %v1267, %v1460
        %v2599 = vsel %vm586, %v1268, %v1462
        %v2602 = vsel %vm586, %v1269, %v1464
        %v2605 = vsel %vm586, %v1270, %v1466
        %v2608 = vsel %vm586, %v1271, %v1468
        %v2611 = vsel %vm586, %v1272, %v1470
        %v2614 = vsel %vm586, %v1273, %v1472
        %v2617 = vsel %vm586, %v1274, %v1474
        %v2620 = vsel %vm586, %v1275, %v1476
        %v2623 = vsel %vm586, %v1276, %v1478
        %v2626 = vsel %vm586, %v1277, %v1480
        %v2629 = vsel %vm586, %v1278, %v1482
        %v2632 = vsel %vm586, %v1279, %v1484
        %v2635 = vsel %vm586, %v1280, %v1486
        %v2638 = vsel %vm586, %v1281, %v1488
        %v2641 = vsel %vm586, %v1282, %v1490
        %v2644 = vsel %vm586, %v1283, %v1492
        %vm2645 = vcmask 261120
        %v2647 = vsel %vm2645, %v2551, %v1558
        %v2648 = vsel %vm2645, %v2554, %v1558
        %v2650 = vsel %vm2645, %v2557, %v1560
        %v2651 = vsel %vm2645, %v2560, %v1560
        %v2653 = vsel %vm2645, %v2563, %v1562
        %v2654 = vsel %vm2645, %v2566, %v1562
        %v2656 = vsel %vm2645, %v2569, %v1564
        %v2657 = vsel %vm2645, %v2572, %v1564
        %v2659 = vsel %vm2645, %v2575, %v1566
        %v2660 = vsel %vm2645, %v2578, %v1566
        %v2662 = vsel %vm2645, %v2581, %v1568
        %v2663 = vsel %vm2645, %v2584, %v1568
        %v2665 = vsel %vm2645, %v2587, %v1570
        %v2666 = vsel %vm2645, %v2590, %v1570
        %v2668 = vsel %vm2645, %v2593, %v1572
        %v2669 = vsel %vm2645, %v2596, %v1572
        %v2671 = vsel %vm2645, %v2599, %v1574
        %v2672 = vsel %vm2645, %v2602, %v1574
        %v2674 = vsel %vm2645, %v2605, %v1576
        %v2675 = vsel %vm2645, %v2608, %v1576
        %v2677 = vsel %vm2645, %v2611, %v1578
        %v2678 = vsel %vm2645, %v2614, %v1578
        %v2680 = vsel %vm2645, %v2617, %v1580
        %v2681 = vsel %vm2645, %v2620, %v1580
        %v2683 = vsel %vm2645, %v2623, %v1582
        %v2684 = vsel %vm2645, %v2626, %v1582
        %v2686 = vsel %vm2645, %v2629, %v1584
        %v2687 = vsel %vm2645, %v2632, %v1584
        %v2689 = vsel %vm2645, %v2635, %v1586
        %v2690 = vsel %vm2645, %v2638, %v1586
        %v2692 = vsel %vm2645, %v2641, %v1588
        %v2693 = vsel %vm2645, %v2644, %v1588
        %vm2694 = vcmask 392192
        %v2696 = vsel %vm2694, %v2647, %v1718
        %v2698 = vsel %vm2694, %v2648, %v1720
        %v2700 = vsel %vm2694, %v2650, %v1722
        %v2702 = vsel %vm2694, %v2651, %v1724
        %v2704 = vsel %vm2694, %v2653, %v1726
        %v2706 = vsel %vm2694, %v2654, %v1728
        %v2708 = vsel %vm2694, %v2656, %v1730
        %v2710 = vsel %vm2694, %v2657, %v1732
        %v2712 = vsel %vm2694, %v2659, %v1734
        %v2714 = vsel %vm2694, %v2660, %v1736
        %v2716 = vsel %vm2694, %v2662, %v1738
        %v2718 = vsel %vm2694, %v2663, %v1740
        %v2720 = vsel %vm2694, %v2665, %v1742
        %v2722 = vsel %vm2694, %v2666, %v1744
        %v2724 = vsel %vm2694, %v2668, %v1746
        %v2726 = vsel %vm2694, %v2669, %v1748
        %v2728 = vsel %vm2694, %v2671, %v1750
        %v2730 = vsel %vm2694, %v2672, %v1752
        %v2732 = vsel %vm2694, %v2674, %v1754
        %v2734 = vsel %vm2694, %v2675, %v1756
        %v2736 = vsel %vm2694, %v2677, %v1758
        %v2738 = vsel %vm2694, %v2678, %v1760
        %v2740 = vsel %vm2694, %v2680, %v1762
        %v2742 = vsel %vm2694, %v2681, %v1764
        %v2744 = vsel %vm2694, %v2683, %v1766
        %v2746 = vsel %vm2694, %v2684, %v1768
        %v2748 = vsel %vm2694, %v2686, %v1770
        %v2750 = vsel %vm2694, %v2687, %v1772
        %v2752 = vsel %vm2694, %v2689, %v1774
        %v2754 = vsel %vm2694, %v2690, %v1776
        %v2756 = vsel %vm2694, %v2692, %v1778
        %v2758 = vsel %vm2694, %v2693, %v1780
        %vm2759 = vcmask 523264
        %v2761 = vsel %vm2759, %v2696, %v1926
        %v2763 = vsel %vm2759, %v2698, %v1928
        %v2765 = vsel %vm2759, %v2700, %v1930
        %v2767 = vsel %vm2759, %v2702, %v1932
        %v2769 = vsel %vm2759, %v2704, %v1934
        %v2771 = vsel %vm2759, %v2706, %v1936
        %v2773 = vsel %vm2759, %v2708, %v1938
        %v2775 = vsel %vm2759, %v2710, %v1940
        %v2777 = vsel %vm2759, %v2712, %v1942
        %v2779 = vsel %vm2759, %v2714, %v1944
        %v2781 = vsel %vm2759, %v2716, %v1946
        %v2783 = vsel %vm2759, %v2718, %v1948
        %v2785 = vsel %vm2759, %v2720, %v1950
        %v2787 = vsel %vm2759, %v2722, %v1952
        %v2789 = vsel %vm2759, %v2724, %v1954
        %v2791 = vsel %vm2759, %v2726, %v1956
        %v2793 = vsel %vm2759, %v2728, %v1958
        %v2795 = vsel %vm2759, %v2730, %v1960
        %v2797 = vsel %vm2759, %v2732, %v1962
        %v2799 = vsel %vm2759, %v2734, %v1964
        %v2801 = vsel %vm2759, %v2736, %v1966
        %v2803 = vsel %vm2759, %v2738, %v1968
        %v2805 = vsel %vm2759, %v2740, %v1970
        %v2807 = vsel %vm2759, %v2742, %v1972
        %v2809 = vsel %vm2759, %v2744, %v1974
        %v2811 = vsel %vm2759, %v2746, %v1976
        %v2813 = vsel %vm2759, %v2748, %v1978
        %v2815 = vsel %vm2759, %v2750, %v1980
        %v2817 = vsel %vm2759, %v2752, %v1982
        %v2819 = vsel %vm2759, %v2754, %v1984
        %v2821 = vsel %vm2759, %v2756, %v1986
        %v2823 = vsel %vm2759, %v2758, %v1988
        %vm2824 = vcmask 654336
        %v2826 = vsel %vm2824, %v2761, %v2054
        %v2827 = vsel %vm2824, %v2763, %v2054
        %v2829 = vsel %vm2824, %v2765, %v2056
        %v2830 = vsel %vm2824, %v2767, %v2056
        %v2832 = vsel %vm2824, %v2769, %v2058
        %v2833 = vsel %vm2824, %v2771, %v2058
        %v2835 = vsel %vm2824, %v2773, %v2060
        %v2836 = vsel %vm2824, %v2775, %v2060
        %v2838 = vsel %vm2824, %v2777, %v2062
        %v2839 = vsel %vm2824, %v2779, %v2062
        %v2841 = vsel %vm2824, %v2781, %v2064
        %v2842 = vsel %vm2824, %v2783, %v2064
        %v2844 = vsel %vm2824, %v2785, %v2066
        %v2845 = vsel %vm2824, %v2787, %v2066
        %v2847 = vsel %vm2824, %v2789, %v2068
        %v2848 = vsel %vm2824, %v2791, %v2068
        %v2850 = vsel %vm2824, %v2793, %v2070
        %v2851 = vsel %vm2824, %v2795, %v2070
        %v2853 = vsel %vm2824, %v2797, %v2072
        %v2854 = vsel %vm2824, %v2799, %v2072
        %v2856 = vsel %vm2824, %v2801, %v2074
        %v2857 = vsel %vm2824, %v2803, %v2074
        %v2859 = vsel %vm2824, %v2805, %v2076
        %v2860 = vsel %vm2824, %v2807, %v2076
        %v2862 = vsel %vm2824, %v2809, %v2078
        %v2863 = vsel %vm2824, %v2811, %v2078
        %v2865 = vsel %vm2824, %v2813, %v2080
        %v2866 = vsel %vm2824, %v2815, %v2080
        %v2868 = vsel %vm2824, %v2817, %v2082
        %v2869 = vsel %vm2824, %v2819, %v2082
        %v2871 = vsel %vm2824, %v2821, %v2084
        %v2872 = vsel %vm2824, %v2823, %v2084
        %vm2873 = vcmask 785408
        %v2875 = vsel %vm2873, %v2826, %v2214
        %v2877 = vsel %vm2873, %v2827, %v2216
        %v2879 = vsel %vm2873, %v2829, %v2218
        %v2881 = vsel %vm2873, %v2830, %v2220
        %v2883 = vsel %vm2873, %v2832, %v2222
        %v2885 = vsel %vm2873, %v2833, %v2224
        %v2887 = vsel %vm2873, %v2835, %v2226
        %v2889 = vsel %vm2873, %v2836, %v2228
        %v2891 = vsel %vm2873, %v2838, %v2230
        %v2893 = vsel %vm2873, %v2839, %v2232
        %v2895 = vsel %vm2873, %v2841, %v2234
        %v2897 = vsel %vm2873, %v2842, %v2236
        %v2899 = vsel %vm2873, %v2844, %v2238
        %v2901 = vsel %vm2873, %v2845, %v2240
        %v2903 = vsel %vm2873, %v2847, %v2242
        %v2905 = vsel %vm2873, %v2848, %v2244
        %v2907 = vsel %vm2873, %v2850, %v2246
        %v2909 = vsel %vm2873, %v2851, %v2248
        %v2911 = vsel %vm2873, %v2853, %v2250
        %v2913 = vsel %vm2873, %v2854, %v2252
        %v2915 = vsel %vm2873, %v2856, %v2254
        %v2917 = vsel %vm2873, %v2857, %v2256
        %v2919 = vsel %vm2873, %v2859, %v2258
        %v2921 = vsel %vm2873, %v2860, %v2260
        %v2923 = vsel %vm2873, %v2862, %v2262
        %v2925 = vsel %vm2873, %v2863, %v2264
        %v2927 = vsel %vm2873, %v2865, %v2266
        %v2929 = vsel %vm2873, %v2866, %v2268
        %v2931 = vsel %vm2873, %v2868, %v2270
        %v2933 = vsel %vm2873, %v2869, %v2272
        %v2935 = vsel %vm2873, %v2871, %v2274
        %v2937 = vsel %vm2873, %v2872, %v2276
        %vm2938 = vcmask 916480
        %v2940 = vsel %vm2938, %v2875, %v2422
        %v2942 = vsel %vm2938, %v2877, %v2424
        %v2944 = vsel %vm2938, %v2879, %v2426
        %v2946 = vsel %vm2938, %v2881, %v2428
        %v2948 = vsel %vm2938, %v2883, %v2430
        %v2950 = vsel %vm2938, %v2885, %v2432
        %v2952 = vsel %vm2938, %v2887, %v2434
        %v2954 = vsel %vm2938, %v2889, %v2436
        %v2956 = vsel %vm2938, %v2891, %v2438
        %v2958 = vsel %vm2938, %v2893, %v2440
        %v2960 = vsel %vm2938, %v2895, %v2442
        %v2962 = vsel %vm2938, %v2897, %v2444
        %v2964 = vsel %vm2938, %v2899, %v2446
        %v2966 = vsel %vm2938, %v2901, %v2448
        %v2968 = vsel %vm2938, %v2903, %v2450
        %v2970 = vsel %vm2938, %v2905, %v2452
        %v2972 = vsel %vm2938, %v2907, %v2454
        %v2974 = vsel %vm2938, %v2909, %v2456
        %v2976 = vsel %vm2938, %v2911, %v2458
        %v2978 = vsel %vm2938, %v2913, %v2460
        %v2980 = vsel %vm2938, %v2915, %v2462
        %v2982 = vsel %vm2938, %v2917, %v2464
        %v2984 = vsel %vm2938, %v2919, %v2466
        %v2986 = vsel %vm2938, %v2921, %v2468
        %v2988 = vsel %vm2938, %v2923, %v2470
        %v2990 = vsel %vm2938, %v2925, %v2472
        %v2992 = vsel %vm2938, %v2927, %v2474
        %v2994 = vsel %vm2938, %v2929, %v2476
        %v2996 = vsel %vm2938, %v2931, %v2478
        %v2998 = vsel %vm2938, %v2933, %v2480
        %v3000 = vsel %vm2938, %v2935, %v2482
        %v3002 = vsel %vm2938, %v2937, %v2484
        %vm3035 = vcmask 1045504
        %v3036 = vrot.slane %v2940, 2
        %v3037 = vrot.slane %v2942, 2
        %v3038 = vsel %vm3035, %v3036, %v3037
        %v3039 = vrot.slane %v2533, 2
        %v3040 = vsel %vm3035, %v3039, %v3039
        %v3041 = vrot.slane %v2944, 2
        %v3042 = vrot.slane %v2946, 2
        %v3043 = vsel %vm3035, %v3041, %v3042
        %v3044 = vrot.slane %v2534, 2
        %v3045 = vsel %vm3035, %v3044, %v3044
        %v3046 = vrot.slane %v2948, 2
        %v3047 = vrot.slane %v2950, 2
        %v3048 = vsel %vm3035, %v3046, %v3047
        %v3049 = vrot.slane %v2535, 2
        %v3050 = vsel %vm3035, %v3049, %v3049
        %v3051 = vrot.slane %v2952, 2
        %v3052 = vrot.slane %v2954, 2
        %v3053 = vsel %vm3035, %v3051, %v3052
        %v3054 = vrot.slane %v2536, 2
        %v3055 = vsel %vm3035, %v3054, %v3054
        %v3056 = vrot.slane %v2956, 2
        %v3057 = vrot.slane %v2958, 2
        %v3058 = vsel %vm3035, %v3056, %v3057
        %v3059 = vrot.slane %v2537, 2
        %v3060 = vsel %vm3035, %v3059, %v3059
        %v3061 = vrot.slane %v2960, 2
        %v3062 = vrot.slane %v2962, 2
        %v3063 = vsel %vm3035, %v3061, %v3062
        %v3064 = vrot.slane %v2538, 2
        %v3065 = vsel %vm3035, %v3064, %v3064
        %v3066 = vrot.slane %v2964, 2
        %v3067 = vrot.slane %v2966, 2
        %v3068 = vsel %vm3035, %v3066, %v3067
        %v3069 = vrot.slane %v2539, 2
        %v3070 = vsel %vm3035, %v3069, %v3069
        %v3071 = vrot.slane %v2968, 2
        %v3072 = vrot.slane %v2970, 2
        %v3073 = vsel %vm3035, %v3071, %v3072
        %v3074 = vrot.slane %v2540, 2
        %v3075 = vsel %vm3035, %v3074, %v3074
        %v3076 = vrot.slane %v2972, 2
        %v3077 = vrot.slane %v2974, 2
        %v3078 = vsel %vm3035, %v3076, %v3077
        %v3079 = vrot.slane %v2541, 2
        %v3080 = vsel %vm3035, %v3079, %v3079
        %v3081 = vrot.slane %v2976, 2
        %v3082 = vrot.slane %v2978, 2
        %v3083 = vsel %vm3035, %v3081, %v3082
        %v3084 = vrot.slane %v2542, 2
        %v3085 = vsel %vm3035, %v3084, %v3084
        %v3086 = vrot.slane %v2980, 2
        %v3087 = vrot.slane %v2982, 2
        %v3088 = vsel %vm3035, %v3086, %v3087
        %v3089 = vrot.slane %v2543, 2
        %v3090 = vsel %vm3035, %v3089, %v3089
        %v3091 = vrot.slane %v2984, 2
        %v3092 = vrot.slane %v2986, 2
        %v3093 = vsel %vm3035, %v3091, %v3092
        %v3094 = vrot.slane %v2544, 2
        %v3095 = vsel %vm3035, %v3094, %v3094
        %v3096 = vrot.slane %v2988, 2
        %v3097 = vrot.slane %v2990, 2
        %v3098 = vsel %vm3035, %v3096, %v3097
        %v3099 = vrot.slane %v2545, 2
        %v3100 = vsel %vm3035, %v3099, %v3099
        %v3101 = vrot.slane %v2992, 2
        %v3102 = vrot.slane %v2994, 2
        %v3103 = vsel %vm3035, %v3101, %v3102
        %v3104 = vrot.slane %v2546, 2
        %v3105 = vsel %vm3035, %v3104, %v3104
        %v3106 = vrot.slane %v2996, 2
        %v3107 = vrot.slane %v2998, 2
        %v3108 = vsel %vm3035, %v3106, %v3107
        %v3109 = vrot.slane %v2547, 2
        %v3110 = vsel %vm3035, %v3109, %v3109
        %v3111 = vrot.slane %v3000, 2
        %v3112 = vrot.slane %v3002, 2
        %v3113 = vsel %vm3035, %v3111, %v3112
        %v3114 = vrot.slane %v2548, 2
        %v3115 = vsel %vm3035, %v3114, %v3114
        %v3132 = vld [vmem:[%s3] sm:$0xf]
        %v3133 = vld [vmem:[%s3 + $0x4] sm:$0xf]
        %v3134 = vld [vmem:[%s3 + $0x8] sm:$0xf]
        %v3135 = vld [vmem:[%s3 + $0xc] sm:$0xf]
        %v3136 = vld [vmem:[%s3 + $0x10] sm:$0xf]
        %v3137 = vld [vmem:[%s3 + $0x14] sm:$0xf]
        %v3138 = vld [vmem:[%s3 + $0x18] sm:$0xf]
        %v3139 = vld [vmem:[%s3 + $0x1c] sm:$0xf]
        %v3140 = vld [vmem:[%s3 + $0x20] sm:$0xf]
        %v3141 = vld [vmem:[%s3 + $0x24] sm:$0xf]
        %v3142 = vld [vmem:[%s3 + $0x28] sm:$0xf]
        %v3143 = vld [vmem:[%s3 + $0x2c] sm:$0xf]
        %v3144 = vld [vmem:[%s3 + $0x30] sm:$0xf]
        %v3145 = vld [vmem:[%s3 + $0x34] sm:$0xf]
        %v3146 = vld [vmem:[%s3 + $0x38] sm:$0xf]
        %v3147 = vld [vmem:[%s3 + $0x3c] sm:$0xf]
        %v3148 = vld [vmem:[%s3 + $0x40] sm:$0xf]
        %v3149 = vld [vmem:[%s3 + $0x44] sm:$0xf]
        %v3150 = vld [vmem:[%s4] sm:$0x1]
        %v3152 = vlaneseq
        %v3153 = vshrl.u32 %v3152, 7
        %v3154 = vsub.s32 0, %v3153
        %v3155 = vrot.slane %v3150, %v3154
        %v3175 = vunpack.c.l.b16 %v3132
        %v3176 = vunpack.c.l.b16 %v3133
        %v3177 = vunpack.c.l.b16 %v3134
        %v3178 = vunpack.c.l.b16 %v3135
        %v3179 = vunpack.c.l.b16 %v3136
        %v3180 = vunpack.c.l.b16 %v3137
        %v3181 = vunpack.c.l.b16 %v3138
        %v3182 = vunpack.c.l.b16 %v3139
        %v3183 = vunpack.c.l.b16 %v3140
        %v3184 = vunpack.c.l.b16 %v3141
        %v3185 = vunpack.c.l.b16 %v3142
        %v3186 = vunpack.c.l.b16 %v3143
        %v3187 = vunpack.c.l.b16 %v3144
        %v3188 = vunpack.c.l.b16 %v3145
        %v3189 = vunpack.c.l.b16 %v3146
        %v3190 = vunpack.c.l.b16 %v3147
        %v3191 = vunpack.c.l.b16 %v3148
        %v3192 = vunpack.c.l.b16 %v3149
        %v3193 = vpack.c.b16 %v3176, %v3175
        %v3194 = vpack.c.b16 %v3178, %v3177
        %v3195 = vpack.c.b16 %v3180, %v3179
        %v3196 = vpack.c.b16 %v3182, %v3181
        %v3197 = vpack.c.b16 %v3184, %v3183
        %v3198 = vpack.c.b16 %v3186, %v3185
        %v3199 = vpack.c.b16 %v3188, %v3187
        %v3200 = vpack.c.b16 %v3190, %v3189
        %v3201 = vpack.c.b16 %v3192, %v3191
        %v3212 = vsel %vm586, %v3040, 0
        %v3215 = vsel %vm586, %v3045, 0
        %v3218 = vsel %vm586, %v3050, 0
        %v3221 = vsel %vm586, %v3055, 0
        %v3224 = vsel %vm586, %v3060, 0
        %v3227 = vsel %vm586, %v3065, 0
        %v3230 = vsel %vm586, %v3070, 0
        %v3233 = vsel %vm586, %v3075, 0
        %v3236 = vsel %vm586, %v3080, 0
        %v3239 = vsel %vm586, %v3085, 0
        %v3242 = vsel %vm586, %v3090, 0
        %v3245 = vsel %vm586, %v3095, 0
        %v3248 = vsel %vm586, %v3100, 0
        %v3251 = vsel %vm586, %v3105, 0
        %v3254 = vsel %vm586, %v3110, 0
        %v3257 = vsel %vm586, %v3115, 0
        %3259 = vmatprep.subr.bf16.mxu0 0
        %3260 = vmatpush1.bf16.msra.mxu0 %v3193
        %3261 = vmatprep.subr.bf16.mxu0 0
        %3262 = vmatpush1.bf16.msra.mxu0 %v3194
        %3263 = vmatprep.subr.bf16.mxu0 0
        %3264 = vmatpush1.bf16.msra.mxu0 %v3195
        %3265 = vmatprep.subr.bf16.mxu0 0
        %3266 = vmatpush1.bf16.msra.mxu0 %v3196
        %3267 = vmatprep.subr.bf16.mxu0 0
        %3268 = vmatpush1.bf16.msra.mxu0 %v3197
        %3269 = vmatprep.subr.bf16.mxu0 0
        %3270 = vmatpush1.bf16.msra.mxu0 %v3198
        %3271 = vmatprep.subr.bf16.mxu0 0
        %3272 = vmatpush1.bf16.msra.mxu0 %v3199
        %3273 = vmatprep.subr.bf16.mxu0 0
        %3274 = vmatpush1.bf16.msra.mxu0 %v3200
        %3275 = vmatprep.subr.bf16.mxu0 0
        %3276 = vmatpush1.bf16.msra.mxu0 %v3201
        %3277 = vmatprep.subr.bf16.mxu0 0
        %3278 = vmatpush1.bf16.msra.mxu0 0
        %3279 = vmatprep.subr.bf16.mxu0 0
        %3280 = vmatpush1.bf16.msra.mxu0 0
        %3281 = vmatprep.subr.bf16.mxu0 0
        %3282 = vmatpush1.bf16.msra.mxu0 0
        %3283 = vmatprep.subr.bf16.mxu0 0
        %3284 = vmatpush1.bf16.msra.mxu0 0
        %3285 = vmatprep.subr.bf16.mxu0 0
        %3286 = vmatpush1.bf16.msra.mxu0 0
        %3287 = vmatprep.subr.bf16.mxu0 0
        %3288 = vmatpush1.bf16.msra.mxu0 0
        %3289 = vmatprep.subr.bf16.mxu0 0
        %3290 = vmatpush1.bf16.msra.mxu0 0
        %3291 = vmatprep.mubr.bf16.mxu0 %v3212
        %3292 = vmatmul.mubr.bf16.gmra.mrb[0].mxu0 %v3038
        %v3293 = vpop.f32.mrb[0].mxu0
        %v3294 = vadd.f32 %v3155, %v3293
        %v3295 = vpop.f32.mrb[0].mxu0
        %v3296 = vpop.f32.mrb[0].mxu0
        %v3297 = vadd.f32 %v3155, %v3296
        %v3298 = vpop.f32.mrb[0].mxu0
        %3299 = vmatprep.mubr.bf16.mxu0 %v3215
        %3300 = vmatmul.mubr.bf16.gmra.mrb[0].mxu0 %v3043
        %v3301 = vpop.f32.mrb[0].mxu0
        %v3302 = vadd.f32 %v3155, %v3301
        %v3303 = vpop.f32.mrb[0].mxu0
        %v3304 = vpop.f32.mrb[0].mxu0
        %v3305 = vadd.f32 %v3155, %v3304
        %v3306 = vpop.f32.mrb[0].mxu0
        %3307 = vmatprep.mubr.bf16.mxu0 %v3218
        %3308 = vmatmul.mubr.bf16.gmra.mrb[0].mxu0 %v3048
        %v3309 = vpop.f32.mrb[0].mxu0
        %v3310 = vadd.f32 %v3155, %v3309
        %v3311 = vpop.f32.mrb[0].mxu0
        %v3312 = vpop.f32.mrb[0].mxu0
        %v3313 = vadd.f32 %v3155, %v3312
        %v3314 = vpop.f32.mrb[0].mxu0
        %3315 = vmatprep.mubr.bf16.mxu0 %v3221
        %3316 = vmatmul.mubr.bf16.gmra.mrb[0].mxu0 %v3053
        %v3317 = vpop.f32.mrb[0].mxu0
        %v3318 = vadd.f32 %v3155, %v3317
        %v3319 = vpop.f32.mrb[0].mxu0
        %v3320 = vpop.f32.mrb[0].mxu0
        %v3321 = vadd.f32 %v3155, %v3320
        %v3322 = vpop.f32.mrb[0].mxu0
        %3323 = vmatprep.mubr.bf16.mxu0 %v3224
        %3324 = vmatmul.mubr.bf16.gmra.mrb[0].mxu0 %v3058
        %v3325 = vpop.f32.mrb[0].mxu0
        %v3326 = vadd.f32 %v3155, %v3325
        %v3327 = vpop.f32.mrb[0].mxu0
        %v3328 = vpop.f32.mrb[0].mxu0
        %v3329 = vadd.f32 %v3155, %v3328
        %v3330 = vpop.f32.mrb[0].mxu0
        %3331 = vmatprep.mubr.bf16.mxu0 %v3227
        %3332 = vmatmul.mubr.bf16.gmra.mrb[0].mxu0 %v3063
        %v3333 = vpop.f32.mrb[0].mxu0
        %v3334 = vadd.f32 %v3155, %v3333
        %v3335 = vpop.f32.mrb[0].mxu0
        %v3336 = vpop.f32.mrb[0].mxu0
        %v3337 = vadd.f32 %v3155, %v3336
        %v3338 = vpop.f32.mrb[0].mxu0
        %3339 = vmatprep.mubr.bf16.mxu0 %v3230
        %3340 = vmatmul.mubr.bf16.gmra.mrb[0].mxu0 %v3068
        %v3341 = vpop.f32.mrb[0].mxu0
        %v3342 = vadd.f32 %v3155, %v3341
        %v3343 = vpop.f32.mrb[0].mxu0
        %v3344 = vpop.f32.mrb[0].mxu0
        %v3345 = vadd.f32 %v3155, %v3344
        %v3346 = vpop.f32.mrb[0].mxu0
        %3347 = vmatprep.mubr.bf16.mxu0 %v3233
        %3348 = vmatmul.mubr.bf16.gmra.mrb[0].mxu0 %v3073
        %v3349 = vpop.f32.mrb[0].mxu0
        %v3350 = vadd.f32 %v3155, %v3349
        %v3351 = vpop.f32.mrb[0].mxu0
        %v3352 = vpop.f32.mrb[0].mxu0
        %v3353 = vadd.f32 %v3155, %v3352
        %v3354 = vpop.f32.mrb[0].mxu0
        %3355 = vmatprep.mubr.bf16.mxu0 %v3236
        %3356 = vmatmul.mubr.bf16.gmra.mrb[0].mxu0 %v3078
        %v3357 = vpop.f32.mrb[0].mxu0
        %v3358 = vadd.f32 %v3155, %v3357
        %v3359 = vpop.f32.mrb[0].mxu0
        %v3360 = vpop.f32.mrb[0].mxu0
        %v3361 = vadd.f32 %v3155, %v3360
        %v3362 = vpop.f32.mrb[0].mxu0
        %3363 = vmatprep.mubr.bf16.mxu0 %v3239
        %3364 = vmatmul.mubr.bf16.gmra.mrb[0].mxu0 %v3083
        %v3365 = vpop.f32.mrb[0].mxu0
        %v3366 = vadd.f32 %v3155, %v3365
        %v3367 = vpop.f32.mrb[0].mxu0
        %v3368 = vpop.f32.mrb[0].mxu0
        %v3369 = vadd.f32 %v3155, %v3368
        %v3370 = vpop.f32.mrb[0].mxu0
        %3371 = vmatprep.mubr.bf16.mxu0 %v3242
        %3372 = vmatmul.mubr.bf16.gmra.mrb[0].mxu0 %v3088
        %v3373 = vpop.f32.mrb[0].mxu0
        %v3374 = vadd.f32 %v3155, %v3373
        %v3375 = vpop.f32.mrb[0].mxu0
        %v3376 = vpop.f32.mrb[0].mxu0
        %v3377 = vadd.f32 %v3155, %v3376
        %v3378 = vpop.f32.mrb[0].mxu0
        %3379 = vmatprep.mubr.bf16.mxu0 %v3245
        %3380 = vmatmul.mubr.bf16.gmra.mrb[0].mxu0 %v3093
        %v3381 = vpop.f32.mrb[0].mxu0
        %v3382 = vadd.f32 %v3155, %v3381
        %v3383 = vpop.f32.mrb[0].mxu0
        %v3384 = vpop.f32.mrb[0].mxu0
        %v3385 = vadd.f32 %v3155, %v3384
        %v3386 = vpop.f32.mrb[0].mxu0
        %3387 = vmatprep.mubr.bf16.mxu0 %v3248
        %3388 = vmatmul.mubr.bf16.gmra.mrb[0].mxu0 %v3098
        %v3389 = vpop.f32.mrb[0].mxu0
        %v3390 = vadd.f32 %v3155, %v3389
        %v3391 = vpop.f32.mrb[0].mxu0
        %v3392 = vpop.f32.mrb[0].mxu0
        %v3393 = vadd.f32 %v3155, %v3392
        %v3394 = vpop.f32.mrb[0].mxu0
        %3395 = vmatprep.mubr.bf16.mxu0 %v3251
        %3396 = vmatmul.mubr.bf16.gmra.mrb[0].mxu0 %v3103
        %v3397 = vpop.f32.mrb[0].mxu0
        %v3398 = vadd.f32 %v3155, %v3397
        %v3399 = vpop.f32.mrb[0].mxu0
        %v3400 = vpop.f32.mrb[0].mxu0
        %v3401 = vadd.f32 %v3155, %v3400
        %v3402 = vpop.f32.mrb[0].mxu0
        %3403 = vmatprep.mubr.bf16.mxu0 %v3254
        %3404 = vmatmul.mubr.bf16.gmra.mrb[0].mxu0 %v3108
        %v3405 = vpop.f32.mrb[0].mxu0
        %v3406 = vadd.f32 %v3155, %v3405
        %v3407 = vpop.f32.mrb[0].mxu0
        %v3408 = vpop.f32.mrb[0].mxu0
        %v3409 = vadd.f32 %v3155, %v3408
        %v3410 = vpop.f32.mrb[0].mxu0
        %3411 = vmatprep.mubr.bf16.mxu0 %v3257
        %3412 = vmatmul.mubr.bf16.gmra.mrb[0].mxu0 %v3113
        %v3413 = vpop.f32.mrb[0].mxu0
        %v3414 = vadd.f32 %v3155, %v3413
        %v3415 = vpop.f32.mrb[0].mxu0
        %v3416 = vpop.f32.mrb[0].mxu0
        %v3417 = vadd.f32 %v3155, %v3416
        %v3418 = vpop.f32.mrb[0].mxu0
        %3419 = vdwg.mxu0
        %v3420 = vmax.f32 %v3294, 0.0
        %v3421 = vmax.f32 %v3297, 0.0
        %v3422 = vmax.f32 %v3302, 0.0
        %v3423 = vmax.f32 %v3305, 0.0
        %v3424 = vmax.f32 %v3310, 0.0
        %v3425 = vmax.f32 %v3313, 0.0
        %v3426 = vmax.f32 %v3318, 0.0
        %v3427 = vmax.f32 %v3321, 0.0
        %v3428 = vmax.f32 %v3326, 0.0
        %v3429 = vmax.f32 %v3329, 0.0
        %v3430 = vmax.f32 %v3334, 0.0
        %v3431 = vmax.f32 %v3337, 0.0
        %v3432 = vmax.f32 %v3342, 0.0
        %v3433 = vmax.f32 %v3345, 0.0
        %v3434 = vmax.f32 %v3350, 0.0
        %v3435 = vmax.f32 %v3353, 0.0
        %v3436 = vmax.f32 %v3358, 0.0
        %v3437 = vmax.f32 %v3361, 0.0
        %v3438 = vmax.f32 %v3366, 0.0
        %v3439 = vmax.f32 %v3369, 0.0
        %v3440 = vmax.f32 %v3374, 0.0
        %v3441 = vmax.f32 %v3377, 0.0
        %v3442 = vmax.f32 %v3382, 0.0
        %v3443 = vmax.f32 %v3385, 0.0
        %v3444 = vmax.f32 %v3390, 0.0
        %v3445 = vmax.f32 %v3393, 0.0
        %v3446 = vmax.f32 %v3398, 0.0
        %v3447 = vmax.f32 %v3401, 0.0
        %v3448 = vmax.f32 %v3406, 0.0
        %v3449 = vmax.f32 %v3409, 0.0
        %v3450 = vmax.f32 %v3414, 0.0
        %v3451 = vmax.f32 %v3417, 0.0
        %v3452 = vpack.c.bf16 %v3421, %v3420
        %v3453 = vpack.c.bf16 %v3423, %v3422
        %v3454 = vpack.c.bf16 %v3425, %v3424
        %v3455 = vpack.c.bf16 %v3427, %v3426
        %v3456 = vpack.c.bf16 %v3429, %v3428
        %v3457 = vpack.c.bf16 %v3431, %v3430
        %v3458 = vpack.c.bf16 %v3433, %v3432
        %v3459 = vpack.c.bf16 %v3435, %v3434
        %v3460 = vpack.c.bf16 %v3437, %v3436
        %v3461 = vpack.c.bf16 %v3439, %v3438
        %v3462 = vpack.c.bf16 %v3441, %v3440
        %v3463 = vpack.c.bf16 %v3443, %v3442
        %v3464 = vpack.c.bf16 %v3445, %v3444
        %v3465 = vpack.c.bf16 %v3447, %v3446
        %v3466 = vpack.c.bf16 %v3449, %v3448
        %v3467 = vpack.c.bf16 %v3451, %v3450
        %3468 = vst [vmem:[#allocation2 + $0x8] sm:$0xff] %v3452
        %3469 = vst [vmem:[#allocation2 + $0x28] sm:$0xff] %v3453
        %3470 = vst [vmem:[#allocation2 + $0x48] sm:$0xff] %v3454
        %3471 = vst [vmem:[#allocation2 + $0x68] sm:$0xff] %v3455
        %3472 = vst [vmem:[#allocation2 + $0x88] sm:$0xff] %v3456
        %3473 = vst [vmem:[#allocation2 + $0xa8] sm:$0xff] %v3457
        %3474 = vst [vmem:[#allocation2 + $0xc8] sm:$0xff] %v3458
        %3475 = vst [vmem:[#allocation2 + $0xe8] sm:$0xff] %v3459
        %3476 = vst [vmem:[#allocation2 + $0x108] sm:$0xff] %v3460
        %3477 = vst [vmem:[#allocation2 + $0x128] sm:$0xff] %v3461
        %3478 = vst [vmem:[#allocation2 + $0x148] sm:$0xff] %v3462
        %3479 = vst [vmem:[#allocation2 + $0x168] sm:$0xff] %v3463
        %3480 = vst [vmem:[#allocation2 + $0x188] sm:$0xff] %v3464
        %3481 = vst [vmem:[#allocation2 + $0x1a8] sm:$0xff] %v3465
        %3482 = vst [vmem:[#allocation2 + $0x1c8] sm:$0xff] %v3466
        %3483 = vst [vmem:[#allocation2 + $0x1e8] sm:$0xff] %v3467
        %s3484 = sadd.s32 %s307, 2
        %s3485 = smul.u32 %s3484, 4
        %s3486 = smul.addr %s3485, 4
        %s3487 = scalar_lea.vmem %s301, %s3486
        %v3488 = vld [vmem:[%s3487] sm:$0xe]
        %v3489 = vld [vmem:[%s3487 + $0x4] sm:$0xf]
        %v3490 = vld [vmem:[%s3487 + $0x8] sm:$0x1]
        %v3491 = vld [vmem:[%s3487 + $0x10] sm:$0xe]
        %v3492 = vld [vmem:[%s3487 + $0x14] sm:$0xf]
        %v3493 = vld [vmem:[%s3487 + $0x18] sm:$0x1]
        %v3494 = vld [vmem:[%s3487 + $0x20] sm:$0xe]
        %v3495 = vld [vmem:[%s3487 + $0x24] sm:$0xf]
        %v3496 = vld [vmem:[%s3487 + $0x28] sm:$0x1]
        %v3497 = vld [vmem:[%s3487 + $0x30] sm:$0xe]
        %v3498 = vld [vmem:[%s3487 + $0x34] sm:$0xf]
        %v3499 = vld [vmem:[%s3487 + $0x38] sm:$0x1]
        %v3500 = vld [vmem:[%s3487 + $0x40] sm:$0xe]
        %v3501 = vld [vmem:[%s3487 + $0x44] sm:$0xf]
        %v3502 = vld [vmem:[%s3487 + $0x48] sm:$0x1]
        %v3503 = vld [vmem:[%s3487 + $0x50] sm:$0xe]
        %v3504 = vld [vmem:[%s3487 + $0x54] sm:$0xf]
        %v3505 = vld [vmem:[%s3487 + $0x58] sm:$0x1]
        %v3506 = vld [vmem:[%s3487 + $0x60] sm:$0xe]
        %v3507 = vld [vmem:[%s3487 + $0x64] sm:$0xf]
        %v3508 = vld [vmem:[%s3487 + $0x68] sm:$0x1]
        %v3509 = vld [vmem:[%s3487 + $0x70] sm:$0xe]
        %v3510 = vld [vmem:[%s3487 + $0x74] sm:$0xf]
        %v3511 = vld [vmem:[%s3487 + $0x78] sm:$0x1]
        %v3512 = vld [vmem:[%s3487 + $0x80] sm:$0xe]
        %v3513 = vld [vmem:[%s3487 + $0x84] sm:$0xf]
        %v3514 = vld [vmem:[%s3487 + $0x88] sm:$0x1]
        %v3515 = vld [vmem:[%s3487 + $0x90] sm:$0xe]
        %v3516 = vld [vmem:[%s3487 + $0x94] sm:$0xf]
        %v3517 = vld [vmem:[%s3487 + $0x98] sm:$0x1]
        %v3518 = vld [vmem:[%s3487 + $0xa0] sm:$0xe]
        %v3519 = vld [vmem:[%s3487 + $0xa4] sm:$0xf]
        %v3520 = vld [vmem:[%s3487 + $0xa8] sm:$0x1]
        %v3521 = vld [vmem:[%s3487 + $0xb0] sm:$0xe]
        %v3522 = vld [vmem:[%s3487 + $0xb4] sm:$0xf]
        %v3523 = vld [vmem:[%s3487 + $0xb8] sm:$0x1]
        %v3524 = vld [vmem:[%s3487 + $0xc0] sm:$0xe]
        %v3525 = vld [vmem:[%s3487 + $0xc4] sm:$0xf]
        %v3526 = vld [vmem:[%s3487 + $0xc8] sm:$0x1]
        %v3527 = vld [vmem:[%s3487 + $0xd0] sm:$0xe]
        %v3528 = vld [vmem:[%s3487 + $0xd4] sm:$0xf]
        %v3529 = vld [vmem:[%s3487 + $0xd8] sm:$0x1]
        %v3530 = vld [vmem:[%s3487 + $0xe0] sm:$0xe]
        %v3531 = vld [vmem:[%s3487 + $0xe4] sm:$0xf]
        %v3532 = vld [vmem:[%s3487 + $0xe8] sm:$0x1]
        %v3533 = vld [vmem:[%s3487 + $0xf0] sm:$0xe]
        %v3534 = vld [vmem:[%s3487 + $0xf4] sm:$0xf]
        %v3535 = vld [vmem:[%s3487 + $0xf8] sm:$0x1]
        %v3536 = vld [vmem:[%s3487] sm:$0x8]
        %v3537 = vld [vmem:[%s3487 + $0x8] sm:$0x7]
        %v3538 = vld [vmem:[%s3487 + $0x10] sm:$0x8]
        %v3539 = vld [vmem:[%s3487 + $0x18] sm:$0x7]
        %v3540 = vld [vmem:[%s3487 + $0x20] sm:$0x8]
        %v3541 = vld [vmem:[%s3487 + $0x28] sm:$0x7]
        %v3542 = vld [vmem:[%s3487 + $0x30] sm:$0x8]
        %v3543 = vld [vmem:[%s3487 + $0x38] sm:$0x7]
        %v3544 = vld [vmem:[%s3487 + $0x40] sm:$0x8]
        %v3545 = vld [vmem:[%s3487 + $0x48] sm:$0x7]
        %v3546 = vld [vmem:[%s3487 + $0x50] sm:$0x8]
        %v3547 = vld [vmem:[%s3487 + $0x58] sm:$0x7]
        %v3548 = vld [vmem:[%s3487 + $0x60] sm:$0x8]
        %v3549 = vld [vmem:[%s3487 + $0x68] sm:$0x7]
        %v3550 = vld [vmem:[%s3487 + $0x70] sm:$0x8]
        %v3551 = vld [vmem:[%s3487 + $0x78] sm:$0x7]
        %v3552 = vld [vmem:[%s3487 + $0x80] sm:$0x8]
        %v3553 = vld [vmem:[%s3487 + $0x88] sm:$0x7]
        %v3554 = vld [vmem:[%s3487 + $0x90] sm:$0x8]
        %v3555 = vld [vmem:[%s3487 + $0x98] sm:$0x7]
        %v3556 = vld [vmem:[%s3487 + $0xa0] sm:$0x8]
        %v3557 = vld [vmem:[%s3487 + $0xa8] sm:$0x7]
        %v3558 = vld [vmem:[%s3487 + $0xb0] sm:$0x8]
        %v3559 = vld [vmem:[%s3487 + $0xb8] sm:$0x7]
        %v3560 = vld [vmem:[%s3487 + $0xc0] sm:$0x8]
        %v3561 = vld [vmem:[%s3487 + $0xc8] sm:$0x7]
        %v3562 = vld [vmem:[%s3487 + $0xd0] sm:$0x8]
        %v3563 = vld [vmem:[%s3487 + $0xd8] sm:$0x7]
        %v3564 = vld [vmem:[%s3487 + $0xe0] sm:$0x8]
        %v3565 = vld [vmem:[%s3487 + $0xe8] sm:$0x7]
        %v3566 = vld [vmem:[%s3487 + $0xf0] sm:$0x8]
        %v3567 = vld [vmem:[%s3487 + $0xf8] sm:$0x7]
        %v3568 = vld [vmem:[%s3487 + $0x4] sm:$0xe]
        %v3569 = vld [vmem:[%s3487 + $0x8] sm:$0xf]
        %v3570 = vld [vmem:[%s3487 + $0xc] sm:$0x1]
        %v3571 = vld [vmem:[%s3487 + $0x14] sm:$0xe]
        %v3572 = vld [vmem:[%s3487 + $0x18] sm:$0xf]
        %v3573 = vld [vmem:[%s3487 + $0x1c] sm:$0x1]
        %v3574 = vld [vmem:[%s3487 + $0x24] sm:$0xe]
        %v3575 = vld [vmem:[%s3487 + $0x28] sm:$0xf]
        %v3576 = vld [vmem:[%s3487 + $0x2c] sm:$0x1]
        %v3577 = vld [vmem:[%s3487 + $0x34] sm:$0xe]
        %v3578 = vld [vmem:[%s3487 + $0x38] sm:$0xf]
        %v3579 = vld [vmem:[%s3487 + $0x3c] sm:$0x1]
        %v3580 = vld [vmem:[%s3487 + $0x44] sm:$0xe]
        %v3581 = vld [vmem:[%s3487 + $0x48] sm:$0xf]
        %v3582 = vld [vmem:[%s3487 + $0x4c] sm:$0x1]
        %v3583 = vld [vmem:[%s3487 + $0x54] sm:$0xe]
        %v3584 = vld [vmem:[%s3487 + $0x58] sm:$0xf]
        %v3585 = vld [vmem:[%s3487 + $0x5c] sm:$0x1]
        %v3586 = vld [vmem:[%s3487 + $0x64] sm:$0xe]
        %v3587 = vld [vmem:[%s3487 + $0x68] sm:$0xf]
        %v3588 = vld [vmem:[%s3487 + $0x6c] sm:$0x1]
        %v3589 = vld [vmem:[%s3487 + $0x74] sm:$0xe]
        %v3590 = vld [vmem:[%s3487 + $0x78] sm:$0xf]
        %v3591 = vld [vmem:[%s3487 + $0x7c] sm:$0x1]
        %v3592 = vld [vmem:[%s3487 + $0x84] sm:$0xe]
        %v3593 = vld [vmem:[%s3487 + $0x88] sm:$0xf]
        %v3594 = vld [vmem:[%s3487 + $0x8c] sm:$0x1]
        %v3595 = vld [vmem:[%s3487 + $0x94] sm:$0xe]
        %v3596 = vld [vmem:[%s3487 + $0x98] sm:$0xf]
        %v3597 = vld [vmem:[%s3487 + $0x9c] sm:$0x1]
        %v3598 = vld [vmem:[%s3487 + $0xa4] sm:$0xe]
        %v3599 = vld [vmem:[%s3487 + $0xa8] sm:$0xf]
        %v3600 = vld [vmem:[%s3487 + $0xac] sm:$0x1]
        %v3601 = vld [vmem:[%s3487 + $0xb4] sm:$0xe]
        %v3602 = vld [vmem:[%s3487 + $0xb8] sm:$0xf]
        %v3603 = vld [vmem:[%s3487 + $0xbc] sm:$0x1]
        %v3604 = vld [vmem:[%s3487 + $0xc4] sm:$0xe]
        %v3605 = vld [vmem:[%s3487 + $0xc8] sm:$0xf]
        %v3606 = vld [vmem:[%s3487 + $0xcc] sm:$0x1]
        %v3607 = vld [vmem:[%s3487 + $0xd4] sm:$0xe]
        %v3608 = vld [vmem:[%s3487 + $0xd8] sm:$0xf]
        %v3609 = vld [vmem:[%s3487 + $0xdc] sm:$0x1]
        %v3610 = vld [vmem:[%s3487 + $0xe4] sm:$0xe]
        %v3611 = vld [vmem:[%s3487 + $0xe8] sm:$0xf]
        %v3612 = vld [vmem:[%s3487 + $0xec] sm:$0x1]
        %v3613 = vld [vmem:[%s3487 + $0xf4] sm:$0xe]
        %v3614 = vld [vmem:[%s3487 + $0xf8] sm:$0xf]
        %v3615 = vld [vmem:[%s3487 + $0xfc] sm:$0x1]
        %v3616 = vld [vmem:[%s311] sm:$0xe]
        %v3617 = vld [vmem:[%s311 + $0x4] sm:$0xf]
        %v3618 = vld [vmem:[%s311 + $0x8] sm:$0x1]
        %v3619 = vld [vmem:[%s311 + $0x10] sm:$0xe]
        %v3620 = vld [vmem:[%s311 + $0x14] sm:$0xf]
        %v3621 = vld [vmem:[%s311 + $0x18] sm:$0x1]
        %v3622 = vld [vmem:[%s311 + $0x20] sm:$0xe]
        %v3623 = vld [vmem:[%s311 + $0x24] sm:$0xf]
        %v3624 = vld [vmem:[%s311 + $0x28] sm:$0x1]
        %v3625 = vld [vmem:[%s311 + $0x30] sm:$0xe]
        %v3626 = vld [vmem:[%s311 + $0x34] sm:$0xf]
        %v3627 = vld [vmem:[%s311 + $0x38] sm:$0x1]
        %v3628 = vld [vmem:[%s311 + $0x40] sm:$0xe]
        %v3629 = vld [vmem:[%s311 + $0x44] sm:$0xf]
        %v3630 = vld [vmem:[%s311 + $0x48] sm:$0x1]
        %v3631 = vld [vmem:[%s311 + $0x50] sm:$0xe]
        %v3632 = vld [vmem:[%s311 + $0x54] sm:$0xf]
        %v3633 = vld [vmem:[%s311 + $0x58] sm:$0x1]
        %v3634 = vld [vmem:[%s311 + $0x60] sm:$0xe]
        %v3635 = vld [vmem:[%s311 + $0x64] sm:$0xf]
        %v3636 = vld [vmem:[%s311 + $0x68] sm:$0x1]
        %v3637 = vld [vmem:[%s311 + $0x70] sm:$0xe]
        %v3638 = vld [vmem:[%s311 + $0x74] sm:$0xf]
        %v3639 = vld [vmem:[%s311 + $0x78] sm:$0x1]
        %v3640 = vld [vmem:[%s311 + $0x80] sm:$0xe]
        %v3641 = vld [vmem:[%s311 + $0x84] sm:$0xf]
        %v3642 = vld [vmem:[%s311 + $0x88] sm:$0x1]
        %v3643 = vld [vmem:[%s311 + $0x90] sm:$0xe]
        %v3644 = vld [vmem:[%s311 + $0x94] sm:$0xf]
        %v3645 = vld [vmem:[%s311 + $0x98] sm:$0x1]
        %v3646 = vld [vmem:[%s311 + $0xa0] sm:$0xe]
        %v3647 = vld [vmem:[%s311 + $0xa4] sm:$0xf]
        %v3648 = vld [vmem:[%s311 + $0xa8] sm:$0x1]
        %v3649 = vld [vmem:[%s311 + $0xb0] sm:$0xe]
        %v3650 = vld [vmem:[%s311 + $0xb4] sm:$0xf]
        %v3651 = vld [vmem:[%s311 + $0xb8] sm:$0x1]
        %v3652 = vld [vmem:[%s311 + $0xc0] sm:$0xe]
        %v3653 = vld [vmem:[%s311 + $0xc4] sm:$0xf]
        %v3654 = vld [vmem:[%s311 + $0xc8] sm:$0x1]
        %v3655 = vld [vmem:[%s311 + $0xd0] sm:$0xe]
        %v3656 = vld [vmem:[%s311 + $0xd4] sm:$0xf]
        %v3657 = vld [vmem:[%s311 + $0xd8] sm:$0x1]
        %v3658 = vld [vmem:[%s311 + $0xe0] sm:$0xe]
        %v3659 = vld [vmem:[%s311 + $0xe4] sm:$0xf]
        %v3660 = vld [vmem:[%s311 + $0xe8] sm:$0x1]
        %v3661 = vld [vmem:[%s311 + $0xf0] sm:$0xe]
        %v3662 = vld [vmem:[%s311 + $0xf4] sm:$0xf]
        %v3663 = vld [vmem:[%s311 + $0xf8] sm:$0x1]
        %v3664 = vld [vmem:[%s311] sm:$0x8]
        %v3665 = vld [vmem:[%s311 + $0x8] sm:$0x7]
        %v3666 = vld [vmem:[%s311 + $0x10] sm:$0x8]
        %v3667 = vld [vmem:[%s311 + $0x18] sm:$0x7]
        %v3668 = vld [vmem:[%s311 + $0x20] sm:$0x8]
        %v3669 = vld [vmem:[%s311 + $0x28] sm:$0x7]
        %v3670 = vld [vmem:[%s311 + $0x30] sm:$0x8]
        %v3671 = vld [vmem:[%s311 + $0x38] sm:$0x7]
        %v3672 = vld [vmem:[%s311 + $0x40] sm:$0x8]
        %v3673 = vld [vmem:[%s311 + $0x48] sm:$0x7]
        %v3674 = vld [vmem:[%s311 + $0x50] sm:$0x8]
        %v3675 = vld [vmem:[%s311 + $0x58] sm:$0x7]
        %v3676 = vld [vmem:[%s311 + $0x60] sm:$0x8]
        %v3677 = vld [vmem:[%s311 + $0x68] sm:$0x7]
        %v3678 = vld [vmem:[%s311 + $0x70] sm:$0x8]
        %v3679 = vld [vmem:[%s311 + $0x78] sm:$0x7]
        %v3680 = vld [vmem:[%s311 + $0x80] sm:$0x8]
        %v3681 = vld [vmem:[%s311 + $0x88] sm:$0x7]
        %v3682 = vld [vmem:[%s311 + $0x90] sm:$0x8]
        %v3683 = vld [vmem:[%s311 + $0x98] sm:$0x7]
        %v3684 = vld [vmem:[%s311 + $0xa0] sm:$0x8]
        %v3685 = vld [vmem:[%s311 + $0xa8] sm:$0x7]
        %v3686 = vld [vmem:[%s311 + $0xb0] sm:$0x8]
        %v3687 = vld [vmem:[%s311 + $0xb8] sm:$0x7]
        %v3688 = vld [vmem:[%s311 + $0xc0] sm:$0x8]
        %v3689 = vld [vmem:[%s311 + $0xc8] sm:$0x7]
        %v3690 = vld [vmem:[%s311 + $0xd0] sm:$0x8]
        %v3691 = vld [vmem:[%s311 + $0xd8] sm:$0x7]
        %v3692 = vld [vmem:[%s311 + $0xe0] sm:$0x8]
        %v3693 = vld [vmem:[%s311 + $0xe8] sm:$0x7]
        %v3694 = vld [vmem:[%s311 + $0xf0] sm:$0x8]
        %v3695 = vld [vmem:[%s311 + $0xf8] sm:$0x7]
        %v3696 = vld [vmem:[%s311 + $0x4] sm:$0xe]
        %v3697 = vld [vmem:[%s311 + $0x8] sm:$0xf]
        %v3698 = vld [vmem:[%s311 + $0xc] sm:$0x1]
        %v3699 = vld [vmem:[%s311 + $0x14] sm:$0xe]
        %v3700 = vld [vmem:[%s311 + $0x18] sm:$0xf]
        %v3701 = vld [vmem:[%s311 + $0x1c] sm:$0x1]
        %v3702 = vld [vmem:[%s311 + $0x24] sm:$0xe]
        %v3703 = vld [vmem:[%s311 + $0x28] sm:$0xf]
        %v3704 = vld [vmem:[%s311 + $0x2c] sm:$0x1]
        %v3705 = vld [vmem:[%s311 + $0x34] sm:$0xe]
        %v3706 = vld [vmem:[%s311 + $0x38] sm:$0xf]
        %v3707 = vld [vmem:[%s311 + $0x3c] sm:$0x1]
        %v3708 = vld [vmem:[%s311 + $0x44] sm:$0xe]
        %v3709 = vld [vmem:[%s311 + $0x48] sm:$0xf]
        %v3710 = vld [vmem:[%s311 + $0x4c] sm:$0x1]
        %v3711 = vld [vmem:[%s311 + $0x54] sm:$0xe]
        %v3712 = vld [vmem:[%s311 + $0x58] sm:$0xf]
        %v3713 = vld [vmem:[%s311 + $0x5c] sm:$0x1]
        %v3714 = vld [vmem:[%s311 + $0x64] sm:$0xe]
        %v3715 = vld [vmem:[%s311 + $0x68] sm:$0xf]
        %v3716 = vld [vmem:[%s311 + $0x6c] sm:$0x1]
        %v3717 = vld [vmem:[%s311 + $0x74] sm:$0xe]
        %v3718 = vld [vmem:[%s311 + $0x78] sm:$0xf]
        %v3719 = vld [vmem:[%s311 + $0x7c] sm:$0x1]
        %v3720 = vld [vmem:[%s311 + $0x84] sm:$0xe]
        %v3721 = vld [vmem:[%s311 + $0x88] sm:$0xf]
        %v3722 = vld [vmem:[%s311 + $0x8c] sm:$0x1]
        %v3723 = vld [vmem:[%s311 + $0x94] sm:$0xe]
        %v3724 = vld [vmem:[%s311 + $0x98] sm:$0xf]
        %v3725 = vld [vmem:[%s311 + $0x9c] sm:$0x1]
        %v3726 = vld [vmem:[%s311 + $0xa4] sm:$0xe]
        %v3727 = vld [vmem:[%s311 + $0xa8] sm:$0xf]
        %v3728 = vld [vmem:[%s311 + $0xac] sm:$0x1]
        %v3729 = vld [vmem:[%s311 + $0xb4] sm:$0xe]
        %v3730 = vld [vmem:[%s311 + $0xb8] sm:$0xf]
        %v3731 = vld [vmem:[%s311 + $0xbc] sm:$0x1]
        %v3732 = vld [vmem:[%s311 + $0xc4] sm:$0xe]
        %v3733 = vld [vmem:[%s311 + $0xc8] sm:$0xf]
        %v3734 = vld [vmem:[%s311 + $0xcc] sm:$0x1]
        %v3735 = vld [vmem:[%s311 + $0xd4] sm:$0xe]
        %v3736 = vld [vmem:[%s311 + $0xd8] sm:$0xf]
        %v3737 = vld [vmem:[%s311 + $0xdc] sm:$0x1]
        %v3738 = vld [vmem:[%s311 + $0xe4] sm:$0xe]
        %v3739 = vld [vmem:[%s311 + $0xe8] sm:$0xf]
        %v3740 = vld [vmem:[%s311 + $0xec] sm:$0x1]
        %v3741 = vld [vmem:[%s311 + $0xf4] sm:$0xe]
        %v3742 = vld [vmem:[%s311 + $0xf8] sm:$0xf]
        %v3743 = vld [vmem:[%s311 + $0xfc] sm:$0x1]
        %s3744 = sadd.s32 %s307, 10
        %s3745 = smul.u32 %s3744, 4
        %s3746 = smul.addr %s3745, 4
        %s3747 = scalar_lea.vmem %s301, %s3746
        %v3748 = vld [vmem:[%s3747] sm:$0xe]
        %v3749 = vld [vmem:[%s3747 + $0x4] sm:$0xf]
        %v3750 = vld [vmem:[%s3747 + $0x8] sm:$0x1]
        %v3751 = vld [vmem:[%s3747 + $0x10] sm:$0xe]
        %v3752 = vld [vmem:[%s3747 + $0x14] sm:$0xf]
        %v3753 = vld [vmem:[%s3747 + $0x18] sm:$0x1]
        %v3754 = vld [vmem:[%s3747 + $0x20] sm:$0xe]
        %v3755 = vld [vmem:[%s3747 + $0x24] sm:$0xf]
        %v3756 = vld [vmem:[%s3747 + $0x28] sm:$0x1]
        %v3757 = vld [vmem:[%s3747 + $0x30] sm:$0xe]
        %v3758 = vld [vmem:[%s3747 + $0x34] sm:$0xf]
        %v3759 = vld [vmem:[%s3747 + $0x38] sm:$0x1]
        %v3760 = vld [vmem:[%s3747 + $0x40] sm:$0xe]
        %v3761 = vld [vmem:[%s3747 + $0x44] sm:$0xf]
        %v3762 = vld [vmem:[%s3747 + $0x48] sm:$0x1]
        %v3763 = vld [vmem:[%s3747 + $0x50] sm:$0xe]
        %v3764 = vld [vmem:[%s3747 + $0x54] sm:$0xf]
        %v3765 = vld [vmem:[%s3747 + $0x58] sm:$0x1]
        %v3766 = vld [vmem:[%s3747 + $0x60] sm:$0xe]
        %v3767 = vld [vmem:[%s3747 + $0x64] sm:$0xf]
        %v3768 = vld [vmem:[%s3747 + $0x68] sm:$0x1]
        %v3769 = vld [vmem:[%s3747 + $0x70] sm:$0xe]
        %v3770 = vld [vmem:[%s3747 + $0x74] sm:$0xf]
        %v3771 = vld [vmem:[%s3747 + $0x78] sm:$0x1]
        %v3772 = vld [vmem:[%s3747 + $0x80] sm:$0xe]
        %v3773 = vld [vmem:[%s3747 + $0x84] sm:$0xf]
        %v3774 = vld [vmem:[%s3747 + $0x88] sm:$0x1]
        %v3775 = vld [vmem:[%s3747 + $0x90] sm:$0xe]
        %v3776 = vld [vmem:[%s3747 + $0x94] sm:$0xf]
        %v3777 = vld [vmem:[%s3747 + $0x98] sm:$0x1]
        %v3778 = vld [vmem:[%s3747 + $0xa0] sm:$0xe]
        %v3779 = vld [vmem:[%s3747 + $0xa4] sm:$0xf]
        %v3780 = vld [vmem:[%s3747 + $0xa8] sm:$0x1]
        %v3781 = vld [vmem:[%s3747 + $0xb0] sm:$0xe]
        %v3782 = vld [vmem:[%s3747 + $0xb4] sm:$0xf]
        %v3783 = vld [vmem:[%s3747 + $0xb8] sm:$0x1]
        %v3784 = vld [vmem:[%s3747 + $0xc0] sm:$0xe]
        %v3785 = vld [vmem:[%s3747 + $0xc4] sm:$0xf]
        %v3786 = vld [vmem:[%s3747 + $0xc8] sm:$0x1]
        %v3787 = vld [vmem:[%s3747 + $0xd0] sm:$0xe]
        %v3788 = vld [vmem:[%s3747 + $0xd4] sm:$0xf]
        %v3789 = vld [vmem:[%s3747 + $0xd8] sm:$0x1]
        %v3790 = vld [vmem:[%s3747 + $0xe0] sm:$0xe]
        %v3791 = vld [vmem:[%s3747 + $0xe4] sm:$0xf]
        %v3792 = vld [vmem:[%s3747 + $0xe8] sm:$0x1]
        %v3793 = vld [vmem:[%s3747 + $0xf0] sm:$0xe]
        %v3794 = vld [vmem:[%s3747 + $0xf4] sm:$0xf]
        %v3795 = vld [vmem:[%s3747 + $0xf8] sm:$0x1]
        %v3796 = vld [vmem:[%s3747] sm:$0x8]
        %v3797 = vld [vmem:[%s3747 + $0x8] sm:$0x7]
        %v3798 = vld [vmem:[%s3747 + $0x10] sm:$0x8]
        %v3799 = vld [vmem:[%s3747 + $0x18] sm:$0x7]
        %v3800 = vld [vmem:[%s3747 + $0x20] sm:$0x8]
        %v3801 = vld [vmem:[%s3747 + $0x28] sm:$0x7]
        %v3802 = vld [vmem:[%s3747 + $0x30] sm:$0x8]
        %v3803 = vld [vmem:[%s3747 + $0x38] sm:$0x7]
        %v3804 = vld [vmem:[%s3747 + $0x40] sm:$0x8]
        %v3805 = vld [vmem:[%s3747 + $0x48] sm:$0x7]
        %v3806 = vld [vmem:[%s3747 + $0x50] sm:$0x8]
        %v3807 = vld [vmem:[%s3747 + $0x58] sm:$0x7]
        %v3808 = vld [vmem:[%s3747 + $0x60] sm:$0x8]
        %v3809 = vld [vmem:[%s3747 + $0x68] sm:$0x7]
        %v3810 = vld [vmem:[%s3747 + $0x70] sm:$0x8]
        %v3811 = vld [vmem:[%s3747 + $0x78] sm:$0x7]
        %v3812 = vld [vmem:[%s3747 + $0x80] sm:$0x8]
        %v3813 = vld [vmem:[%s3747 + $0x88] sm:$0x7]
        %v3814 = vld [vmem:[%s3747 + $0x90] sm:$0x8]
        %v3815 = vld [vmem:[%s3747 + $0x98] sm:$0x7]
        %v3816 = vld [vmem:[%s3747 + $0xa0] sm:$0x8]
        %v3817 = vld [vmem:[%s3747 + $0xa8] sm:$0x7]
        %v3818 = vld [vmem:[%s3747 + $0xb0] sm:$0x8]
        %v3819 = vld [vmem:[%s3747 + $0xb8] sm:$0x7]
        %v3820 = vld [vmem:[%s3747 + $0xc0] sm:$0x8]
        %v3821 = vld [vmem:[%s3747 + $0xc8] sm:$0x7]
        %v3822 = vld [vmem:[%s3747 + $0xd0] sm:$0x8]
        %v3823 = vld [vmem:[%s3747 + $0xd8] sm:$0x7]
        %v3824 = vld [vmem:[%s3747 + $0xe0] sm:$0x8]
        %v3825 = vld [vmem:[%s3747 + $0xe8] sm:$0x7]
        %v3826 = vld [vmem:[%s3747 + $0xf0] sm:$0x8]
        %v3827 = vld [vmem:[%s3747 + $0xf8] sm:$0x7]
        %v3828 = vld [vmem:[%s3747 + $0x4] sm:$0xe]
        %v3829 = vld [vmem:[%s3747 + $0x8] sm:$0xf]
        %v3830 = vld [vmem:[%s3747 + $0xc] sm:$0x1]
        %v3831 = vld [vmem:[%s3747 + $0x14] sm:$0xe]
        %v3832 = vld [vmem:[%s3747 + $0x18] sm:$0xf]
        %v3833 = vld [vmem:[%s3747 + $0x1c] sm:$0x1]
        %v3834 = vld [vmem:[%s3747 + $0x24] sm:$0xe]
        %v3835 = vld [vmem:[%s3747 + $0x28] sm:$0xf]
        %v3836 = vld [vmem:[%s3747 + $0x2c] sm:$0x1]
        %v3837 = vld [vmem:[%s3747 + $0x34] sm:$0xe]
        %v3838 = vld [vmem:[%s3747 + $0x38] sm:$0xf]
        %v3839 = vld [vmem:[%s3747 + $0x3c] sm:$0x1]
        %v3840 = vld [vmem:[%s3747 + $0x44] sm:$0xe]
        %v3841 = vld [vmem:[%s3747 + $0x48] sm:$0xf]
        %v3842 = vld [vmem:[%s3747 + $0x4c] sm:$0x1]
        %v3843 = vld [vmem:[%s3747 + $0x54] sm:$0xe]
        %v3844 = vld [vmem:[%s3747 + $0x58] sm:$0xf]
        %v3845 = vld [vmem:[%s3747 + $0x5c] sm:$0x1]
        %v3846 = vld [vmem:[%s3747 + $0x64] sm:$0xe]
        %v3847 = vld [vmem:[%s3747 + $0x68] sm:$0xf]
        %v3848 = vld [vmem:[%s3747 + $0x6c] sm:$0x1]
        %v3849 = vld [vmem:[%s3747 + $0x74] sm:$0xe]
        %v3850 = vld [vmem:[%s3747 + $0x78] sm:$0xf]
        %v3851 = vld [vmem:[%s3747 + $0x7c] sm:$0x1]
        %v3852 = vld [vmem:[%s3747 + $0x84] sm:$0xe]
        %v3853 = vld [vmem:[%s3747 + $0x88] sm:$0xf]
        %v3854 = vld [vmem:[%s3747 + $0x8c] sm:$0x1]
        %v3855 = vld [vmem:[%s3747 + $0x94] sm:$0xe]
        %v3856 = vld [vmem:[%s3747 + $0x98] sm:$0xf]
        %v3857 = vld [vmem:[%s3747 + $0x9c] sm:$0x1]
        %v3858 = vld [vmem:[%s3747 + $0xa4] sm:$0xe]
        %v3859 = vld [vmem:[%s3747 + $0xa8] sm:$0xf]
        %v3860 = vld [vmem:[%s3747 + $0xac] sm:$0x1]
        %v3861 = vld [vmem:[%s3747 + $0xb4] sm:$0xe]
        %v3862 = vld [vmem:[%s3747 + $0xb8] sm:$0xf]
        %v3863 = vld [vmem:[%s3747 + $0xbc] sm:$0x1]
        %v3864 = vld [vmem:[%s3747 + $0xc4] sm:$0xe]
        %v3865 = vld [vmem:[%s3747 + $0xc8] sm:$0xf]
        %v3866 = vld [vmem:[%s3747 + $0xcc] sm:$0x1]
        %v3867 = vld [vmem:[%s3747 + $0xd4] sm:$0xe]
        %v3868 = vld [vmem:[%s3747 + $0xd8] sm:$0xf]
        %v3869 = vld [vmem:[%s3747 + $0xdc] sm:$0x1]
        %v3870 = vld [vmem:[%s3747 + $0xe4] sm:$0xe]
        %v3871 = vld [vmem:[%s3747 + $0xe8] sm:$0xf]
        %v3872 = vld [vmem:[%s3747 + $0xec] sm:$0x1]
        %v3873 = vld [vmem:[%s3747 + $0xf4] sm:$0xe]
        %v3874 = vld [vmem:[%s3747 + $0xf8] sm:$0xf]
        %v3875 = vld [vmem:[%s3747 + $0xfc] sm:$0x1]
        %v3924 = vunpack.c.l.b16 %v3488
        %v3925 = vunpack.c.l.b16 %v3489
        %v3926 = vunpack.c.l.b16 %v3490
        %v3927 = vunpack.c.l.b16 %v3491
        %v3928 = vunpack.c.l.b16 %v3492
        %v3929 = vunpack.c.l.b16 %v3493
        %v3930 = vunpack.c.l.b16 %v3494
        %v3931 = vunpack.c.l.b16 %v3495
        %v3932 = vunpack.c.l.b16 %v3496
        %v3933 = vunpack.c.l.b16 %v3497
        %v3934 = vunpack.c.l.b16 %v3498
        %v3935 = vunpack.c.l.b16 %v3499
        %v3936 = vunpack.c.l.b16 %v3500
        %v3937 = vunpack.c.l.b16 %v3501
        %v3938 = vunpack.c.l.b16 %v3502
        %v3939 = vunpack.c.l.b16 %v3503
        %v3940 = vunpack.c.l.b16 %v3504
        %v3941 = vunpack.c.l.b16 %v3505
        %v3942 = vunpack.c.l.b16 %v3506
        %v3943 = vunpack.c.l.b16 %v3507
        %v3944 = vunpack.c.l.b16 %v3508
        %v3945 = vunpack.c.l.b16 %v3509
        %v3946 = vunpack.c.l.b16 %v3510
        %v3947 = vunpack.c.l.b16 %v3511
        %v3948 = vunpack.c.l.b16 %v3512
        %v3949 = vunpack.c.l.b16 %v3513
        %v3950 = vunpack.c.l.b16 %v3514
        %v3951 = vunpack.c.l.b16 %v3515
        %v3952 = vunpack.c.l.b16 %v3516
        %v3953 = vunpack.c.l.b16 %v3517
        %v3954 = vunpack.c.l.b16 %v3518
        %v3955 = vunpack.c.l.b16 %v3519
        %v3956 = vunpack.c.l.b16 %v3520
        %v3957 = vunpack.c.l.b16 %v3521
        %v3958 = vunpack.c.l.b16 %v3522
        %v3959 = vunpack.c.l.b16 %v3523
        %v3960 = vunpack.c.l.b16 %v3524
        %v3961 = vunpack.c.l.b16 %v3525
        %v3962 = vunpack.c.l.b16 %v3526
        %v3963 = vunpack.c.l.b16 %v3527
        %v3964 = vunpack.c.l.b16 %v3528
        %v3965 = vunpack.c.l.b16 %v3529
        %v3966 = vunpack.c.l.b16 %v3530
        %v3967 = vunpack.c.l.b16 %v3531
        %v3968 = vunpack.c.l.b16 %v3532
        %v3969 = vunpack.c.l.b16 %v3533
        %v3970 = vunpack.c.l.b16 %v3534
        %v3971 = vunpack.c.l.b16 %v3535
        %v3972 = vpack.c.b16 %v3925, %v3924
        %v3973 = vpack.c.b16 %v3926, %v3926
        %v3974 = vpack.c.b16 %v3928, %v3927
        %v3975 = vpack.c.b16 %v3929, %v3929
        %v3976 = vpack.c.b16 %v3931, %v3930
        %v3977 = vpack.c.b16 %v3932, %v3932
        %v3978 = vpack.c.b16 %v3934, %v3933
        %v3979 = vpack.c.b16 %v3935, %v3935
        %v3980 = vpack.c.b16 %v3937, %v3936
        %v3981 = vpack.c.b16 %v3938, %v3938
        %v3982 = vpack.c.b16 %v3940, %v3939
        %v3983 = vpack.c.b16 %v3941, %v3941
        %v3984 = vpack.c.b16 %v3943, %v3942
        %v3985 = vpack.c.b16 %v3944, %v3944
        %v3986 = vpack.c.b16 %v3946, %v3945
        %v3987 = vpack.c.b16 %v3947, %v3947
        %v3988 = vpack.c.b16 %v3949, %v3948
        %v3989 = vpack.c.b16 %v3950, %v3950
        %v3990 = vpack.c.b16 %v3952, %v3951
        %v3991 = vpack.c.b16 %v3953, %v3953
        %v3992 = vpack.c.b16 %v3955, %v3954
        %v3993 = vpack.c.b16 %v3956, %v3956
        %v3994 = vpack.c.b16 %v3958, %v3957
        %v3995 = vpack.c.b16 %v3959, %v3959
        %v3996 = vpack.c.b16 %v3961, %v3960
        %v3997 = vpack.c.b16 %v3962, %v3962
        %v3998 = vpack.c.b16 %v3964, %v3963
        %v3999 = vpack.c.b16 %v3965, %v3965
        %v4000 = vpack.c.b16 %v3967, %v3966
        %v4001 = vpack.c.b16 %v3968, %v3968
        %v4002 = vpack.c.b16 %v3970, %v3969
        %v4003 = vpack.c.b16 %v3971, %v3971
        %v4036 = vunpack.c.l.b16 %v3536
        %v4037 = vunpack.c.l.b16 %v3537
        %v4038 = vunpack.c.l.b16 %v3538
        %v4039 = vunpack.c.l.b16 %v3539
        %v4040 = vunpack.c.l.b16 %v3540
        %v4041 = vunpack.c.l.b16 %v3541
        %v4042 = vunpack.c.l.b16 %v3542
        %v4043 = vunpack.c.l.b16 %v3543
        %v4044 = vunpack.c.l.b16 %v3544
        %v4045 = vunpack.c.l.b16 %v3545
        %v4046 = vunpack.c.l.b16 %v3546
        %v4047 = vunpack.c.l.b16 %v3547
        %v4048 = vunpack.c.l.b16 %v3548
        %v4049 = vunpack.c.l.b16 %v3549
        %v4050 = vunpack.c.l.b16 %v3550
        %v4051 = vunpack.c.l.b16 %v3551
        %v4052 = vunpack.c.l.b16 %v3552
        %v4053 = vunpack.c.l.b16 %v3553
        %v4054 = vunpack.c.l.b16 %v3554
        %v4055 = vunpack.c.l.b16 %v3555
        %v4056 = vunpack.c.l.b16 %v3556
        %v4057 = vunpack.c.l.b16 %v3557
        %v4058 = vunpack.c.l.b16 %v3558
        %v4059 = vunpack.c.l.b16 %v3559
        %v4060 = vunpack.c.l.b16 %v3560
        %v4061 = vunpack.c.l.b16 %v3561
        %v4062 = vunpack.c.l.b16 %v3562
        %v4063 = vunpack.c.l.b16 %v3563
        %v4064 = vunpack.c.l.b16 %v3564
        %v4065 = vunpack.c.l.b16 %v3565
        %v4066 = vunpack.c.l.b16 %v3566
        %v4067 = vunpack.c.l.b16 %v3567
        %v4068 = vpack.c.b16 %v3925, %v4036
        %v4069 = vpack.c.b16 %v4037, %v4037
        %v4070 = vpack.c.b16 %v3928, %v4038
        %v4071 = vpack.c.b16 %v4039, %v4039
        %v4072 = vpack.c.b16 %v3931, %v4040
        %v4073 = vpack.c.b16 %v4041, %v4041
        %v4074 = vpack.c.b16 %v3934, %v4042
        %v4075 = vpack.c.b16 %v4043, %v4043
        %v4076 = vpack.c.b16 %v3937, %v4044
        %v4077 = vpack.c.b16 %v4045, %v4045
        %v4078 = vpack.c.b16 %v3940, %v4046
        %v4079 = vpack.c.b16 %v4047, %v4047
        %v4080 = vpack.c.b16 %v3943, %v4048
        %v4081 = vpack.c.b16 %v4049, %v4049
        %v4082 = vpack.c.b16 %v3946, %v4050
        %v4083 = vpack.c.b16 %v4051, %v4051
        %v4084 = vpack.c.b16 %v3949, %v4052
        %v4085 = vpack.c.b16 %v4053, %v4053
        %v4086 = vpack.c.b16 %v3952, %v4054
        %v4087 = vpack.c.b16 %v4055, %v4055
        %v4088 = vpack.c.b16 %v3955, %v4056
        %v4089 = vpack.c.b16 %v4057, %v4057
        %v4090 = vpack.c.b16 %v3958, %v4058
        %v4091 = vpack.c.b16 %v4059, %v4059
        %v4092 = vpack.c.b16 %v3961, %v4060
        %v4093 = vpack.c.b16 %v4061, %v4061
        %v4094 = vpack.c.b16 %v3964, %v4062
        %v4095 = vpack.c.b16 %v4063, %v4063
        %v4096 = vpack.c.b16 %v3967, %v4064
        %v4097 = vpack.c.b16 %v4065, %v4065
        %v4098 = vpack.c.b16 %v3970, %v4066
        %v4099 = vpack.c.b16 %v4067, %v4067
        %v4100 = vrot.slane %v4068, 2
        %v4101 = vrot.slane %v4069, 2
        %v4102 = vsel %vm3035, %v4100, %v4101
        %v4103 = vrot.slane %v4070, 2
        %v4104 = vrot.slane %v4071, 2
        %v4105 = vsel %vm3035, %v4103, %v4104
        %v4106 = vrot.slane %v4072, 2
        %v4107 = vrot.slane %v4073, 2
        %v4108 = vsel %vm3035, %v4106, %v4107
        %v4109 = vrot.slane %v4074, 2
        %v4110 = vrot.slane %v4075, 2
        %v4111 = vsel %vm3035, %v4109, %v4110
        %v4112 = vrot.slane %v4076, 2
        %v4113 = vrot.slane %v4077, 2
        %v4114 = vsel %vm3035, %v4112, %v4113
        %v4115 = vrot.slane %v4078, 2
        %v4116 = vrot.slane %v4079, 2
        %v4117 = vsel %vm3035, %v4115, %v4116
        %v4118 = vrot.slane %v4080, 2
        %v4119 = vrot.slane %v4081, 2
        %v4120 = vsel %vm3035, %v4118, %v4119
        %v4121 = vrot.slane %v4082, 2
        %v4122 = vrot.slane %v4083, 2
        %v4123 = vsel %vm3035, %v4121, %v4122
        %v4124 = vrot.slane %v4084, 2
        %v4125 = vrot.slane %v4085, 2
        %v4126 = vsel %vm3035, %v4124, %v4125
        %v4127 = vrot.slane %v4086, 2
        %v4128 = vrot.slane %v4087, 2
        %v4129 = vsel %vm3035, %v4127, %v4128
        %v4130 = vrot.slane %v4088, 2
        %v4131 = vrot.slane %v4089, 2
        %v4132 = vsel %vm3035, %v4130, %v4131
        %v4133 = vrot.slane %v4090, 2
        %v4134 = vrot.slane %v4091, 2
        %v4135 = vsel %vm3035, %v4133, %v4134
        %v4136 = vrot.slane %v4092, 2
        %v4137 = vrot.slane %v4093, 2
        %v4138 = vsel %vm3035, %v4136, %v4137
        %v4139 = vrot.slane %v4094, 2
        %v4140 = vrot.slane %v4095, 2
        %v4141 = vsel %vm3035, %v4139, %v4140
        %v4142 = vrot.slane %v4096, 2
        %v4143 = vrot.slane %v4097, 2
        %v4144 = vsel %vm3035, %v4142, %v4143
        %v4145 = vrot.slane %v4098, 2
        %v4146 = vrot.slane %v4099, 2
        %v4147 = vsel %vm3035, %v4145, %v4146
        %4148 = vrot.lane.b32.xlu0 %v4102, 16
        %v4149 = vpop.permute.xlu0 %4148
        %4150 = vrot.lane.b32.xlu0 %v4101, 16
        %v4151 = vpop.permute.xlu0 %4150
        %4152 = vrot.lane.b32.xlu0 %v4105, 16
        %v4153 = vpop.permute.xlu0 %4152
        %4154 = vrot.lane.b32.xlu0 %v4104, 16
        %v4155 = vpop.permute.xlu0 %4154
        %4156 = vrot.lane.b32.xlu0 %v4108, 16
        %v4157 = vpop.permute.xlu0 %4156
        %4158 = vrot.lane.b32.xlu0 %v4107, 16
        %v4159 = vpop.permute.xlu0 %4158
        %4160 = vrot.lane.b32.xlu0 %v4111, 16
        %v4161 = vpop.permute.xlu0 %4160
        %4162 = vrot.lane.b32.xlu0 %v4110, 16
        %v4163 = vpop.permute.xlu0 %4162
        %4164 = vrot.lane.b32.xlu0 %v4114, 16
        %v4165 = vpop.permute.xlu0 %4164
        %4166 = vrot.lane.b32.xlu0 %v4113, 16
        %v4167 = vpop.permute.xlu0 %4166
        %4168 = vrot.lane.b32.xlu0 %v4117, 16
        %v4169 = vpop.permute.xlu0 %4168
        %4170 = vrot.lane.b32.xlu0 %v4116, 16
        %v4171 = vpop.permute.xlu0 %4170
        %4172 = vrot.lane.b32.xlu0 %v4120, 16
        %v4173 = vpop.permute.xlu0 %4172
        %4174 = vrot.lane.b32.xlu0 %v4119, 16
        %v4175 = vpop.permute.xlu0 %4174
        %4176 = vrot.lane.b32.xlu0 %v4123, 16
        %v4177 = vpop.permute.xlu0 %4176
        %4178 = vrot.lane.b32.xlu0 %v4122, 16
        %v4179 = vpop.permute.xlu0 %4178
        %4180 = vrot.lane.b32.xlu0 %v4126, 16
        %v4181 = vpop.permute.xlu0 %4180
        %4182 = vrot.lane.b32.xlu0 %v4125, 16
        %v4183 = vpop.permute.xlu0 %4182
        %4184 = vrot.lane.b32.xlu0 %v4129, 16
        %v4185 = vpop.permute.xlu0 %4184
        %4186 = vrot.lane.b32.xlu0 %v4128, 16
        %v4187 = vpop.permute.xlu0 %4186
        %4188 = vrot.lane.b32.xlu0 %v4132, 16
        %v4189 = vpop.permute.xlu0 %4188
        %4190 = vrot.lane.b32.xlu0 %v4131, 16
        %v4191 = vpop.permute.xlu0 %4190
        %4192 = vrot.lane.b32.xlu0 %v4135, 16
        %v4193 = vpop.permute.xlu0 %4192
        %4194 = vrot.lane.b32.xlu0 %v4134, 16
        %v4195 = vpop.permute.xlu0 %4194
        %4196 = vrot.lane.b32.xlu0 %v4138, 16
        %v4197 = vpop.permute.xlu0 %4196
        %4198 = vrot.lane.b32.xlu0 %v4137, 16
        %v4199 = vpop.permute.xlu0 %4198
        %4200 = vrot.lane.b32.xlu0 %v4141, 16
        %v4201 = vpop.permute.xlu0 %4200
        %4202 = vrot.lane.b32.xlu0 %v4140, 16
        %v4203 = vpop.permute.xlu0 %4202
        %4204 = vrot.lane.b32.xlu0 %v4144, 16
        %v4205 = vpop.permute.xlu0 %4204
        %4206 = vrot.lane.b32.xlu0 %v4143, 16
        %v4207 = vpop.permute.xlu0 %4206
        %4208 = vrot.lane.b32.xlu0 %v4147, 16
        %v4209 = vpop.permute.xlu0 %4208
        %4210 = vrot.lane.b32.xlu0 %v4146, 16
        %v4211 = vpop.permute.xlu0 %4210
        %v4260 = vunpack.c.l.b16 %v3568
        %v4261 = vunpack.c.l.b16 %v3569
        %v4262 = vunpack.c.l.b16 %v3570
        %v4263 = vunpack.c.l.b16 %v3571
        %v4264 = vunpack.c.l.b16 %v3572
        %v4265 = vunpack.c.l.b16 %v3573
        %v4266 = vunpack.c.l.b16 %v3574
        %v4267 = vunpack.c.l.b16 %v3575
        %v4268 = vunpack.c.l.b16 %v3576
        %v4269 = vunpack.c.l.b16 %v3577
        %v4270 = vunpack.c.l.b16 %v3578
        %v4271 = vunpack.c.l.b16 %v3579
        %v4272 = vunpack.c.l.b16 %v3580
        %v4273 = vunpack.c.l.b16 %v3581
        %v4274 = vunpack.c.l.b16 %v3582
        %v4275 = vunpack.c.l.b16 %v3583
        %v4276 = vunpack.c.l.b16 %v3584
        %v4277 = vunpack.c.l.b16 %v3585
        %v4278 = vunpack.c.l.b16 %v3586
        %v4279 = vunpack.c.l.b16 %v3587
        %v4280 = vunpack.c.l.b16 %v3588
        %v4281 = vunpack.c.l.b16 %v3589
        %v4282 = vunpack.c.l.b16 %v3590
        %v4283 = vunpack.c.l.b16 %v3591
        %v4284 = vunpack.c.l.b16 %v3592
        %v4285 = vunpack.c.l.b16 %v3593
        %v4286 = vunpack.c.l.b16 %v3594
        %v4287 = vunpack.c.l.b16 %v3595
        %v4288 = vunpack.c.l.b16 %v3596
        %v4289 = vunpack.c.l.b16 %v3597
        %v4290 = vunpack.c.l.b16 %v3598
        %v4291 = vunpack.c.l.b16 %v3599
        %v4292 = vunpack.c.l.b16 %v3600
        %v4293 = vunpack.c.l.b16 %v3601
        %v4294 = vunpack.c.l.b16 %v3602
        %v4295 = vunpack.c.l.b16 %v3603
        %v4296 = vunpack.c.l.b16 %v3604
        %v4297 = vunpack.c.l.b16 %v3605
        %v4298 = vunpack.c.l.b16 %v3606
        %v4299 = vunpack.c.l.b16 %v3607
        %v4300 = vunpack.c.l.b16 %v3608
        %v4301 = vunpack.c.l.b16 %v3609
        %v4302 = vunpack.c.l.b16 %v3610
        %v4303 = vunpack.c.l.b16 %v3611
        %v4304 = vunpack.c.l.b16 %v3612
        %v4305 = vunpack.c.l.b16 %v3613
        %v4306 = vunpack.c.l.b16 %v3614
        %v4307 = vunpack.c.l.b16 %v3615
        %v4308 = vpack.c.b16 %v4261, %v4260
        %v4309 = vpack.c.b16 %v4262, %v4262
        %v4310 = vpack.c.b16 %v4264, %v4263
        %v4311 = vpack.c.b16 %v4265, %v4265
        %v4312 = vpack.c.b16 %v4267, %v4266
        %v4313 = vpack.c.b16 %v4268, %v4268
        %v4314 = vpack.c.b16 %v4270, %v4269
        %v4315 = vpack.c.b16 %v4271, %v4271
        %v4316 = vpack.c.b16 %v4273, %v4272
        %v4317 = vpack.c.b16 %v4274, %v4274
        %v4318 = vpack.c.b16 %v4276, %v4275
        %v4319 = vpack.c.b16 %v4277, %v4277
        %v4320 = vpack.c.b16 %v4279, %v4278
        %v4321 = vpack.c.b16 %v4280, %v4280
        %v4322 = vpack.c.b16 %v4282, %v4281
        %v4323 = vpack.c.b16 %v4283, %v4283
        %v4324 = vpack.c.b16 %v4285, %v4284
        %v4325 = vpack.c.b16 %v4286, %v4286
        %v4326 = vpack.c.b16 %v4288, %v4287
        %v4327 = vpack.c.b16 %v4289, %v4289
        %v4328 = vpack.c.b16 %v4291, %v4290
        %v4329 = vpack.c.b16 %v4292, %v4292
        %v4330 = vpack.c.b16 %v4294, %v4293
        %v4331 = vpack.c.b16 %v4295, %v4295
        %v4332 = vpack.c.b16 %v4297, %v4296
        %v4333 = vpack.c.b16 %v4298, %v4298
        %v4334 = vpack.c.b16 %v4300, %v4299
        %v4335 = vpack.c.b16 %v4301, %v4301
        %v4336 = vpack.c.b16 %v4303, %v4302
        %v4337 = vpack.c.b16 %v4304, %v4304
        %v4338 = vpack.c.b16 %v4306, %v4305
        %v4339 = vpack.c.b16 %v4307, %v4307
        %4340 = vrot.lane.b32.xlu0 %v4308, 32
        %v4341 = vpop.permute.xlu0 %4340
        %4342 = vrot.lane.b32.xlu0 %v4309, 32
        %v4343 = vpop.permute.xlu0 %4342
        %4344 = vrot.lane.b32.xlu0 %v4310, 32
        %v4345 = vpop.permute.xlu0 %4344
        %4346 = vrot.lane.b32.xlu0 %v4311, 32
        %v4347 = vpop.permute.xlu0 %4346
        %4348 = vrot.lane.b32.xlu0 %v4312, 32
        %v4349 = vpop.permute.xlu0 %4348
        %4350 = vrot.lane.b32.xlu0 %v4313, 32
        %v4351 = vpop.permute.xlu0 %4350
        %4352 = vrot.lane.b32.xlu0 %v4314, 32
        %v4353 = vpop.permute.xlu0 %4352
        %4354 = vrot.lane.b32.xlu0 %v4315, 32
        %v4355 = vpop.permute.xlu0 %4354
        %4356 = vrot.lane.b32.xlu0 %v4316, 32
        %v4357 = vpop.permute.xlu0 %4356
        %4358 = vrot.lane.b32.xlu0 %v4317, 32
        %v4359 = vpop.permute.xlu0 %4358
        %4360 = vrot.lane.b32.xlu0 %v4318, 32
        %v4361 = vpop.permute.xlu0 %4360
        %4362 = vrot.lane.b32.xlu0 %v4319, 32
        %v4363 = vpop.permute.xlu0 %4362
        %4364 = vrot.lane.b32.xlu0 %v4320, 32
        %v4365 = vpop.permute.xlu0 %4364
        %4366 = vrot.lane.b32.xlu0 %v4321, 32
        %v4367 = vpop.permute.xlu0 %4366
        %4368 = vrot.lane.b32.xlu0 %v4322, 32
        %v4369 = vpop.permute.xlu0 %4368
        %4370 = vrot.lane.b32.xlu0 %v4323, 32
        %v4371 = vpop.permute.xlu0 %4370
        %4372 = vrot.lane.b32.xlu0 %v4324, 32
        %v4373 = vpop.permute.xlu0 %4372
        %4374 = vrot.lane.b32.xlu0 %v4325, 32
        %v4375 = vpop.permute.xlu0 %4374
        %4376 = vrot.lane.b32.xlu0 %v4326, 32
        %v4377 = vpop.permute.xlu0 %4376
        %4378 = vrot.lane.b32.xlu0 %v4327, 32
        %v4379 = vpop.permute.xlu0 %4378
        %4380 = vrot.lane.b32.xlu0 %v4328, 32
        %v4381 = vpop.permute.xlu0 %4380
        %4382 = vrot.lane.b32.xlu0 %v4329, 32
        %v4383 = vpop.permute.xlu0 %4382
        %4384 = vrot.lane.b32.xlu0 %v4330, 32
        %v4385 = vpop.permute.xlu0 %4384
        %4386 = vrot.lane.b32.xlu0 %v4331, 32
        %v4387 = vpop.permute.xlu0 %4386
        %4388 = vrot.lane.b32.xlu0 %v4332, 32
        %v4389 = vpop.permute.xlu0 %4388
        %4390 = vrot.lane.b32.xlu0 %v4333, 32
        %v4391 = vpop.permute.xlu0 %4390
        %4392 = vrot.lane.b32.xlu0 %v4334, 32
        %v4393 = vpop.permute.xlu0 %4392
        %4394 = vrot.lane.b32.xlu0 %v4335, 32
        %v4395 = vpop.permute.xlu0 %4394
        %4396 = vrot.lane.b32.xlu0 %v4336, 32
        %v4397 = vpop.permute.xlu0 %4396
        %4398 = vrot.lane.b32.xlu0 %v4337, 32
        %v4399 = vpop.permute.xlu0 %4398
        %4400 = vrot.lane.b32.xlu0 %v4338, 32
        %v4401 = vpop.permute.xlu0 %4400
        %4402 = vrot.lane.b32.xlu0 %v4339, 32
        %v4403 = vpop.permute.xlu0 %4402
        %v4452 = vunpack.c.l.b16 %v3616
        %v4453 = vunpack.c.l.b16 %v3617
        %v4454 = vunpack.c.l.b16 %v3618
        %v4455 = vunpack.c.l.b16 %v3619
        %v4456 = vunpack.c.l.b16 %v3620
        %v4457 = vunpack.c.l.b16 %v3621
        %v4458 = vunpack.c.l.b16 %v3622
        %v4459 = vunpack.c.l.b16 %v3623
        %v4460 = vunpack.c.l.b16 %v3624
        %v4461 = vunpack.c.l.b16 %v3625
        %v4462 = vunpack.c.l.b16 %v3626
        %v4463 = vunpack.c.l.b16 %v3627
        %v4464 = vunpack.c.l.b16 %v3628
        %v4465 = vunpack.c.l.b16 %v3629
        %v4466 = vunpack.c.l.b16 %v3630
        %v4467 = vunpack.c.l.b16 %v3631
        %v4468 = vunpack.c.l.b16 %v3632
        %v4469 = vunpack.c.l.b16 %v3633
        %v4470 = vunpack.c.l.b16 %v3634
        %v4471 = vunpack.c.l.b16 %v3635
        %v4472 = vunpack.c.l.b16 %v3636
        %v4473 = vunpack.c.l.b16 %v3637
        %v4474 = vunpack.c.l.b16 %v3638
        %v4475 = vunpack.c.l.b16 %v3639
        %v4476 = vunpack.c.l.b16 %v3640
        %v4477 = vunpack.c.l.b16 %v3641
        %v4478 = vunpack.c.l.b16 %v3642
        %v4479 = vunpack.c.l.b16 %v3643
        %v4480 = vunpack.c.l.b16 %v3644
        %v4481 = vunpack.c.l.b16 %v3645
        %v4482 = vunpack.c.l.b16 %v3646
        %v4483 = vunpack.c.l.b16 %v3647
        %v4484 = vunpack.c.l.b16 %v3648
        %v4485 = vunpack.c.l.b16 %v3649
        %v4486 = vunpack.c.l.b16 %v3650
        %v4487 = vunpack.c.l.b16 %v3651
        %v4488 = vunpack.c.l.b16 %v3652
        %v4489 = vunpack.c.l.b16 %v3653
        %v4490 = vunpack.c.l.b16 %v3654
        %v4491 = vunpack.c.l.b16 %v3655
        %v4492 = vunpack.c.l.b16 %v3656
        %v4493 = vunpack.c.l.b16 %v3657
        %v4494 = vunpack.c.l.b16 %v3658
        %v4495 = vunpack.c.l.b16 %v3659
        %v4496 = vunpack.c.l.b16 %v3660
        %v4497 = vunpack.c.l.b16 %v3661
        %v4498 = vunpack.c.l.b16 %v3662
        %v4499 = vunpack.c.l.b16 %v3663
        %v4500 = vpack.c.b16 %v4453, %v4452
        %v4501 = vpack.c.b16 %v4454, %v4454
        %v4502 = vpack.c.b16 %v4456, %v4455
        %v4503 = vpack.c.b16 %v4457, %v4457
        %v4504 = vpack.c.b16 %v4459, %v4458
        %v4505 = vpack.c.b16 %v4460, %v4460
        %v4506 = vpack.c.b16 %v4462, %v4461
        %v4507 = vpack.c.b16 %v4463, %v4463
        %v4508 = vpack.c.b16 %v4465, %v4464
        %v4509 = vpack.c.b16 %v4466, %v4466
        %v4510 = vpack.c.b16 %v4468, %v4467
        %v4511 = vpack.c.b16 %v4469, %v4469
        %v4512 = vpack.c.b16 %v4471, %v4470
        %v4513 = vpack.c.b16 %v4472, %v4472
        %v4514 = vpack.c.b16 %v4474, %v4473
        %v4515 = vpack.c.b16 %v4475, %v4475
        %v4516 = vpack.c.b16 %v4477, %v4476
        %v4517 = vpack.c.b16 %v4478, %v4478
        %v4518 = vpack.c.b16 %v4480, %v4479
        %v4519 = vpack.c.b16 %v4481, %v4481
        %v4520 = vpack.c.b16 %v4483, %v4482
        %v4521 = vpack.c.b16 %v4484, %v4484
        %v4522 = vpack.c.b16 %v4486, %v4485
        %v4523 = vpack.c.b16 %v4487, %v4487
        %v4524 = vpack.c.b16 %v4489, %v4488
        %v4525 = vpack.c.b16 %v4490, %v4490
        %v4526 = vpack.c.b16 %v4492, %v4491
        %v4527 = vpack.c.b16 %v4493, %v4493
        %v4528 = vpack.c.b16 %v4495, %v4494
        %v4529 = vpack.c.b16 %v4496, %v4496
        %v4530 = vpack.c.b16 %v4498, %v4497
        %v4531 = vpack.c.b16 %v4499, %v4499
        %4532 = vrot.lane.b32.xlu0 %v4500, 48
        %v4533 = vpop.permute.xlu0 %4532
        %4534 = vrot.lane.b32.xlu0 %v4501, 48
        %v4535 = vpop.permute.xlu0 %4534
        %4536 = vrot.lane.b32.xlu0 %v4502, 48
        %v4537 = vpop.permute.xlu0 %4536
        %4538 = vrot.lane.b32.xlu0 %v4503, 48
        %v4539 = vpop.permute.xlu0 %4538
        %4540 = vrot.lane.b32.xlu0 %v4504, 48
        %v4541 = vpop.permute.xlu0 %4540
        %4542 = vrot.lane.b32.xlu0 %v4505, 48
        %v4543 = vpop.permute.xlu0 %4542
        %4544 = vrot.lane.b32.xlu0 %v4506, 48
        %v4545 = vpop.permute.xlu0 %4544
        %4546 = vrot.lane.b32.xlu0 %v4507, 48
        %v4547 = vpop.permute.xlu0 %4546
        %4548 = vrot.lane.b32.xlu0 %v4508, 48
        %v4549 = vpop.permute.xlu0 %4548
        %4550 = vrot.lane.b32.xlu0 %v4509, 48
        %v4551 = vpop.permute.xlu0 %4550
        %4552 = vrot.lane.b32.xlu0 %v4510, 48
        %v4553 = vpop.permute.xlu0 %4552
        %4554 = vrot.lane.b32.xlu0 %v4511, 48
        %v4555 = vpop.permute.xlu0 %4554
        %4556 = vrot.lane.b32.xlu0 %v4512, 48
        %v4557 = vpop.permute.xlu0 %4556
        %4558 = vrot.lane.b32.xlu0 %v4513, 48
        %v4559 = vpop.permute.xlu0 %4558
        %4560 = vrot.lane.b32.xlu0 %v4514, 48
        %v4561 = vpop.permute.xlu0 %4560
        %4562 = vrot.lane.b32.xlu0 %v4515, 48
        %v4563 = vpop.permute.xlu0 %4562
        %4564 = vrot.lane.b32.xlu0 %v4516, 48
        %v4565 = vpop.permute.xlu0 %4564
        %4566 = vrot.lane.b32.xlu0 %v4517, 48
        %v4567 = vpop.permute.xlu0 %4566
        %4568 = vrot.lane.b32.xlu0 %v4518, 48
        %v4569 = vpop.permute.xlu0 %4568
        %4570 = vrot.lane.b32.xlu0 %v4519, 48
        %v4571 = vpop.permute.xlu0 %4570
        %4572 = vrot.lane.b32.xlu0 %v4520, 48
        %v4573 = vpop.permute.xlu0 %4572
        %4574 = vrot.lane.b32.xlu0 %v4521, 48
        %v4575 = vpop.permute.xlu0 %4574
        %4576 = vrot.lane.b32.xlu0 %v4522, 48
        %v4577 = vpop.permute.xlu0 %4576
        %4578 = vrot.lane.b32.xlu0 %v4523, 48
        %v4579 = vpop.permute.xlu0 %4578
        %4580 = vrot.lane.b32.xlu0 %v4524, 48
        %v4581 = vpop.permute.xlu0 %4580
        %4582 = vrot.lane.b32.xlu0 %v4525, 48
        %v4583 = vpop.permute.xlu0 %4582
        %4584 = vrot.lane.b32.xlu0 %v4526, 48
        %v4585 = vpop.permute.xlu0 %4584
        %4586 = vrot.lane.b32.xlu0 %v4527, 48
        %v4587 = vpop.permute.xlu0 %4586
        %4588 = vrot.lane.b32.xlu0 %v4528, 48
        %v4589 = vpop.permute.xlu0 %4588
        %4590 = vrot.lane.b32.xlu0 %v4529, 48
        %v4591 = vpop.permute.xlu0 %4590
        %4592 = vrot.lane.b32.xlu0 %v4530, 48
        %v4593 = vpop.permute.xlu0 %4592
        %4594 = vrot.lane.b32.xlu0 %v4531, 48
        %v4595 = vpop.permute.xlu0 %4594
        %v4628 = vunpack.c.l.b16 %v3664
        %v4629 = vunpack.c.l.b16 %v3665
        %v4630 = vunpack.c.l.b16 %v3666
        %v4631 = vunpack.c.l.b16 %v3667
        %v4632 = vunpack.c.l.b16 %v3668
        %v4633 = vunpack.c.l.b16 %v3669
        %v4634 = vunpack.c.l.b16 %v3670
        %v4635 = vunpack.c.l.b16 %v3671
        %v4636 = vunpack.c.l.b16 %v3672
        %v4637 = vunpack.c.l.b16 %v3673
        %v4638 = vunpack.c.l.b16 %v3674
        %v4639 = vunpack.c.l.b16 %v3675
        %v4640 = vunpack.c.l.b16 %v3676
        %v4641 = vunpack.c.l.b16 %v3677
        %v4642 = vunpack.c.l.b16 %v3678
        %v4643 = vunpack.c.l.b16 %v3679
        %v4644 = vunpack.c.l.b16 %v3680
        %v4645 = vunpack.c.l.b16 %v3681
        %v4646 = vunpack.c.l.b16 %v3682
        %v4647 = vunpack.c.l.b16 %v3683
        %v4648 = vunpack.c.l.b16 %v3684
        %v4649 = vunpack.c.l.b16 %v3685
        %v4650 = vunpack.c.l.b16 %v3686
        %v4651 = vunpack.c.l.b16 %v3687
        %v4652 = vunpack.c.l.b16 %v3688
        %v4653 = vunpack.c.l.b16 %v3689
        %v4654 = vunpack.c.l.b16 %v3690
        %v4655 = vunpack.c.l.b16 %v3691
        %v4656 = vunpack.c.l.b16 %v3692
        %v4657 = vunpack.c.l.b16 %v3693
        %v4658 = vunpack.c.l.b16 %v3694
        %v4659 = vunpack.c.l.b16 %v3695
        %v4660 = vpack.c.b16 %v4453, %v4628
        %v4661 = vpack.c.b16 %v4629, %v4629
        %v4662 = vpack.c.b16 %v4456, %v4630
        %v4663 = vpack.c.b16 %v4631, %v4631
        %v4664 = vpack.c.b16 %v4459, %v4632
        %v4665 = vpack.c.b16 %v4633, %v4633
        %v4666 = vpack.c.b16 %v4462, %v4634
        %v4667 = vpack.c.b16 %v4635, %v4635
        %v4668 = vpack.c.b16 %v4465, %v4636
        %v4669 = vpack.c.b16 %v4637, %v4637
        %v4670 = vpack.c.b16 %v4468, %v4638
        %v4671 = vpack.c.b16 %v4639, %v4639
        %v4672 = vpack.c.b16 %v4471, %v4640
        %v4673 = vpack.c.b16 %v4641, %v4641
        %v4674 = vpack.c.b16 %v4474, %v4642
        %v4675 = vpack.c.b16 %v4643, %v4643
        %v4676 = vpack.c.b16 %v4477, %v4644
        %v4677 = vpack.c.b16 %v4645, %v4645
        %v4678 = vpack.c.b16 %v4480, %v4646
        %v4679 = vpack.c.b16 %v4647, %v4647
        %v4680 = vpack.c.b16 %v4483, %v4648
        %v4681 = vpack.c.b16 %v4649, %v4649
        %v4682 = vpack.c.b16 %v4486, %v4650
        %v4683 = vpack.c.b16 %v4651, %v4651
        %v4684 = vpack.c.b16 %v4489, %v4652
        %v4685 = vpack.c.b16 %v4653, %v4653
        %v4686 = vpack.c.b16 %v4492, %v4654
        %v4687 = vpack.c.b16 %v4655, %v4655
        %v4688 = vpack.c.b16 %v4495, %v4656
        %v4689 = vpack.c.b16 %v4657, %v4657
        %v4690 = vpack.c.b16 %v4498, %v4658
        %v4691 = vpack.c.b16 %v4659, %v4659
        %v4692 = vrot.slane %v4660, 2
        %v4693 = vrot.slane %v4661, 2
        %v4694 = vsel %vm3035, %v4692, %v4693
        %v4695 = vrot.slane %v4662, 2
        %v4696 = vrot.slane %v4663, 2
        %v4697 = vsel %vm3035, %v4695, %v4696
        %v4698 = vrot.slane %v4664, 2
        %v4699 = vrot.slane %v4665, 2
        %v4700 = vsel %vm3035, %v4698, %v4699
        %v4701 = vrot.slane %v4666, 2
        %v4702 = vrot.slane %v4667, 2
        %v4703 = vsel %vm3035, %v4701, %v4702
        %v4704 = vrot.slane %v4668, 2
        %v4705 = vrot.slane %v4669, 2
        %v4706 = vsel %vm3035, %v4704, %v4705
        %v4707 = vrot.slane %v4670, 2
        %v4708 = vrot.slane %v4671, 2
        %v4709 = vsel %vm3035, %v4707, %v4708
        %v4710 = vrot.slane %v4672, 2
        %v4711 = vrot.slane %v4673, 2
        %v4712 = vsel %vm3035, %v4710, %v4711
        %v4713 = vrot.slane %v4674, 2
        %v4714 = vrot.slane %v4675, 2
        %v4715 = vsel %vm3035, %v4713, %v4714
        %v4716 = vrot.slane %v4676, 2
        %v4717 = vrot.slane %v4677, 2
        %v4718 = vsel %vm3035, %v4716, %v4717
        %v4719 = vrot.slane %v4678, 2
        %v4720 = vrot.slane %v4679, 2
        %v4721 = vsel %vm3035, %v4719, %v4720
        %v4722 = vrot.slane %v4680, 2
        %v4723 = vrot.slane %v4681, 2
        %v4724 = vsel %vm3035, %v4722, %v4723
        %v4725 = vrot.slane %v4682, 2
        %v4726 = vrot.slane %v4683, 2
        %v4727 = vsel %vm3035, %v4725, %v4726
        %v4728 = vrot.slane %v4684, 2
        %v4729 = vrot.slane %v4685, 2
        %v4730 = vsel %vm3035, %v4728, %v4729
        %v4731 = vrot.slane %v4686, 2
        %v4732 = vrot.slane %v4687, 2
        %v4733 = vsel %vm3035, %v4731, %v4732
        %v4734 = vrot.slane %v4688, 2
        %v4735 = vrot.slane %v4689, 2
        %v4736 = vsel %vm3035, %v4734, %v4735
        %v4737 = vrot.slane %v4690, 2
        %v4738 = vrot.slane %v4691, 2
        %v4739 = vsel %vm3035, %v4737, %v4738
        %4740 = vrot.lane.b32.xlu0 %v4694, 64
        %v4741 = vpop.permute.xlu0 %4740
        %4742 = vrot.lane.b32.xlu0 %v4693, 64
        %v4743 = vpop.permute.xlu0 %4742
        %4744 = vrot.lane.b32.xlu0 %v4697, 64
        %v4745 = vpop.permute.xlu0 %4744
        %4746 = vrot.lane.b32.xlu0 %v4696, 64
        %v4747 = vpop.permute.xlu0 %4746
        %4748 = vrot.lane.b32.xlu0 %v4700, 64
        %v4749 = vpop.permute.xlu0 %4748
        %4750 = vrot.lane.b32.xlu0 %v4699, 64
        %v4751 = vpop.permute.xlu0 %4750
        %4752 = vrot.lane.b32.xlu0 %v4703, 64
        %v4753 = vpop.permute.xlu0 %4752
        %4754 = vrot.lane.b32.xlu0 %v4702, 64
        %v4755 = vpop.permute.xlu0 %4754
        %4756 = vrot.lane.b32.xlu0 %v4706, 64
        %v4757 = vpop.permute.xlu0 %4756
        %4758 = vrot.lane.b32.xlu0 %v4705, 64
        %v4759 = vpop.permute.xlu0 %4758
        %4760 = vrot.lane.b32.xlu0 %v4709, 64
        %v4761 = vpop.permute.xlu0 %4760
        %4762 = vrot.lane.b32.xlu0 %v4708, 64
        %v4763 = vpop.permute.xlu0 %4762
        %4764 = vrot.lane.b32.xlu0 %v4712, 64
        %v4765 = vpop.permute.xlu0 %4764
        %4766 = vrot.lane.b32.xlu0 %v4711, 64
        %v4767 = vpop.permute.xlu0 %4766
        %4768 = vrot.lane.b32.xlu0 %v4715, 64
        %v4769 = vpop.permute.xlu0 %4768
        %4770 = vrot.lane.b32.xlu0 %v4714, 64
        %v4771 = vpop.permute.xlu0 %4770
        %4772 = vrot.lane.b32.xlu0 %v4718, 64
        %v4773 = vpop.permute.xlu0 %4772
        %4774 = vrot.lane.b32.xlu0 %v4717, 64
        %v4775 = vpop.permute.xlu0 %4774
        %4776 = vrot.lane.b32.xlu0 %v4721, 64
        %v4777 = vpop.permute.xlu0 %4776
        %4778 = vrot.lane.b32.xlu0 %v4720, 64
        %v4779 = vpop.permute.xlu0 %4778
        %4780 = vrot.lane.b32.xlu0 %v4724, 64
        %v4781 = vpop.permute.xlu0 %4780
        %4782 = vrot.lane.b32.xlu0 %v4723, 64
        %v4783 = vpop.permute.xlu0 %4782
        %4784 = vrot.lane.b32.xlu0 %v4727, 64
        %v4785 = vpop.permute.xlu0 %4784
        %4786 = vrot.lane.b32.xlu0 %v4726, 64
        %v4787 = vpop.permute.xlu0 %4786
        %4788 = vrot.lane.b32.xlu0 %v4730, 64
        %v4789 = vpop.permute.xlu0 %4788
        %4790 = vrot.lane.b32.xlu0 %v4729, 64
        %v4791 = vpop.permute.xlu0 %4790
        %4792 = vrot.lane.b32.xlu0 %v4733, 64
        %v4793 = vpop.permute.xlu0 %4792
        %4794 = vrot.lane.b32.xlu0 %v4732, 64
        %v4795 = vpop.permute.xlu0 %4794
        %4796 = vrot.lane.b32.xlu0 %v4736, 64
        %v4797 = vpop.permute.xlu0 %4796
        %4798 = vrot.lane.b32.xlu0 %v4735, 64
        %v4799 = vpop.permute.xlu0 %4798
        %4800 = vrot.lane.b32.xlu0 %v4739, 64
        %v4801 = vpop.permute.xlu0 %4800
        %4802 = vrot.lane.b32.xlu0 %v4738, 64
        %v4803 = vpop.permute.xlu0 %4802
        %v4852 = vunpack.c.l.b16 %v3696
        %v4853 = vunpack.c.l.b16 %v3697
        %v4854 = vunpack.c.l.b16 %v3698
        %v4855 = vunpack.c.l.b16 %v3699
        %v4856 = vunpack.c.l.b16 %v3700
        %v4857 = vunpack.c.l.b16 %v3701
        %v4858 = vunpack.c.l.b16 %v3702
        %v4859 = vunpack.c.l.b16 %v3703
        %v4860 = vunpack.c.l.b16 %v3704
        %v4861 = vunpack.c.l.b16 %v3705
        %v4862 = vunpack.c.l.b16 %v3706
        %v4863 = vunpack.c.l.b16 %v3707
        %v4864 = vunpack.c.l.b16 %v3708
        %v4865 = vunpack.c.l.b16 %v3709
        %v4866 = vunpack.c.l.b16 %v3710
        %v4867 = vunpack.c.l.b16 %v3711
        %v4868 = vunpack.c.l.b16 %v3712
        %v4869 = vunpack.c.l.b16 %v3713
        %v4870 = vunpack.c.l.b16 %v3714
        %v4871 = vunpack.c.l.b16 %v3715
        %v4872 = vunpack.c.l.b16 %v3716
        %v4873 = vunpack.c.l.b16 %v3717
        %v4874 = vunpack.c.l.b16 %v3718
        %v4875 = vunpack.c.l.b16 %v3719
        %v4876 = vunpack.c.l.b16 %v3720
        %v4877 = vunpack.c.l.b16 %v3721
        %v4878 = vunpack.c.l.b16 %v3722
        %v4879 = vunpack.c.l.b16 %v3723
        %v4880 = vunpack.c.l.b16 %v3724
        %v4881 = vunpack.c.l.b16 %v3725
        %v4882 = vunpack.c.l.b16 %v3726
        %v4883 = vunpack.c.l.b16 %v3727
        %v4884 = vunpack.c.l.b16 %v3728
        %v4885 = vunpack.c.l.b16 %v3729
        %v4886 = vunpack.c.l.b16 %v3730
        %v4887 = vunpack.c.l.b16 %v3731
        %v4888 = vunpack.c.l.b16 %v3732
        %v4889 = vunpack.c.l.b16 %v3733
        %v4890 = vunpack.c.l.b16 %v3734
        %v4891 = vunpack.c.l.b16 %v3735
        %v4892 = vunpack.c.l.b16 %v3736
        %v4893 = vunpack.c.l.b16 %v3737
        %v4894 = vunpack.c.l.b16 %v3738
        %v4895 = vunpack.c.l.b16 %v3739
        %v4896 = vunpack.c.l.b16 %v3740
        %v4897 = vunpack.c.l.b16 %v3741
        %v4898 = vunpack.c.l.b16 %v3742
        %v4899 = vunpack.c.l.b16 %v3743
        %v4900 = vpack.c.b16 %v4853, %v4852
        %v4901 = vpack.c.b16 %v4854, %v4854
        %v4902 = vpack.c.b16 %v4856, %v4855
        %v4903 = vpack.c.b16 %v4857, %v4857
        %v4904 = vpack.c.b16 %v4859, %v4858
        %v4905 = vpack.c.b16 %v4860, %v4860
        %v4906 = vpack.c.b16 %v4862, %v4861
        %v4907 = vpack.c.b16 %v4863, %v4863
        %v4908 = vpack.c.b16 %v4865, %v4864
        %v4909 = vpack.c.b16 %v4866, %v4866
        %v4910 = vpack.c.b16 %v4868, %v4867
        %v4911 = vpack.c.b16 %v4869, %v4869
        %v4912 = vpack.c.b16 %v4871, %v4870
        %v4913 = vpack.c.b16 %v4872, %v4872
        %v4914 = vpack.c.b16 %v4874, %v4873
        %v4915 = vpack.c.b16 %v4875, %v4875
        %v4916 = vpack.c.b16 %v4877, %v4876
        %v4917 = vpack.c.b16 %v4878, %v4878
        %v4918 = vpack.c.b16 %v4880, %v4879
        %v4919 = vpack.c.b16 %v4881, %v4881
        %v4920 = vpack.c.b16 %v4883, %v4882
        %v4921 = vpack.c.b16 %v4884, %v4884
        %v4922 = vpack.c.b16 %v4886, %v4885
        %v4923 = vpack.c.b16 %v4887, %v4887
        %v4924 = vpack.c.b16 %v4889, %v4888
        %v4925 = vpack.c.b16 %v4890, %v4890
        %v4926 = vpack.c.b16 %v4892, %v4891
        %v4927 = vpack.c.b16 %v4893, %v4893
        %v4928 = vpack.c.b16 %v4895, %v4894
        %v4929 = vpack.c.b16 %v4896, %v4896
        %v4930 = vpack.c.b16 %v4898, %v4897
        %v4931 = vpack.c.b16 %v4899, %v4899
        %4932 = vrot.lane.b32.xlu0 %v4900, 80
        %v4933 = vpop.permute.xlu0 %4932
        %4934 = vrot.lane.b32.xlu0 %v4901, 80
        %v4935 = vpop.permute.xlu0 %4934
        %4936 = vrot.lane.b32.xlu0 %v4902, 80
        %v4937 = vpop.permute.xlu0 %4936
        %4938 = vrot.lane.b32.xlu0 %v4903, 80
        %v4939 = vpop.permute.xlu0 %4938
        %4940 = vrot.lane.b32.xlu0 %v4904, 80
        %v4941 = vpop.permute.xlu0 %4940
        %4942 = vrot.lane.b32.xlu0 %v4905, 80
        %v4943 = vpop.permute.xlu0 %4942
        %4944 = vrot.lane.b32.xlu0 %v4906, 80
        %v4945 = vpop.permute.xlu0 %4944
        %4946 = vrot.lane.b32.xlu0 %v4907, 80
        %v4947 = vpop.permute.xlu0 %4946
        %4948 = vrot.lane.b32.xlu0 %v4908, 80
        %v4949 = vpop.permute.xlu0 %4948
        %4950 = vrot.lane.b32.xlu0 %v4909, 80
        %v4951 = vpop.permute.xlu0 %4950
        %4952 = vrot.lane.b32.xlu0 %v4910, 80
        %v4953 = vpop.permute.xlu0 %4952
        %4954 = vrot.lane.b32.xlu0 %v4911, 80
        %v4955 = vpop.permute.xlu0 %4954
        %4956 = vrot.lane.b32.xlu0 %v4912, 80
        %v4957 = vpop.permute.xlu0 %4956
        %4958 = vrot.lane.b32.xlu0 %v4913, 80
        %v4959 = vpop.permute.xlu0 %4958
        %4960 = vrot.lane.b32.xlu0 %v4914, 80
        %v4961 = vpop.permute.xlu0 %4960
        %4962 = vrot.lane.b32.xlu0 %v4915, 80
        %v4963 = vpop.permute.xlu0 %4962
        %4964 = vrot.lane.b32.xlu0 %v4916, 80
        %v4965 = vpop.permute.xlu0 %4964
        %4966 = vrot.lane.b32.xlu0 %v4917, 80
        %v4967 = vpop.permute.xlu0 %4966
        %4968 = vrot.lane.b32.xlu0 %v4918, 80
        %v4969 = vpop.permute.xlu0 %4968
        %4970 = vrot.lane.b32.xlu0 %v4919, 80
        %v4971 = vpop.permute.xlu0 %4970
        %4972 = vrot.lane.b32.xlu0 %v4920, 80
        %v4973 = vpop.permute.xlu0 %4972
        %4974 = vrot.lane.b32.xlu0 %v4921, 80
        %v4975 = vpop.permute.xlu0 %4974
        %4976 = vrot.lane.b32.xlu0 %v4922, 80
        %v4977 = vpop.permute.xlu0 %4976
        %4978 = vrot.lane.b32.xlu0 %v4923, 80
        %v4979 = vpop.permute.xlu0 %4978
        %4980 = vrot.lane.b32.xlu0 %v4924, 80
        %v4981 = vpop.permute.xlu0 %4980
        %4982 = vrot.lane.b32.xlu0 %v4925, 80
        %v4983 = vpop.permute.xlu0 %4982
        %4984 = vrot.lane.b32.xlu0 %v4926, 80
        %v4985 = vpop.permute.xlu0 %4984
        %4986 = vrot.lane.b32.xlu0 %v4927, 80
        %v4987 = vpop.permute.xlu0 %4986
        %4988 = vrot.lane.b32.xlu0 %v4928, 80
        %v4989 = vpop.permute.xlu0 %4988
        %4990 = vrot.lane.b32.xlu0 %v4929, 80
        %v4991 = vpop.permute.xlu0 %4990
        %4992 = vrot.lane.b32.xlu0 %v4930, 80
        %v4993 = vpop.permute.xlu0 %4992
        %4994 = vrot.lane.b32.xlu0 %v4931, 80
        %v4995 = vpop.permute.xlu0 %4994
        %v5044 = vunpack.c.l.b16 %v3748
        %v5045 = vunpack.c.l.b16 %v3749
        %v5046 = vunpack.c.l.b16 %v3750
        %v5047 = vunpack.c.l.b16 %v3751
        %v5048 = vunpack.c.l.b16 %v3752
        %v5049 = vunpack.c.l.b16 %v3753
        %v5050 = vunpack.c.l.b16 %v3754
        %v5051 = vunpack.c.l.b16 %v3755
        %v5052 = vunpack.c.l.b16 %v3756
        %v5053 = vunpack.c.l.b16 %v3757
        %v5054 = vunpack.c.l.b16 %v3758
        %v5055 = vunpack.c.l.b16 %v3759
        %v5056 = vunpack.c.l.b16 %v3760
        %v5057 = vunpack.c.l.b16 %v3761
        %v5058 = vunpack.c.l.b16 %v3762
        %v5059 = vunpack.c.l.b16 %v3763
        %v5060 = vunpack.c.l.b16 %v3764
        %v5061 = vunpack.c.l.b16 %v3765
        %v5062 = vunpack.c.l.b16 %v3766
        %v5063 = vunpack.c.l.b16 %v3767
        %v5064 = vunpack.c.l.b16 %v3768
        %v5065 = vunpack.c.l.b16 %v3769
        %v5066 = vunpack.c.l.b16 %v3770
        %v5067 = vunpack.c.l.b16 %v3771
        %v5068 = vunpack.c.l.b16 %v3772
        %v5069 = vunpack.c.l.b16 %v3773
        %v5070 = vunpack.c.l.b16 %v3774
        %v5071 = vunpack.c.l.b16 %v3775
        %v5072 = vunpack.c.l.b16 %v3776
        %v5073 = vunpack.c.l.b16 %v3777
        %v5074 = vunpack.c.l.b16 %v3778
        %v5075 = vunpack.c.l.b16 %v3779
        %v5076 = vunpack.c.l.b16 %v3780
        %v5077 = vunpack.c.l.b16 %v3781
        %v5078 = vunpack.c.l.b16 %v3782
        %v5079 = vunpack.c.l.b16 %v3783
        %v5080 = vunpack.c.l.b16 %v3784
        %v5081 = vunpack.c.l.b16 %v3785
        %v5082 = vunpack.c.l.b16 %v3786
        %v5083 = vunpack.c.l.b16 %v3787
        %v5084 = vunpack.c.l.b16 %v3788
        %v5085 = vunpack.c.l.b16 %v3789
        %v5086 = vunpack.c.l.b16 %v3790
        %v5087 = vunpack.c.l.b16 %v3791
        %v5088 = vunpack.c.l.b16 %v3792
        %v5089 = vunpack.c.l.b16 %v3793
        %v5090 = vunpack.c.l.b16 %v3794
        %v5091 = vunpack.c.l.b16 %v3795
        %v5092 = vpack.c.b16 %v5045, %v5044
        %v5093 = vpack.c.b16 %v5046, %v5046
        %v5094 = vpack.c.b16 %v5048, %v5047
        %v5095 = vpack.c.b16 %v5049, %v5049
        %v5096 = vpack.c.b16 %v5051, %v5050
        %v5097 = vpack.c.b16 %v5052, %v5052
        %v5098 = vpack.c.b16 %v5054, %v5053
        %v5099 = vpack.c.b16 %v5055, %v5055
        %v5100 = vpack.c.b16 %v5057, %v5056
        %v5101 = vpack.c.b16 %v5058, %v5058
        %v5102 = vpack.c.b16 %v5060, %v5059
        %v5103 = vpack.c.b16 %v5061, %v5061
        %v5104 = vpack.c.b16 %v5063, %v5062
        %v5105 = vpack.c.b16 %v5064, %v5064
        %v5106 = vpack.c.b16 %v5066, %v5065
        %v5107 = vpack.c.b16 %v5067, %v5067
        %v5108 = vpack.c.b16 %v5069, %v5068
        %v5109 = vpack.c.b16 %v5070, %v5070
        %v5110 = vpack.c.b16 %v5072, %v5071
        %v5111 = vpack.c.b16 %v5073, %v5073
        %v5112 = vpack.c.b16 %v5075, %v5074
        %v5113 = vpack.c.b16 %v5076, %v5076
        %v5114 = vpack.c.b16 %v5078, %v5077
        %v5115 = vpack.c.b16 %v5079, %v5079
        %v5116 = vpack.c.b16 %v5081, %v5080
        %v5117 = vpack.c.b16 %v5082, %v5082
        %v5118 = vpack.c.b16 %v5084, %v5083
        %v5119 = vpack.c.b16 %v5085, %v5085
        %v5120 = vpack.c.b16 %v5087, %v5086
        %v5121 = vpack.c.b16 %v5088, %v5088
        %v5122 = vpack.c.b16 %v5090, %v5089
        %v5123 = vpack.c.b16 %v5091, %v5091
        %5124 = vrot.lane.b32.xlu0 %v5092, 96
        %v5125 = vpop.permute.xlu0 %5124
        %5126 = vrot.lane.b32.xlu0 %v5093, 96
        %v5127 = vpop.permute.xlu0 %5126
        %5128 = vrot.lane.b32.xlu0 %v5094, 96
        %v5129 = vpop.permute.xlu0 %5128
        %5130 = vrot.lane.b32.xlu0 %v5095, 96
        %v5131 = vpop.permute.xlu0 %5130
        %5132 = vrot.lane.b32.xlu0 %v5096, 96
        %v5133 = vpop.permute.xlu0 %5132
        %5134 = vrot.lane.b32.xlu0 %v5097, 96
        %v5135 = vpop.permute.xlu0 %5134
        %5136 = vrot.lane.b32.xlu0 %v5098, 96
        %v5137 = vpop.permute.xlu0 %5136
        %5138 = vrot.lane.b32.xlu0 %v5099, 96
        %v5139 = vpop.permute.xlu0 %5138
        %5140 = vrot.lane.b32.xlu0 %v5100, 96
        %v5141 = vpop.permute.xlu0 %5140
        %5142 = vrot.lane.b32.xlu0 %v5101, 96
        %v5143 = vpop.permute.xlu0 %5142
        %5144 = vrot.lane.b32.xlu0 %v5102, 96
        %v5145 = vpop.permute.xlu0 %5144
        %5146 = vrot.lane.b32.xlu0 %v5103, 96
        %v5147 = vpop.permute.xlu0 %5146
        %5148 = vrot.lane.b32.xlu0 %v5104, 96
        %v5149 = vpop.permute.xlu0 %5148
        %5150 = vrot.lane.b32.xlu0 %v5105, 96
        %v5151 = vpop.permute.xlu0 %5150
        %5152 = vrot.lane.b32.xlu0 %v5106, 96
        %v5153 = vpop.permute.xlu0 %5152
        %5154 = vrot.lane.b32.xlu0 %v5107, 96
        %v5155 = vpop.permute.xlu0 %5154
        %5156 = vrot.lane.b32.xlu0 %v5108, 96
        %v5157 = vpop.permute.xlu0 %5156
        %5158 = vrot.lane.b32.xlu0 %v5109, 96
        %v5159 = vpop.permute.xlu0 %5158
        %5160 = vrot.lane.b32.xlu0 %v5110, 96
        %v5161 = vpop.permute.xlu0 %5160
        %5162 = vrot.lane.b32.xlu0 %v5111, 96
        %v5163 = vpop.permute.xlu0 %5162
        %5164 = vrot.lane.b32.xlu0 %v5112, 96
        %v5165 = vpop.permute.xlu0 %5164
        %5166 = vrot.lane.b32.xlu0 %v5113, 96
        %v5167 = vpop.permute.xlu0 %5166
        %5168 = vrot.lane.b32.xlu0 %v5114, 96
        %v5169 = vpop.permute.xlu0 %5168
        %5170 = vrot.lane.b32.xlu0 %v5115, 96
        %v5171 = vpop.permute.xlu0 %5170
        %5172 = vrot.lane.b32.xlu0 %v5116, 96
        %v5173 = vpop.permute.xlu0 %5172
        %5174 = vrot.lane.b32.xlu0 %v5117, 96
        %v5175 = vpop.permute.xlu0 %5174
        %5176 = vrot.lane.b32.xlu0 %v5118, 96
        %v5177 = vpop.permute.xlu0 %5176
        %5178 = vrot.lane.b32.xlu0 %v5119, 96
        %v5179 = vpop.permute.xlu0 %5178
        %5180 = vrot.lane.b32.xlu0 %v5120, 96
        %v5181 = vpop.permute.xlu0 %5180
        %5182 = vrot.lane.b32.xlu0 %v5121, 96
        %v5183 = vpop.permute.xlu0 %5182
        %5184 = vrot.lane.b32.xlu0 %v5122, 96
        %v5185 = vpop.permute.xlu0 %5184
        %5186 = vrot.lane.b32.xlu0 %v5123, 96
        %v5187 = vpop.permute.xlu0 %5186
        %v5220 = vunpack.c.l.b16 %v3796
        %v5221 = vunpack.c.l.b16 %v3797
        %v5222 = vunpack.c.l.b16 %v3798
        %v5223 = vunpack.c.l.b16 %v3799
        %v5224 = vunpack.c.l.b16 %v3800
        %v5225 = vunpack.c.l.b16 %v3801
        %v5226 = vunpack.c.l.b16 %v3802
        %v5227 = vunpack.c.l.b16 %v3803
        %v5228 = vunpack.c.l.b16 %v3804
        %v5229 = vunpack.c.l.b16 %v3805
        %v5230 = vunpack.c.l.b16 %v3806
        %v5231 = vunpack.c.l.b16 %v3807
        %v5232 = vunpack.c.l.b16 %v3808
        %v5233 = vunpack.c.l.b16 %v3809
        %v5234 = vunpack.c.l.b16 %v3810
        %v5235 = vunpack.c.l.b16 %v3811
        %v5236 = vunpack.c.l.b16 %v3812
        %v5237 = vunpack.c.l.b16 %v3813
        %v5238 = vunpack.c.l.b16 %v3814
        %v5239 = vunpack.c.l.b16 %v3815
        %v5240 = vunpack.c.l.b16 %v3816
        %v5241 = vunpack.c.l.b16 %v3817
        %v5242 = vunpack.c.l.b16 %v3818
        %v5243 = vunpack.c.l.b16 %v3819
        %v5244 = vunpack.c.l.b16 %v3820
        %v5245 = vunpack.c.l.b16 %v3821
        %v5246 = vunpack.c.l.b16 %v3822
        %v5247 = vunpack.c.l.b16 %v3823
        %v5248 = vunpack.c.l.b16 %v3824
        %v5249 = vunpack.c.l.b16 %v3825
        %v5250 = vunpack.c.l.b16 %v3826
        %v5251 = vunpack.c.l.b16 %v3827
        %v5252 = vpack.c.b16 %v5045, %v5220
        %v5253 = vpack.c.b16 %v5221, %v5221
        %v5254 = vpack.c.b16 %v5048, %v5222
        %v5255 = vpack.c.b16 %v5223, %v5223
        %v5256 = vpack.c.b16 %v5051, %v5224
        %v5257 = vpack.c.b16 %v5225, %v5225
        %v5258 = vpack.c.b16 %v5054, %v5226
        %v5259 = vpack.c.b16 %v5227, %v5227
        %v5260 = vpack.c.b16 %v5057, %v5228
        %v5261 = vpack.c.b16 %v5229, %v5229
        %v5262 = vpack.c.b16 %v5060, %v5230
        %v5263 = vpack.c.b16 %v5231, %v5231
        %v5264 = vpack.c.b16 %v5063, %v5232
        %v5265 = vpack.c.b16 %v5233, %v5233
        %v5266 = vpack.c.b16 %v5066, %v5234
        %v5267 = vpack.c.b16 %v5235, %v5235
        %v5268 = vpack.c.b16 %v5069, %v5236
        %v5269 = vpack.c.b16 %v5237, %v5237
        %v5270 = vpack.c.b16 %v5072, %v5238
        %v5271 = vpack.c.b16 %v5239, %v5239
        %v5272 = vpack.c.b16 %v5075, %v5240
        %v5273 = vpack.c.b16 %v5241, %v5241
        %v5274 = vpack.c.b16 %v5078, %v5242
        %v5275 = vpack.c.b16 %v5243, %v5243
        %v5276 = vpack.c.b16 %v5081, %v5244
        %v5277 = vpack.c.b16 %v5245, %v5245
        %v5278 = vpack.c.b16 %v5084, %v5246
        %v5279 = vpack.c.b16 %v5247, %v5247
        %v5280 = vpack.c.b16 %v5087, %v5248
        %v5281 = vpack.c.b16 %v5249, %v5249
        %v5282 = vpack.c.b16 %v5090, %v5250
        %v5283 = vpack.c.b16 %v5251, %v5251
        %v5284 = vrot.slane %v5252, 2
        %v5285 = vrot.slane %v5253, 2
        %v5286 = vsel %vm3035, %v5284, %v5285
        %v5287 = vrot.slane %v5254, 2
        %v5288 = vrot.slane %v5255, 2
        %v5289 = vsel %vm3035, %v5287, %v5288
        %v5290 = vrot.slane %v5256, 2
        %v5291 = vrot.slane %v5257, 2
        %v5292 = vsel %vm3035, %v5290, %v5291
        %v5293 = vrot.slane %v5258, 2
        %v5294 = vrot.slane %v5259, 2
        %v5295 = vsel %vm3035, %v5293, %v5294
        %v5296 = vrot.slane %v5260, 2
        %v5297 = vrot.slane %v5261, 2
        %v5298 = vsel %vm3035, %v5296, %v5297
        %v5299 = vrot.slane %v5262, 2
        %v5300 = vrot.slane %v5263, 2
        %v5301 = vsel %vm3035, %v5299, %v5300
        %v5302 = vrot.slane %v5264, 2
        %v5303 = vrot.slane %v5265, 2
        %v5304 = vsel %vm3035, %v5302, %v5303
        %v5305 = vrot.slane %v5266, 2
        %v5306 = vrot.slane %v5267, 2
        %v5307 = vsel %vm3035, %v5305, %v5306
        %v5308 = vrot.slane %v5268, 2
        %v5309 = vrot.slane %v5269, 2
        %v5310 = vsel %vm3035, %v5308, %v5309
        %v5311 = vrot.slane %v5270, 2
        %v5312 = vrot.slane %v5271, 2
        %v5313 = vsel %vm3035, %v5311, %v5312
        %v5314 = vrot.slane %v5272, 2
        %v5315 = vrot.slane %v5273, 2
        %v5316 = vsel %vm3035, %v5314, %v5315
        %v5317 = vrot.slane %v5274, 2
        %v5318 = vrot.slane %v5275, 2
        %v5319 = vsel %vm3035, %v5317, %v5318
        %v5320 = vrot.slane %v5276, 2
        %v5321 = vrot.slane %v5277, 2
        %v5322 = vsel %vm3035, %v5320, %v5321
        %v5323 = vrot.slane %v5278, 2
        %v5324 = vrot.slane %v5279, 2
        %v5325 = vsel %vm3035, %v5323, %v5324
        %v5326 = vrot.slane %v5280, 2
        %v5327 = vrot.slane %v5281, 2
        %v5328 = vsel %vm3035, %v5326, %v5327
        %v5329 = vrot.slane %v5282, 2
        %v5330 = vrot.slane %v5283, 2
        %v5331 = vsel %vm3035, %v5329, %v5330
        %5332 = vrot.lane.b32.xlu0 %v5286, 112
        %v5333 = vpop.permute.xlu0 %5332
        %5334 = vrot.lane.b32.xlu0 %v5285, 112
        %v5335 = vpop.permute.xlu0 %5334
        %5336 = vrot.lane.b32.xlu0 %v5289, 112
        %v5337 = vpop.permute.xlu0 %5336
        %5338 = vrot.lane.b32.xlu0 %v5288, 112
        %v5339 = vpop.permute.xlu0 %5338
        %5340 = vrot.lane.b32.xlu0 %v5292, 112
        %v5341 = vpop.permute.xlu0 %5340
        %5342 = vrot.lane.b32.xlu0 %v5291, 112
        %v5343 = vpop.permute.xlu0 %5342
        %5344 = vrot.lane.b32.xlu0 %v5295, 112
        %v5345 = vpop.permute.xlu0 %5344
        %5346 = vrot.lane.b32.xlu0 %v5294, 112
        %v5347 = vpop.permute.xlu0 %5346
        %5348 = vrot.lane.b32.xlu0 %v5298, 112
        %v5349 = vpop.permute.xlu0 %5348
        %5350 = vrot.lane.b32.xlu0 %v5297, 112
        %v5351 = vpop.permute.xlu0 %5350
        %5352 = vrot.lane.b32.xlu0 %v5301, 112
        %v5353 = vpop.permute.xlu0 %5352
        %5354 = vrot.lane.b32.xlu0 %v5300, 112
        %v5355 = vpop.permute.xlu0 %5354
        %5356 = vrot.lane.b32.xlu0 %v5304, 112
        %v5357 = vpop.permute.xlu0 %5356
        %5358 = vrot.lane.b32.xlu0 %v5303, 112
        %v5359 = vpop.permute.xlu0 %5358
        %5360 = vrot.lane.b32.xlu0 %v5307, 112
        %v5361 = vpop.permute.xlu0 %5360
        %5362 = vrot.lane.b32.xlu0 %v5306, 112
        %v5363 = vpop.permute.xlu0 %5362
        %5364 = vrot.lane.b32.xlu0 %v5310, 112
        %v5365 = vpop.permute.xlu0 %5364
        %5366 = vrot.lane.b32.xlu0 %v5309, 112
        %v5367 = vpop.permute.xlu0 %5366
        %5368 = vrot.lane.b32.xlu0 %v5313, 112
        %v5369 = vpop.permute.xlu0 %5368
        %5370 = vrot.lane.b32.xlu0 %v5312, 112
        %v5371 = vpop.permute.xlu0 %5370
        %5372 = vrot.lane.b32.xlu0 %v5316, 112
        %v5373 = vpop.permute.xlu0 %5372
        %5374 = vrot.lane.b32.xlu0 %v5315, 112
        %v5375 = vpop.permute.xlu0 %5374
        %5376 = vrot.lane.b32.xlu0 %v5319, 112
        %v5377 = vpop.permute.xlu0 %5376
        %5378 = vrot.lane.b32.xlu0 %v5318, 112
        %v5379 = vpop.permute.xlu0 %5378
        %5380 = vrot.lane.b32.xlu0 %v5322, 112
        %v5381 = vpop.permute.xlu0 %5380
        %5382 = vrot.lane.b32.xlu0 %v5321, 112
        %v5383 = vpop.permute.xlu0 %5382
        %5384 = vrot.lane.b32.xlu0 %v5325, 112
        %v5385 = vpop.permute.xlu0 %5384
        %5386 = vrot.lane.b32.xlu0 %v5324, 112
        %v5387 = vpop.permute.xlu0 %5386
        %5388 = vrot.lane.b32.xlu0 %v5328, 112
        %v5389 = vpop.permute.xlu0 %5388
        %5390 = vrot.lane.b32.xlu0 %v5327, 112
        %v5391 = vpop.permute.xlu0 %5390
        %5392 = vrot.lane.b32.xlu0 %v5331, 112
        %v5393 = vpop.permute.xlu0 %5392
        %5394 = vrot.lane.b32.xlu0 %v5330, 112
        %v5395 = vpop.permute.xlu0 %5394
        %v5444 = vunpack.c.l.b16 %v3828
        %v5445 = vunpack.c.l.b16 %v3829
        %v5446 = vunpack.c.l.b16 %v3830
        %v5447 = vunpack.c.l.b16 %v3831
        %v5448 = vunpack.c.l.b16 %v3832
        %v5449 = vunpack.c.l.b16 %v3833
        %v5450 = vunpack.c.l.b16 %v3834
        %v5451 = vunpack.c.l.b16 %v3835
        %v5452 = vunpack.c.l.b16 %v3836
        %v5453 = vunpack.c.l.b16 %v3837
        %v5454 = vunpack.c.l.b16 %v3838
        %v5455 = vunpack.c.l.b16 %v3839
        %v5456 = vunpack.c.l.b16 %v3840
        %v5457 = vunpack.c.l.b16 %v3841
        %v5458 = vunpack.c.l.b16 %v3842
        %v5459 = vunpack.c.l.b16 %v3843
        %v5460 = vunpack.c.l.b16 %v3844
        %v5461 = vunpack.c.l.b16 %v3845
        %v5462 = vunpack.c.l.b16 %v3846
        %v5463 = vunpack.c.l.b16 %v3847
        %v5464 = vunpack.c.l.b16 %v3848
        %v5465 = vunpack.c.l.b16 %v3849
        %v5466 = vunpack.c.l.b16 %v3850
        %v5467 = vunpack.c.l.b16 %v3851
        %v5468 = vunpack.c.l.b16 %v3852
        %v5469 = vunpack.c.l.b16 %v3853
        %v5470 = vunpack.c.l.b16 %v3854
        %v5471 = vunpack.c.l.b16 %v3855
        %v5472 = vunpack.c.l.b16 %v3856
        %v5473 = vunpack.c.l.b16 %v3857
        %v5474 = vunpack.c.l.b16 %v3858
        %v5475 = vunpack.c.l.b16 %v3859
        %v5476 = vunpack.c.l.b16 %v3860
        %v5477 = vunpack.c.l.b16 %v3861
        %v5478 = vunpack.c.l.b16 %v3862
        %v5479 = vunpack.c.l.b16 %v3863
        %v5480 = vunpack.c.l.b16 %v3864
        %v5481 = vunpack.c.l.b16 %v3865
        %v5482 = vunpack.c.l.b16 %v3866
        %v5483 = vunpack.c.l.b16 %v3867
        %v5484 = vunpack.c.l.b16 %v3868
        %v5485 = vunpack.c.l.b16 %v3869
        %v5486 = vunpack.c.l.b16 %v3870
        %v5487 = vunpack.c.l.b16 %v3871
        %v5488 = vunpack.c.l.b16 %v3872
        %v5489 = vunpack.c.l.b16 %v3873
        %v5490 = vunpack.c.l.b16 %v3874
        %v5491 = vunpack.c.l.b16 %v3875
        %v5492 = vpack.c.b16 %v5445, %v5444
        %v5493 = vpack.c.b16 %v5446, %v5446
        %v5494 = vpack.c.b16 %v5448, %v5447
        %v5495 = vpack.c.b16 %v5449, %v5449
        %v5496 = vpack.c.b16 %v5451, %v5450
        %v5497 = vpack.c.b16 %v5452, %v5452
        %v5498 = vpack.c.b16 %v5454, %v5453
        %v5499 = vpack.c.b16 %v5455, %v5455
        %v5500 = vpack.c.b16 %v5457, %v5456
        %v5501 = vpack.c.b16 %v5458, %v5458
        %v5502 = vpack.c.b16 %v5460, %v5459
        %v5503 = vpack.c.b16 %v5461, %v5461
        %v5504 = vpack.c.b16 %v5463, %v5462
        %v5505 = vpack.c.b16 %v5464, %v5464
        %v5506 = vpack.c.b16 %v5466, %v5465
        %v5507 = vpack.c.b16 %v5467, %v5467
        %v5508 = vpack.c.b16 %v5469, %v5468
        %v5509 = vpack.c.b16 %v5470, %v5470
        %v5510 = vpack.c.b16 %v5472, %v5471
        %v5511 = vpack.c.b16 %v5473, %v5473
        %v5512 = vpack.c.b16 %v5475, %v5474
        %v5513 = vpack.c.b16 %v5476, %v5476
        %v5514 = vpack.c.b16 %v5478, %v5477
        %v5515 = vpack.c.b16 %v5479, %v5479
        %v5516 = vpack.c.b16 %v5481, %v5480
        %v5517 = vpack.c.b16 %v5482, %v5482
        %v5518 = vpack.c.b16 %v5484, %v5483
        %v5519 = vpack.c.b16 %v5485, %v5485
        %v5520 = vpack.c.b16 %v5487, %v5486
        %v5521 = vpack.c.b16 %v5488, %v5488
        %v5522 = vpack.c.b16 %v5490, %v5489
        %v5523 = vpack.c.b16 %v5491, %v5491
        %v5526 = vsel %vm586, %v3972, %v4149
        %v5529 = vsel %vm586, %v3973, %v4151
        %v5532 = vsel %vm586, %v3974, %v4153
        %v5535 = vsel %vm586, %v3975, %v4155
        %v5538 = vsel %vm586, %v3976, %v4157
        %v5541 = vsel %vm586, %v3977, %v4159
        %v5544 = vsel %vm586, %v3978, %v4161
        %v5547 = vsel %vm586, %v3979, %v4163
        %v5550 = vsel %vm586, %v3980, %v4165
        %v5553 = vsel %vm586, %v3981, %v4167
        %v5556 = vsel %vm586, %v3982, %v4169
        %v5559 = vsel %vm586, %v3983, %v4171
        %v5562 = vsel %vm586, %v3984, %v4173
        %v5565 = vsel %vm586, %v3985, %v4175
        %v5568 = vsel %vm586, %v3986, %v4177
        %v5571 = vsel %vm586, %v3987, %v4179
        %v5574 = vsel %vm586, %v3988, %v4181
        %v5577 = vsel %vm586, %v3989, %v4183
        %v5580 = vsel %vm586, %v3990, %v4185
        %v5583 = vsel %vm586, %v3991, %v4187
        %v5586 = vsel %vm586, %v3992, %v4189
        %v5589 = vsel %vm586, %v3993, %v4191
        %v5592 = vsel %vm586, %v3994, %v4193
        %v5595 = vsel %vm586, %v3995, %v4195
        %v5598 = vsel %vm586, %v3996, %v4197
        %v5601 = vsel %vm586, %v3997, %v4199
        %v5604 = vsel %vm586, %v3998, %v4201
        %v5607 = vsel %vm586, %v3999, %v4203
        %v5610 = vsel %vm586, %v4000, %v4205
        %v5613 = vsel %vm586, %v4001, %v4207
        %v5616 = vsel %vm586, %v4002, %v4209
        %v5619 = vsel %vm586, %v4003, %v4211
        %v5621 = vsel %vm2645, %v5526, %v4341
        %v5623 = vsel %vm2645, %v5529, %v4343
        %v5625 = vsel %vm2645, %v5532, %v4345
        %v5627 = vsel %vm2645, %v5535, %v4347
        %v5629 = vsel %vm2645, %v5538, %v4349
        %v5631 = vsel %vm2645, %v5541, %v4351
        %v5633 = vsel %vm2645, %v5544, %v4353
        %v5635 = vsel %vm2645, %v5547, %v4355
        %v5637 = vsel %vm2645, %v5550, %v4357
        %v5639 = vsel %vm2645, %v5553, %v4359
        %v5641 = vsel %vm2645, %v5556, %v4361
        %v5643 = vsel %vm2645, %v5559, %v4363
        %v5645 = vsel %vm2645, %v5562, %v4365
        %v5647 = vsel %vm2645, %v5565, %v4367
        %v5649 = vsel %vm2645, %v5568, %v4369
        %v5651 = vsel %vm2645, %v5571, %v4371
        %v5653 = vsel %vm2645, %v5574, %v4373
        %v5655 = vsel %vm2645, %v5577, %v4375
        %v5657 = vsel %vm2645, %v5580, %v4377
        %v5659 = vsel %vm2645, %v5583, %v4379
        %v5661 = vsel %vm2645, %v5586, %v4381
        %v5663 = vsel %vm2645, %v5589, %v4383
        %v5665 = vsel %vm2645, %v5592, %v4385
        %v5667 = vsel %vm2645, %v5595, %v4387
        %v5669 = vsel %vm2645, %v5598, %v4389
        %v5671 = vsel %vm2645, %v5601, %v4391
        %v5673 = vsel %vm2645, %v5604, %v4393
        %v5675 = vsel %vm2645, %v5607, %v4395
        %v5677 = vsel %vm2645, %v5610, %v4397
        %v5679 = vsel %vm2645, %v5613, %v4399
        %v5681 = vsel %vm2645, %v5616, %v4401
        %v5683 = vsel %vm2645, %v5619, %v4403
        %v5685 = vsel %vm2694, %v5621, %v4533
        %v5687 = vsel %vm2694, %v5623, %v4535
        %v5689 = vsel %vm2694, %v5625, %v4537
        %v5691 = vsel %vm2694, %v5627, %v4539
        %v5693 = vsel %vm2694, %v5629, %v4541
        %v5695 = vsel %vm2694, %v5631, %v4543
        %v5697 = vsel %vm2694, %v5633, %v4545
        %v5699 = vsel %vm2694, %v5635, %v4547
        %v5701 = vsel %vm2694, %v5637, %v4549
        %v5703 = vsel %vm2694, %v5639, %v4551
        %v5705 = vsel %vm2694, %v5641, %v4553
        %v5707 = vsel %vm2694, %v5643, %v4555
        %v5709 = vsel %vm2694, %v5645, %v4557
        %v5711 = vsel %vm2694, %v5647, %v4559
        %v5713 = vsel %vm2694, %v5649, %v4561
        %v5715 = vsel %vm2694, %v5651, %v4563
        %v5717 = vsel %vm2694, %v5653, %v4565
        %v5719 = vsel %vm2694, %v5655, %v4567
        %v5721 = vsel %vm2694, %v5657, %v4569
        %v5723 = vsel %vm2694, %v5659, %v4571
        %v5725 = vsel %vm2694, %v5661, %v4573
        %v5727 = vsel %vm2694, %v5663, %v4575
        %v5729 = vsel %vm2694, %v5665, %v4577
        %v5731 = vsel %vm2694, %v5667, %v4579
        %v5733 = vsel %vm2694, %v5669, %v4581
        %v5735 = vsel %vm2694, %v5671, %v4583
        %v5737 = vsel %vm2694, %v5673, %v4585
        %v5739 = vsel %vm2694, %v5675, %v4587
        %v5741 = vsel %vm2694, %v5677, %v4589
        %v5743 = vsel %vm2694, %v5679, %v4591
        %v5745 = vsel %vm2694, %v5681, %v4593
        %v5747 = vsel %vm2694, %v5683, %v4595
        %v5749 = vsel %vm2759, %v5685, %v4741
        %v5751 = vsel %vm2759, %v5687, %v4743
        %v5753 = vsel %vm2759, %v5689, %v4745
        %v5755 = vsel %vm2759, %v5691, %v4747
        %v5757 = vsel %vm2759, %v5693, %v4749
        %v5759 = vsel %vm2759, %v5695, %v4751
        %v5761 = vsel %vm2759, %v5697, %v4753
        %v5763 = vsel %vm2759, %v5699, %v4755
        %v5765 = vsel %vm2759, %v5701, %v4757
        %v5767 = vsel %vm2759, %v5703, %v4759
        %v5769 = vsel %vm2759, %v5705, %v4761
        %v5771 = vsel %vm2759, %v5707, %v4763
        %v5773 = vsel %vm2759, %v5709, %v4765
        %v5775 = vsel %vm2759, %v5711, %v4767
        %v5777 = vsel %vm2759, %v5713, %v4769
        %v5779 = vsel %vm2759, %v5715, %v4771
        %v5781 = vsel %vm2759, %v5717, %v4773
        %v5783 = vsel %vm2759, %v5719, %v4775
        %v5785 = vsel %vm2759, %v5721, %v4777
        %v5787 = vsel %vm2759, %v5723, %v4779
        %v5789 = vsel %vm2759, %v5725, %v4781
        %v5791 = vsel %vm2759, %v5727, %v4783
        %v5793 = vsel %vm2759, %v5729, %v4785
        %v5795 = vsel %vm2759, %v5731, %v4787
        %v5797 = vsel %vm2759, %v5733, %v4789
        %v5799 = vsel %vm2759, %v5735, %v4791
        %v5801 = vsel %vm2759, %v5737, %v4793
        %v5803 = vsel %vm2759, %v5739, %v4795
        %v5805 = vsel %vm2759, %v5741, %v4797
        %v5807 = vsel %vm2759, %v5743, %v4799
        %v5809 = vsel %vm2759, %v5745, %v4801
        %v5811 = vsel %vm2759, %v5747, %v4803
        %v5813 = vsel %vm2824, %v5749, %v4933
        %v5815 = vsel %vm2824, %v5751, %v4935
        %v5817 = vsel %vm2824, %v5753, %v4937
        %v5819 = vsel %vm2824, %v5755, %v4939
        %v5821 = vsel %vm2824, %v5757, %v4941
        %v5823 = vsel %vm2824, %v5759, %v4943
        %v5825 = vsel %vm2824, %v5761, %v4945
        %v5827 = vsel %vm2824, %v5763, %v4947
        %v5829 = vsel %vm2824, %v5765, %v4949
        %v5831 = vsel %vm2824, %v5767, %v4951
        %v5833 = vsel %vm2824, %v5769, %v4953
        %v5835 = vsel %vm2824, %v5771, %v4955
        %v5837 = vsel %vm2824, %v5773, %v4957
        %v5839 = vsel %vm2824, %v5775, %v4959
        %v5841 = vsel %vm2824, %v5777, %v4961
        %v5843 = vsel %vm2824, %v5779, %v4963
        %v5845 = vsel %vm2824, %v5781, %v4965
        %v5847 = vsel %vm2824, %v5783, %v4967
        %v5849 = vsel %vm2824, %v5785, %v4969
        %v5851 = vsel %vm2824, %v5787, %v4971
        %v5853 = vsel %vm2824, %v5789, %v4973
        %v5855 = vsel %vm2824, %v5791, %v4975
        %v5857 = vsel %vm2824, %v5793, %v4977
        %v5859 = vsel %vm2824, %v5795, %v4979
        %v5861 = vsel %vm2824, %v5797, %v4981
        %v5863 = vsel %vm2824, %v5799, %v4983
        %v5865 = vsel %vm2824, %v5801, %v4985
        %v5867 = vsel %vm2824, %v5803, %v4987
        %v5869 = vsel %vm2824, %v5805, %v4989
        %v5871 = vsel %vm2824, %v5807, %v4991
        %v5873 = vsel %vm2824, %v5809, %v4993
        %v5875 = vsel %vm2824, %v5811, %v4995
        %v5877 = vsel %vm2873, %v5813, %v5125
        %v5879 = vsel %vm2873, %v5815, %v5127
        %v5881 = vsel %vm2873, %v5817, %v5129
        %v5883 = vsel %vm2873, %v5819, %v5131
        %v5885 = vsel %vm2873, %v5821, %v5133
        %v5887 = vsel %vm2873, %v5823, %v5135
        %v5889 = vsel %vm2873, %v5825, %v5137
        %v5891 = vsel %vm2873, %v5827, %v5139
        %v5893 = vsel %vm2873, %v5829, %v5141
        %v5895 = vsel %vm2873, %v5831, %v5143
        %v5897 = vsel %vm2873, %v5833, %v5145
        %v5899 = vsel %vm2873, %v5835, %v5147
        %v5901 = vsel %vm2873, %v5837, %v5149
        %v5903 = vsel %vm2873, %v5839, %v5151
        %v5905 = vsel %vm2873, %v5841, %v5153
        %v5907 = vsel %vm2873, %v5843, %v5155
        %v5909 = vsel %vm2873, %v5845, %v5157
        %v5911 = vsel %vm2873, %v5847, %v5159
        %v5913 = vsel %vm2873, %v5849, %v5161
        %v5915 = vsel %vm2873, %v5851, %v5163
        %v5917 = vsel %vm2873, %v5853, %v5165
        %v5919 = vsel %vm2873, %v5855, %v5167
        %v5921 = vsel %vm2873, %v5857, %v5169
        %v5923 = vsel %vm2873, %v5859, %v5171
        %v5925 = vsel %vm2873, %v5861, %v5173
        %v5927 = vsel %vm2873, %v5863, %v5175
        %v5929 = vsel %vm2873, %v5865, %v5177
        %v5931 = vsel %vm2873, %v5867, %v5179
        %v5933 = vsel %vm2873, %v5869, %v5181
        %v5935 = vsel %vm2873, %v5871, %v5183
        %v5937 = vsel %vm2873, %v5873, %v5185
        %v5939 = vsel %vm2873, %v5875, %v5187
        %v5941 = vsel %vm2938, %v5877, %v5333
        %v5943 = vsel %vm2938, %v5879, %v5335
        %v5945 = vsel %vm2938, %v5881, %v5337
        %v5947 = vsel %vm2938, %v5883, %v5339
        %v5949 = vsel %vm2938, %v5885, %v5341
        %v5951 = vsel %vm2938, %v5887, %v5343
        %v5953 = vsel %vm2938, %v5889, %v5345
        %v5955 = vsel %vm2938, %v5891, %v5347
        %v5957 = vsel %vm2938, %v5893, %v5349
        %v5959 = vsel %vm2938, %v5895, %v5351
        %v5961 = vsel %vm2938, %v5897, %v5353
        %v5963 = vsel %vm2938, %v5899, %v5355
        %v5965 = vsel %vm2938, %v5901, %v5357
        %v5967 = vsel %vm2938, %v5903, %v5359
        %v5969 = vsel %vm2938, %v5905, %v5361
        %v5971 = vsel %vm2938, %v5907, %v5363
        %v5973 = vsel %vm2938, %v5909, %v5365
        %v5975 = vsel %vm2938, %v5911, %v5367
        %v5977 = vsel %vm2938, %v5913, %v5369
        %v5979 = vsel %vm2938, %v5915, %v5371
        %v5981 = vsel %vm2938, %v5917, %v5373
        %v5983 = vsel %vm2938, %v5919, %v5375
        %v5985 = vsel %vm2938, %v5921, %v5377
        %v5987 = vsel %vm2938, %v5923, %v5379
        %v5989 = vsel %vm2938, %v5925, %v5381
        %v5991 = vsel %vm2938, %v5927, %v5383
        %v5993 = vsel %vm2938, %v5929, %v5385
        %v5995 = vsel %vm2938, %v5931, %v5387
        %v5997 = vsel %vm2938, %v5933, %v5389
        %v5999 = vsel %vm2938, %v5935, %v5391
        %v6001 = vsel %vm2938, %v5937, %v5393
        %v6003 = vsel %vm2938, %v5939, %v5395
        %v6036 = vrot.slane %v5941, 1
        %v6037 = vrot.slane %v5943, 1
        %v6038 = vsel %vm1380, %v6036, %v6037
        %v6039 = vrot.slane %v5492, 1
        %v6040 = vrot.slane %v5493, 1
        %v6041 = vsel %vm1380, %v6039, %v6040
        %v6042 = vrot.slane %v5945, 1
        %v6043 = vrot.slane %v5947, 1
        %v6044 = vsel %vm1380, %v6042, %v6043
        %v6045 = vrot.slane %v5494, 1
        %v6046 = vrot.slane %v5495, 1
        %v6047 = vsel %vm1380, %v6045, %v6046
        %v6048 = vrot.slane %v5949, 1
        %v6049 = vrot.slane %v5951, 1
        %v6050 = vsel %vm1380, %v6048, %v6049
        %v6051 = vrot.slane %v5496, 1
        %v6052 = vrot.slane %v5497, 1
        %v6053 = vsel %vm1380, %v6051, %v6052
        %v6054 = vrot.slane %v5953, 1
        %v6055 = vrot.slane %v5955, 1
        %v6056 = vsel %vm1380, %v6054, %v6055
        %v6057 = vrot.slane %v5498, 1
        %v6058 = vrot.slane %v5499, 1
        %v6059 = vsel %vm1380, %v6057, %v6058
        %v6060 = vrot.slane %v5957, 1
        %v6061 = vrot.slane %v5959, 1
        %v6062 = vsel %vm1380, %v6060, %v6061
        %v6063 = vrot.slane %v5500, 1
        %v6064 = vrot.slane %v5501, 1
        %v6065 = vsel %vm1380, %v6063, %v6064
        %v6066 = vrot.slane %v5961, 1
        %v6067 = vrot.slane %v5963, 1
        %v6068 = vsel %vm1380, %v6066, %v6067
        %v6069 = vrot.slane %v5502, 1
        %v6070 = vrot.slane %v5503, 1
        %v6071 = vsel %vm1380, %v6069, %v6070
        %v6072 = vrot.slane %v5965, 1
        %v6073 = vrot.slane %v5967, 1
        %v6074 = vsel %vm1380, %v6072, %v6073
        %v6075 = vrot.slane %v5504, 1
        %v6076 = vrot.slane %v5505, 1
        %v6077 = vsel %vm1380, %v6075, %v6076
        %v6078 = vrot.slane %v5969, 1
        %v6079 = vrot.slane %v5971, 1
        %v6080 = vsel %vm1380, %v6078, %v6079
        %v6081 = vrot.slane %v5506, 1
        %v6082 = vrot.slane %v5507, 1
        %v6083 = vsel %vm1380, %v6081, %v6082
        %v6084 = vrot.slane %v5973, 1
        %v6085 = vrot.slane %v5975, 1
        %v6086 = vsel %vm1380, %v6084, %v6085
        %v6087 = vrot.slane %v5508, 1
        %v6088 = vrot.slane %v5509, 1
        %v6089 = vsel %vm1380, %v6087, %v6088
        %v6090 = vrot.slane %v5977, 1
        %v6091 = vrot.slane %v5979, 1
        %v6092 = vsel %vm1380, %v6090, %v6091
        %v6093 = vrot.slane %v5510, 1
        %v6094 = vrot.slane %v5511, 1
        %v6095 = vsel %vm1380, %v6093, %v6094
        %v6096 = vrot.slane %v5981, 1
        %v6097 = vrot.slane %v5983, 1
        %v6098 = vsel %vm1380, %v6096, %v6097
        %v6099 = vrot.slane %v5512, 1
        %v6100 = vrot.slane %v5513, 1
        %v6101 = vsel %vm1380, %v6099, %v6100
        %v6102 = vrot.slane %v5985, 1
        %v6103 = vrot.slane %v5987, 1
        %v6104 = vsel %vm1380, %v6102, %v6103
        %v6105 = vrot.slane %v5514, 1
        %v6106 = vrot.slane %v5515, 1
        %v6107 = vsel %vm1380, %v6105, %v6106
        %v6108 = vrot.slane %v5989, 1
        %v6109 = vrot.slane %v5991, 1
        %v6110 = vsel %vm1380, %v6108, %v6109
        %v6111 = vrot.slane %v5516, 1
        %v6112 = vrot.slane %v5517, 1
        %v6113 = vsel %vm1380, %v6111, %v6112
        %v6114 = vrot.slane %v5993, 1
        %v6115 = vrot.slane %v5995, 1
        %v6116 = vsel %vm1380, %v6114, %v6115
        %v6117 = vrot.slane %v5518, 1
        %v6118 = vrot.slane %v5519, 1
        %v6119 = vsel %vm1380, %v6117, %v6118
        %v6120 = vrot.slane %v5997, 1
        %v6121 = vrot.slane %v5999, 1
        %v6122 = vsel %vm1380, %v6120, %v6121
        %v6123 = vrot.slane %v5520, 1
        %v6124 = vrot.slane %v5521, 1
        %v6125 = vsel %vm1380, %v6123, %v6124
        %v6126 = vrot.slane %v6001, 1
        %v6127 = vrot.slane %v6003, 1
        %v6128 = vsel %vm1380, %v6126, %v6127
        %v6129 = vrot.slane %v5522, 1
        %v6130 = vrot.slane %v5523, 1
        %v6131 = vsel %vm1380, %v6129, %v6130
        %s6148 = scalar_lea.vmem %s3, 72
        %v6149 = vld [vmem:[%s6148] sm:$0xf]
        %v6150 = vld [vmem:[%s6148 + $0x4] sm:$0xf]
        %v6151 = vld [vmem:[%s6148 + $0x8] sm:$0xf]
        %v6152 = vld [vmem:[%s6148 + $0xc] sm:$0xf]
        %v6153 = vld [vmem:[%s6148 + $0x10] sm:$0xf]
        %v6154 = vld [vmem:[%s6148 + $0x14] sm:$0xf]
        %v6155 = vld [vmem:[%s6148 + $0x18] sm:$0xf]
        %v6156 = vld [vmem:[%s6148 + $0x1c] sm:$0xf]
        %v6157 = vld [vmem:[%s6148 + $0x20] sm:$0xf]
        %v6158 = vld [vmem:[%s6148 + $0x24] sm:$0xf]
        %v6159 = vld [vmem:[%s6148 + $0x28] sm:$0xf]
        %v6160 = vld [vmem:[%s6148 + $0x2c] sm:$0xf]
        %v6161 = vld [vmem:[%s6148 + $0x30] sm:$0xf]
        %v6162 = vld [vmem:[%s6148 + $0x34] sm:$0xf]
        %v6163 = vld [vmem:[%s6148 + $0x38] sm:$0xf]
        %v6164 = vld [vmem:[%s6148 + $0x3c] sm:$0xf]
        %v6165 = vld [vmem:[%s6148 + $0x40] sm:$0xf]
        %v6166 = vld [vmem:[%s6148 + $0x44] sm:$0xf]
        %s6167 = scalar_lea.vmem %s4, 1
        %v6168 = vld [vmem:[%s6167] sm:$0x1]
        %v6170 = vlaneseq
        %v6171 = vshrl.u32 %v6170, 7
        %v6172 = vsub.s32 0, %v6171
        %v6173 = vrot.slane %v6168, %v6172
        %v6193 = vunpack.c.l.b16 %v6149
        %v6194 = vunpack.c.l.b16 %v6150
        %v6195 = vunpack.c.l.b16 %v6151
        %v6196 = vunpack.c.l.b16 %v6152
        %v6197 = vunpack.c.l.b16 %v6153
        %v6198 = vunpack.c.l.b16 %v6154
        %v6199 = vunpack.c.l.b16 %v6155
        %v6200 = vunpack.c.l.b16 %v6156
        %v6201 = vunpack.c.l.b16 %v6157
        %v6202 = vunpack.c.l.b16 %v6158
        %v6203 = vunpack.c.l.b16 %v6159
        %v6204 = vunpack.c.l.b16 %v6160
        %v6205 = vunpack.c.l.b16 %v6161
        %v6206 = vunpack.c.l.b16 %v6162
        %v6207 = vunpack.c.l.b16 %v6163
        %v6208 = vunpack.c.l.b16 %v6164
        %v6209 = vunpack.c.l.b16 %v6165
        %v6210 = vunpack.c.l.b16 %v6166
        %v6211 = vpack.c.b16 %v6194, %v6193
        %v6212 = vpack.c.b16 %v6196, %v6195
        %v6213 = vpack.c.b16 %v6198, %v6197
        %v6214 = vpack.c.b16 %v6200, %v6199
        %v6215 = vpack.c.b16 %v6202, %v6201
        %v6216 = vpack.c.b16 %v6204, %v6203
        %v6217 = vpack.c.b16 %v6206, %v6205
        %v6218 = vpack.c.b16 %v6208, %v6207
        %v6219 = vpack.c.b16 %v6210, %v6209
        %v6230 = vsel %vm586, %v6041, 0
        %v6233 = vsel %vm586, %v6047, 0
        %v6236 = vsel %vm586, %v6053, 0
        %v6239 = vsel %vm586, %v6059, 0
        %v6242 = vsel %vm586, %v6065, 0
        %v6245 = vsel %vm586, %v6071, 0
        %v6248 = vsel %vm586, %v6077, 0
        %v6251 = vsel %vm586, %v6083, 0
        %v6254 = vsel %vm586, %v6089, 0
        %v6257 = vsel %vm586, %v6095, 0
        %v6260 = vsel %vm586, %v6101, 0
        %v6263 = vsel %vm586, %v6107, 0
        %v6266 = vsel %vm586, %v6113, 0
        %v6269 = vsel %vm586, %v6119, 0
        %v6272 = vsel %vm586, %v6125, 0
        %v6275 = vsel %vm586, %v6131, 0
        %6277 = vmatprep.subr.bf16.mxu0 0
        %6278 = vmatpush1.bf16.msra.mxu0 %v6211
        %6279 = vmatprep.subr.bf16.mxu0 0
        %6280 = vmatpush1.bf16.msra.mxu0 %v6212
        %6281 = vmatprep.subr.bf16.mxu0 0
        %6282 = vmatpush1.bf16.msra.mxu0 %v6213
        %6283 = vmatprep.subr.bf16.mxu0 0
        %6284 = vmatpush1.bf16.msra.mxu0 %v6214
        %6285 = vmatprep.subr.bf16.mxu0 0
        %6286 = vmatpush1.bf16.msra.mxu0 %v6215
        %6287 = vmatprep.subr.bf16.mxu0 0
        %6288 = vmatpush1.bf16.msra.mxu0 %v6216
        %6289 = vmatprep.subr.bf16.mxu0 0
        %6290 = vmatpush1.bf16.msra.mxu0 %v6217
        %6291 = vmatprep.subr.bf16.mxu0 0
        %6292 = vmatpush1.bf16.msra.mxu0 %v6218
        %6293 = vmatprep.subr.bf16.mxu0 0
        %6294 = vmatpush1.bf16.msra.mxu0 %v6219
        %6295 = vmatprep.subr.bf16.mxu0 0
        %6296 = vmatpush1.bf16.msra.mxu0 0
        %6297 = vmatprep.subr.bf16.mxu0 0
        %6298 = vmatpush1.bf16.msra.mxu0 0
        %6299 = vmatprep.subr.bf16.mxu0 0
        %6300 = vmatpush1.bf16.msra.mxu0 0
        %6301 = vmatprep.subr.bf16.mxu0 0
        %6302 = vmatpush1.bf16.msra.mxu0 0
        %6303 = vmatprep.subr.bf16.mxu0 0
        %6304 = vmatpush1.bf16.msra.mxu0 0
        %6305 = vmatprep.subr.bf16.mxu0 0
        %6306 = vmatpush1.bf16.msra.mxu0 0
        %6307 = vmatprep.subr.bf16.mxu0 0
        %6308 = vmatpush1.bf16.msra.mxu0 0
        %6309 = vmatprep.mubr.bf16.mxu0 %v6230
        %6310 = vmatmul.mubr.bf16.gmra.mrb[0].mxu0 %v6038
        %v6311 = vpop.f32.mrb[0].mxu0
        %v6312 = vadd.f32 %v6173, %v6311
        %v6313 = vpop.f32.mrb[0].mxu0
        %v6314 = vpop.f32.mrb[0].mxu0
        %v6315 = vadd.f32 %v6173, %v6314
        %v6316 = vpop.f32.mrb[0].mxu0
        %6317 = vmatprep.mubr.bf16.mxu0 %v6233
        %6318 = vmatmul.mubr.bf16.gmra.mrb[0].mxu0 %v6044
        %v6319 = vpop.f32.mrb[0].mxu0
        %v6320 = vadd.f32 %v6173, %v6319
        %v6321 = vpop.f32.mrb[0].mxu0
        %v6322 = vpop.f32.mrb[0].mxu0
        %v6323 = vadd.f32 %v6173, %v6322
        %v6324 = vpop.f32.mrb[0].mxu0
        %6325 = vmatprep.mubr.bf16.mxu0 %v6236
        %6326 = vmatmul.mubr.bf16.gmra.mrb[0].mxu0 %v6050
        %v6327 = vpop.f32.mrb[0].mxu0
        %v6328 = vadd.f32 %v6173, %v6327
        %v6329 = vpop.f32.mrb[0].mxu0
        %v6330 = vpop.f32.mrb[0].mxu0
        %v6331 = vadd.f32 %v6173, %v6330
        %v6332 = vpop.f32.mrb[0].mxu0
        %6333 = vmatprep.mubr.bf16.mxu0 %v6239
        %6334 = vmatmul.mubr.bf16.gmra.mrb[0].mxu0 %v6056
        %v6335 = vpop.f32.mrb[0].mxu0
        %v6336 = vadd.f32 %v6173, %v6335
        %v6337 = vpop.f32.mrb[0].mxu0
        %v6338 = vpop.f32.mrb[0].mxu0
        %v6339 = vadd.f32 %v6173, %v6338
        %v6340 = vpop.f32.mrb[0].mxu0
        %6341 = vmatprep.mubr.bf16.mxu0 %v6242
        %6342 = vmatmul.mubr.bf16.gmra.mrb[0].mxu0 %v6062
        %v6343 = vpop.f32.mrb[0].mxu0
        %v6344 = vadd.f32 %v6173, %v6343
        %v6345 = vpop.f32.mrb[0].mxu0
        %v6346 = vpop.f32.mrb[0].mxu0
        %v6347 = vadd.f32 %v6173, %v6346
        %v6348 = vpop.f32.mrb[0].mxu0
        %6349 = vmatprep.mubr.bf16.mxu0 %v6245
        %6350 = vmatmul.mubr.bf16.gmra.mrb[0].mxu0 %v6068
        %v6351 = vpop.f32.mrb[0].mxu0
        %v6352 = vadd.f32 %v6173, %v6351
        %v6353 = vpop.f32.mrb[0].mxu0
        %v6354 = vpop.f32.mrb[0].mxu0
        %v6355 = vadd.f32 %v6173, %v6354
        %v6356 = vpop.f32.mrb[0].mxu0
        %6357 = vmatprep.mubr.bf16.mxu0 %v6248
        %6358 = vmatmul.mubr.bf16.gmra.mrb[0].mxu0 %v6074
        %v6359 = vpop.f32.mrb[0].mxu0
        %v6360 = vadd.f32 %v6173, %v6359
        %v6361 = vpop.f32.mrb[0].mxu0
        %v6362 = vpop.f32.mrb[0].mxu0
        %v6363 = vadd.f32 %v6173, %v6362
        %v6364 = vpop.f32.mrb[0].mxu0
        %6365 = vmatprep.mubr.bf16.mxu0 %v6251
        %6366 = vmatmul.mubr.bf16.gmra.mrb[0].mxu0 %v6080
        %v6367 = vpop.f32.mrb[0].mxu0
        %v6368 = vadd.f32 %v6173, %v6367
        %v6369 = vpop.f32.mrb[0].mxu0
        %v6370 = vpop.f32.mrb[0].mxu0
        %v6371 = vadd.f32 %v6173, %v6370
        %v6372 = vpop.f32.mrb[0].mxu0
        %6373 = vmatprep.mubr.bf16.mxu0 %v6254
        %6374 = vmatmul.mubr.bf16.gmra.mrb[0].mxu0 %v6086
        %v6375 = vpop.f32.mrb[0].mxu0
        %v6376 = vadd.f32 %v6173, %v6375
        %v6377 = vpop.f32.mrb[0].mxu0
        %v6378 = vpop.f32.mrb[0].mxu0
        %v6379 = vadd.f32 %v6173, %v6378
        %v6380 = vpop.f32.mrb[0].mxu0
        %6381 = vmatprep.mubr.bf16.mxu0 %v6257
        %6382 = vmatmul.mubr.bf16.gmra.mrb[0].mxu0 %v6092
        %v6383 = vpop.f32.mrb[0].mxu0
        %v6384 = vadd.f32 %v6173, %v6383
        %v6385 = vpop.f32.mrb[0].mxu0
        %v6386 = vpop.f32.mrb[0].mxu0
        %v6387 = vadd.f32 %v6173, %v6386
        %v6388 = vpop.f32.mrb[0].mxu0
        %6389 = vmatprep.mubr.bf16.mxu0 %v6260
        %6390 = vmatmul.mubr.bf16.gmra.mrb[0].mxu0 %v6098
        %v6391 = vpop.f32.mrb[0].mxu0
        %v6392 = vadd.f32 %v6173, %v6391
        %v6393 = vpop.f32.mrb[0].mxu0
        %v6394 = vpop.f32.mrb[0].mxu0
        %v6395 = vadd.f32 %v6173, %v6394
        %v6396 = vpop.f32.mrb[0].mxu0
        %6397 = vmatprep.mubr.bf16.mxu0 %v6263
        %6398 = vmatmul.mubr.bf16.gmra.mrb[0].mxu0 %v6104
        %v6399 = vpop.f32.mrb[0].mxu0
        %v6400 = vadd.f32 %v6173, %v6399
        %v6401 = vpop.f32.mrb[0].mxu0
        %v6402 = vpop.f32.mrb[0].mxu0
        %v6403 = vadd.f32 %v6173, %v6402
        %v6404 = vpop.f32.mrb[0].mxu0
        %6405 = vmatprep.mubr.bf16.mxu0 %v6266
        %6406 = vmatmul.mubr.bf16.gmra.mrb[0].mxu0 %v6110
        %v6407 = vpop.f32.mrb[0].mxu0
        %v6408 = vadd.f32 %v6173, %v6407
        %v6409 = vpop.f32.mrb[0].mxu0
        %v6410 = vpop.f32.mrb[0].mxu0
        %v6411 = vadd.f32 %v6173, %v6410
        %v6412 = vpop.f32.mrb[0].mxu0
        %6413 = vmatprep.mubr.bf16.mxu0 %v6269
        %6414 = vmatmul.mubr.bf16.gmra.mrb[0].mxu0 %v6116
        %v6415 = vpop.f32.mrb[0].mxu0
        %v6416 = vadd.f32 %v6173, %v6415
        %v6417 = vpop.f32.mrb[0].mxu0
        %v6418 = vpop.f32.mrb[0].mxu0
        %v6419 = vadd.f32 %v6173, %v6418
        %v6420 = vpop.f32.mrb[0].mxu0
        %6421 = vmatprep.mubr.bf16.mxu0 %v6272
        %6422 = vmatmul.mubr.bf16.gmra.mrb[0].mxu0 %v6122
        %v6423 = vpop.f32.mrb[0].mxu0
        %v6424 = vadd.f32 %v6173, %v6423
        %v6425 = vpop.f32.mrb[0].mxu0
        %v6426 = vpop.f32.mrb[0].mxu0
        %v6427 = vadd.f32 %v6173, %v6426
        %v6428 = vpop.f32.mrb[0].mxu0
        %6429 = vmatprep.mubr.bf16.mxu0 %v6275
        %6430 = vmatmul.mubr.bf16.gmra.mrb[0].mxu0 %v6128
        %v6431 = vpop.f32.mrb[0].mxu0
        %v6432 = vadd.f32 %v6173, %v6431
        %v6433 = vpop.f32.mrb[0].mxu0
        %v6434 = vpop.f32.mrb[0].mxu0
        %v6435 = vadd.f32 %v6173, %v6434
        %v6436 = vpop.f32.mrb[0].mxu0
        %6437 = vdwg.mxu0
        %v6438 = vmax.f32 %v6312, 0.0
        %v6439 = vmax.f32 %v6315, 0.0
        %v6440 = vmax.f32 %v6320, 0.0
        %v6441 = vmax.f32 %v6323, 0.0
        %v6442 = vmax.f32 %v6328, 0.0
        %v6443 = vmax.f32 %v6331, 0.0
        %v6444 = vmax.f32 %v6336, 0.0
        %v6445 = vmax.f32 %v6339, 0.0
        %v6446 = vmax.f32 %v6344, 0.0
        %v6447 = vmax.f32 %v6347, 0.0
        %v6448 = vmax.f32 %v6352, 0.0
        %v6449 = vmax.f32 %v6355, 0.0
        %v6450 = vmax.f32 %v6360, 0.0
        %v6451 = vmax.f32 %v6363, 0.0
        %v6452 = vmax.f32 %v6368, 0.0
        %v6453 = vmax.f32 %v6371, 0.0
        %v6454 = vmax.f32 %v6376, 0.0
        %v6455 = vmax.f32 %v6379, 0.0
        %v6456 = vmax.f32 %v6384, 0.0
        %v6457 = vmax.f32 %v6387, 0.0
        %v6458 = vmax.f32 %v6392, 0.0
        %v6459 = vmax.f32 %v6395, 0.0
        %v6460 = vmax.f32 %v6400, 0.0
        %v6461 = vmax.f32 %v6403, 0.0
        %v6462 = vmax.f32 %v6408, 0.0
        %v6463 = vmax.f32 %v6411, 0.0
        %v6464 = vmax.f32 %v6416, 0.0
        %v6465 = vmax.f32 %v6419, 0.0
        %v6466 = vmax.f32 %v6424, 0.0
        %v6467 = vmax.f32 %v6427, 0.0
        %v6468 = vmax.f32 %v6432, 0.0
        %v6469 = vmax.f32 %v6435, 0.0
        %v6470 = vpack.c.bf16 %v6439, %v6438
        %v6471 = vpack.c.bf16 %v6441, %v6440
        %v6472 = vpack.c.bf16 %v6443, %v6442
        %v6473 = vpack.c.bf16 %v6445, %v6444
        %v6474 = vpack.c.bf16 %v6447, %v6446
        %v6475 = vpack.c.bf16 %v6449, %v6448
        %v6476 = vpack.c.bf16 %v6451, %v6450
        %v6477 = vpack.c.bf16 %v6453, %v6452
        %v6478 = vpack.c.bf16 %v6455, %v6454
        %v6479 = vpack.c.bf16 %v6457, %v6456
        %v6480 = vpack.c.bf16 %v6459, %v6458
        %v6481 = vpack.c.bf16 %v6461, %v6460
        %v6482 = vpack.c.bf16 %v6463, %v6462
        %v6483 = vpack.c.bf16 %v6465, %v6464
        %v6484 = vpack.c.bf16 %v6467, %v6466
        %v6485 = vpack.c.bf16 %v6469, %v6468
        %6486 = vst [vmem:[#allocation2 + $0x10] sm:$0xff] %v6470
        %6487 = vst [vmem:[#allocation2 + $0x30] sm:$0xff] %v6471
        %6488 = vst [vmem:[#allocation2 + $0x50] sm:$0xff] %v6472
        %6489 = vst [vmem:[#allocation2 + $0x70] sm:$0xff] %v6473
        %6490 = vst [vmem:[#allocation2 + $0x90] sm:$0xff] %v6474
        %6491 = vst [vmem:[#allocation2 + $0xb0] sm:$0xff] %v6475
        %6492 = vst [vmem:[#allocation2 + $0xd0] sm:$0xff] %v6476
        %6493 = vst [vmem:[#allocation2 + $0xf0] sm:$0xff] %v6477
        %6494 = vst [vmem:[#allocation2 + $0x110] sm:$0xff] %v6478
        %6495 = vst [vmem:[#allocation2 + $0x130] sm:$0xff] %v6479
        %6496 = vst [vmem:[#allocation2 + $0x150] sm:$0xff] %v6480
        %6497 = vst [vmem:[#allocation2 + $0x170] sm:$0xff] %v6481
        %6498 = vst [vmem:[#allocation2 + $0x190] sm:$0xff] %v6482
        %6499 = vst [vmem:[#allocation2 + $0x1b0] sm:$0xff] %v6483
        %6500 = vst [vmem:[#allocation2 + $0x1d0] sm:$0xff] %v6484
        %6501 = vst [vmem:[#allocation2 + $0x1f0] sm:$0xff] %v6485
        %s6502 = smul.u32 %s307, 4
        %s6503 = smul.addr %s6502, 4
        %s6504 = scalar_lea.vmem %s301, %s6503
        %v6505 = vld [vmem:[%s6504] sm:$0xf]
        %v6506 = vld [vmem:[%s6504 + $0x4] sm:$0xf]
        %v6507 = vld [vmem:[%s6504 + $0x10] sm:$0xf]
        %v6508 = vld [vmem:[%s6504 + $0x14] sm:$0xf]
        %v6509 = vld [vmem:[%s6504 + $0x20] sm:$0xf]
        %v6510 = vld [vmem:[%s6504 + $0x24] sm:$0xf]
        %v6511 = vld [vmem:[%s6504 + $0x30] sm:$0xf]
        %v6512 = vld [vmem:[%s6504 + $0x34] sm:$0xf]
        %v6513 = vld [vmem:[%s6504 + $0x40] sm:$0xf]
        %v6514 = vld [vmem:[%s6504 + $0x44] sm:$0xf]
        %v6515 = vld [vmem:[%s6504 + $0x50] sm:$0xf]
        %v6516 = vld [vmem:[%s6504 + $0x54] sm:$0xf]
        %v6517 = vld [vmem:[%s6504 + $0x60] sm:$0xf]
        %v6518 = vld [vmem:[%s6504 + $0x64] sm:$0xf]
        %v6519 = vld [vmem:[%s6504 + $0x70] sm:$0xf]
        %v6520 = vld [vmem:[%s6504 + $0x74] sm:$0xf]
        %v6521 = vld [vmem:[%s6504 + $0x80] sm:$0xf]
        %v6522 = vld [vmem:[%s6504 + $0x84] sm:$0xf]
        %v6523 = vld [vmem:[%s6504 + $0x90] sm:$0xf]
        %v6524 = vld [vmem:[%s6504 + $0x94] sm:$0xf]
        %v6525 = vld [vmem:[%s6504 + $0xa0] sm:$0xf]
        %v6526 = vld [vmem:[%s6504 + $0xa4] sm:$0xf]
        %v6527 = vld [vmem:[%s6504 + $0xb0] sm:$0xf]
        %v6528 = vld [vmem:[%s6504 + $0xb4] sm:$0xf]
        %v6529 = vld [vmem:[%s6504 + $0xc0] sm:$0xf]
        %v6530 = vld [vmem:[%s6504 + $0xc4] sm:$0xf]
        %v6531 = vld [vmem:[%s6504 + $0xd0] sm:$0xf]
        %v6532 = vld [vmem:[%s6504 + $0xd4] sm:$0xf]
        %v6533 = vld [vmem:[%s6504 + $0xe0] sm:$0xf]
        %v6534 = vld [vmem:[%s6504 + $0xe4] sm:$0xf]
        %v6535 = vld [vmem:[%s6504 + $0xf0] sm:$0xf]
        %v6536 = vld [vmem:[%s6504 + $0xf4] sm:$0xf]
        %v6537 = vld [vmem:[%s6504] sm:$0x8]
        %v6538 = vld [vmem:[%s6504 + $0x8] sm:$0x7]
        %v6539 = vld [vmem:[%s6504 + $0x10] sm:$0x8]
        %v6540 = vld [vmem:[%s6504 + $0x18] sm:$0x7]
        %v6541 = vld [vmem:[%s6504 + $0x20] sm:$0x8]
        %v6542 = vld [vmem:[%s6504 + $0x28] sm:$0x7]
        %v6543 = vld [vmem:[%s6504 + $0x30] sm:$0x8]
        %v6544 = vld [vmem:[%s6504 + $0x38] sm:$0x7]
        %v6545 = vld [vmem:[%s6504 + $0x40] sm:$0x8]
        %v6546 = vld [vmem:[%s6504 + $0x48] sm:$0x7]
        %v6547 = vld [vmem:[%s6504 + $0x50] sm:$0x8]
        %v6548 = vld [vmem:[%s6504 + $0x58] sm:$0x7]
        %v6549 = vld [vmem:[%s6504 + $0x60] sm:$0x8]
        %v6550 = vld [vmem:[%s6504 + $0x68] sm:$0x7]
        %v6551 = vld [vmem:[%s6504 + $0x70] sm:$0x8]
        %v6552 = vld [vmem:[%s6504 + $0x78] sm:$0x7]
        %v6553 = vld [vmem:[%s6504 + $0x80] sm:$0x8]
        %v6554 = vld [vmem:[%s6504 + $0x88] sm:$0x7]
        %v6555 = vld [vmem:[%s6504 + $0x90] sm:$0x8]
        %v6556 = vld [vmem:[%s6504 + $0x98] sm:$0x7]
        %v6557 = vld [vmem:[%s6504 + $0xa0] sm:$0x8]
        %v6558 = vld [vmem:[%s6504 + $0xa8] sm:$0x7]
        %v6559 = vld [vmem:[%s6504 + $0xb0] sm:$0x8]
        %v6560 = vld [vmem:[%s6504 + $0xb8] sm:$0x7]
        %v6561 = vld [vmem:[%s6504 + $0xc0] sm:$0x8]
        %v6562 = vld [vmem:[%s6504 + $0xc8] sm:$0x7]
        %v6563 = vld [vmem:[%s6504 + $0xd0] sm:$0x8]
        %v6564 = vld [vmem:[%s6504 + $0xd8] sm:$0x7]
        %v6565 = vld [vmem:[%s6504 + $0xe0] sm:$0x8]
        %v6566 = vld [vmem:[%s6504 + $0xe8] sm:$0x7]
        %v6567 = vld [vmem:[%s6504 + $0xf0] sm:$0x8]
        %v6568 = vld [vmem:[%s6504 + $0xf8] sm:$0x7]
        %v6569 = vld [vmem:[%s6504 + $0x4] sm:$0xc]
        %v6570 = vld [vmem:[%s6504 + $0x8] sm:$0xf]
        %v6571 = vld [vmem:[%s6504 + $0xc] sm:$0x3]
        %v6572 = vld [vmem:[%s6504 + $0x14] sm:$0xc]
        %v6573 = vld [vmem:[%s6504 + $0x18] sm:$0xf]
        %v6574 = vld [vmem:[%s6504 + $0x1c] sm:$0x3]
        %v6575 = vld [vmem:[%s6504 + $0x24] sm:$0xc]
        %v6576 = vld [vmem:[%s6504 + $0x28] sm:$0xf]
        %v6577 = vld [vmem:[%s6504 + $0x2c] sm:$0x3]
        %v6578 = vld [vmem:[%s6504 + $0x34] sm:$0xc]
        %v6579 = vld [vmem:[%s6504 + $0x38] sm:$0xf]
        %v6580 = vld [vmem:[%s6504 + $0x3c] sm:$0x3]
        %v6581 = vld [vmem:[%s6504 + $0x44] sm:$0xc]
        %v6582 = vld [vmem:[%s6504 + $0x48] sm:$0xf]
        %v6583 = vld [vmem:[%s6504 + $0x4c] sm:$0x3]
        %v6584 = vld [vmem:[%s6504 + $0x54] sm:$0xc]
        %v6585 = vld [vmem:[%s6504 + $0x58] sm:$0xf]
        %v6586 = vld [vmem:[%s6504 + $0x5c] sm:$0x3]
        %v6587 = vld [vmem:[%s6504 + $0x64] sm:$0xc]
        %v6588 = vld [vmem:[%s6504 + $0x68] sm:$0xf]
        %v6589 = vld [vmem:[%s6504 + $0x6c] sm:$0x3]
        %v6590 = vld [vmem:[%s6504 + $0x74] sm:$0xc]
        %v6591 = vld [vmem:[%s6504 + $0x78] sm:$0xf]
        %v6592 = vld [vmem:[%s6504 + $0x7c] sm:$0x3]
        %v6593 = vld [vmem:[%s6504 + $0x84] sm:$0xc]
        %v6594 = vld [vmem:[%s6504 + $0x88] sm:$0xf]
        %v6595 = vld [vmem:[%s6504 + $0x8c] sm:$0x3]
        %v6596 = vld [vmem:[%s6504 + $0x94] sm:$0xc]
        %v6597 = vld [vmem:[%s6504 + $0x98] sm:$0xf]
        %v6598 = vld [vmem:[%s6504 + $0x9c] sm:$0x3]
        %v6599 = vld [vmem:[%s6504 + $0xa4] sm:$0xc]
        %v6600 = vld [vmem:[%s6504 + $0xa8] sm:$0xf]
        %v6601 = vld [vmem:[%s6504 + $0xac] sm:$0x3]
        %v6602 = vld [vmem:[%s6504 + $0xb4] sm:$0xc]
        %v6603 = vld [vmem:[%s6504 + $0xb8] sm:$0xf]
        %v6604 = vld [vmem:[%s6504 + $0xbc] sm:$0x3]
        %v6605 = vld [vmem:[%s6504 + $0xc4] sm:$0xc]
        %v6606 = vld [vmem:[%s6504 + $0xc8] sm:$0xf]
        %v6607 = vld [vmem:[%s6504 + $0xcc] sm:$0x3]
        %v6608 = vld [vmem:[%s6504 + $0xd4] sm:$0xc]
        %v6609 = vld [vmem:[%s6504 + $0xd8] sm:$0xf]
        %v6610 = vld [vmem:[%s6504 + $0xdc] sm:$0x3]
        %v6611 = vld [vmem:[%s6504 + $0xe4] sm:$0xc]
        %v6612 = vld [vmem:[%s6504 + $0xe8] sm:$0xf]
        %v6613 = vld [vmem:[%s6504 + $0xec] sm:$0x3]
        %v6614 = vld [vmem:[%s6504 + $0xf4] sm:$0xc]
        %v6615 = vld [vmem:[%s6504 + $0xf8] sm:$0xf]
        %v6616 = vld [vmem:[%s6504 + $0xfc] sm:$0x3]
        %v6617 = vld [vmem:[%s311] sm:$0xf]
        %v6618 = vld [vmem:[%s311 + $0x4] sm:$0xf]
        %v6619 = vld [vmem:[%s311 + $0x10] sm:$0xf]
        %v6620 = vld [vmem:[%s311 + $0x14] sm:$0xf]
        %v6621 = vld [vmem:[%s311 + $0x20] sm:$0xf]
        %v6622 = vld [vmem:[%s311 + $0x24] sm:$0xf]
        %v6623 = vld [vmem:[%s311 + $0x30] sm:$0xf]
        %v6624 = vld [vmem:[%s311 + $0x34] sm:$0xf]
        %v6625 = vld [vmem:[%s311 + $0x40] sm:$0xf]
        %v6626 = vld [vmem:[%s311 + $0x44] sm:$0xf]
        %v6627 = vld [vmem:[%s311 + $0x50] sm:$0xf]
        %v6628 = vld [vmem:[%s311 + $0x54] sm:$0xf]
        %v6629 = vld [vmem:[%s311 + $0x60] sm:$0xf]
        %v6630 = vld [vmem:[%s311 + $0x64] sm:$0xf]
        %v6631 = vld [vmem:[%s311 + $0x70] sm:$0xf]
        %v6632 = vld [vmem:[%s311 + $0x74] sm:$0xf]
        %v6633 = vld [vmem:[%s311 + $0x80] sm:$0xf]
        %v6634 = vld [vmem:[%s311 + $0x84] sm:$0xf]
        %v6635 = vld [vmem:[%s311 + $0x90] sm:$0xf]
        %v6636 = vld [vmem:[%s311 + $0x94] sm:$0xf]
        %v6637 = vld [vmem:[%s311 + $0xa0] sm:$0xf]
        %v6638 = vld [vmem:[%s311 + $0xa4] sm:$0xf]
        %v6639 = vld [vmem:[%s311 + $0xb0] sm:$0xf]
        %v6640 = vld [vmem:[%s311 + $0xb4] sm:$0xf]
        %v6641 = vld [vmem:[%s311 + $0xc0] sm:$0xf]
        %v6642 = vld [vmem:[%s311 + $0xc4] sm:$0xf]
        %v6643 = vld [vmem:[%s311 + $0xd0] sm:$0xf]
        %v6644 = vld [vmem:[%s311 + $0xd4] sm:$0xf]
        %v6645 = vld [vmem:[%s311 + $0xe0] sm:$0xf]
        %v6646 = vld [vmem:[%s311 + $0xe4] sm:$0xf]
        %v6647 = vld [vmem:[%s311 + $0xf0] sm:$0xf]
        %v6648 = vld [vmem:[%s311 + $0xf4] sm:$0xf]
        %v6649 = vld [vmem:[%s311] sm:$0x8]
        %v6650 = vld [vmem:[%s311 + $0x8] sm:$0x7]
        %v6651 = vld [vmem:[%s311 + $0x10] sm:$0x8]
        %v6652 = vld [vmem:[%s311 + $0x18] sm:$0x7]
        %v6653 = vld [vmem:[%s311 + $0x20] sm:$0x8]
        %v6654 = vld [vmem:[%s311 + $0x28] sm:$0x7]
        %v6655 = vld [vmem:[%s311 + $0x30] sm:$0x8]
        %v6656 = vld [vmem:[%s311 + $0x38] sm:$0x7]
        %v6657 = vld [vmem:[%s311 + $0x40] sm:$0x8]
        %v6658 = vld [vmem:[%s311 + $0x48] sm:$0x7]
        %v6659 = vld [vmem:[%s311 + $0x50] sm:$0x8]
        %v6660 = vld [vmem:[%s311 + $0x58] sm:$0x7]
        %v6661 = vld [vmem:[%s311 + $0x60] sm:$0x8]
        %v6662 = vld [vmem:[%s311 + $0x68] sm:$0x7]
        %v6663 = vld [vmem:[%s311 + $0x70] sm:$0x8]
        %v6664 = vld [vmem:[%s311 + $0x78] sm:$0x7]
        %v6665 = vld [vmem:[%s311 + $0x80] sm:$0x8]
        %v6666 = vld [vmem:[%s311 + $0x88] sm:$0x7]
        %v6667 = vld [vmem:[%s311 + $0x90] sm:$0x8]
        %v6668 = vld [vmem:[%s311 + $0x98] sm:$0x7]
        %v6669 = vld [vmem:[%s311 + $0xa0] sm:$0x8]
        %v6670 = vld [vmem:[%s311 + $0xa8] sm:$0x7]
        %v6671 = vld [vmem:[%s311 + $0xb0] sm:$0x8]
        %v6672 = vld [vmem:[%s311 + $0xb8] sm:$0x7]
        %v6673 = vld [vmem:[%s311 + $0xc0] sm:$0x8]
        %v6674 = vld [vmem:[%s311 + $0xc8] sm:$0x7]
        %v6675 = vld [vmem:[%s311 + $0xd0] sm:$0x8]
        %v6676 = vld [vmem:[%s311 + $0xd8] sm:$0x7]
        %v6677 = vld [vmem:[%s311 + $0xe0] sm:$0x8]
        %v6678 = vld [vmem:[%s311 + $0xe8] sm:$0x7]
        %v6679 = vld [vmem:[%s311 + $0xf0] sm:$0x8]
        %v6680 = vld [vmem:[%s311 + $0xf8] sm:$0x7]
        %v6681 = vld [vmem:[%s311 + $0x4] sm:$0xc]
        %v6682 = vld [vmem:[%s311 + $0x8] sm:$0xf]
        %v6683 = vld [vmem:[%s311 + $0xc] sm:$0x3]
        %v6684 = vld [vmem:[%s311 + $0x14] sm:$0xc]
        %v6685 = vld [vmem:[%s311 + $0x18] sm:$0xf]
        %v6686 = vld [vmem:[%s311 + $0x1c] sm:$0x3]
        %v6687 = vld [vmem:[%s311 + $0x24] sm:$0xc]
        %v6688 = vld [vmem:[%s311 + $0x28] sm:$0xf]
        %v6689 = vld [vmem:[%s311 + $0x2c] sm:$0x3]
        %v6690 = vld [vmem:[%s311 + $0x34] sm:$0xc]
        %v6691 = vld [vmem:[%s311 + $0x38] sm:$0xf]
        %v6692 = vld [vmem:[%s311 + $0x3c] sm:$0x3]
        %v6693 = vld [vmem:[%s311 + $0x44] sm:$0xc]
        %v6694 = vld [vmem:[%s311 + $0x48] sm:$0xf]
        %v6695 = vld [vmem:[%s311 + $0x4c] sm:$0x3]
        %v6696 = vld [vmem:[%s311 + $0x54] sm:$0xc]
        %v6697 = vld [vmem:[%s311 + $0x58] sm:$0xf]
        %v6698 = vld [vmem:[%s311 + $0x5c] sm:$0x3]
        %v6699 = vld [vmem:[%s311 + $0x64] sm:$0xc]
        %v6700 = vld [vmem:[%s311 + $0x68] sm:$0xf]
        %v6701 = vld [vmem:[%s311 + $0x6c] sm:$0x3]
        %v6702 = vld [vmem:[%s311 + $0x74] sm:$0xc]
        %v6703 = vld [vmem:[%s311 + $0x78] sm:$0xf]
        %v6704 = vld [vmem:[%s311 + $0x7c] sm:$0x3]
        %v6705 = vld [vmem:[%s311 + $0x84] sm:$0xc]
        %v6706 = vld [vmem:[%s311 + $0x88] sm:$0xf]
        %v6707 = vld [vmem:[%s311 + $0x8c] sm:$0x3]
        %v6708 = vld [vmem:[%s311 + $0x94] sm:$0xc]
        %v6709 = vld [vmem:[%s311 + $0x98] sm:$0xf]
        %v6710 = vld [vmem:[%s311 + $0x9c] sm:$0x3]
        %v6711 = vld [vmem:[%s311 + $0xa4] sm:$0xc]
        %v6712 = vld [vmem:[%s311 + $0xa8] sm:$0xf]
        %v6713 = vld [vmem:[%s311 + $0xac] sm:$0x3]
        %v6714 = vld [vmem:[%s311 + $0xb4] sm:$0xc]
        %v6715 = vld [vmem:[%s311 + $0xb8] sm:$0xf]
        %v6716 = vld [vmem:[%s311 + $0xbc] sm:$0x3]
        %v6717 = vld [vmem:[%s311 + $0xc4] sm:$0xc]
        %v6718 = vld [vmem:[%s311 + $0xc8] sm:$0xf]
        %v6719 = vld [vmem:[%s311 + $0xcc] sm:$0x3]
        %v6720 = vld [vmem:[%s311 + $0xd4] sm:$0xc]
        %v6721 = vld [vmem:[%s311 + $0xd8] sm:$0xf]
        %v6722 = vld [vmem:[%s311 + $0xdc] sm:$0x3]
        %v6723 = vld [vmem:[%s311 + $0xe4] sm:$0xc]
        %v6724 = vld [vmem:[%s311 + $0xe8] sm:$0xf]
        %v6725 = vld [vmem:[%s311 + $0xec] sm:$0x3]
        %v6726 = vld [vmem:[%s311 + $0xf4] sm:$0xc]
        %v6727 = vld [vmem:[%s311 + $0xf8] sm:$0xf]
        %v6728 = vld [vmem:[%s311 + $0xfc] sm:$0x3]
        %s6729 = sadd.s32 %s307, 12
        %s6730 = smul.u32 %s6729, 4
        %s6731 = smul.addr %s6730, 4
        %s6732 = scalar_lea.vmem %s301, %s6731
        %v6733 = vld [vmem:[%s6732] sm:$0xf]
        %v6734 = vld [vmem:[%s6732 + $0x4] sm:$0xf]
        %v6735 = vld [vmem:[%s6732 + $0x10] sm:$0xf]
        %v6736 = vld [vmem:[%s6732 + $0x14] sm:$0xf]
        %v6737 = vld [vmem:[%s6732 + $0x20] sm:$0xf]
        %v6738 = vld [vmem:[%s6732 + $0x24] sm:$0xf]
        %v6739 = vld [vmem:[%s6732 + $0x30] sm:$0xf]
        %v6740 = vld [vmem:[%s6732 + $0x34] sm:$0xf]
        %v6741 = vld [vmem:[%s6732 + $0x40] sm:$0xf]
        %v6742 = vld [vmem:[%s6732 + $0x44] sm:$0xf]
        %v6743 = vld [vmem:[%s6732 + $0x50] sm:$0xf]
        %v6744 = vld [vmem:[%s6732 + $0x54] sm:$0xf]
        %v6745 = vld [vmem:[%s6732 + $0x60] sm:$0xf]
        %v6746 = vld [vmem:[%s6732 + $0x64] sm:$0xf]
        %v6747 = vld [vmem:[%s6732 + $0x70] sm:$0xf]
        %v6748 = vld [vmem:[%s6732 + $0x74] sm:$0xf]
        %v6749 = vld [vmem:[%s6732 + $0x80] sm:$0xf]
        %v6750 = vld [vmem:[%s6732 + $0x84] sm:$0xf]
        %v6751 = vld [vmem:[%s6732 + $0x90] sm:$0xf]
        %v6752 = vld [vmem:[%s6732 + $0x94] sm:$0xf]
        %v6753 = vld [vmem:[%s6732 + $0xa0] sm:$0xf]
        %v6754 = vld [vmem:[%s6732 + $0xa4] sm:$0xf]
        %v6755 = vld [vmem:[%s6732 + $0xb0] sm:$0xf]
        %v6756 = vld [vmem:[%s6732 + $0xb4] sm:$0xf]
        %v6757 = vld [vmem:[%s6732 + $0xc0] sm:$0xf]
        %v6758 = vld [vmem:[%s6732 + $0xc4] sm:$0xf]
        %v6759 = vld [vmem:[%s6732 + $0xd0] sm:$0xf]
        %v6760 = vld [vmem:[%s6732 + $0xd4] sm:$0xf]
        %v6761 = vld [vmem:[%s6732 + $0xe0] sm:$0xf]
        %v6762 = vld [vmem:[%s6732 + $0xe4] sm:$0xf]
        %v6763 = vld [vmem:[%s6732 + $0xf0] sm:$0xf]
        %v6764 = vld [vmem:[%s6732 + $0xf4] sm:$0xf]
        %v6765 = vld [vmem:[%s6732] sm:$0x8]
        %v6766 = vld [vmem:[%s6732 + $0x8] sm:$0x7]
        %v6767 = vld [vmem:[%s6732 + $0x10] sm:$0x8]
        %v6768 = vld [vmem:[%s6732 + $0x18] sm:$0x7]
        %v6769 = vld [vmem:[%s6732 + $0x20] sm:$0x8]
        %v6770 = vld [vmem:[%s6732 + $0x28] sm:$0x7]
        %v6771 = vld [vmem:[%s6732 + $0x30] sm:$0x8]
        %v6772 = vld [vmem:[%s6732 + $0x38] sm:$0x7]
        %v6773 = vld [vmem:[%s6732 + $0x40] sm:$0x8]
        %v6774 = vld [vmem:[%s6732 + $0x48] sm:$0x7]
        %v6775 = vld [vmem:[%s6732 + $0x50] sm:$0x8]
        %v6776 = vld [vmem:[%s6732 + $0x58] sm:$0x7]
        %v6777 = vld [vmem:[%s6732 + $0x60] sm:$0x8]
        %v6778 = vld [vmem:[%s6732 + $0x68] sm:$0x7]
        %v6779 = vld [vmem:[%s6732 + $0x70] sm:$0x8]
        %v6780 = vld [vmem:[%s6732 + $0x78] sm:$0x7]
        %v6781 = vld [vmem:[%s6732 + $0x80] sm:$0x8]
        %v6782 = vld [vmem:[%s6732 + $0x88] sm:$0x7]
        %v6783 = vld [vmem:[%s6732 + $0x90] sm:$0x8]
        %v6784 = vld [vmem:[%s6732 + $0x98] sm:$0x7]
        %v6785 = vld [vmem:[%s6732 + $0xa0] sm:$0x8]
        %v6786 = vld [vmem:[%s6732 + $0xa8] sm:$0x7]
        %v6787 = vld [vmem:[%s6732 + $0xb0] sm:$0x8]
        %v6788 = vld [vmem:[%s6732 + $0xb8] sm:$0x7]
        %v6789 = vld [vmem:[%s6732 + $0xc0] sm:$0x8]
        %v6790 = vld [vmem:[%s6732 + $0xc8] sm:$0x7]
        %v6791 = vld [vmem:[%s6732 + $0xd0] sm:$0x8]
        %v6792 = vld [vmem:[%s6732 + $0xd8] sm:$0x7]
        %v6793 = vld [vmem:[%s6732 + $0xe0] sm:$0x8]
        %v6794 = vld [vmem:[%s6732 + $0xe8] sm:$0x7]
        %v6795 = vld [vmem:[%s6732 + $0xf0] sm:$0x8]
        %v6796 = vld [vmem:[%s6732 + $0xf8] sm:$0x7]
        %v6797 = vld [vmem:[%s6732 + $0x4] sm:$0xc]
        %v6798 = vld [vmem:[%s6732 + $0x8] sm:$0xf]
        %v6799 = vld [vmem:[%s6732 + $0xc] sm:$0x3]
        %v6800 = vld [vmem:[%s6732 + $0x14] sm:$0xc]
        %v6801 = vld [vmem:[%s6732 + $0x18] sm:$0xf]
        %v6802 = vld [vmem:[%s6732 + $0x1c] sm:$0x3]
        %v6803 = vld [vmem:[%s6732 + $0x24] sm:$0xc]
        %v6804 = vld [vmem:[%s6732 + $0x28] sm:$0xf]
        %v6805 = vld [vmem:[%s6732 + $0x2c] sm:$0x3]
        %v6806 = vld [vmem:[%s6732 + $0x34] sm:$0xc]
        %v6807 = vld [vmem:[%s6732 + $0x38] sm:$0xf]
        %v6808 = vld [vmem:[%s6732 + $0x3c] sm:$0x3]
        %v6809 = vld [vmem:[%s6732 + $0x44] sm:$0xc]
        %v6810 = vld [vmem:[%s6732 + $0x48] sm:$0xf]
        %v6811 = vld [vmem:[%s6732 + $0x4c] sm:$0x3]
        %v6812 = vld [vmem:[%s6732 + $0x54] sm:$0xc]
        %v6813 = vld [vmem:[%s6732 + $0x58] sm:$0xf]
        %v6814 = vld [vmem:[%s6732 + $0x5c] sm:$0x3]
        %v6815 = vld [vmem:[%s6732 + $0x64] sm:$0xc]
        %v6816 = vld [vmem:[%s6732 + $0x68] sm:$0xf]
        %v6817 = vld [vmem:[%s6732 + $0x6c] sm:$0x3]
        %v6818 = vld [vmem:[%s6732 + $0x74] sm:$0xc]
        %v6819 = vld [vmem:[%s6732 + $0x78] sm:$0xf]
        %v6820 = vld [vmem:[%s6732 + $0x7c] sm:$0x3]
        %v6821 = vld [vmem:[%s6732 + $0x84] sm:$0xc]
        %v6822 = vld [vmem:[%s6732 + $0x88] sm:$0xf]
        %v6823 = vld [vmem:[%s6732 + $0x8c] sm:$0x3]
        %v6824 = vld [vmem:[%s6732 + $0x94] sm:$0xc]
        %v6825 = vld [vmem:[%s6732 + $0x98] sm:$0xf]
        %v6826 = vld [vmem:[%s6732 + $0x9c] sm:$0x3]
        %v6827 = vld [vmem:[%s6732 + $0xa4] sm:$0xc]
        %v6828 = vld [vmem:[%s6732 + $0xa8] sm:$0xf]
        %v6829 = vld [vmem:[%s6732 + $0xac] sm:$0x3]
        %v6830 = vld [vmem:[%s6732 + $0xb4] sm:$0xc]
        %v6831 = vld [vmem:[%s6732 + $0xb8] sm:$0xf]
        %v6832 = vld [vmem:[%s6732 + $0xbc] sm:$0x3]
        %v6833 = vld [vmem:[%s6732 + $0xc4] sm:$0xc]
        %v6834 = vld [vmem:[%s6732 + $0xc8] sm:$0xf]
        %v6835 = vld [vmem:[%s6732 + $0xcc] sm:$0x3]
        %v6836 = vld [vmem:[%s6732 + $0xd4] sm:$0xc]
        %v6837 = vld [vmem:[%s6732 + $0xd8] sm:$0xf]
        %v6838 = vld [vmem:[%s6732 + $0xdc] sm:$0x3]
        %v6839 = vld [vmem:[%s6732 + $0xe4] sm:$0xc]
        %v6840 = vld [vmem:[%s6732 + $0xe8] sm:$0xf]
        %v6841 = vld [vmem:[%s6732 + $0xec] sm:$0x3]
        %v6842 = vld [vmem:[%s6732 + $0xf4] sm:$0xc]
        %v6843 = vld [vmem:[%s6732 + $0xf8] sm:$0xf]
        %v6844 = vld [vmem:[%s6732 + $0xfc] sm:$0x3]
        %v6877 = vunpack.c.l.b16 %v6505
        %v6878 = vunpack.c.l.b16 %v6506
        %v6879 = vunpack.c.l.b16 %v6507
        %v6880 = vunpack.c.l.b16 %v6508
        %v6881 = vunpack.c.l.b16 %v6509
        %v6882 = vunpack.c.l.b16 %v6510
        %v6883 = vunpack.c.l.b16 %v6511
        %v6884 = vunpack.c.l.b16 %v6512
        %v6885 = vunpack.c.l.b16 %v6513
        %v6886 = vunpack.c.l.b16 %v6514
        %v6887 = vunpack.c.l.b16 %v6515
        %v6888 = vunpack.c.l.b16 %v6516
        %v6889 = vunpack.c.l.b16 %v6517
        %v6890 = vunpack.c.l.b16 %v6518
        %v6891 = vunpack.c.l.b16 %v6519
        %v6892 = vunpack.c.l.b16 %v6520
        %v6893 = vunpack.c.l.b16 %v6521
        %v6894 = vunpack.c.l.b16 %v6522
        %v6895 = vunpack.c.l.b16 %v6523
        %v6896 = vunpack.c.l.b16 %v6524
        %v6897 = vunpack.c.l.b16 %v6525
        %v6898 = vunpack.c.l.b16 %v6526
        %v6899 = vunpack.c.l.b16 %v6527
        %v6900 = vunpack.c.l.b16 %v6528
        %v6901 = vunpack.c.l.b16 %v6529
        %v6902 = vunpack.c.l.b16 %v6530
        %v6903 = vunpack.c.l.b16 %v6531
        %v6904 = vunpack.c.l.b16 %v6532
        %v6905 = vunpack.c.l.b16 %v6533
        %v6906 = vunpack.c.l.b16 %v6534
        %v6907 = vunpack.c.l.b16 %v6535
        %v6908 = vunpack.c.l.b16 %v6536
        %v6909 = vpack.c.b16 %v6878, %v6877
        %v6910 = vpack.c.b16 %v6880, %v6879
        %v6911 = vpack.c.b16 %v6882, %v6881
        %v6912 = vpack.c.b16 %v6884, %v6883
        %v6913 = vpack.c.b16 %v6886, %v6885
        %v6914 = vpack.c.b16 %v6888, %v6887
        %v6915 = vpack.c.b16 %v6890, %v6889
        %v6916 = vpack.c.b16 %v6892, %v6891
        %v6917 = vpack.c.b16 %v6894, %v6893
        %v6918 = vpack.c.b16 %v6896, %v6895
        %v6919 = vpack.c.b16 %v6898, %v6897
        %v6920 = vpack.c.b16 %v6900, %v6899
        %v6921 = vpack.c.b16 %v6902, %v6901
        %v6922 = vpack.c.b16 %v6904, %v6903
        %v6923 = vpack.c.b16 %v6906, %v6905
        %v6924 = vpack.c.b16 %v6908, %v6907
        %v6957 = vunpack.c.l.b16 %v6537
        %v6958 = vunpack.c.l.b16 %v6538
        %v6959 = vunpack.c.l.b16 %v6539
        %v6960 = vunpack.c.l.b16 %v6540
        %v6961 = vunpack.c.l.b16 %v6541
        %v6962 = vunpack.c.l.b16 %v6542
        %v6963 = vunpack.c.l.b16 %v6543
        %v6964 = vunpack.c.l.b16 %v6544
        %v6965 = vunpack.c.l.b16 %v6545
        %v6966 = vunpack.c.l.b16 %v6546
        %v6967 = vunpack.c.l.b16 %v6547
        %v6968 = vunpack.c.l.b16 %v6548
        %v6969 = vunpack.c.l.b16 %v6549
        %v6970 = vunpack.c.l.b16 %v6550
        %v6971 = vunpack.c.l.b16 %v6551
        %v6972 = vunpack.c.l.b16 %v6552
        %v6973 = vunpack.c.l.b16 %v6553
        %v6974 = vunpack.c.l.b16 %v6554
        %v6975 = vunpack.c.l.b16 %v6555
        %v6976 = vunpack.c.l.b16 %v6556
        %v6977 = vunpack.c.l.b16 %v6557
        %v6978 = vunpack.c.l.b16 %v6558
        %v6979 = vunpack.c.l.b16 %v6559
        %v6980 = vunpack.c.l.b16 %v6560
        %v6981 = vunpack.c.l.b16 %v6561
        %v6982 = vunpack.c.l.b16 %v6562
        %v6983 = vunpack.c.l.b16 %v6563
        %v6984 = vunpack.c.l.b16 %v6564
        %v6985 = vunpack.c.l.b16 %v6565
        %v6986 = vunpack.c.l.b16 %v6566
        %v6987 = vunpack.c.l.b16 %v6567
        %v6988 = vunpack.c.l.b16 %v6568
        %v6989 = vpack.c.b16 %v6878, %v6957
        %v6990 = vpack.c.b16 %v6958, %v6958
        %v6991 = vpack.c.b16 %v6880, %v6959
        %v6992 = vpack.c.b16 %v6960, %v6960
        %v6993 = vpack.c.b16 %v6882, %v6961
        %v6994 = vpack.c.b16 %v6962, %v6962
        %v6995 = vpack.c.b16 %v6884, %v6963
        %v6996 = vpack.c.b16 %v6964, %v6964
        %v6997 = vpack.c.b16 %v6886, %v6965
        %v6998 = vpack.c.b16 %v6966, %v6966
        %v6999 = vpack.c.b16 %v6888, %v6967
        %v7000 = vpack.c.b16 %v6968, %v6968
        %v7001 = vpack.c.b16 %v6890, %v6969
        %v7002 = vpack.c.b16 %v6970, %v6970
        %v7003 = vpack.c.b16 %v6892, %v6971
        %v7004 = vpack.c.b16 %v6972, %v6972
        %v7005 = vpack.c.b16 %v6894, %v6973
        %v7006 = vpack.c.b16 %v6974, %v6974
        %v7007 = vpack.c.b16 %v6896, %v6975
        %v7008 = vpack.c.b16 %v6976, %v6976
        %v7009 = vpack.c.b16 %v6898, %v6977
        %v7010 = vpack.c.b16 %v6978, %v6978
        %v7011 = vpack.c.b16 %v6900, %v6979
        %v7012 = vpack.c.b16 %v6980, %v6980
        %v7013 = vpack.c.b16 %v6902, %v6981
        %v7014 = vpack.c.b16 %v6982, %v6982
        %v7015 = vpack.c.b16 %v6904, %v6983
        %v7016 = vpack.c.b16 %v6984, %v6984
        %v7017 = vpack.c.b16 %v6906, %v6985
        %v7018 = vpack.c.b16 %v6986, %v6986
        %v7019 = vpack.c.b16 %v6908, %v6987
        %v7020 = vpack.c.b16 %v6988, %v6988
        %vm7021 = vcmask 1044480
        %v7022 = vrot.slane %v6989, 3
        %v7023 = vrot.slane %v6990, 3
        %v7024 = vsel %vm7021, %v7022, %v7023
        %v7025 = vrot.slane %v6991, 3
        %v7026 = vrot.slane %v6992, 3
        %v7027 = vsel %vm7021, %v7025, %v7026
        %v7028 = vrot.slane %v6993, 3
        %v7029 = vrot.slane %v6994, 3
        %v7030 = vsel %vm7021, %v7028, %v7029
        %v7031 = vrot.slane %v6995, 3
        %v7032 = vrot.slane %v6996, 3
        %v7033 = vsel %vm7021, %v7031, %v7032
        %v7034 = vrot.slane %v6997, 3
        %v7035 = vrot.slane %v6998, 3
        %v7036 = vsel %vm7021, %v7034, %v7035
        %v7037 = vrot.slane %v6999, 3
        %v7038 = vrot.slane %v7000, 3
        %v7039 = vsel %vm7021, %v7037, %v7038
        %v7040 = vrot.slane %v7001, 3
        %v7041 = vrot.slane %v7002, 3
        %v7042 = vsel %vm7021, %v7040, %v7041
        %v7043 = vrot.slane %v7003, 3
        %v7044 = vrot.slane %v7004, 3
        %v7045 = vsel %vm7021, %v7043, %v7044
        %v7046 = vrot.slane %v7005, 3
        %v7047 = vrot.slane %v7006, 3
        %v7048 = vsel %vm7021, %v7046, %v7047
        %v7049 = vrot.slane %v7007, 3
        %v7050 = vrot.slane %v7008, 3
        %v7051 = vsel %vm7021, %v7049, %v7050
        %v7052 = vrot.slane %v7009, 3
        %v7053 = vrot.slane %v7010, 3
        %v7054 = vsel %vm7021, %v7052, %v7053
        %v7055 = vrot.slane %v7011, 3
        %v7056 = vrot.slane %v7012, 3
        %v7057 = vsel %vm7021, %v7055, %v7056
        %v7058 = vrot.slane %v7013, 3
        %v7059 = vrot.slane %v7014, 3
        %v7060 = vsel %vm7021, %v7058, %v7059
        %v7061 = vrot.slane %v7015, 3
        %v7062 = vrot.slane %v7016, 3
        %v7063 = vsel %vm7021, %v7061, %v7062
        %v7064 = vrot.slane %v7017, 3
        %v7065 = vrot.slane %v7018, 3
        %v7066 = vsel %vm7021, %v7064, %v7065
        %v7067 = vrot.slane %v7019, 3
        %v7068 = vrot.slane %v7020, 3
        %v7069 = vsel %vm7021, %v7067, %v7068
        %7070 = vrot.lane.b32.xlu0 %v7024, 16
        %v7071 = vpop.permute.xlu0 %7070
        %7072 = vrot.lane.b32.xlu0 %v7027, 16
        %v7073 = vpop.permute.xlu0 %7072
        %7074 = vrot.lane.b32.xlu0 %v7030, 16
        %v7075 = vpop.permute.xlu0 %7074
        %7076 = vrot.lane.b32.xlu0 %v7033, 16
        %v7077 = vpop.permute.xlu0 %7076
        %7078 = vrot.lane.b32.xlu0 %v7036, 16
        %v7079 = vpop.permute.xlu0 %7078
        %7080 = vrot.lane.b32.xlu0 %v7039, 16
        %v7081 = vpop.permute.xlu0 %7080
        %7082 = vrot.lane.b32.xlu0 %v7042, 16
        %v7083 = vpop.permute.xlu0 %7082
        %7084 = vrot.lane.b32.xlu0 %v7045, 16
        %v7085 = vpop.permute.xlu0 %7084
        %7086 = vrot.lane.b32.xlu0 %v7048, 16
        %v7087 = vpop.permute.xlu0 %7086
        %7088 = vrot.lane.b32.xlu0 %v7051, 16
        %v7089 = vpop.permute.xlu0 %7088
        %7090 = vrot.lane.b32.xlu0 %v7054, 16
        %v7091 = vpop.permute.xlu0 %7090
        %7092 = vrot.lane.b32.xlu0 %v7057, 16
        %v7093 = vpop.permute.xlu0 %7092
        %7094 = vrot.lane.b32.xlu0 %v7060, 16
        %v7095 = vpop.permute.xlu0 %7094
        %7096 = vrot.lane.b32.xlu0 %v7063, 16
        %v7097 = vpop.permute.xlu0 %7096
        %7098 = vrot.lane.b32.xlu0 %v7066, 16
        %v7099 = vpop.permute.xlu0 %7098
        %7100 = vrot.lane.b32.xlu0 %v7069, 16
        %v7101 = vpop.permute.xlu0 %7100
        %v7150 = vunpack.c.l.b16 %v6569
        %v7151 = vunpack.c.l.b16 %v6570
        %v7152 = vunpack.c.l.b16 %v6571
        %v7153 = vunpack.c.l.b16 %v6572
        %v7154 = vunpack.c.l.b16 %v6573
        %v7155 = vunpack.c.l.b16 %v6574
        %v7156 = vunpack.c.l.b16 %v6575
        %v7157 = vunpack.c.l.b16 %v6576
        %v7158 = vunpack.c.l.b16 %v6577
        %v7159 = vunpack.c.l.b16 %v6578
        %v7160 = vunpack.c.l.b16 %v6579
        %v7161 = vunpack.c.l.b16 %v6580
        %v7162 = vunpack.c.l.b16 %v6581
        %v7163 = vunpack.c.l.b16 %v6582
        %v7164 = vunpack.c.l.b16 %v6583
        %v7165 = vunpack.c.l.b16 %v6584
        %v7166 = vunpack.c.l.b16 %v6585
        %v7167 = vunpack.c.l.b16 %v6586
        %v7168 = vunpack.c.l.b16 %v6587
        %v7169 = vunpack.c.l.b16 %v6588
        %v7170 = vunpack.c.l.b16 %v6589
        %v7171 = vunpack.c.l.b16 %v6590
        %v7172 = vunpack.c.l.b16 %v6591
        %v7173 = vunpack.c.l.b16 %v6592
        %v7174 = vunpack.c.l.b16 %v6593
        %v7175 = vunpack.c.l.b16 %v6594
        %v7176 = vunpack.c.l.b16 %v6595
        %v7177 = vunpack.c.l.b16 %v6596
        %v7178 = vunpack.c.l.b16 %v6597
        %v7179 = vunpack.c.l.b16 %v6598
        %v7180 = vunpack.c.l.b16 %v6599
        %v7181 = vunpack.c.l.b16 %v6600
        %v7182 = vunpack.c.l.b16 %v6601
        %v7183 = vunpack.c.l.b16 %v6602
        %v7184 = vunpack.c.l.b16 %v6603
        %v7185 = vunpack.c.l.b16 %v6604
        %v7186 = vunpack.c.l.b16 %v6605
        %v7187 = vunpack.c.l.b16 %v6606
        %v7188 = vunpack.c.l.b16 %v6607
        %v7189 = vunpack.c.l.b16 %v6608
        %v7190 = vunpack.c.l.b16 %v6609
        %v7191 = vunpack.c.l.b16 %v6610
        %v7192 = vunpack.c.l.b16 %v6611
        %v7193 = vunpack.c.l.b16 %v6612
        %v7194 = vunpack.c.l.b16 %v6613
        %v7195 = vunpack.c.l.b16 %v6614
        %v7196 = vunpack.c.l.b16 %v6615
        %v7197 = vunpack.c.l.b16 %v6616
        %v7198 = vpack.c.b16 %v7151, %v7150
        %v7199 = vpack.c.b16 %v7152, %v7152
        %v7200 = vpack.c.b16 %v7154, %v7153
        %v7201 = vpack.c.b16 %v7155, %v7155
        %v7202 = vpack.c.b16 %v7157, %v7156
        %v7203 = vpack.c.b16 %v7158, %v7158
        %v7204 = vpack.c.b16 %v7160, %v7159
        %v7205 = vpack.c.b16 %v7161, %v7161
        %v7206 = vpack.c.b16 %v7163, %v7162
        %v7207 = vpack.c.b16 %v7164, %v7164
        %v7208 = vpack.c.b16 %v7166, %v7165
        %v7209 = vpack.c.b16 %v7167, %v7167
        %v7210 = vpack.c.b16 %v7169, %v7168
        %v7211 = vpack.c.b16 %v7170, %v7170
        %v7212 = vpack.c.b16 %v7172, %v7171
        %v7213 = vpack.c.b16 %v7173, %v7173
        %v7214 = vpack.c.b16 %v7175, %v7174
        %v7215 = vpack.c.b16 %v7176, %v7176
        %v7216 = vpack.c.b16 %v7178, %v7177
        %v7217 = vpack.c.b16 %v7179, %v7179
        %v7218 = vpack.c.b16 %v7181, %v7180
        %v7219 = vpack.c.b16 %v7182, %v7182
        %v7220 = vpack.c.b16 %v7184, %v7183
        %v7221 = vpack.c.b16 %v7185, %v7185
        %v7222 = vpack.c.b16 %v7187, %v7186
        %v7223 = vpack.c.b16 %v7188, %v7188
        %v7224 = vpack.c.b16 %v7190, %v7189
        %v7225 = vpack.c.b16 %v7191, %v7191
        %v7226 = vpack.c.b16 %v7193, %v7192
        %v7227 = vpack.c.b16 %v7194, %v7194
        %v7228 = vpack.c.b16 %v7196, %v7195
        %v7229 = vpack.c.b16 %v7197, %v7197
        %v7230 = vrot.slane %v7198, 2
        %v7231 = vrot.slane %v7199, 2
        %v7232 = vsel %vm3035, %v7230, %v7231
        %v7233 = vrot.slane %v7200, 2
        %v7234 = vrot.slane %v7201, 2
        %v7235 = vsel %vm3035, %v7233, %v7234
        %v7236 = vrot.slane %v7202, 2
        %v7237 = vrot.slane %v7203, 2
        %v7238 = vsel %vm3035, %v7236, %v7237
        %v7239 = vrot.slane %v7204, 2
        %v7240 = vrot.slane %v7205, 2
        %v7241 = vsel %vm3035, %v7239, %v7240
        %v7242 = vrot.slane %v7206, 2
        %v7243 = vrot.slane %v7207, 2
        %v7244 = vsel %vm3035, %v7242, %v7243
        %v7245 = vrot.slane %v7208, 2
        %v7246 = vrot.slane %v7209, 2
        %v7247 = vsel %vm3035, %v7245, %v7246
        %v7248 = vrot.slane %v7210, 2
        %v7249 = vrot.slane %v7211, 2
        %v7250 = vsel %vm3035, %v7248, %v7249
        %v7251 = vrot.slane %v7212, 2
        %v7252 = vrot.slane %v7213, 2
        %v7253 = vsel %vm3035, %v7251, %v7252
        %v7254 = vrot.slane %v7214, 2
        %v7255 = vrot.slane %v7215, 2
        %v7256 = vsel %vm3035, %v7254, %v7255
        %v7257 = vrot.slane %v7216, 2
        %v7258 = vrot.slane %v7217, 2
        %v7259 = vsel %vm3035, %v7257, %v7258
        %v7260 = vrot.slane %v7218, 2
        %v7261 = vrot.slane %v7219, 2
        %v7262 = vsel %vm3035, %v7260, %v7261
        %v7263 = vrot.slane %v7220, 2
        %v7264 = vrot.slane %v7221, 2
        %v7265 = vsel %vm3035, %v7263, %v7264
        %v7266 = vrot.slane %v7222, 2
        %v7267 = vrot.slane %v7223, 2
        %v7268 = vsel %vm3035, %v7266, %v7267
        %v7269 = vrot.slane %v7224, 2
        %v7270 = vrot.slane %v7225, 2
        %v7271 = vsel %vm3035, %v7269, %v7270
        %v7272 = vrot.slane %v7226, 2
        %v7273 = vrot.slane %v7227, 2
        %v7274 = vsel %vm3035, %v7272, %v7273
        %v7275 = vrot.slane %v7228, 2
        %v7276 = vrot.slane %v7229, 2
        %v7277 = vsel %vm3035, %v7275, %v7276
        %7278 = vrot.lane.b32.xlu0 %v7232, 32
        %v7279 = vpop.permute.xlu0 %7278
        %7280 = vrot.lane.b32.xlu0 %v7235, 32
        %v7281 = vpop.permute.xlu0 %7280
        %7282 = vrot.lane.b32.xlu0 %v7238, 32
        %v7283 = vpop.permute.xlu0 %7282
        %7284 = vrot.lane.b32.xlu0 %v7241, 32
        %v7285 = vpop.permute.xlu0 %7284
        %7286 = vrot.lane.b32.xlu0 %v7244, 32
        %v7287 = vpop.permute.xlu0 %7286
        %7288 = vrot.lane.b32.xlu0 %v7247, 32
        %v7289 = vpop.permute.xlu0 %7288
        %7290 = vrot.lane.b32.xlu0 %v7250, 32
        %v7291 = vpop.permute.xlu0 %7290
        %7292 = vrot.lane.b32.xlu0 %v7253, 32
        %v7293 = vpop.permute.xlu0 %7292
        %7294 = vrot.lane.b32.xlu0 %v7256, 32
        %v7295 = vpop.permute.xlu0 %7294
        %7296 = vrot.lane.b32.xlu0 %v7259, 32
        %v7297 = vpop.permute.xlu0 %7296
        %7298 = vrot.lane.b32.xlu0 %v7262, 32
        %v7299 = vpop.permute.xlu0 %7298
        %7300 = vrot.lane.b32.xlu0 %v7265, 32
        %v7301 = vpop.permute.xlu0 %7300
        %7302 = vrot.lane.b32.xlu0 %v7268, 32
        %v7303 = vpop.permute.xlu0 %7302
        %7304 = vrot.lane.b32.xlu0 %v7271, 32
        %v7305 = vpop.permute.xlu0 %7304
        %7306 = vrot.lane.b32.xlu0 %v7274, 32
        %v7307 = vpop.permute.xlu0 %7306
        %7308 = vrot.lane.b32.xlu0 %v7277, 32
        %v7309 = vpop.permute.xlu0 %7308
        %v7342 = vunpack.c.l.b16 %v6617
        %v7343 = vunpack.c.l.b16 %v6618
        %v7344 = vunpack.c.l.b16 %v6619
        %v7345 = vunpack.c.l.b16 %v6620
        %v7346 = vunpack.c.l.b16 %v6621
        %v7347 = vunpack.c.l.b16 %v6622
        %v7348 = vunpack.c.l.b16 %v6623
        %v7349 = vunpack.c.l.b16 %v6624
        %v7350 = vunpack.c.l.b16 %v6625
        %v7351 = vunpack.c.l.b16 %v6626
        %v7352 = vunpack.c.l.b16 %v6627
        %v7353 = vunpack.c.l.b16 %v6628
        %v7354 = vunpack.c.l.b16 %v6629
        %v7355 = vunpack.c.l.b16 %v6630
        %v7356 = vunpack.c.l.b16 %v6631
        %v7357 = vunpack.c.l.b16 %v6632
        %v7358 = vunpack.c.l.b16 %v6633
        %v7359 = vunpack.c.l.b16 %v6634
        %v7360 = vunpack.c.l.b16 %v6635
        %v7361 = vunpack.c.l.b16 %v6636
        %v7362 = vunpack.c.l.b16 %v6637
        %v7363 = vunpack.c.l.b16 %v6638
        %v7364 = vunpack.c.l.b16 %v6639
        %v7365 = vunpack.c.l.b16 %v6640
        %v7366 = vunpack.c.l.b16 %v6641
        %v7367 = vunpack.c.l.b16 %v6642
        %v7368 = vunpack.c.l.b16 %v6643
        %v7369 = vunpack.c.l.b16 %v6644
        %v7370 = vunpack.c.l.b16 %v6645
        %v7371 = vunpack.c.l.b16 %v6646
        %v7372 = vunpack.c.l.b16 %v6647
        %v7373 = vunpack.c.l.b16 %v6648
        %v7374 = vpack.c.b16 %v7343, %v7342
        %v7375 = vpack.c.b16 %v7345, %v7344
        %v7376 = vpack.c.b16 %v7347, %v7346
        %v7377 = vpack.c.b16 %v7349, %v7348
        %v7378 = vpack.c.b16 %v7351, %v7350
        %v7379 = vpack.c.b16 %v7353, %v7352
        %v7380 = vpack.c.b16 %v7355, %v7354
        %v7381 = vpack.c.b16 %v7357, %v7356
        %v7382 = vpack.c.b16 %v7359, %v7358
        %v7383 = vpack.c.b16 %v7361, %v7360
        %v7384 = vpack.c.b16 %v7363, %v7362
        %v7385 = vpack.c.b16 %v7365, %v7364
        %v7386 = vpack.c.b16 %v7367, %v7366
        %v7387 = vpack.c.b16 %v7369, %v7368
        %v7388 = vpack.c.b16 %v7371, %v7370
        %v7389 = vpack.c.b16 %v7373, %v7372
        %7390 = vrot.lane.b32.xlu0 %v7374, 48
        %v7391 = vpop.permute.xlu0 %7390
        %7392 = vrot.lane.b32.xlu0 %v7375, 48
        %v7393 = vpop.permute.xlu0 %7392
        %7394 = vrot.lane.b32.xlu0 %v7376, 48
        %v7395 = vpop.permute.xlu0 %7394
        %7396 = vrot.lane.b32.xlu0 %v7377, 48
        %v7397 = vpop.permute.xlu0 %7396
        %7398 = vrot.lane.b32.xlu0 %v7378, 48
        %v7399 = vpop.permute.xlu0 %7398
        %7400 = vrot.lane.b32.xlu0 %v7379, 48
        %v7401 = vpop.permute.xlu0 %7400
        %7402 = vrot.lane.b32.xlu0 %v7380, 48
        %v7403 = vpop.permute.xlu0 %7402
        %7404 = vrot.lane.b32.xlu0 %v7381, 48
        %v7405 = vpop.permute.xlu0 %7404
        %7406 = vrot.lane.b32.xlu0 %v7382, 48
        %v7407 = vpop.permute.xlu0 %7406
        %7408 = vrot.lane.b32.xlu0 %v7383, 48
        %v7409 = vpop.permute.xlu0 %7408
        %7410 = vrot.lane.b32.xlu0 %v7384, 48
        %v7411 = vpop.permute.xlu0 %7410
        %7412 = vrot.lane.b32.xlu0 %v7385, 48
        %v7413 = vpop.permute.xlu0 %7412
        %7414 = vrot.lane.b32.xlu0 %v7386, 48
        %v7415 = vpop.permute.xlu0 %7414
        %7416 = vrot.lane.b32.xlu0 %v7387, 48
        %v7417 = vpop.permute.xlu0 %7416
        %7418 = vrot.lane.b32.xlu0 %v7388, 48
        %v7419 = vpop.permute.xlu0 %7418
        %7420 = vrot.lane.b32.xlu0 %v7389, 48
        %v7421 = vpop.permute.xlu0 %7420
        %v7454 = vunpack.c.l.b16 %v6649
        %v7455 = vunpack.c.l.b16 %v6650
        %v7456 = vunpack.c.l.b16 %v6651
        %v7457 = vunpack.c.l.b16 %v6652
        %v7458 = vunpack.c.l.b16 %v6653
        %v7459 = vunpack.c.l.b16 %v6654
        %v7460 = vunpack.c.l.b16 %v6655
        %v7461 = vunpack.c.l.b16 %v6656
        %v7462 = vunpack.c.l.b16 %v6657
        %v7463 = vunpack.c.l.b16 %v6658
        %v7464 = vunpack.c.l.b16 %v6659
        %v7465 = vunpack.c.l.b16 %v6660
        %v7466 = vunpack.c.l.b16 %v6661
        %v7467 = vunpack.c.l.b16 %v6662
        %v7468 = vunpack.c.l.b16 %v6663
        %v7469 = vunpack.c.l.b16 %v6664
        %v7470 = vunpack.c.l.b16 %v6665
        %v7471 = vunpack.c.l.b16 %v6666
        %v7472 = vunpack.c.l.b16 %v6667
        %v7473 = vunpack.c.l.b16 %v6668
        %v7474 = vunpack.c.l.b16 %v6669
        %v7475 = vunpack.c.l.b16 %v6670
        %v7476 = vunpack.c.l.b16 %v6671
        %v7477 = vunpack.c.l.b16 %v6672
        %v7478 = vunpack.c.l.b16 %v6673
        %v7479 = vunpack.c.l.b16 %v6674
        %v7480 = vunpack.c.l.b16 %v6675
        %v7481 = vunpack.c.l.b16 %v6676
        %v7482 = vunpack.c.l.b16 %v6677
        %v7483 = vunpack.c.l.b16 %v6678
        %v7484 = vunpack.c.l.b16 %v6679
        %v7485 = vunpack.c.l.b16 %v6680
        %v7486 = vpack.c.b16 %v7343, %v7454
        %v7487 = vpack.c.b16 %v7455, %v7455
        %v7488 = vpack.c.b16 %v7345, %v7456
        %v7489 = vpack.c.b16 %v7457, %v7457
        %v7490 = vpack.c.b16 %v7347, %v7458
        %v7491 = vpack.c.b16 %v7459, %v7459
        %v7492 = vpack.c.b16 %v7349, %v7460
        %v7493 = vpack.c.b16 %v7461, %v7461
        %v7494 = vpack.c.b16 %v7351, %v7462
        %v7495 = vpack.c.b16 %v7463, %v7463
        %v7496 = vpack.c.b16 %v7353, %v7464
        %v7497 = vpack.c.b16 %v7465, %v7465
        %v7498 = vpack.c.b16 %v7355, %v7466
        %v7499 = vpack.c.b16 %v7467, %v7467
        %v7500 = vpack.c.b16 %v7357, %v7468
        %v7501 = vpack.c.b16 %v7469, %v7469
        %v7502 = vpack.c.b16 %v7359, %v7470
        %v7503 = vpack.c.b16 %v7471, %v7471
        %v7504 = vpack.c.b16 %v7361, %v7472
        %v7505 = vpack.c.b16 %v7473, %v7473
        %v7506 = vpack.c.b16 %v7363, %v7474
        %v7507 = vpack.c.b16 %v7475, %v7475
        %v7508 = vpack.c.b16 %v7365, %v7476
        %v7509 = vpack.c.b16 %v7477, %v7477
        %v7510 = vpack.c.b16 %v7367, %v7478
        %v7511 = vpack.c.b16 %v7479, %v7479
        %v7512 = vpack.c.b16 %v7369, %v7480
        %v7513 = vpack.c.b16 %v7481, %v7481
        %v7514 = vpack.c.b16 %v7371, %v7482
        %v7515 = vpack.c.b16 %v7483, %v7483
        %v7516 = vpack.c.b16 %v7373, %v7484
        %v7517 = vpack.c.b16 %v7485, %v7485
        %v7518 = vrot.slane %v7486, 3
        %v7519 = vrot.slane %v7487, 3
        %v7520 = vsel %vm7021, %v7518, %v7519
        %v7521 = vrot.slane %v7488, 3
        %v7522 = vrot.slane %v7489, 3
        %v7523 = vsel %vm7021, %v7521, %v7522
        %v7524 = vrot.slane %v7490, 3
        %v7525 = vrot.slane %v7491, 3
        %v7526 = vsel %vm7021, %v7524, %v7525
        %v7527 = vrot.slane %v7492, 3
        %v7528 = vrot.slane %v7493, 3
        %v7529 = vsel %vm7021, %v7527, %v7528
        %v7530 = vrot.slane %v7494, 3
        %v7531 = vrot.slane %v7495, 3
        %v7532 = vsel %vm7021, %v7530, %v7531
        %v7533 = vrot.slane %v7496, 3
        %v7534 = vrot.slane %v7497, 3
        %v7535 = vsel %vm7021, %v7533, %v7534
        %v7536 = vrot.slane %v7498, 3
        %v7537 = vrot.slane %v7499, 3
        %v7538 = vsel %vm7021, %v7536, %v7537
        %v7539 = vrot.slane %v7500, 3
        %v7540 = vrot.slane %v7501, 3
        %v7541 = vsel %vm7021, %v7539, %v7540
        %v7542 = vrot.slane %v7502, 3
        %v7543 = vrot.slane %v7503, 3
        %v7544 = vsel %vm7021, %v7542, %v7543
        %v7545 = vrot.slane %v7504, 3
        %v7546 = vrot.slane %v7505, 3
        %v7547 = vsel %vm7021, %v7545, %v7546
        %v7548 = vrot.slane %v7506, 3
        %v7549 = vrot.slane %v7507, 3
        %v7550 = vsel %vm7021, %v7548, %v7549
        %v7551 = vrot.slane %v7508, 3
        %v7552 = vrot.slane %v7509, 3
        %v7553 = vsel %vm7021, %v7551, %v7552
        %v7554 = vrot.slane %v7510, 3
        %v7555 = vrot.slane %v7511, 3
        %v7556 = vsel %vm7021, %v7554, %v7555
        %v7557 = vrot.slane %v7512, 3
        %v7558 = vrot.slane %v7513, 3
        %v7559 = vsel %vm7021, %v7557, %v7558
        %v7560 = vrot.slane %v7514, 3
        %v7561 = vrot.slane %v7515, 3
        %v7562 = vsel %vm7021, %v7560, %v7561
        %v7563 = vrot.slane %v7516, 3
        %v7564 = vrot.slane %v7517, 3
        %v7565 = vsel %vm7021, %v7563, %v7564
        %7566 = vrot.lane.b32.xlu0 %v7520, 64
        %v7567 = vpop.permute.xlu0 %7566
        %7568 = vrot.lane.b32.xlu0 %v7523, 64
        %v7569 = vpop.permute.xlu0 %7568
        %7570 = vrot.lane.b32.xlu0 %v7526, 64
        %v7571 = vpop.permute.xlu0 %7570
        %7572 = vrot.lane.b32.xlu0 %v7529, 64
        %v7573 = vpop.permute.xlu0 %7572
        %7574 = vrot.lane.b32.xlu0 %v7532, 64
        %v7575 = vpop.permute.xlu0 %7574
        %7576 = vrot.lane.b32.xlu0 %v7535, 64
        %v7577 = vpop.permute.xlu0 %7576
        %7578 = vrot.lane.b32.xlu0 %v7538, 64
        %v7579 = vpop.permute.xlu0 %7578
        %7580 = vrot.lane.b32.xlu0 %v7541, 64
        %v7581 = vpop.permute.xlu0 %7580
        %7582 = vrot.lane.b32.xlu0 %v7544, 64
        %v7583 = vpop.permute.xlu0 %7582
        %7584 = vrot.lane.b32.xlu0 %v7547, 64
        %v7585 = vpop.permute.xlu0 %7584
        %7586 = vrot.lane.b32.xlu0 %v7550, 64
        %v7587 = vpop.permute.xlu0 %7586
        %7588 = vrot.lane.b32.xlu0 %v7553, 64
        %v7589 = vpop.permute.xlu0 %7588
        %7590 = vrot.lane.b32.xlu0 %v7556, 64
        %v7591 = vpop.permute.xlu0 %7590
        %7592 = vrot.lane.b32.xlu0 %v7559, 64
        %v7593 = vpop.permute.xlu0 %7592
        %7594 = vrot.lane.b32.xlu0 %v7562, 64
        %v7595 = vpop.permute.xlu0 %7594
        %7596 = vrot.lane.b32.xlu0 %v7565, 64
        %v7597 = vpop.permute.xlu0 %7596
        %v7646 = vunpack.c.l.b16 %v6681
        %v7647 = vunpack.c.l.b16 %v6682
        %v7648 = vunpack.c.l.b16 %v6683
        %v7649 = vunpack.c.l.b16 %v6684
        %v7650 = vunpack.c.l.b16 %v6685
        %v7651 = vunpack.c.l.b16 %v6686
        %v7652 = vunpack.c.l.b16 %v6687
        %v7653 = vunpack.c.l.b16 %v6688
        %v7654 = vunpack.c.l.b16 %v6689
        %v7655 = vunpack.c.l.b16 %v6690
        %v7656 = vunpack.c.l.b16 %v6691
        %v7657 = vunpack.c.l.b16 %v6692
        %v7658 = vunpack.c.l.b16 %v6693
        %v7659 = vunpack.c.l.b16 %v6694
        %v7660 = vunpack.c.l.b16 %v6695
        %v7661 = vunpack.c.l.b16 %v6696
        %v7662 = vunpack.c.l.b16 %v6697
        %v7663 = vunpack.c.l.b16 %v6698
        %v7664 = vunpack.c.l.b16 %v6699
        %v7665 = vunpack.c.l.b16 %v6700
        %v7666 = vunpack.c.l.b16 %v6701
        %v7667 = vunpack.c.l.b16 %v6702
        %v7668 = vunpack.c.l.b16 %v6703
        %v7669 = vunpack.c.l.b16 %v6704
        %v7670 = vunpack.c.l.b16 %v6705
        %v7671 = vunpack.c.l.b16 %v6706
        %v7672 = vunpack.c.l.b16 %v6707
        %v7673 = vunpack.c.l.b16 %v6708
        %v7674 = vunpack.c.l.b16 %v6709
        %v7675 = vunpack.c.l.b16 %v6710
        %v7676 = vunpack.c.l.b16 %v6711
        %v7677 = vunpack.c.l.b16 %v6712
        %v7678 = vunpack.c.l.b16 %v6713
        %v7679 = vunpack.c.l.b16 %v6714
        %v7680 = vunpack.c.l.b16 %v6715
        %v7681 = vunpack.c.l.b16 %v6716
        %v7682 = vunpack.c.l.b16 %v6717
        %v7683 = vunpack.c.l.b16 %v6718
        %v7684 = vunpack.c.l.b16 %v6719
        %v7685 = vunpack.c.l.b16 %v6720
        %v7686 = vunpack.c.l.b16 %v6721
        %v7687 = vunpack.c.l.b16 %v6722
        %v7688 = vunpack.c.l.b16 %v6723
        %v7689 = vunpack.c.l.b16 %v6724
        %v7690 = vunpack.c.l.b16 %v6725
        %v7691 = vunpack.c.l.b16 %v6726
        %v7692 = vunpack.c.l.b16 %v6727
        %v7693 = vunpack.c.l.b16 %v6728
        %v7694 = vpack.c.b16 %v7647, %v7646
        %v7695 = vpack.c.b16 %v7648, %v7648
        %v7696 = vpack.c.b16 %v7650, %v7649
        %v7697 = vpack.c.b16 %v7651, %v7651
        %v7698 = vpack.c.b16 %v7653, %v7652
        %v7699 = vpack.c.b16 %v7654, %v7654
        %v7700 = vpack.c.b16 %v7656, %v7655
        %v7701 = vpack.c.b16 %v7657, %v7657
        %v7702 = vpack.c.b16 %v7659, %v7658
        %v7703 = vpack.c.b16 %v7660, %v7660
        %v7704 = vpack.c.b16 %v7662, %v7661
        %v7705 = vpack.c.b16 %v7663, %v7663
        %v7706 = vpack.c.b16 %v7665, %v7664
        %v7707 = vpack.c.b16 %v7666, %v7666
        %v7708 = vpack.c.b16 %v7668, %v7667
        %v7709 = vpack.c.b16 %v7669, %v7669
        %v7710 = vpack.c.b16 %v7671, %v7670
        %v7711 = vpack.c.b16 %v7672, %v7672
        %v7712 = vpack.c.b16 %v7674, %v7673
        %v7713 = vpack.c.b16 %v7675, %v7675
        %v7714 = vpack.c.b16 %v7677, %v7676
        %v7715 = vpack.c.b16 %v7678, %v7678
        %v7716 = vpack.c.b16 %v7680, %v7679
        %v7717 = vpack.c.b16 %v7681, %v7681
        %v7718 = vpack.c.b16 %v7683, %v7682
        %v7719 = vpack.c.b16 %v7684, %v7684
        %v7720 = vpack.c.b16 %v7686, %v7685
        %v7721 = vpack.c.b16 %v7687, %v7687
        %v7722 = vpack.c.b16 %v7689, %v7688
        %v7723 = vpack.c.b16 %v7690, %v7690
        %v7724 = vpack.c.b16 %v7692, %v7691
        %v7725 = vpack.c.b16 %v7693, %v7693
        %v7726 = vrot.slane %v7694, 2
        %v7727 = vrot.slane %v7695, 2
        %v7728 = vsel %vm3035, %v7726, %v7727
        %v7729 = vrot.slane %v7696, 2
        %v7730 = vrot.slane %v7697, 2
        %v7731 = vsel %vm3035, %v7729, %v7730
        %v7732 = vrot.slane %v7698, 2
        %v7733 = vrot.slane %v7699, 2
        %v7734 = vsel %vm3035, %v7732, %v7733
        %v7735 = vrot.slane %v7700, 2
        %v7736 = vrot.slane %v7701, 2
        %v7737 = vsel %vm3035, %v7735, %v7736
        %v7738 = vrot.slane %v7702, 2
        %v7739 = vrot.slane %v7703, 2
        %v7740 = vsel %vm3035, %v7738, %v7739
        %v7741 = vrot.slane %v7704, 2
        %v7742 = vrot.slane %v7705, 2
        %v7743 = vsel %vm3035, %v7741, %v7742
        %v7744 = vrot.slane %v7706, 2
        %v7745 = vrot.slane %v7707, 2
        %v7746 = vsel %vm3035, %v7744, %v7745
        %v7747 = vrot.slane %v7708, 2
        %v7748 = vrot.slane %v7709, 2
        %v7749 = vsel %vm3035, %v7747, %v7748
        %v7750 = vrot.slane %v7710, 2
        %v7751 = vrot.slane %v7711, 2
        %v7752 = vsel %vm3035, %v7750, %v7751
        %v7753 = vrot.slane %v7712, 2
        %v7754 = vrot.slane %v7713, 2
        %v7755 = vsel %vm3035, %v7753, %v7754
        %v7756 = vrot.slane %v7714, 2
        %v7757 = vrot.slane %v7715, 2
        %v7758 = vsel %vm3035, %v7756, %v7757
        %v7759 = vrot.slane %v7716, 2
        %v7760 = vrot.slane %v7717, 2
        %v7761 = vsel %vm3035, %v7759, %v7760
        %v7762 = vrot.slane %v7718, 2
        %v7763 = vrot.slane %v7719, 2
        %v7764 = vsel %vm3035, %v7762, %v7763
        %v7765 = vrot.slane %v7720, 2
        %v7766 = vrot.slane %v7721, 2
        %v7767 = vsel %vm3035, %v7765, %v7766
        %v7768 = vrot.slane %v7722, 2
        %v7769 = vrot.slane %v7723, 2
        %v7770 = vsel %vm3035, %v7768, %v7769
        %v7771 = vrot.slane %v7724, 2
        %v7772 = vrot.slane %v7725, 2
        %v7773 = vsel %vm3035, %v7771, %v7772
        %7774 = vrot.lane.b32.xlu0 %v7728, 80
        %v7775 = vpop.permute.xlu0 %7774
        %7776 = vrot.lane.b32.xlu0 %v7731, 80
        %v7777 = vpop.permute.xlu0 %7776
        %7778 = vrot.lane.b32.xlu0 %v7734, 80
        %v7779 = vpop.permute.xlu0 %7778
        %7780 = vrot.lane.b32.xlu0 %v7737, 80
        %v7781 = vpop.permute.xlu0 %7780
        %7782 = vrot.lane.b32.xlu0 %v7740, 80
        %v7783 = vpop.permute.xlu0 %7782
        %7784 = vrot.lane.b32.xlu0 %v7743, 80
        %v7785 = vpop.permute.xlu0 %7784
        %7786 = vrot.lane.b32.xlu0 %v7746, 80
        %v7787 = vpop.permute.xlu0 %7786
        %7788 = vrot.lane.b32.xlu0 %v7749, 80
        %v7789 = vpop.permute.xlu0 %7788
        %7790 = vrot.lane.b32.xlu0 %v7752, 80
        %v7791 = vpop.permute.xlu0 %7790
        %7792 = vrot.lane.b32.xlu0 %v7755, 80
        %v7793 = vpop.permute.xlu0 %7792
        %7794 = vrot.lane.b32.xlu0 %v7758, 80
        %v7795 = vpop.permute.xlu0 %7794
        %7796 = vrot.lane.b32.xlu0 %v7761, 80
        %v7797 = vpop.permute.xlu0 %7796
        %7798 = vrot.lane.b32.xlu0 %v7764, 80
        %v7799 = vpop.permute.xlu0 %7798
        %7800 = vrot.lane.b32.xlu0 %v7767, 80
        %v7801 = vpop.permute.xlu0 %7800
        %7802 = vrot.lane.b32.xlu0 %v7770, 80
        %v7803 = vpop.permute.xlu0 %7802
        %7804 = vrot.lane.b32.xlu0 %v7773, 80
        %v7805 = vpop.permute.xlu0 %7804
        %v7838 = vunpack.c.l.b16 %v6733
        %v7839 = vunpack.c.l.b16 %v6734
        %v7840 = vunpack.c.l.b16 %v6735
        %v7841 = vunpack.c.l.b16 %v6736
        %v7842 = vunpack.c.l.b16 %v6737
        %v7843 = vunpack.c.l.b16 %v6738
        %v7844 = vunpack.c.l.b16 %v6739
        %v7845 = vunpack.c.l.b16 %v6740
        %v7846 = vunpack.c.l.b16 %v6741
        %v7847 = vunpack.c.l.b16 %v6742
        %v7848 = vunpack.c.l.b16 %v6743
        %v7849 = vunpack.c.l.b16 %v6744
        %v7850 = vunpack.c.l.b16 %v6745
        %v7851 = vunpack.c.l.b16 %v6746
        %v7852 = vunpack.c.l.b16 %v6747
        %v7853 = vunpack.c.l.b16 %v6748
        %v7854 = vunpack.c.l.b16 %v6749
        %v7855 = vunpack.c.l.b16 %v6750
        %v7856 = vunpack.c.l.b16 %v6751
        %v7857 = vunpack.c.l.b16 %v6752
        %v7858 = vunpack.c.l.b16 %v6753
        %v7859 = vunpack.c.l.b16 %v6754
        %v7860 = vunpack.c.l.b16 %v6755
        %v7861 = vunpack.c.l.b16 %v6756
        %v7862 = vunpack.c.l.b16 %v6757
        %v7863 = vunpack.c.l.b16 %v6758
        %v7864 = vunpack.c.l.b16 %v6759
        %v7865 = vunpack.c.l.b16 %v6760
        %v7866 = vunpack.c.l.b16 %v6761
        %v7867 = vunpack.c.l.b16 %v6762
        %v7868 = vunpack.c.l.b16 %v6763
        %v7869 = vunpack.c.l.b16 %v6764
        %v7870 = vpack.c.b16 %v7839, %v7838
        %v7871 = vpack.c.b16 %v7841, %v7840
        %v7872 = vpack.c.b16 %v7843, %v7842
        %v7873 = vpack.c.b16 %v7845, %v7844
        %v7874 = vpack.c.b16 %v7847, %v7846
        %v7875 = vpack.c.b16 %v7849, %v7848
        %v7876 = vpack.c.b16 %v7851, %v7850
        %v7877 = vpack.c.b16 %v7853, %v7852
        %v7878 = vpack.c.b16 %v7855, %v7854
        %v7879 = vpack.c.b16 %v7857, %v7856
        %v7880 = vpack.c.b16 %v7859, %v7858
        %v7881 = vpack.c.b16 %v7861, %v7860
        %v7882 = vpack.c.b16 %v7863, %v7862
        %v7883 = vpack.c.b16 %v7865, %v7864
        %v7884 = vpack.c.b16 %v7867, %v7866
        %v7885 = vpack.c.b16 %v7869, %v7868
        %7886 = vrot.lane.b32.xlu0 %v7870, 96
        %v7887 = vpop.permute.xlu0 %7886
        %7888 = vrot.lane.b32.xlu0 %v7871, 96
        %v7889 = vpop.permute.xlu0 %7888
        %7890 = vrot.lane.b32.xlu0 %v7872, 96
        %v7891 = vpop.permute.xlu0 %7890
        %7892 = vrot.lane.b32.xlu0 %v7873, 96
        %v7893 = vpop.permute.xlu0 %7892
        %7894 = vrot.lane.b32.xlu0 %v7874, 96
        %v7895 = vpop.permute.xlu0 %7894
        %7896 = vrot.lane.b32.xlu0 %v7875, 96
        %v7897 = vpop.permute.xlu0 %7896
        %7898 = vrot.lane.b32.xlu0 %v7876, 96
        %v7899 = vpop.permute.xlu0 %7898
        %7900 = vrot.lane.b32.xlu0 %v7877, 96
        %v7901 = vpop.permute.xlu0 %7900
        %7902 = vrot.lane.b32.xlu0 %v7878, 96
        %v7903 = vpop.permute.xlu0 %7902
        %7904 = vrot.lane.b32.xlu0 %v7879, 96
        %v7905 = vpop.permute.xlu0 %7904
        %7906 = vrot.lane.b32.xlu0 %v7880, 96
        %v7907 = vpop.permute.xlu0 %7906
        %7908 = vrot.lane.b32.xlu0 %v7881, 96
        %v7909 = vpop.permute.xlu0 %7908
        %7910 = vrot.lane.b32.xlu0 %v7882, 96
        %v7911 = vpop.permute.xlu0 %7910
        %7912 = vrot.lane.b32.xlu0 %v7883, 96
        %v7913 = vpop.permute.xlu0 %7912
        %7914 = vrot.lane.b32.xlu0 %v7884, 96
        %v7915 = vpop.permute.xlu0 %7914
        %7916 = vrot.lane.b32.xlu0 %v7885, 96
        %v7917 = vpop.permute.xlu0 %7916
        %v7950 = vunpack.c.l.b16 %v6765
        %v7951 = vunpack.c.l.b16 %v6766
        %v7952 = vunpack.c.l.b16 %v6767
        %v7953 = vunpack.c.l.b16 %v6768
        %v7954 = vunpack.c.l.b16 %v6769
        %v7955 = vunpack.c.l.b16 %v6770
        %v7956 = vunpack.c.l.b16 %v6771
        %v7957 = vunpack.c.l.b16 %v6772
        %v7958 = vunpack.c.l.b16 %v6773
        %v7959 = vunpack.c.l.b16 %v6774
        %v7960 = vunpack.c.l.b16 %v6775
        %v7961 = vunpack.c.l.b16 %v6776
        %v7962 = vunpack.c.l.b16 %v6777
        %v7963 = vunpack.c.l.b16 %v6778
        %v7964 = vunpack.c.l.b16 %v6779
        %v7965 = vunpack.c.l.b16 %v6780
        %v7966 = vunpack.c.l.b16 %v6781
        %v7967 = vunpack.c.l.b16 %v6782
        %v7968 = vunpack.c.l.b16 %v6783
        %v7969 = vunpack.c.l.b16 %v6784
        %v7970 = vunpack.c.l.b16 %v6785
        %v7971 = vunpack.c.l.b16 %v6786
        %v7972 = vunpack.c.l.b16 %v6787
        %v7973 = vunpack.c.l.b16 %v6788
        %v7974 = vunpack.c.l.b16 %v6789
        %v7975 = vunpack.c.l.b16 %v6790
        %v7976 = vunpack.c.l.b16 %v6791
        %v7977 = vunpack.c.l.b16 %v6792
        %v7978 = vunpack.c.l.b16 %v6793
        %v7979 = vunpack.c.l.b16 %v6794
        %v7980 = vunpack.c.l.b16 %v6795
        %v7981 = vunpack.c.l.b16 %v6796
        %v7982 = vpack.c.b16 %v7839, %v7950
        %v7983 = vpack.c.b16 %v7951, %v7951
        %v7984 = vpack.c.b16 %v7841, %v7952
        %v7985 = vpack.c.b16 %v7953, %v7953
        %v7986 = vpack.c.b16 %v7843, %v7954
        %v7987 = vpack.c.b16 %v7955, %v7955
        %v7988 = vpack.c.b16 %v7845, %v7956
        %v7989 = vpack.c.b16 %v7957, %v7957
        %v7990 = vpack.c.b16 %v7847, %v7958
        %v7991 = vpack.c.b16 %v7959, %v7959
        %v7992 = vpack.c.b16 %v7849, %v7960
        %v7993 = vpack.c.b16 %v7961, %v7961
        %v7994 = vpack.c.b16 %v7851, %v7962
        %v7995 = vpack.c.b16 %v7963, %v7963
        %v7996 = vpack.c.b16 %v7853, %v7964
        %v7997 = vpack.c.b16 %v7965, %v7965
        %v7998 = vpack.c.b16 %v7855, %v7966
        %v7999 = vpack.c.b16 %v7967, %v7967
        %v8000 = vpack.c.b16 %v7857, %v7968
        %v8001 = vpack.c.b16 %v7969, %v7969
        %v8002 = vpack.c.b16 %v7859, %v7970
        %v8003 = vpack.c.b16 %v7971, %v7971
        %v8004 = vpack.c.b16 %v7861, %v7972
        %v8005 = vpack.c.b16 %v7973, %v7973
        %v8006 = vpack.c.b16 %v7863, %v7974
        %v8007 = vpack.c.b16 %v7975, %v7975
        %v8008 = vpack.c.b16 %v7865, %v7976
        %v8009 = vpack.c.b16 %v7977, %v7977
        %v8010 = vpack.c.b16 %v7867, %v7978
        %v8011 = vpack.c.b16 %v7979, %v7979
        %v8012 = vpack.c.b16 %v7869, %v7980
        %v8013 = vpack.c.b16 %v7981, %v7981
        %v8014 = vrot.slane %v7982, 3
        %v8015 = vrot.slane %v7983, 3
        %v8016 = vsel %vm7021, %v8014, %v8015
        %v8017 = vrot.slane %v7984, 3
        %v8018 = vrot.slane %v7985, 3
        %v8019 = vsel %vm7021, %v8017, %v8018
        %v8020 = vrot.slane %v7986, 3
        %v8021 = vrot.slane %v7987, 3
        %v8022 = vsel %vm7021, %v8020, %v8021
        %v8023 = vrot.slane %v7988, 3
        %v8024 = vrot.slane %v7989, 3
        %v8025 = vsel %vm7021, %v8023, %v8024
        %v8026 = vrot.slane %v7990, 3
        %v8027 = vrot.slane %v7991, 3
        %v8028 = vsel %vm7021, %v8026, %v8027
        %v8029 = vrot.slane %v7992, 3
        %v8030 = vrot.slane %v7993, 3
        %v8031 = vsel %vm7021, %v8029, %v8030
        %v8032 = vrot.slane %v7994, 3
        %v8033 = vrot.slane %v7995, 3
        %v8034 = vsel %vm7021, %v8032, %v8033
        %v8035 = vrot.slane %v7996, 3
        %v8036 = vrot.slane %v7997, 3
        %v8037 = vsel %vm7021, %v8035, %v8036
        %v8038 = vrot.slane %v7998, 3
        %v8039 = vrot.slane %v7999, 3
        %v8040 = vsel %vm7021, %v8038, %v8039
        %v8041 = vrot.slane %v8000, 3
        %v8042 = vrot.slane %v8001, 3
        %v8043 = vsel %vm7021, %v8041, %v8042
        %v8044 = vrot.slane %v8002, 3
        %v8045 = vrot.slane %v8003, 3
        %v8046 = vsel %vm7021, %v8044, %v8045
        %v8047 = vrot.slane %v8004, 3
        %v8048 = vrot.slane %v8005, 3
        %v8049 = vsel %vm7021, %v8047, %v8048
        %v8050 = vrot.slane %v8006, 3
        %v8051 = vrot.slane %v8007, 3
        %v8052 = vsel %vm7021, %v8050, %v8051
        %v8053 = vrot.slane %v8008, 3
        %v8054 = vrot.slane %v8009, 3
        %v8055 = vsel %vm7021, %v8053, %v8054
        %v8056 = vrot.slane %v8010, 3
        %v8057 = vrot.slane %v8011, 3
        %v8058 = vsel %vm7021, %v8056, %v8057
        %v8059 = vrot.slane %v8012, 3
        %v8060 = vrot.slane %v8013, 3
        %v8061 = vsel %vm7021, %v8059, %v8060
        %8062 = vrot.lane.b32.xlu0 %v8016, 112
        %v8063 = vpop.permute.xlu0 %8062
        %8064 = vrot.lane.b32.xlu0 %v8019, 112
        %v8065 = vpop.permute.xlu0 %8064
        %8066 = vrot.lane.b32.xlu0 %v8022, 112
        %v8067 = vpop.permute.xlu0 %8066
        %8068 = vrot.lane.b32.xlu0 %v8025, 112
        %v8069 = vpop.permute.xlu0 %8068
        %8070 = vrot.lane.b32.xlu0 %v8028, 112
        %v8071 = vpop.permute.xlu0 %8070
        %8072 = vrot.lane.b32.xlu0 %v8031, 112
        %v8073 = vpop.permute.xlu0 %8072
        %8074 = vrot.lane.b32.xlu0 %v8034, 112
        %v8075 = vpop.permute.xlu0 %8074
        %8076 = vrot.lane.b32.xlu0 %v8037, 112
        %v8077 = vpop.permute.xlu0 %8076
        %8078 = vrot.lane.b32.xlu0 %v8040, 112
        %v8079 = vpop.permute.xlu0 %8078
        %8080 = vrot.lane.b32.xlu0 %v8043, 112
        %v8081 = vpop.permute.xlu0 %8080
        %8082 = vrot.lane.b32.xlu0 %v8046, 112
        %v8083 = vpop.permute.xlu0 %8082
        %8084 = vrot.lane.b32.xlu0 %v8049, 112
        %v8085 = vpop.permute.xlu0 %8084
        %8086 = vrot.lane.b32.xlu0 %v8052, 112
        %v8087 = vpop.permute.xlu0 %8086
        %8088 = vrot.lane.b32.xlu0 %v8055, 112
        %v8089 = vpop.permute.xlu0 %8088
        %8090 = vrot.lane.b32.xlu0 %v8058, 112
        %v8091 = vpop.permute.xlu0 %8090
        %8092 = vrot.lane.b32.xlu0 %v8061, 112
        %v8093 = vpop.permute.xlu0 %8092
        %v8142 = vunpack.c.l.b16 %v6797
        %v8143 = vunpack.c.l.b16 %v6798
        %v8144 = vunpack.c.l.b16 %v6799
        %v8145 = vunpack.c.l.b16 %v6800
        %v8146 = vunpack.c.l.b16 %v6801
        %v8147 = vunpack.c.l.b16 %v6802
        %v8148 = vunpack.c.l.b16 %v6803
        %v8149 = vunpack.c.l.b16 %v6804
        %v8150 = vunpack.c.l.b16 %v6805
        %v8151 = vunpack.c.l.b16 %v6806
        %v8152 = vunpack.c.l.b16 %v6807
        %v8153 = vunpack.c.l.b16 %v6808
        %v8154 = vunpack.c.l.b16 %v6809
        %v8155 = vunpack.c.l.b16 %v6810
        %v8156 = vunpack.c.l.b16 %v6811
        %v8157 = vunpack.c.l.b16 %v6812
        %v8158 = vunpack.c.l.b16 %v6813
        %v8159 = vunpack.c.l.b16 %v6814
        %v8160 = vunpack.c.l.b16 %v6815
        %v8161 = vunpack.c.l.b16 %v6816
        %v8162 = vunpack.c.l.b16 %v6817
        %v8163 = vunpack.c.l.b16 %v6818
        %v8164 = vunpack.c.l.b16 %v6819
        %v8165 = vunpack.c.l.b16 %v6820
        %v8166 = vunpack.c.l.b16 %v6821
        %v8167 = vunpack.c.l.b16 %v6822
        %v8168 = vunpack.c.l.b16 %v6823
        %v8169 = vunpack.c.l.b16 %v6824
        %v8170 = vunpack.c.l.b16 %v6825
        %v8171 = vunpack.c.l.b16 %v6826
        %v8172 = vunpack.c.l.b16 %v6827
        %v8173 = vunpack.c.l.b16 %v6828
        %v8174 = vunpack.c.l.b16 %v6829
        %v8175 = vunpack.c.l.b16 %v6830
        %v8176 = vunpack.c.l.b16 %v6831
        %v8177 = vunpack.c.l.b16 %v6832
        %v8178 = vunpack.c.l.b16 %v6833
        %v8179 = vunpack.c.l.b16 %v6834
        %v8180 = vunpack.c.l.b16 %v6835
        %v8181 = vunpack.c.l.b16 %v6836
        %v8182 = vunpack.c.l.b16 %v6837
        %v8183 = vunpack.c.l.b16 %v6838
        %v8184 = vunpack.c.l.b16 %v6839
        %v8185 = vunpack.c.l.b16 %v6840
        %v8186 = vunpack.c.l.b16 %v6841
        %v8187 = vunpack.c.l.b16 %v6842
        %v8188 = vunpack.c.l.b16 %v6843
        %v8189 = vunpack.c.l.b16 %v6844
        %v8190 = vpack.c.b16 %v8143, %v8142
        %v8191 = vpack.c.b16 %v8144, %v8144
        %v8192 = vpack.c.b16 %v8146, %v8145
        %v8193 = vpack.c.b16 %v8147, %v8147
        %v8194 = vpack.c.b16 %v8149, %v8148
        %v8195 = vpack.c.b16 %v8150, %v8150
        %v8196 = vpack.c.b16 %v8152, %v8151
        %v8197 = vpack.c.b16 %v8153, %v8153
        %v8198 = vpack.c.b16 %v8155, %v8154
        %v8199 = vpack.c.b16 %v8156, %v8156
        %v8200 = vpack.c.b16 %v8158, %v8157
        %v8201 = vpack.c.b16 %v8159, %v8159
        %v8202 = vpack.c.b16 %v8161, %v8160
        %v8203 = vpack.c.b16 %v8162, %v8162
        %v8204 = vpack.c.b16 %v8164, %v8163
        %v8205 = vpack.c.b16 %v8165, %v8165
        %v8206 = vpack.c.b16 %v8167, %v8166
        %v8207 = vpack.c.b16 %v8168, %v8168
        %v8208 = vpack.c.b16 %v8170, %v8169
        %v8209 = vpack.c.b16 %v8171, %v8171
        %v8210 = vpack.c.b16 %v8173, %v8172
        %v8211 = vpack.c.b16 %v8174, %v8174
        %v8212 = vpack.c.b16 %v8176, %v8175
        %v8213 = vpack.c.b16 %v8177, %v8177
        %v8214 = vpack.c.b16 %v8179, %v8178
        %v8215 = vpack.c.b16 %v8180, %v8180
        %v8216 = vpack.c.b16 %v8182, %v8181
        %v8217 = vpack.c.b16 %v8183, %v8183
        %v8218 = vpack.c.b16 %v8185, %v8184
        %v8219 = vpack.c.b16 %v8186, %v8186
        %v8220 = vpack.c.b16 %v8188, %v8187
        %v8221 = vpack.c.b16 %v8189, %v8189
        %v8222 = vrot.slane %v8190, 2
        %v8223 = vrot.slane %v8191, 2
        %v8224 = vsel %vm3035, %v8222, %v8223
        %v8225 = vrot.slane %v8192, 2
        %v8226 = vrot.slane %v8193, 2
        %v8227 = vsel %vm3035, %v8225, %v8226
        %v8228 = vrot.slane %v8194, 2
        %v8229 = vrot.slane %v8195, 2
        %v8230 = vsel %vm3035, %v8228, %v8229
        %v8231 = vrot.slane %v8196, 2
        %v8232 = vrot.slane %v8197, 2
        %v8233 = vsel %vm3035, %v8231, %v8232
        %v8234 = vrot.slane %v8198, 2
        %v8235 = vrot.slane %v8199, 2
        %v8236 = vsel %vm3035, %v8234, %v8235
        %v8237 = vrot.slane %v8200, 2
        %v8238 = vrot.slane %v8201, 2
        %v8239 = vsel %vm3035, %v8237, %v8238
        %v8240 = vrot.slane %v8202, 2
        %v8241 = vrot.slane %v8203, 2
        %v8242 = vsel %vm3035, %v8240, %v8241
        %v8243 = vrot.slane %v8204, 2
        %v8244 = vrot.slane %v8205, 2
        %v8245 = vsel %vm3035, %v8243, %v8244
        %v8246 = vrot.slane %v8206, 2
        %v8247 = vrot.slane %v8207, 2
        %v8248 = vsel %vm3035, %v8246, %v8247
        %v8249 = vrot.slane %v8208, 2
        %v8250 = vrot.slane %v8209, 2
        %v8251 = vsel %vm3035, %v8249, %v8250
        %v8252 = vrot.slane %v8210, 2
        %v8253 = vrot.slane %v8211, 2
        %v8254 = vsel %vm3035, %v8252, %v8253
        %v8255 = vrot.slane %v8212, 2
        %v8256 = vrot.slane %v8213, 2
        %v8257 = vsel %vm3035, %v8255, %v8256
        %v8258 = vrot.slane %v8214, 2
        %v8259 = vrot.slane %v8215, 2
        %v8260 = vsel %vm3035, %v8258, %v8259
        %v8261 = vrot.slane %v8216, 2
        %v8262 = vrot.slane %v8217, 2
        %v8263 = vsel %vm3035, %v8261, %v8262
        %v8264 = vrot.slane %v8218, 2
        %v8265 = vrot.slane %v8219, 2
        %v8266 = vsel %vm3035, %v8264, %v8265
        %v8267 = vrot.slane %v8220, 2
        %v8268 = vrot.slane %v8221, 2
        %v8269 = vsel %vm3035, %v8267, %v8268
        %v8272 = vsel %vm586, %v6909, %v7071
        %v8275 = vsel %vm586, %v6910, %v7073
        %v8278 = vsel %vm586, %v6911, %v7075
        %v8281 = vsel %vm586, %v6912, %v7077
        %v8284 = vsel %vm586, %v6913, %v7079
        %v8287 = vsel %vm586, %v6914, %v7081
        %v8290 = vsel %vm586, %v6915, %v7083
        %v8293 = vsel %vm586, %v6916, %v7085
        %v8296 = vsel %vm586, %v6917, %v7087
        %v8299 = vsel %vm586, %v6918, %v7089
        %v8302 = vsel %vm586, %v6919, %v7091
        %v8305 = vsel %vm586, %v6920, %v7093
        %v8308 = vsel %vm586, %v6921, %v7095
        %v8311 = vsel %vm586, %v6922, %v7097
        %v8314 = vsel %vm586, %v6923, %v7099
        %v8317 = vsel %vm586, %v6924, %v7101
        %v8319 = vsel %vm2645, %v8272, %v7279
        %v8321 = vsel %vm2645, %v8275, %v7281
        %v8323 = vsel %vm2645, %v8278, %v7283
        %v8325 = vsel %vm2645, %v8281, %v7285
        %v8327 = vsel %vm2645, %v8284, %v7287
        %v8329 = vsel %vm2645, %v8287, %v7289
        %v8331 = vsel %vm2645, %v8290, %v7291
        %v8333 = vsel %vm2645, %v8293, %v7293
        %v8335 = vsel %vm2645, %v8296, %v7295
        %v8337 = vsel %vm2645, %v8299, %v7297
        %v8339 = vsel %vm2645, %v8302, %v7299
        %v8341 = vsel %vm2645, %v8305, %v7301
        %v8343 = vsel %vm2645, %v8308, %v7303
        %v8345 = vsel %vm2645, %v8311, %v7305
        %v8347 = vsel %vm2645, %v8314, %v7307
        %v8349 = vsel %vm2645, %v8317, %v7309
        %v8351 = vsel %vm2694, %v8319, %v7391
        %v8353 = vsel %vm2694, %v8321, %v7393
        %v8355 = vsel %vm2694, %v8323, %v7395
        %v8357 = vsel %vm2694, %v8325, %v7397
        %v8359 = vsel %vm2694, %v8327, %v7399
        %v8361 = vsel %vm2694, %v8329, %v7401
        %v8363 = vsel %vm2694, %v8331, %v7403
        %v8365 = vsel %vm2694, %v8333, %v7405
        %v8367 = vsel %vm2694, %v8335, %v7407
        %v8369 = vsel %vm2694, %v8337, %v7409
        %v8371 = vsel %vm2694, %v8339, %v7411
        %v8373 = vsel %vm2694, %v8341, %v7413
        %v8375 = vsel %vm2694, %v8343, %v7415
        %v8377 = vsel %vm2694, %v8345, %v7417
        %v8379 = vsel %vm2694, %v8347, %v7419
        %v8381 = vsel %vm2694, %v8349, %v7421
        %v8383 = vsel %vm2759, %v8351, %v7567
        %v8385 = vsel %vm2759, %v8353, %v7569
        %v8387 = vsel %vm2759, %v8355, %v7571
        %v8389 = vsel %vm2759, %v8357, %v7573
        %v8391 = vsel %vm2759, %v8359, %v7575
        %v8393 = vsel %vm2759, %v8361, %v7577
        %v8395 = vsel %vm2759, %v8363, %v7579
        %v8397 = vsel %vm2759, %v8365, %v7581
        %v8399 = vsel %vm2759, %v8367, %v7583
        %v8401 = vsel %vm2759, %v8369, %v7585
        %v8403 = vsel %vm2759, %v8371, %v7587
        %v8405 = vsel %vm2759, %v8373, %v7589
        %v8407 = vsel %vm2759, %v8375, %v7591
        %v8409 = vsel %vm2759, %v8377, %v7593
        %v8411 = vsel %vm2759, %v8379, %v7595
        %v8413 = vsel %vm2759, %v8381, %v7597
        %v8415 = vsel %vm2824, %v8383, %v7775
        %v8417 = vsel %vm2824, %v8385, %v7777
        %v8419 = vsel %vm2824, %v8387, %v7779
        %v8421 = vsel %vm2824, %v8389, %v7781
        %v8423 = vsel %vm2824, %v8391, %v7783
        %v8425 = vsel %vm2824, %v8393, %v7785
        %v8427 = vsel %vm2824, %v8395, %v7787
        %v8429 = vsel %vm2824, %v8397, %v7789
        %v8431 = vsel %vm2824, %v8399, %v7791
        %v8433 = vsel %vm2824, %v8401, %v7793
        %v8435 = vsel %vm2824, %v8403, %v7795
        %v8437 = vsel %vm2824, %v8405, %v7797
        %v8439 = vsel %vm2824, %v8407, %v7799
        %v8441 = vsel %vm2824, %v8409, %v7801
        %v8443 = vsel %vm2824, %v8411, %v7803
        %v8445 = vsel %vm2824, %v8413, %v7805
        %v8447 = vsel %vm2873, %v8415, %v7887
        %v8449 = vsel %vm2873, %v8417, %v7889
        %v8451 = vsel %vm2873, %v8419, %v7891
        %v8453 = vsel %vm2873, %v8421, %v7893
        %v8455 = vsel %vm2873, %v8423, %v7895
        %v8457 = vsel %vm2873, %v8425, %v7897
        %v8459 = vsel %vm2873, %v8427, %v7899
        %v8461 = vsel %vm2873, %v8429, %v7901
        %v8463 = vsel %vm2873, %v8431, %v7903
        %v8465 = vsel %vm2873, %v8433, %v7905
        %v8467 = vsel %vm2873, %v8435, %v7907
        %v8469 = vsel %vm2873, %v8437, %v7909
        %v8471 = vsel %vm2873, %v8439, %v7911
        %v8473 = vsel %vm2873, %v8441, %v7913
        %v8475 = vsel %vm2873, %v8443, %v7915
        %v8477 = vsel %vm2873, %v8445, %v7917
        %v8479 = vsel %vm2938, %v8447, %v8063
        %v8482 = vsel %vm2938, %v8449, %v8065
        %v8485 = vsel %vm2938, %v8451, %v8067
        %v8488 = vsel %vm2938, %v8453, %v8069
        %v8491 = vsel %vm2938, %v8455, %v8071
        %v8494 = vsel %vm2938, %v8457, %v8073
        %v8497 = vsel %vm2938, %v8459, %v8075
        %v8500 = vsel %vm2938, %v8461, %v8077
        %v8503 = vsel %vm2938, %v8463, %v8079
        %v8506 = vsel %vm2938, %v8465, %v8081
        %v8509 = vsel %vm2938, %v8467, %v8083
        %v8512 = vsel %vm2938, %v8469, %v8085
        %v8515 = vsel %vm2938, %v8471, %v8087
        %v8518 = vsel %vm2938, %v8473, %v8089
        %v8521 = vsel %vm2938, %v8475, %v8091
        %v8524 = vsel %vm2938, %v8477, %v8093
        %s8526 = scalar_lea.vmem %s3, 144
        %v8527 = vld [vmem:[%s8526] sm:$0xf]
        %v8528 = vld [vmem:[%s8526 + $0x4] sm:$0xf]
        %v8529 = vld [vmem:[%s8526 + $0x8] sm:$0xf]
        %v8530 = vld [vmem:[%s8526 + $0xc] sm:$0xf]
        %v8531 = vld [vmem:[%s8526 + $0x10] sm:$0xf]
        %v8532 = vld [vmem:[%s8526 + $0x14] sm:$0xf]
        %v8533 = vld [vmem:[%s8526 + $0x18] sm:$0xf]
        %v8534 = vld [vmem:[%s8526 + $0x1c] sm:$0xf]
        %v8535 = vld [vmem:[%s8526 + $0x20] sm:$0xf]
        %v8536 = vld [vmem:[%s8526 + $0x24] sm:$0xf]
        %v8537 = vld [vmem:[%s8526 + $0x28] sm:$0xf]
        %v8538 = vld [vmem:[%s8526 + $0x2c] sm:$0xf]
        %v8539 = vld [vmem:[%s8526 + $0x30] sm:$0xf]
        %v8540 = vld [vmem:[%s8526 + $0x34] sm:$0xf]
        %v8541 = vld [vmem:[%s8526 + $0x38] sm:$0xf]
        %v8542 = vld [vmem:[%s8526 + $0x3c] sm:$0xf]
        %v8543 = vld [vmem:[%s8526 + $0x40] sm:$0xf]
        %v8544 = vld [vmem:[%s8526 + $0x44] sm:$0xf]
        %s8545 = scalar_lea.vmem %s4, 2
        %v8546 = vld [vmem:[%s8545] sm:$0x1]
        %v8548 = vlaneseq
        %v8549 = vshrl.u32 %v8548, 7
        %v8550 = vsub.s32 0, %v8549
        %v8551 = vrot.slane %v8546, %v8550
        %v8571 = vunpack.c.l.b16 %v8527
        %v8572 = vunpack.c.l.b16 %v8528
        %v8573 = vunpack.c.l.b16 %v8529
        %v8574 = vunpack.c.l.b16 %v8530
        %v8575 = vunpack.c.l.b16 %v8531
        %v8576 = vunpack.c.l.b16 %v8532
        %v8577 = vunpack.c.l.b16 %v8533
        %v8578 = vunpack.c.l.b16 %v8534
        %v8579 = vunpack.c.l.b16 %v8535
        %v8580 = vunpack.c.l.b16 %v8536
        %v8581 = vunpack.c.l.b16 %v8537
        %v8582 = vunpack.c.l.b16 %v8538
        %v8583 = vunpack.c.l.b16 %v8539
        %v8584 = vunpack.c.l.b16 %v8540
        %v8585 = vunpack.c.l.b16 %v8541
        %v8586 = vunpack.c.l.b16 %v8542
        %v8587 = vunpack.c.l.b16 %v8543
        %v8588 = vunpack.c.l.b16 %v8544
        %v8589 = vpack.c.b16 %v8572, %v8571
        %v8590 = vpack.c.b16 %v8574, %v8573
        %v8591 = vpack.c.b16 %v8576, %v8575
        %v8592 = vpack.c.b16 %v8578, %v8577
        %v8593 = vpack.c.b16 %v8580, %v8579
        %v8594 = vpack.c.b16 %v8582, %v8581
        %v8595 = vpack.c.b16 %v8584, %v8583
        %v8596 = vpack.c.b16 %v8586, %v8585
        %v8597 = vpack.c.b16 %v8588, %v8587
        %v8608 = vsel %vm586, %v8224, 0
        %v8611 = vsel %vm586, %v8227, 0
        %v8614 = vsel %vm586, %v8230, 0
        %v8617 = vsel %vm586, %v8233, 0
        %v8620 = vsel %vm586, %v8236, 0
        %v8623 = vsel %vm586, %v8239, 0
        %v8626 = vsel %vm586, %v8242, 0
        %v8629 = vsel %vm586, %v8245, 0
        %v8632 = vsel %vm586, %v8248, 0
        %v8635 = vsel %vm586, %v8251, 0
        %v8638 = vsel %vm586, %v8254, 0
        %v8641 = vsel %vm586, %v8257, 0
        %v8644 = vsel %vm586, %v8260, 0
        %v8647 = vsel %vm586, %v8263, 0
        %v8650 = vsel %vm586, %v8266, 0
        %v8653 = vsel %vm586, %v8269, 0
        %8655 = vmatprep.subr.bf16.mxu0 0
        %8656 = vmatpush1.bf16.msra.mxu0 %v8589
        %8657 = vmatprep.subr.bf16.mxu0 0
        %8658 = vmatpush1.bf16.msra.mxu0 %v8590
        %8659 = vmatprep.subr.bf16.mxu0 0
        %8660 = vmatpush1.bf16.msra.mxu0 %v8591
        %8661 = vmatprep.subr.bf16.mxu0 0
        %8662 = vmatpush1.bf16.msra.mxu0 %v8592
        %8663 = vmatprep.subr.bf16.mxu0 0
        %8664 = vmatpush1.bf16.msra.mxu0 %v8593
        %8665 = vmatprep.subr.bf16.mxu0 0
        %8666 = vmatpush1.bf16.msra.mxu0 %v8594
        %8667 = vmatprep.subr.bf16.mxu0 0
        %8668 = vmatpush1.bf16.msra.mxu0 %v8595
        %8669 = vmatprep.subr.bf16.mxu0 0
        %8670 = vmatpush1.bf16.msra.mxu0 %v8596
        %8671 = vmatprep.subr.bf16.mxu0 0
        %8672 = vmatpush1.bf16.msra.mxu0 %v8597
        %8673 = vmatprep.subr.bf16.mxu0 0
        %8674 = vmatpush1.bf16.msra.mxu0 0
        %8675 = vmatprep.subr.bf16.mxu0 0
        %8676 = vmatpush1.bf16.msra.mxu0 0
        %8677 = vmatprep.subr.bf16.mxu0 0
        %8678 = vmatpush1.bf16.msra.mxu0 0
        %8679 = vmatprep.subr.bf16.mxu0 0
        %8680 = vmatpush1.bf16.msra.mxu0 0
        %8681 = vmatprep.subr.bf16.mxu0 0
        %8682 = vmatpush1.bf16.msra.mxu0 0
        %8683 = vmatprep.subr.bf16.mxu0 0
        %8684 = vmatpush1.bf16.msra.mxu0 0
        %8685 = vmatprep.subr.bf16.mxu0 0
        %8686 = vmatpush1.bf16.msra.mxu0 0
        %8687 = vmatprep.mubr.bf16.mxu0 %v8608
        %8688 = vmatmul.mubr.bf16.gmra.mrb[0].mxu0 %v8479
        %v8689 = vpop.f32.mrb[0].mxu0
        %v8690 = vadd.f32 %v8551, %v8689
        %v8691 = vpop.f32.mrb[0].mxu0
        %v8692 = vpop.f32.mrb[0].mxu0
        %v8693 = vadd.f32 %v8551, %v8692
        %v8694 = vpop.f32.mrb[0].mxu0
        %8695 = vmatprep.mubr.bf16.mxu0 %v8611
        %8696 = vmatmul.mubr.bf16.gmra.mrb[0].mxu0 %v8482
        %v8697 = vpop.f32.mrb[0].mxu0
        %v8698 = vadd.f32 %v8551, %v8697
        %v8699 = vpop.f32.mrb[0].mxu0
        %v8700 = vpop.f32.mrb[0].mxu0
        %v8701 = vadd.f32 %v8551, %v8700
        %v8702 = vpop.f32.mrb[0].mxu0
        %8703 = vmatprep.mubr.bf16.mxu0 %v8614
        %8704 = vmatmul.mubr.bf16.gmra.mrb[0].mxu0 %v8485
        %v8705 = vpop.f32.mrb[0].mxu0
        %v8706 = vadd.f32 %v8551, %v8705
        %v8707 = vpop.f32.mrb[0].mxu0
        %v8708 = vpop.f32.mrb[0].mxu0
        %v8709 = vadd.f32 %v8551, %v8708
        %v8710 = vpop.f32.mrb[0].mxu0
        %8711 = vmatprep.mubr.bf16.mxu0 %v8617
        %8712 = vmatmul.mubr.bf16.gmra.mrb[0].mxu0 %v8488
        %v8713 = vpop.f32.mrb[0].mxu0
        %v8714 = vadd.f32 %v8551, %v8713
        %v8715 = vpop.f32.mrb[0].mxu0
        %v8716 = vpop.f32.mrb[0].mxu0
        %v8717 = vadd.f32 %v8551, %v8716
        %v8718 = vpop.f32.mrb[0].mxu0
        %8719 = vmatprep.mubr.bf16.mxu0 %v8620
        %8720 = vmatmul.mubr.bf16.gmra.mrb[0].mxu0 %v8491
        %v8721 = vpop.f32.mrb[0].mxu0
        %v8722 = vadd.f32 %v8551, %v8721
        %v8723 = vpop.f32.mrb[0].mxu0
        %v8724 = vpop.f32.mrb[0].mxu0
        %v8725 = vadd.f32 %v8551, %v8724
        %v8726 = vpop.f32.mrb[0].mxu0
        %8727 = vmatprep.mubr.bf16.mxu0 %v8623
        %8728 = vmatmul.mubr.bf16.gmra.mrb[0].mxu0 %v8494
        %v8729 = vpop.f32.mrb[0].mxu0
        %v8730 = vadd.f32 %v8551, %v8729
        %v8731 = vpop.f32.mrb[0].mxu0
        %v8732 = vpop.f32.mrb[0].mxu0
        %v8733 = vadd.f32 %v8551, %v8732
        %v8734 = vpop.f32.mrb[0].mxu0
        %8735 = vmatprep.mubr.bf16.mxu0 %v8626
        %8736 = vmatmul.mubr.bf16.gmra.mrb[0].mxu0 %v8497
        %v8737 = vpop.f32.mrb[0].mxu0
        %v8738 = vadd.f32 %v8551, %v8737
        %v8739 = vpop.f32.mrb[0].mxu0
        %v8740 = vpop.f32.mrb[0].mxu0
        %v8741 = vadd.f32 %v8551, %v8740
        %v8742 = vpop.f32.mrb[0].mxu0
        %8743 = vmatprep.mubr.bf16.mxu0 %v8629
        %8744 = vmatmul.mubr.bf16.gmra.mrb[0].mxu0 %v8500
        %v8745 = vpop.f32.mrb[0].mxu0
        %v8746 = vadd.f32 %v8551, %v8745
        %v8747 = vpop.f32.mrb[0].mxu0
        %v8748 = vpop.f32.mrb[0].mxu0
        %v8749 = vadd.f32 %v8551, %v8748
        %v8750 = vpop.f32.mrb[0].mxu0
        %8751 = vmatprep.mubr.bf16.mxu0 %v8632
        %8752 = vmatmul.mubr.bf16.gmra.mrb[0].mxu0 %v8503
        %v8753 = vpop.f32.mrb[0].mxu0
        %v8754 = vadd.f32 %v8551, %v8753
        %v8755 = vpop.f32.mrb[0].mxu0
        %v8756 = vpop.f32.mrb[0].mxu0
        %v8757 = vadd.f32 %v8551, %v8756
        %v8758 = vpop.f32.mrb[0].mxu0
        %8759 = vmatprep.mubr.bf16.mxu0 %v8635
        %8760 = vmatmul.mubr.bf16.gmra.mrb[0].mxu0 %v8506
        %v8761 = vpop.f32.mrb[0].mxu0
        %v8762 = vadd.f32 %v8551, %v8761
        %v8763 = vpop.f32.mrb[0].mxu0
        %v8764 = vpop.f32.mrb[0].mxu0
        %v8765 = vadd.f32 %v8551, %v8764
        %v8766 = vpop.f32.mrb[0].mxu0
        %8767 = vmatprep.mubr.bf16.mxu0 %v8638
        %8768 = vmatmul.mubr.bf16.gmra.mrb[0].mxu0 %v8509
        %v8769 = vpop.f32.mrb[0].mxu0
        %v8770 = vadd.f32 %v8551, %v8769
        %v8771 = vpop.f32.mrb[0].mxu0
        %v8772 = vpop.f32.mrb[0].mxu0
        %v8773 = vadd.f32 %v8551, %v8772
        %v8774 = vpop.f32.mrb[0].mxu0
        %8775 = vmatprep.mubr.bf16.mxu0 %v8641
        %8776 = vmatmul.mubr.bf16.gmra.mrb[0].mxu0 %v8512
        %v8777 = vpop.f32.mrb[0].mxu0
        %v8778 = vadd.f32 %v8551, %v8777
        %v8779 = vpop.f32.mrb[0].mxu0
        %v8780 = vpop.f32.mrb[0].mxu0
        %v8781 = vadd.f32 %v8551, %v8780
        %v8782 = vpop.f32.mrb[0].mxu0
        %8783 = vmatprep.mubr.bf16.mxu0 %v8644
        %8784 = vmatmul.mubr.bf16.gmra.mrb[0].mxu0 %v8515
        %v8785 = vpop.f32.mrb[0].mxu0
        %v8786 = vadd.f32 %v8551, %v8785
        %v8787 = vpop.f32.mrb[0].mxu0
        %v8788 = vpop.f32.mrb[0].mxu0
        %v8789 = vadd.f32 %v8551, %v8788
        %v8790 = vpop.f32.mrb[0].mxu0
        %8791 = vmatprep.mubr.bf16.mxu0 %v8647
        %8792 = vmatmul.mubr.bf16.gmra.mrb[0].mxu0 %v8518
        %v8793 = vpop.f32.mrb[0].mxu0
        %v8794 = vadd.f32 %v8551, %v8793
        %v8795 = vpop.f32.mrb[0].mxu0
        %v8796 = vpop.f32.mrb[0].mxu0
        %v8797 = vadd.f32 %v8551, %v8796
        %v8798 = vpop.f32.mrb[0].mxu0
        %8799 = vmatprep.mubr.bf16.mxu0 %v8650
        %8800 = vmatmul.mubr.bf16.gmra.mrb[0].mxu0 %v8521
        %v8801 = vpop.f32.mrb[0].mxu0
        %v8802 = vadd.f32 %v8551, %v8801
        %v8803 = vpop.f32.mrb[0].mxu0
        %v8804 = vpop.f32.mrb[0].mxu0
        %v8805 = vadd.f32 %v8551, %v8804
        %v8806 = vpop.f32.mrb[0].mxu0
        %8807 = vmatprep.mubr.bf16.mxu0 %v8653
        %8808 = vmatmul.mubr.bf16.gmra.mrb[0].mxu0 %v8524
        %v8809 = vpop.f32.mrb[0].mxu0
        %v8810 = vadd.f32 %v8551, %v8809
        %v8811 = vpop.f32.mrb[0].mxu0
        %v8812 = vpop.f32.mrb[0].mxu0
        %v8813 = vadd.f32 %v8551, %v8812
        %v8814 = vpop.f32.mrb[0].mxu0
        %8815 = vdwg.mxu0
        %v8816 = vmax.f32 %v8690, 0.0
        %v8817 = vmax.f32 %v8693, 0.0
        %v8818 = vmax.f32 %v8698, 0.0
        %v8819 = vmax.f32 %v8701, 0.0
        %v8820 = vmax.f32 %v8706, 0.0
        %v8821 = vmax.f32 %v8709, 0.0
        %v8822 = vmax.f32 %v8714, 0.0
        %v8823 = vmax.f32 %v8717, 0.0
        %v8824 = vmax.f32 %v8722, 0.0
        %v8825 = vmax.f32 %v8725, 0.0
        %v8826 = vmax.f32 %v8730, 0.0
        %v8827 = vmax.f32 %v8733, 0.0
        %v8828 = vmax.f32 %v8738, 0.0
        %v8829 = vmax.f32 %v8741, 0.0
        %v8830 = vmax.f32 %v8746, 0.0
        %v8831 = vmax.f32 %v8749, 0.0
        %v8832 = vmax.f32 %v8754, 0.0
        %v8833 = vmax.f32 %v8757, 0.0
        %v8834 = vmax.f32 %v8762, 0.0
        %v8835 = vmax.f32 %v8765, 0.0
        %v8836 = vmax.f32 %v8770, 0.0
        %v8837 = vmax.f32 %v8773, 0.0
        %v8838 = vmax.f32 %v8778, 0.0
        %v8839 = vmax.f32 %v8781, 0.0
        %v8840 = vmax.f32 %v8786, 0.0
        %v8841 = vmax.f32 %v8789, 0.0
        %v8842 = vmax.f32 %v8794, 0.0
        %v8843 = vmax.f32 %v8797, 0.0
        %v8844 = vmax.f32 %v8802, 0.0
        %v8845 = vmax.f32 %v8805, 0.0
        %v8846 = vmax.f32 %v8810, 0.0
        %v8847 = vmax.f32 %v8813, 0.0
        %v8848 = vpack.c.bf16 %v8817, %v8816
        %v8849 = vpack.c.bf16 %v8819, %v8818
        %v8850 = vpack.c.bf16 %v8821, %v8820
        %v8851 = vpack.c.bf16 %v8823, %v8822
        %v8852 = vpack.c.bf16 %v8825, %v8824
        %v8853 = vpack.c.bf16 %v8827, %v8826
        %v8854 = vpack.c.bf16 %v8829, %v8828
        %v8855 = vpack.c.bf16 %v8831, %v8830
        %v8856 = vpack.c.bf16 %v8833, %v8832
        %v8857 = vpack.c.bf16 %v8835, %v8834
        %v8858 = vpack.c.bf16 %v8837, %v8836
        %v8859 = vpack.c.bf16 %v8839, %v8838
        %v8860 = vpack.c.bf16 %v8841, %v8840
        %v8861 = vpack.c.bf16 %v8843, %v8842
        %v8862 = vpack.c.bf16 %v8845, %v8844
        %v8863 = vpack.c.bf16 %v8847, %v8846
        %8864 = vst [vmem:[#allocation2 + $0x18] sm:$0xff] %v8848
        %8865 = vst [vmem:[#allocation2 + $0x38] sm:$0xff] %v8849
        %8866 = vst [vmem:[#allocation2 + $0x58] sm:$0xff] %v8850
        %8867 = vst [vmem:[#allocation2 + $0x78] sm:$0xff] %v8851
        %8868 = vst [vmem:[#allocation2 + $0x98] sm:$0xff] %v8852
        %8869 = vst [vmem:[#allocation2 + $0xb8] sm:$0xff] %v8853
        %8870 = vst [vmem:[#allocation2 + $0xd8] sm:$0xff] %v8854
        %8871 = vst [vmem:[#allocation2 + $0xf8] sm:$0xff] %v8855
        %8872 = vst [vmem:[#allocation2 + $0x118] sm:$0xff] %v8856
        %8873 = vst [vmem:[#allocation2 + $0x138] sm:$0xff] %v8857
        %8874 = vst [vmem:[#allocation2 + $0x158] sm:$0xff] %v8858
        %8875 = vst [vmem:[#allocation2 + $0x178] sm:$0xff] %v8859
        %8876 = vst [vmem:[#allocation2 + $0x198] sm:$0xff] %v8860
        %8877 = vst [vmem:[#allocation2 + $0x1b8] sm:$0xff] %v8861
        %8878 = vst [vmem:[#allocation2 + $0x1d8] sm:$0xff] %v8862
        %8879 = vst [vmem:[#allocation2 + $0x1f8] sm:$0xff] %v8863
        %v8880 = vld [vmem:[#allocation2] sm:$0xff]
        %v8881 = vld [vmem:[#allocation2 + $0x8] sm:$0xff]
        %v8882 = vld [vmem:[#allocation2 + $0x10] sm:$0xff]
        %v8883 = vld [vmem:[#allocation2 + $0x18] sm:$0xff]
        %v8884 = vld [vmem:[#allocation2 + $0x20] sm:$0xff]
        %v8885 = vld [vmem:[#allocation2 + $0x28] sm:$0xff]
        %v8886 = vld [vmem:[#allocation2 + $0x30] sm:$0xff]
        %v8887 = vld [vmem:[#allocation2 + $0x38] sm:$0xff]
        %v8888 = vld [vmem:[#allocation2 + $0x40] sm:$0xff]
        %v8889 = vld [vmem:[#allocation2 + $0x48] sm:$0xff]
        %v8890 = vld [vmem:[#allocation2 + $0x50] sm:$0xff]
        %v8891 = vld [vmem:[#allocation2 + $0x58] sm:$0xff]
        %v8892 = vld [vmem:[#allocation2 + $0x60] sm:$0xff]
        %v8893 = vld [vmem:[#allocation2 + $0x68] sm:$0xff]
        %v8894 = vld [vmem:[#allocation2 + $0x70] sm:$0xff]
        %v8895 = vld [vmem:[#allocation2 + $0x78] sm:$0xff]
        %v8896 = vld [vmem:[#allocation2 + $0x80] sm:$0xff]
        %v8897 = vld [vmem:[#allocation2 + $0x88] sm:$0xff]
        %v8898 = vld [vmem:[#allocation2 + $0x90] sm:$0xff]
        %v8899 = vld [vmem:[#allocation2 + $0x98] sm:$0xff]
        %v8900 = vld [vmem:[#allocation2 + $0xa0] sm:$0xff]
        %v8901 = vld [vmem:[#allocation2 + $0xa8] sm:$0xff]
        %v8902 = vld [vmem:[#allocation2 + $0xb0] sm:$0xff]
        %v8903 = vld [vmem:[#allocation2 + $0xb8] sm:$0xff]
        %v8904 = vld [vmem:[#allocation2 + $0xc0] sm:$0xff]
        %v8905 = vld [vmem:[#allocation2 + $0xc8] sm:$0xff]
        %v8906 = vld [vmem:[#allocation2 + $0xd0] sm:$0xff]
        %v8907 = vld [vmem:[#allocation2 + $0xd8] sm:$0xff]
        %v8908 = vld [vmem:[#allocation2 + $0xe0] sm:$0xff]
        %v8909 = vld [vmem:[#allocation2 + $0xe8] sm:$0xff]
        %v8910 = vld [vmem:[#allocation2 + $0xf0] sm:$0xff]
        %v8911 = vld [vmem:[#allocation2 + $0xf8] sm:$0xff]
        %v8912 = vld [vmem:[#allocation2 + $0x100] sm:$0xff]
        %v8913 = vld [vmem:[#allocation2 + $0x108] sm:$0xff]
        %v8914 = vld [vmem:[#allocation2 + $0x110] sm:$0xff]
        %v8915 = vld [vmem:[#allocation2 + $0x118] sm:$0xff]
        %v8916 = vld [vmem:[#allocation2 + $0x120] sm:$0xff]
        %v8917 = vld [vmem:[#allocation2 + $0x128] sm:$0xff]
        %v8918 = vld [vmem:[#allocation2 + $0x130] sm:$0xff]
        %v8919 = vld [vmem:[#allocation2 + $0x138] sm:$0xff]
        %v8920 = vld [vmem:[#allocation2 + $0x140] sm:$0xff]
        %v8921 = vld [vmem:[#allocation2 + $0x148] sm:$0xff]
        %v8922 = vld [vmem:[#allocation2 + $0x150] sm:$0xff]
        %v8923 = vld [vmem:[#allocation2 + $0x158] sm:$0xff]
        %v8924 = vld [vmem:[#allocation2 + $0x160] sm:$0xff]
        %v8925 = vld [vmem:[#allocation2 + $0x168] sm:$0xff]
        %v8926 = vld [vmem:[#allocation2 + $0x170] sm:$0xff]
        %v8927 = vld [vmem:[#allocation2 + $0x178] sm:$0xff]
        %v8928 = vld [vmem:[#allocation2 + $0x180] sm:$0xff]
        %v8929 = vld [vmem:[#allocation2 + $0x188] sm:$0xff]
        %v8930 = vld [vmem:[#allocation2 + $0x190] sm:$0xff]
        %v8931 = vld [vmem:[#allocation2 + $0x198] sm:$0xff]
        %v8932 = vld [vmem:[#allocation2 + $0x1a0] sm:$0xff]
        %v8933 = vld [vmem:[#allocation2 + $0x1a8] sm:$0xff]
        %v8934 = vld [vmem:[#allocation2 + $0x1b0] sm:$0xff]
        %v8935 = vld [vmem:[#allocation2 + $0x1b8] sm:$0xff]
        %v8936 = vld [vmem:[#allocation2 + $0x1c0] sm:$0xff]
        %v8937 = vld [vmem:[#allocation2 + $0x1c8] sm:$0xff]
        %v8938 = vld [vmem:[#allocation2 + $0x1d0] sm:$0xff]
        %v8939 = vld [vmem:[#allocation2 + $0x1d8] sm:$0xff]
        %v8940 = vld [vmem:[#allocation2 + $0x1e0] sm:$0xff]
        %v8941 = vld [vmem:[#allocation2 + $0x1e8] sm:$0xff]
        %v8942 = vld [vmem:[#allocation2 + $0x1f0] sm:$0xff]
        %v8943 = vld [vmem:[#allocation2 + $0x1f8] sm:$0xff]
        %v8944 = vld [vmem:[%s5] sm:$0xf]
        %v8945 = vld [vmem:[%s5 + $0x4] sm:$0xf]
        %v8946 = vld [vmem:[%s5 + $0x8] sm:$0xf]
        %v8947 = vld [vmem:[%s5 + $0xc] sm:$0xf]
        %v8948 = vld [vmem:[%s5 + $0x10] sm:$0xf]
        %v8949 = vld [vmem:[%s5 + $0x14] sm:$0xf]
        %v8950 = vld [vmem:[%s5 + $0x18] sm:$0xf]
        %v8951 = vld [vmem:[%s5 + $0x1c] sm:$0xf]
        %v8952 = vld [vmem:[%s5 + $0x20] sm:$0xf]
        %v8953 = vld [vmem:[%s5 + $0x24] sm:$0xf]
        %v8954 = vld [vmem:[%s5 + $0x28] sm:$0xf]
        %v8955 = vld [vmem:[%s5 + $0x2c] sm:$0xf]
        %v8956 = vld [vmem:[%s5 + $0x30] sm:$0xf]
        %v8957 = vld [vmem:[%s5 + $0x34] sm:$0xf]
        %v8958 = vld [vmem:[%s5 + $0x38] sm:$0xf]
        %v8959 = vld [vmem:[%s5 + $0x3c] sm:$0xf]
        %v8960 = vld [vmem:[%s5 + $0x40] sm:$0xf]
        %v8961 = vld [vmem:[%s5 + $0x44] sm:$0xf]
        %v8962 = vld [vmem:[%s5 + $0x48] sm:$0xf]
        %v8963 = vld [vmem:[%s5 + $0x4c] sm:$0xf]
        %v8964 = vld [vmem:[%s5 + $0x50] sm:$0xf]
        %v8965 = vld [vmem:[%s5 + $0x54] sm:$0xf]
        %v8966 = vld [vmem:[%s5 + $0x58] sm:$0xf]
        %v8967 = vld [vmem:[%s5 + $0x5c] sm:$0xf]
        %v8968 = vld [vmem:[%s5 + $0x60] sm:$0xf]
        %v8969 = vld [vmem:[%s5 + $0x64] sm:$0xf]
        %v8970 = vld [vmem:[%s5 + $0x68] sm:$0xf]
        %v8971 = vld [vmem:[%s5 + $0x6c] sm:$0xf]
        %v8972 = vld [vmem:[%s5 + $0x70] sm:$0xf]
        %v8973 = vld [vmem:[%s5 + $0x74] sm:$0xf]
        %v8974 = vld [vmem:[%s5 + $0x78] sm:$0xf]
        %v8975 = vld [vmem:[%s5 + $0x7c] sm:$0xf]
        %v8976 = vld [vmem:[%s5 + $0x80] sm:$0xf]
        %v8977 = vld [vmem:[%s5 + $0x84] sm:$0xf]
        %v8978 = vld [vmem:[%s5 + $0x88] sm:$0xf]
        %v8979 = vld [vmem:[%s5 + $0x8c] sm:$0xf]
        %v8980 = vld [vmem:[%s5 + $0x90] sm:$0xf]
        %v8981 = vld [vmem:[%s5 + $0x94] sm:$0xf]
        %v8982 = vld [vmem:[%s5 + $0x98] sm:$0xf]
        %v8983 = vld [vmem:[%s5 + $0x9c] sm:$0xf]
        %v8984 = vld [vmem:[%s5 + $0xa0] sm:$0xf]
        %v8985 = vld [vmem:[%s5 + $0xa4] sm:$0xf]
        %v8986 = vld [vmem:[%s5 + $0xa8] sm:$0xf]
        %v8987 = vld [vmem:[%s5 + $0xac] sm:$0xf]
        %v8988 = vld [vmem:[%s5 + $0xb0] sm:$0xf]
        %v8989 = vld [vmem:[%s5 + $0xb4] sm:$0xf]
        %v8990 = vld [vmem:[%s5 + $0xb8] sm:$0xf]
        %v8991 = vld [vmem:[%s5 + $0xbc] sm:$0xf]
        %v8992 = vld [vmem:[%s5 + $0xc0] sm:$0xf]
        %v8993 = vld [vmem:[%s5 + $0xc4] sm:$0xf]
        %v8994 = vld [vmem:[%s5 + $0xc8] sm:$0xf]
        %v8995 = vld [vmem:[%s5 + $0xcc] sm:$0xf]
        %v8996 = vld [vmem:[%s5 + $0xd0] sm:$0xf]
        %v8997 = vld [vmem:[%s5 + $0xd4] sm:$0xf]
        %v8998 = vld [vmem:[%s5 + $0xd8] sm:$0xf]
        %v8999 = vld [vmem:[%s5 + $0xdc] sm:$0xf]
        %v9000 = vld [vmem:[%s5 + $0xe0] sm:$0xf]
        %v9001 = vld [vmem:[%s5 + $0xe4] sm:$0xf]
        %v9002 = vld [vmem:[%s5 + $0xe8] sm:$0xf]
        %v9003 = vld [vmem:[%s5 + $0xec] sm:$0xf]
        %v9004 = vld [vmem:[%s5 + $0xf0] sm:$0xf]
        %v9005 = vld [vmem:[%s5 + $0xf4] sm:$0xf]
        %v9006 = vld [vmem:[%s5 + $0xf8] sm:$0xf]
        %v9007 = vld [vmem:[%s5 + $0xfc] sm:$0xf]
        %v9008 = vld [vmem:[%s304] sm:$0x1]
        %v9010 = vlaneseq
        %v9011 = vshrl.u32 %v9010, 7
        %v9012 = vsub.s32 0, %v9011
        %v9013 = vrot.slane %v9008, %v9012
        %v9079 = vunpack.c.l.b16 %v8944
        %v9080 = vunpack.c.l.b16 %v8945
        %v9081 = vunpack.c.l.b16 %v8946
        %v9082 = vunpack.c.l.b16 %v8947
        %v9083 = vunpack.c.l.b16 %v8948
        %v9084 = vunpack.c.l.b16 %v8949
        %v9085 = vunpack.c.l.b16 %v8950
        %v9086 = vunpack.c.l.b16 %v8951
        %v9087 = vunpack.c.l.b16 %v8952
        %v9088 = vunpack.c.l.b16 %v8953
        %v9089 = vunpack.c.l.b16 %v8954
        %v9090 = vunpack.c.l.b16 %v8955
        %v9091 = vunpack.c.l.b16 %v8956
        %v9092 = vunpack.c.l.b16 %v8957
        %v9093 = vunpack.c.l.b16 %v8958
        %v9094 = vunpack.c.l.b16 %v8959
        %v9095 = vunpack.c.l.b16 %v8960
        %v9096 = vunpack.c.l.b16 %v8961
        %v9097 = vunpack.c.l.b16 %v8962
        %v9098 = vunpack.c.l.b16 %v8963
        %v9099 = vunpack.c.l.b16 %v8964
        %v9100 = vunpack.c.l.b16 %v8965
        %v9101 = vunpack.c.l.b16 %v8966
        %v9102 = vunpack.c.l.b16 %v8967
        %v9103 = vunpack.c.l.b16 %v8968
        %v9104 = vunpack.c.l.b16 %v8969
        %v9105 = vunpack.c.l.b16 %v8970
        %v9106 = vunpack.c.l.b16 %v8971
        %v9107 = vunpack.c.l.b16 %v8972
        %v9108 = vunpack.c.l.b16 %v8973
        %v9109 = vunpack.c.l.b16 %v8974
        %v9110 = vunpack.c.l.b16 %v8975
        %v9111 = vunpack.c.l.b16 %v8976
        %v9112 = vunpack.c.l.b16 %v8977
        %v9113 = vunpack.c.l.b16 %v8978
        %v9114 = vunpack.c.l.b16 %v8979
        %v9115 = vunpack.c.l.b16 %v8980
        %v9116 = vunpack.c.l.b16 %v8981
        %v9117 = vunpack.c.l.b16 %v8982
        %v9118 = vunpack.c.l.b16 %v8983
        %v9119 = vunpack.c.l.b16 %v8984
        %v9120 = vunpack.c.l.b16 %v8985
        %v9121 = vunpack.c.l.b16 %v8986
        %v9122 = vunpack.c.l.b16 %v8987
        %v9123 = vunpack.c.l.b16 %v8988
        %v9124 = vunpack.c.l.b16 %v8989
        %v9125 = vunpack.c.l.b16 %v8990
        %v9126 = vunpack.c.l.b16 %v8991
        %v9127 = vunpack.c.l.b16 %v8992
        %v9128 = vunpack.c.l.b16 %v8993
        %v9129 = vunpack.c.l.b16 %v8994
        %v9130 = vunpack.c.l.b16 %v8995
        %v9131 = vunpack.c.l.b16 %v8996
        %v9132 = vunpack.c.l.b16 %v8997
        %v9133 = vunpack.c.l.b16 %v8998
        %v9134 = vunpack.c.l.b16 %v8999
        %v9135 = vunpack.c.l.b16 %v9000
        %v9136 = vunpack.c.l.b16 %v9001
        %v9137 = vunpack.c.l.b16 %v9002
        %v9138 = vunpack.c.l.b16 %v9003
        %v9139 = vunpack.c.l.b16 %v9004
        %v9140 = vunpack.c.l.b16 %v9005
        %v9141 = vunpack.c.l.b16 %v9006
        %v9142 = vunpack.c.l.b16 %v9007
        %v9143 = vpack.c.b16 %v9080, %v9079
        %v9144 = vpack.c.b16 %v9082, %v9081
        %v9145 = vpack.c.b16 %v9084, %v9083
        %v9146 = vpack.c.b16 %v9086, %v9085
        %v9147 = vpack.c.b16 %v9088, %v9087
        %v9148 = vpack.c.b16 %v9090, %v9089
        %v9149 = vpack.c.b16 %v9092, %v9091
        %v9150 = vpack.c.b16 %v9094, %v9093
        %v9151 = vpack.c.b16 %v9096, %v9095
        %v9152 = vpack.c.b16 %v9098, %v9097
        %v9153 = vpack.c.b16 %v9100, %v9099
        %v9154 = vpack.c.b16 %v9102, %v9101
        %v9155 = vpack.c.b16 %v9104, %v9103
        %v9156 = vpack.c.b16 %v9106, %v9105
        %v9157 = vpack.c.b16 %v9108, %v9107
        %v9158 = vpack.c.b16 %v9110, %v9109
        %v9159 = vpack.c.b16 %v9112, %v9111
        %v9160 = vpack.c.b16 %v9114, %v9113
        %v9161 = vpack.c.b16 %v9116, %v9115
        %v9162 = vpack.c.b16 %v9118, %v9117
        %v9163 = vpack.c.b16 %v9120, %v9119
        %v9164 = vpack.c.b16 %v9122, %v9121
        %v9165 = vpack.c.b16 %v9124, %v9123
        %v9166 = vpack.c.b16 %v9126, %v9125
        %v9167 = vpack.c.b16 %v9128, %v9127
        %v9168 = vpack.c.b16 %v9130, %v9129
        %v9169 = vpack.c.b16 %v9132, %v9131
        %v9170 = vpack.c.b16 %v9134, %v9133
        %v9171 = vpack.c.b16 %v9136, %v9135
        %v9172 = vpack.c.b16 %v9138, %v9137
        %v9173 = vpack.c.b16 %v9140, %v9139
        %v9174 = vpack.c.b16 %v9142, %v9141
        %9207 = vmatprep.subr.bf16.mxu0 0
        %9208 = vmatpush1.bf16.msra.mxu0 %v9143
        %9209 = vmatprep.subr.bf16.mxu0 0
        %9210 = vmatpush1.bf16.msra.mxu0 %v9144
        %9211 = vmatprep.subr.bf16.mxu0 0
        %9212 = vmatpush1.bf16.msra.mxu0 %v9145
        %9213 = vmatprep.subr.bf16.mxu0 0
        %9214 = vmatpush1.bf16.msra.mxu0 %v9146
        %9215 = vmatprep.subr.bf16.mxu0 0
        %9216 = vmatpush1.bf16.msra.mxu0 %v9147
        %9217 = vmatprep.subr.bf16.mxu0 0
        %9218 = vmatpush1.bf16.msra.mxu0 %v9148
        %9219 = vmatprep.subr.bf16.mxu0 0
        %9220 = vmatpush1.bf16.msra.mxu0 %v9149
        %9221 = vmatprep.subr.bf16.mxu0 0
        %9222 = vmatpush1.bf16.msra.mxu0 %v9150
        %9223 = vmatprep.subr.bf16.mxu0 0
        %9224 = vmatpush1.bf16.msra.mxu0 %v9151
        %9225 = vmatprep.subr.bf16.mxu0 0
        %9226 = vmatpush1.bf16.msra.mxu0 %v9152
        %9227 = vmatprep.subr.bf16.mxu0 0
        %9228 = vmatpush1.bf16.msra.mxu0 %v9153
        %9229 = vmatprep.subr.bf16.mxu0 0
        %9230 = vmatpush1.bf16.msra.mxu0 %v9154
        %9231 = vmatprep.subr.bf16.mxu0 0
        %9232 = vmatpush1.bf16.msra.mxu0 %v9155
        %9233 = vmatprep.subr.bf16.mxu0 0
        %9234 = vmatpush1.bf16.msra.mxu0 %v9156
        %9235 = vmatprep.subr.bf16.mxu0 0
        %9236 = vmatpush1.bf16.msra.mxu0 %v9157
        %9237 = vmatprep.subr.bf16.mxu0 0
        %9238 = vmatpush1.bf16.msra.mxu0 %v9158
        %9239 = vmatprep.mubr.bf16.mxu0 %v8881
        %9240 = vmatmul.mubr.bf16.gmra.mrb[0].mxu0 %v8880
        %v9241 = vpop.f32.mrb[0].mxu0
        %v9242 = vadd.f32 %v9013, %v9241
        %v9243 = vpop.f32.mrb[0].mxu0
        %v9244 = vpop.f32.mrb[0].mxu0
        %v9245 = vadd.f32 %v9013, %v9244
        %v9246 = vpop.f32.mrb[0].mxu0
        %9247 = vmatprep.mubr.bf16.mxu0 %v8885
        %9248 = vmatmul.mubr.bf16.gmra.mrb[0].mxu0 %v8884
        %v9249 = vpop.f32.mrb[0].mxu0
        %v9250 = vadd.f32 %v9013, %v9249
        %v9251 = vpop.f32.mrb[0].mxu0
        %v9252 = vpop.f32.mrb[0].mxu0
        %v9253 = vadd.f32 %v9013, %v9252
        %v9254 = vpop.f32.mrb[0].mxu0
        %9255 = vmatprep.mubr.bf16.mxu0 %v8889
        %9256 = vmatmul.mubr.bf16.gmra.mrb[0].mxu0 %v8888
        %v9257 = vpop.f32.mrb[0].mxu0
        %v9258 = vadd.f32 %v9013, %v9257
        %v9259 = vpop.f32.mrb[0].mxu0
        %v9260 = vpop.f32.mrb[0].mxu0
        %v9261 = vadd.f32 %v9013, %v9260
        %v9262 = vpop.f32.mrb[0].mxu0
        %9263 = vmatprep.mubr.bf16.mxu0 %v8893
        %9264 = vmatmul.mubr.bf16.gmra.mrb[0].mxu0 %v8892
        %v9265 = vpop.f32.mrb[0].mxu0
        %v9266 = vadd.f32 %v9013, %v9265
        %v9267 = vpop.f32.mrb[0].mxu0
        %v9268 = vpop.f32.mrb[0].mxu0
        %v9269 = vadd.f32 %v9013, %v9268
        %v9270 = vpop.f32.mrb[0].mxu0
        %9271 = vmatprep.mubr.bf16.mxu0 %v8897
        %9272 = vmatmul.mubr.bf16.gmra.mrb[0].mxu0 %v8896
        %v9273 = vpop.f32.mrb[0].mxu0
        %v9274 = vadd.f32 %v9013, %v9273
        %v9275 = vpop.f32.mrb[0].mxu0
        %v9276 = vpop.f32.mrb[0].mxu0
        %v9277 = vadd.f32 %v9013, %v9276
        %v9278 = vpop.f32.mrb[0].mxu0
        %9279 = vmatprep.mubr.bf16.mxu0 %v8901
        %9280 = vmatmul.mubr.bf16.gmra.mrb[0].mxu0 %v8900
        %v9281 = vpop.f32.mrb[0].mxu0
        %v9282 = vadd.f32 %v9013, %v9281
        %v9283 = vpop.f32.mrb[0].mxu0
        %v9284 = vpop.f32.mrb[0].mxu0
        %v9285 = vadd.f32 %v9013, %v9284
        %v9286 = vpop.f32.mrb[0].mxu0
        %9287 = vmatprep.mubr.bf16.mxu0 %v8905
        %9288 = vmatmul.mubr.bf16.gmra.mrb[0].mxu0 %v8904
        %v9289 = vpop.f32.mrb[0].mxu0
        %v9290 = vadd.f32 %v9013, %v9289
        %v9291 = vpop.f32.mrb[0].mxu0
        %v9292 = vpop.f32.mrb[0].mxu0
        %v9293 = vadd.f32 %v9013, %v9292
        %v9294 = vpop.f32.mrb[0].mxu0
        %9295 = vmatprep.mubr.bf16.mxu0 %v8909
        %9296 = vmatmul.mubr.bf16.gmra.mrb[0].mxu0 %v8908
        %v9297 = vpop.f32.mrb[0].mxu0
        %v9298 = vadd.f32 %v9013, %v9297
        %v9299 = vpop.f32.mrb[0].mxu0
        %v9300 = vpop.f32.mrb[0].mxu0
        %v9301 = vadd.f32 %v9013, %v9300
        %v9302 = vpop.f32.mrb[0].mxu0
        %9303 = vmatprep.mubr.bf16.mxu0 %v8913
        %9304 = vmatmul.mubr.bf16.gmra.mrb[0].mxu0 %v8912
        %v9305 = vpop.f32.mrb[0].mxu0
        %v9306 = vadd.f32 %v9013, %v9305
        %v9307 = vpop.f32.mrb[0].mxu0
        %v9308 = vpop.f32.mrb[0].mxu0
        %v9309 = vadd.f32 %v9013, %v9308
        %v9310 = vpop.f32.mrb[0].mxu0
        %9311 = vmatprep.mubr.bf16.mxu0 %v8917
        %9312 = vmatmul.mubr.bf16.gmra.mrb[0].mxu0 %v8916
        %v9313 = vpop.f32.mrb[0].mxu0
        %v9314 = vadd.f32 %v9013, %v9313
        %v9315 = vpop.f32.mrb[0].mxu0
        %v9316 = vpop.f32.mrb[0].mxu0
        %v9317 = vadd.f32 %v9013, %v9316
        %v9318 = vpop.f32.mrb[0].mxu0
        %9319 = vmatprep.mubr.bf16.mxu0 %v8921
        %9320 = vmatmul.mubr.bf16.gmra.mrb[0].mxu0 %v8920
        %v9321 = vpop.f32.mrb[0].mxu0
        %v9322 = vadd.f32 %v9013, %v9321
        %v9323 = vpop.f32.mrb[0].mxu0
        %v9324 = vpop.f32.mrb[0].mxu0
        %v9325 = vadd.f32 %v9013, %v9324
        %v9326 = vpop.f32.mrb[0].mxu0
        %9327 = vmatprep.mubr.bf16.mxu0 %v8925
        %9328 = vmatmul.mubr.bf16.gmra.mrb[0].mxu0 %v8924
        %v9329 = vpop.f32.mrb[0].mxu0
        %v9330 = vadd.f32 %v9013, %v9329
        %v9331 = vpop.f32.mrb[0].mxu0
        %v9332 = vpop.f32.mrb[0].mxu0
        %v9333 = vadd.f32 %v9013, %v9332
        %v9334 = vpop.f32.mrb[0].mxu0
        %9335 = vmatprep.mubr.bf16.mxu0 %v8929
        %9336 = vmatmul.mubr.bf16.gmra.mrb[0].mxu0 %v8928
        %v9337 = vpop.f32.mrb[0].mxu0
        %v9338 = vadd.f32 %v9013, %v9337
        %v9339 = vpop.f32.mrb[0].mxu0
        %v9340 = vpop.f32.mrb[0].mxu0
        %v9341 = vadd.f32 %v9013, %v9340
        %v9342 = vpop.f32.mrb[0].mxu0
        %9343 = vmatprep.mubr.bf16.mxu0 %v8933
        %9344 = vmatmul.mubr.bf16.gmra.mrb[0].mxu0 %v8932
        %v9345 = vpop.f32.mrb[0].mxu0
        %v9346 = vadd.f32 %v9013, %v9345
        %v9347 = vpop.f32.mrb[0].mxu0
        %v9348 = vpop.f32.mrb[0].mxu0
        %v9349 = vadd.f32 %v9013, %v9348
        %v9350 = vpop.f32.mrb[0].mxu0
        %9351 = vmatprep.mubr.bf16.mxu0 %v8937
        %9352 = vmatmul.mubr.bf16.gmra.mrb[0].mxu0 %v8936
        %v9353 = vpop.f32.mrb[0].mxu0
        %v9354 = vadd.f32 %v9013, %v9353
        %v9355 = vpop.f32.mrb[0].mxu0
        %v9356 = vpop.f32.mrb[0].mxu0
        %v9357 = vadd.f32 %v9013, %v9356
        %v9358 = vpop.f32.mrb[0].mxu0
        %9359 = vmatprep.mubr.bf16.mxu0 %v8941
        %9360 = vmatmul.mubr.bf16.gmra.mrb[0].mxu0 %v8940
        %v9361 = vpop.f32.mrb[0].mxu0
        %v9362 = vadd.f32 %v9013, %v9361
        %v9363 = vpop.f32.mrb[0].mxu0
        %v9364 = vpop.f32.mrb[0].mxu0
        %v9365 = vadd.f32 %v9013, %v9364
        %v9366 = vpop.f32.mrb[0].mxu0
        %9367 = vdwg.mxu0
        %9368 = vmatprep.subr.bf16.mxu0 0
        %9369 = vmatpush1.bf16.msra.mxu0 %v9159
        %9370 = vmatprep.subr.bf16.mxu0 0
        %9371 = vmatpush1.bf16.msra.mxu0 %v9160
        %9372 = vmatprep.subr.bf16.mxu0 0
        %9373 = vmatpush1.bf16.msra.mxu0 %v9161
        %9374 = vmatprep.subr.bf16.mxu0 0
        %9375 = vmatpush1.bf16.msra.mxu0 %v9162
        %9376 = vmatprep.subr.bf16.mxu0 0
        %9377 = vmatpush1.bf16.msra.mxu0 %v9163
        %9378 = vmatprep.subr.bf16.mxu0 0
        %9379 = vmatpush1.bf16.msra.mxu0 %v9164
        %9380 = vmatprep.subr.bf16.mxu0 0
        %9381 = vmatpush1.bf16.msra.mxu0 %v9165
        %9382 = vmatprep.subr.bf16.mxu0 0
        %9383 = vmatpush1.bf16.msra.mxu0 %v9166
        %9384 = vmatprep.subr.bf16.mxu0 0
        %9385 = vmatpush1.bf16.msra.mxu0 %v9167
        %9386 = vmatprep.subr.bf16.mxu0 0
        %9387 = vmatpush1.bf16.msra.mxu0 %v9168
        %9388 = vmatprep.subr.bf16.mxu0 0
        %9389 = vmatpush1.bf16.msra.mxu0 %v9169
        %9390 = vmatprep.subr.bf16.mxu0 0
        %9391 = vmatpush1.bf16.msra.mxu0 %v9170
        %9392 = vmatprep.subr.bf16.mxu0 0
        %9393 = vmatpush1.bf16.msra.mxu0 %v9171
        %9394 = vmatprep.subr.bf16.mxu0 0
        %9395 = vmatpush1.bf16.msra.mxu0 %v9172
        %9396 = vmatprep.subr.bf16.mxu0 0
        %9397 = vmatpush1.bf16.msra.mxu0 %v9173
        %9398 = vmatprep.subr.bf16.mxu0 0
        %9399 = vmatpush1.bf16.msra.mxu0 %v9174
        %9400 = vmatprep.mubr.bf16.mxu0 %v8883
        %9401 = vmatmul.mubr.bf16.gmra.mrb[0].mxu0 %v8882
        %v9402 = vpop.f32.mrb[0].mxu0
        %v9403 = vadd.f32 %v9242, %v9402
        %v9404 = vpop.f32.mrb[0].mxu0
        %v9405 = vpop.f32.mrb[0].mxu0
        %v9406 = vadd.f32 %v9245, %v9405
        %v9407 = vpop.f32.mrb[0].mxu0
        %9408 = vmatprep.mubr.bf16.mxu0 %v8887
        %9409 = vmatmul.mubr.bf16.gmra.mrb[0].mxu0 %v8886
        %v9410 = vpop.f32.mrb[0].mxu0
        %v9411 = vadd.f32 %v9250, %v9410
        %v9412 = vpop.f32.mrb[0].mxu0
        %v9413 = vpop.f32.mrb[0].mxu0
        %v9414 = vadd.f32 %v9253, %v9413
        %v9415 = vpop.f32.mrb[0].mxu0
        %9416 = vmatprep.mubr.bf16.mxu0 %v8891
        %9417 = vmatmul.mubr.bf16.gmra.mrb[0].mxu0 %v8890
        %v9418 = vpop.f32.mrb[0].mxu0
        %v9419 = vadd.f32 %v9258, %v9418
        %v9420 = vpop.f32.mrb[0].mxu0
        %v9421 = vpop.f32.mrb[0].mxu0
        %v9422 = vadd.f32 %v9261, %v9421
        %v9423 = vpop.f32.mrb[0].mxu0
        %9424 = vmatprep.mubr.bf16.mxu0 %v8895
        %9425 = vmatmul.mubr.bf16.gmra.mrb[0].mxu0 %v8894
        %v9426 = vpop.f32.mrb[0].mxu0
        %v9427 = vadd.f32 %v9266, %v9426
        %v9428 = vpop.f32.mrb[0].mxu0
        %v9429 = vpop.f32.mrb[0].mxu0
        %v9430 = vadd.f32 %v9269, %v9429
        %v9431 = vpop.f32.mrb[0].mxu0
        %9432 = vmatprep.mubr.bf16.mxu0 %v8899
        %9433 = vmatmul.mubr.bf16.gmra.mrb[0].mxu0 %v8898
        %v9434 = vpop.f32.mrb[0].mxu0
        %v9435 = vadd.f32 %v9274, %v9434
        %v9436 = vpop.f32.mrb[0].mxu0
        %v9437 = vpop.f32.mrb[0].mxu0
        %v9438 = vadd.f32 %v9277, %v9437
        %v9439 = vpop.f32.mrb[0].mxu0
        %9440 = vmatprep.mubr.bf16.mxu0 %v8903
        %9441 = vmatmul.mubr.bf16.gmra.mrb[0].mxu0 %v8902
        %v9442 = vpop.f32.mrb[0].mxu0
        %v9443 = vadd.f32 %v9282, %v9442
        %v9444 = vpop.f32.mrb[0].mxu0
        %v9445 = vpop.f32.mrb[0].mxu0
        %v9446 = vadd.f32 %v9285, %v9445
        %v9447 = vpop.f32.mrb[0].mxu0
        %9448 = vmatprep.mubr.bf16.mxu0 %v8907
        %9449 = vmatmul.mubr.bf16.gmra.mrb[0].mxu0 %v8906
        %v9450 = vpop.f32.mrb[0].mxu0
        %v9451 = vadd.f32 %v9290, %v9450
        %v9452 = vpop.f32.mrb[0].mxu0
        %v9453 = vpop.f32.mrb[0].mxu0
        %v9454 = vadd.f32 %v9293, %v9453
        %v9455 = vpop.f32.mrb[0].mxu0
        %9456 = vmatprep.mubr.bf16.mxu0 %v8911
        %9457 = vmatmul.mubr.bf16.gmra.mrb[0].mxu0 %v8910
        %v9458 = vpop.f32.mrb[0].mxu0
        %v9459 = vadd.f32 %v9298, %v9458
        %v9460 = vpop.f32.mrb[0].mxu0
        %v9461 = vpop.f32.mrb[0].mxu0
        %v9462 = vadd.f32 %v9301, %v9461
        %v9463 = vpop.f32.mrb[0].mxu0
        %9464 = vmatprep.mubr.bf16.mxu0 %v8915
        %9465 = vmatmul.mubr.bf16.gmra.mrb[0].mxu0 %v8914
        %v9466 = vpop.f32.mrb[0].mxu0
        %v9467 = vadd.f32 %v9306, %v9466
        %v9468 = vpop.f32.mrb[0].mxu0
        %v9469 = vpop.f32.mrb[0].mxu0
        %v9470 = vadd.f32 %v9309, %v9469
        %v9471 = vpop.f32.mrb[0].mxu0
        %9472 = vmatprep.mubr.bf16.mxu0 %v8919
        %9473 = vmatmul.mubr.bf16.gmra.mrb[0].mxu0 %v8918
        %v9474 = vpop.f32.mrb[0].mxu0
        %v9475 = vadd.f32 %v9314, %v9474
        %v9476 = vpop.f32.mrb[0].mxu0
        %v9477 = vpop.f32.mrb[0].mxu0
        %v9478 = vadd.f32 %v9317, %v9477
        %v9479 = vpop.f32.mrb[0].mxu0
        %9480 = vmatprep.mubr.bf16.mxu0 %v8923
        %9481 = vmatmul.mubr.bf16.gmra.mrb[0].mxu0 %v8922
        %v9482 = vpop.f32.mrb[0].mxu0
        %v9483 = vadd.f32 %v9322, %v9482
        %v9484 = vpop.f32.mrb[0].mxu0
        %v9485 = vpop.f32.mrb[0].mxu0
        %v9486 = vadd.f32 %v9325, %v9485
        %v9487 = vpop.f32.mrb[0].mxu0
        %9488 = vmatprep.mubr.bf16.mxu0 %v8927
        %9489 = vmatmul.mubr.bf16.gmra.mrb[0].mxu0 %v8926
        %v9490 = vpop.f32.mrb[0].mxu0
        %v9491 = vadd.f32 %v9330, %v9490
        %v9492 = vpop.f32.mrb[0].mxu0
        %v9493 = vpop.f32.mrb[0].mxu0
        %v9494 = vadd.f32 %v9333, %v9493
        %v9495 = vpop.f32.mrb[0].mxu0
        %9496 = vmatprep.mubr.bf16.mxu0 %v8931
        %9497 = vmatmul.mubr.bf16.gmra.mrb[0].mxu0 %v8930
        %v9498 = vpop.f32.mrb[0].mxu0
        %v9499 = vadd.f32 %v9338, %v9498
        %v9500 = vpop.f32.mrb[0].mxu0
        %v9501 = vpop.f32.mrb[0].mxu0
        %v9502 = vadd.f32 %v9341, %v9501
        %v9503 = vpop.f32.mrb[0].mxu0
        %9504 = vmatprep.mubr.bf16.mxu0 %v8935
        %9505 = vmatmul.mubr.bf16.gmra.mrb[0].mxu0 %v8934
        %v9506 = vpop.f32.mrb[0].mxu0
        %v9507 = vadd.f32 %v9346, %v9506
        %v9508 = vpop.f32.mrb[0].mxu0
        %v9509 = vpop.f32.mrb[0].mxu0
        %v9510 = vadd.f32 %v9349, %v9509
        %v9511 = vpop.f32.mrb[0].mxu0
        %9512 = vmatprep.mubr.bf16.mxu0 %v8939
        %9513 = vmatmul.mubr.bf16.gmra.mrb[0].mxu0 %v8938
        %v9514 = vpop.f32.mrb[0].mxu0
        %v9515 = vadd.f32 %v9354, %v9514
        %v9516 = vpop.f32.mrb[0].mxu0
        %v9517 = vpop.f32.mrb[0].mxu0
        %v9518 = vadd.f32 %v9357, %v9517
        %v9519 = vpop.f32.mrb[0].mxu0
        %9520 = vmatprep.mubr.bf16.mxu0 %v8943
        %9521 = vmatmul.mubr.bf16.gmra.mrb[0].mxu0 %v8942
        %v9522 = vpop.f32.mrb[0].mxu0
        %v9523 = vadd.f32 %v9362, %v9522
        %v9524 = vpop.f32.mrb[0].mxu0
        %v9525 = vpop.f32.mrb[0].mxu0
        %v9526 = vadd.f32 %v9365, %v9525
        %v9527 = vpop.f32.mrb[0].mxu0
        %9528 = vdwg.mxu0
        %v9529 = vmax.f32 %v9403, 0.0
        %v9530 = vmax.f32 %v9406, 0.0
        %v9531 = vmax.f32 %v9411, 0.0
        %v9532 = vmax.f32 %v9414, 0.0
        %v9533 = vmax.f32 %v9419, 0.0
        %v9534 = vmax.f32 %v9422, 0.0
        %v9535 = vmax.f32 %v9427, 0.0
        %v9536 = vmax.f32 %v9430, 0.0
        %v9537 = vmax.f32 %v9435, 0.0
        %v9538 = vmax.f32 %v9438, 0.0
        %v9539 = vmax.f32 %v9443, 0.0
        %v9540 = vmax.f32 %v9446, 0.0
        %v9541 = vmax.f32 %v9451, 0.0
        %v9542 = vmax.f32 %v9454, 0.0
        %v9543 = vmax.f32 %v9459, 0.0
        %v9544 = vmax.f32 %v9462, 0.0
        %v9545 = vmax.f32 %v9467, 0.0
        %v9546 = vmax.f32 %v9470, 0.0
        %v9547 = vmax.f32 %v9475, 0.0
        %v9548 = vmax.f32 %v9478, 0.0
        %v9549 = vmax.f32 %v9483, 0.0
        %v9550 = vmax.f32 %v9486, 0.0
        %v9551 = vmax.f32 %v9491, 0.0
        %v9552 = vmax.f32 %v9494, 0.0
        %v9553 = vmax.f32 %v9499, 0.0
        %v9554 = vmax.f32 %v9502, 0.0
        %v9555 = vmax.f32 %v9507, 0.0
        %v9556 = vmax.f32 %v9510, 0.0
        %v9557 = vmax.f32 %v9515, 0.0
        %v9558 = vmax.f32 %v9518, 0.0
        %v9559 = vmax.f32 %v9523, 0.0
        %v9560 = vmax.f32 %v9526, 0.0
        %v9561 = vpack.c.bf16 %v9530, %v9529
        %v9562 = vpack.c.bf16 %v9532, %v9531
        %v9563 = vpack.c.bf16 %v9534, %v9533
        %v9564 = vpack.c.bf16 %v9536, %v9535
        %v9565 = vpack.c.bf16 %v9538, %v9537
        %v9566 = vpack.c.bf16 %v9540, %v9539
        %v9567 = vpack.c.bf16 %v9542, %v9541
        %v9568 = vpack.c.bf16 %v9544, %v9543
        %v9569 = vpack.c.bf16 %v9546, %v9545
        %v9570 = vpack.c.bf16 %v9548, %v9547
        %v9571 = vpack.c.bf16 %v9550, %v9549
        %v9572 = vpack.c.bf16 %v9552, %v9551
        %v9573 = vpack.c.bf16 %v9554, %v9553
        %v9574 = vpack.c.bf16 %v9556, %v9555
        %v9575 = vpack.c.bf16 %v9558, %v9557
        %v9576 = vpack.c.bf16 %v9560, %v9559
        %v9593 = vunpack.c.l.b16 %v9561
        %v9594 = vunpack.c.h.b16 %v9561
        %v9595 = vunpack.c.l.b16 %v9562
        %v9596 = vunpack.c.h.b16 %v9562
        %v9597 = vunpack.c.l.b16 %v9563
        %v9598 = vunpack.c.h.b16 %v9563
        %v9599 = vunpack.c.l.b16 %v9564
        %v9600 = vunpack.c.h.b16 %v9564
        %v9601 = vunpack.c.l.b16 %v9565
        %v9602 = vunpack.c.h.b16 %v9565
        %v9603 = vunpack.c.l.b16 %v9566
        %v9604 = vunpack.c.h.b16 %v9566
        %v9605 = vunpack.c.l.b16 %v9567
        %v9606 = vunpack.c.h.b16 %v9567
        %v9607 = vunpack.c.l.b16 %v9568
        %v9608 = vunpack.c.h.b16 %v9568
        %v9609 = vunpack.c.l.b16 %v9569
        %v9610 = vunpack.c.h.b16 %v9569
        %v9611 = vunpack.c.l.b16 %v9570
        %v9612 = vunpack.c.h.b16 %v9570
        %v9613 = vunpack.c.l.b16 %v9571
        %v9614 = vunpack.c.h.b16 %v9571
        %v9615 = vunpack.c.l.b16 %v9572
        %v9616 = vunpack.c.h.b16 %v9572
        %v9617 = vunpack.c.l.b16 %v9573
        %v9618 = vunpack.c.h.b16 %v9573
        %v9619 = vunpack.c.l.b16 %v9574
        %v9620 = vunpack.c.h.b16 %v9574
        %v9621 = vunpack.c.l.b16 %v9575
        %v9622 = vunpack.c.h.b16 %v9575
        %v9623 = vunpack.c.l.b16 %v9576
        %v9624 = vunpack.c.h.b16 %v9576
        %v9625 = vpack.c.b16 %v9593, %v9593
        %v9626 = vpack.c.b16 %v9594, %v9594
        %v9627 = vpack.c.b16 %v9595, %v9595
        %v9628 = vpack.c.b16 %v9596, %v9596
        %v9629 = vpack.c.b16 %v9597, %v9597
        %v9630 = vpack.c.b16 %v9598, %v9598
        %v9631 = vpack.c.b16 %v9599, %v9599
        %v9632 = vpack.c.b16 %v9600, %v9600
        %v9633 = vpack.c.b16 %v9601, %v9601
        %v9634 = vpack.c.b16 %v9602, %v9602
        %v9635 = vpack.c.b16 %v9603, %v9603
        %v9636 = vpack.c.b16 %v9604, %v9604
        %v9637 = vpack.c.b16 %v9605, %v9605
        %v9638 = vpack.c.b16 %v9606, %v9606
        %v9639 = vpack.c.b16 %v9607, %v9607
        %v9640 = vpack.c.b16 %v9608, %v9608
        %v9641 = vpack.c.b16 %v9609, %v9609
        %v9642 = vpack.c.b16 %v9610, %v9610
        %v9643 = vpack.c.b16 %v9611, %v9611
        %v9644 = vpack.c.b16 %v9612, %v9612
        %v9645 = vpack.c.b16 %v9613, %v9613
        %v9646 = vpack.c.b16 %v9614, %v9614
        %v9647 = vpack.c.b16 %v9615, %v9615
        %v9648 = vpack.c.b16 %v9616, %v9616
        %v9649 = vpack.c.b16 %v9617, %v9617
        %v9650 = vpack.c.b16 %v9618, %v9618
        %v9651 = vpack.c.b16 %v9619, %v9619
        %v9652 = vpack.c.b16 %v9620, %v9620
        %v9653 = vpack.c.b16 %v9621, %v9621
        %v9654 = vpack.c.b16 %v9622, %v9622
        %v9655 = vpack.c.b16 %v9623, %v9623
        %v9656 = vpack.c.b16 %v9624, %v9624
        %9689 = vst [vmem:[%s296] sm:$0xf] %v9625
        %9690 = vst [vmem:[%s296 + $0x4] sm:$0xf] %v9626
        %9691 = vst [vmem:[%s296 + $0x8] sm:$0xf] %v9627
        %9692 = vst [vmem:[%s296 + $0xc] sm:$0xf] %v9628
        %9693 = vst [vmem:[%s296 + $0x10] sm:$0xf] %v9629
        %9694 = vst [vmem:[%s296 + $0x14] sm:$0xf] %v9630
        %9695 = vst [vmem:[%s296 + $0x18] sm:$0xf] %v9631
        %9696 = vst [vmem:[%s296 + $0x1c] sm:$0xf] %v9632
        %9697 = vst [vmem:[%s296 + $0x20] sm:$0xf] %v9633
        %9698 = vst [vmem:[%s296 + $0x24] sm:$0xf] %v9634
        %9699 = vst [vmem:[%s296 + $0x28] sm:$0xf] %v9635
        %9700 = vst [vmem:[%s296 + $0x2c] sm:$0xf] %v9636
        %9701 = vst [vmem:[%s296 + $0x30] sm:$0xf] %v9637
        %9702 = vst [vmem:[%s296 + $0x34] sm:$0xf] %v9638
        %9703 = vst [vmem:[%s296 + $0x38] sm:$0xf] %v9639
        %9704 = vst [vmem:[%s296 + $0x3c] sm:$0xf] %v9640
        %9705 = vst [vmem:[%s296 + $0x40] sm:$0xf] %v9641
        %9706 = vst [vmem:[%s296 + $0x44] sm:$0xf] %v9642
        %9707 = vst [vmem:[%s296 + $0x48] sm:$0xf] %v9643
        %9708 = vst [vmem:[%s296 + $0x4c] sm:$0xf] %v9644
        %9709 = vst [vmem:[%s296 + $0x50] sm:$0xf] %v9645
        %9710 = vst [vmem:[%s296 + $0x54] sm:$0xf] %v9646
        %9711 = vst [vmem:[%s296 + $0x58] sm:$0xf] %v9647
        %9712 = vst [vmem:[%s296 + $0x5c] sm:$0xf] %v9648
        %9713 = vst [vmem:[%s296 + $0x60] sm:$0xf] %v9649
        %9714 = vst [vmem:[%s296 + $0x64] sm:$0xf] %v9650
        %9715 = vst [vmem:[%s296 + $0x68] sm:$0xf] %v9651
        %9716 = vst [vmem:[%s296 + $0x6c] sm:$0xf] %v9652
        %9717 = vst [vmem:[%s296 + $0x70] sm:$0xf] %v9653
        %9718 = vst [vmem:[%s296 + $0x74] sm:$0xf] %v9654
        %9719 = vst [vmem:[%s296 + $0x78] sm:$0xf] %v9655
        %9720 = vst [vmem:[%s296 + $0x7c] sm:$0xf] %v9656
        %s9721 = sand.u32 %s200, 1
        %s9722 = scalar_lea.sflag [#allocation4], %s9721
        %s9723 = sand.u32 %s200, 1
        %s9724 = smul.addr %s9723, 128
        %s9725 = scalar_lea.vmem [#allocation3], %s9724
        // Predicated region
        $region49: #{tpu_custom_call.1} parent=47 // pred_check
          %p9726 = pneg %p210
        $region50: #{tpu_custom_call.1} parent=47 // pred_check_branch
          %9728 = sbr.rel (%p9726) target = $region52
        $region51: #{tpu_custom_call.1} parent=47 // pred_region
          %s9729 = smul.u32 16, %s26
          %s9731 = ssub.s32 2048, 2048
          %9732 = vsyncadd %s9722, %s9731
          %s9733 = smul.addr %s9729, 2
          %s9734 = smul.addr %s25, 32
          %s9735 = sadd.s32 %s9733, %s9734
          %s9736 = smul.addr %s9735, 64
          %s9737 = scalar_lea.hbm %s7, %s9736
          %s9738 = sshll.u32 %s9725, 4
          %s9739 = int_to_ptr.vmem [resolvable:$true] %s9738
          %9744 = dma.vmem_to_hbm [thread:$0]  %s9739, 2048, %s9737, %s9722, 64, 64, 4
        $region52: #{tpu_custom_call.1} parent=47 // pred_fallthru
          _
      $region48: #{tpu_custom_call.1} parent=5 // pred_fallthru
        _
      %p9745 = scmp.le.s32.totalorder 2, %s16
      // Predicated region
      $region53: #{tpu_custom_call.1} parent=5 // pred_check
        %p9746 = pneg %p9745
      $region54: #{tpu_custom_call.1} parent=5 // pred_check_branch
        %9748 = sbr.rel (%p9746) target = $region56
      $region55: #{tpu_custom_call.1} parent=5 // pred_region
        %s9749 = ssub.s32 %s16, 2
        // Predicated region
        $region57: #{tpu_custom_call.1} parent=55 // pred_check
          %p9750 = pneg %p216
        $region58: #{tpu_custom_call.1} parent=55 // pred_check_branch
          %9752 = sbr.rel (%p9750) target = $region60
        $region59: #{tpu_custom_call.1} parent=55 // pred_region
          %s9753 = sand.u32 %s201, 1
          %s9754 = scalar_lea.sflag [#allocation4], %s9753
          %s9755 = sand.u32 %s201, 1
          %s9756 = smul.addr %s9755, 128
          %s9757 = scalar_lea.vmem [#allocation3], %s9756
          %9758 = dma.done %s9754, 2048
        $region60: #{tpu_custom_call.1} parent=55 // pred_fallthru
          _
      $region56: #{tpu_custom_call.1} parent=5 // pred_fallthru
        _
    $region6: #{tpu_custom_call.1} parent=1 // loop_footer
      %s20 = sadd.s32 1, %s16
    $region7: #{tpu_custom_call.1} parent=1 // loop_footer_branch
      %15 = sbr.rel target = $region3
    $region8: #{tpu_custom_call.1} parent=1 // loop_exit
      _
    %9759 = vsyncpa [#allocation4], 1
    %s9760 = scalar_lea.sflag [#allocation4], 1
    %9761 = vsyncpa %s9760, 1

</llo_original>
